<compile_context>
chip_gen: v6e
topology: v6e:2x2x1
jax: 0.10.0
libtpu: 0.0.40
codegen_flags: <defaults>
</compile_context>

<pallas_src>
import jax
import jax.numpy as jnp
from jax import lax
from jax.experimental import pallas as pl
from jax.experimental.pallas import tpu as pltpu

# ----- model hyper-parameters (small, consistent with the module) -----
HIDDEN = 32            # config.hidden_size
LSTM_HIDDEN = 16       # LSTM_HIDDEN
N_BOUNDARY_UNI = 4     # len(BOUNDARY_LABEL_UNIDIRECTION)
N_BOUNDARY = 7         # len(BOUNDARY_LABEL)
N_TYPE = 8             # len(LABEL_2_ID)
N_BIO = 9              # len(LABEL_BIO)


# ---------------------------------------------------------------------------
# small in-kernel math helpers
# ---------------------------------------------------------------------------
def _sigmoid(z):
    # exact form (true divide): avoids compounding approx-reciprocal error over
    # the serial recurrence (review correctness concern).
    return 1.0 / (1.0 + jnp.exp(-z))


def _log1p(x):
    # Kahan-corrected log1p(x) using only log/add/sub/div (accurate for tiny x)
    w = 1.0 + x
    return jnp.log(w) - ((w - 1.0) - x) / w


def _logsigmoid(z):
    return jnp.minimum(z, 0.0) - _log1p(jnp.exp(-jnp.abs(z)))


# ---------------------------------------------------------------------------
# Kernel 1: encoder recurrence — one bidirectional LSTM pair per grid step.
#   grid=(2,): g=0 -> boundary_encoder, g=1 -> type_lstm  ("parallel" => both
#   TensorCores on v7x).  Per pair: NH = 32 hidden lanes ([fwd 16 | bwd 16]),
#   128 gate lanes ordered [i | f | g | o] (fwd cols first inside each gate).
#   The input projection is done per step on the (otherwise idle) MXU:
#     gates = x[t] @ Wf + x[L-1-t] @ Wb + h @ Whh + bias
#   (Wf has the bwd gate columns zeroed, Wb the fwd ones).
#   Output (1, L, B, 32) is written in torch order: fwd hidden at row t (lanes
#   0:16), bwd hidden at row L-1-t (lanes 16:32)  => bh_tm / th_tm directly.
# ---------------------------------------------------------------------------
def _enc_kernel(x_ref, wf_ref, wb_ref, whh_ref, b_ref, out_ref):
    L, B, _ = x_ref.shape
    NH = whh_ref.shape[1]          # 32
    H = NH // 2                    # 16
    wf = wf_ref[0]
    wb = wb_ref[0]
    whh = whh_ref[0]
    bias = b_ref[0]                # (1, 4*NH)

    def step(t, carry):
        h, c = carry
        gates = (jnp.dot(x_ref[t], wf, preferred_element_type=jnp.float32)
                 + jnp.dot(x_ref[L - 1 - t], wb, preferred_element_type=jnp.float32)
                 + jnp.dot(h, whh, preferred_element_type=jnp.float32)
                 + bias)
        i = _sigmoid(gates[:, 0 * NH:1 * NH])
        f = _sigmoid(gates[:, 1 * NH:2 * NH])
        g = jnp.tanh(gates[:, 2 * NH:3 * NH])
        o = _sigmoid(gates[:, 3 * NH:4 * NH])
        c = f * c + i * g
        h = o * jnp.tanh(c)
        out_ref[0, t, :, 0:H] = h[:, 0:H]            # forward dir at t
        out_ref[0, L - 1 - t, :, H:NH] = h[:, H:NH]  # backward dir at L-1-t
        return h, c

    h0 = jnp.zeros((B, NH), jnp.float32)
    if L <= 64:
        # full trace-time unroll: static addressing + cross-step interleave
        carry = (h0, h0)
        for t in range(L):
            carry = step(t, carry)
    else:
        # partial unroll so the LLO scheduler can overlap off-critical-path work
        lax.fori_loop(0, L, step, (h0, h0), unroll=4)


def encoder_recurrence(x_tm, kp):
    L, B, Hd = x_tm.shape
    NH = 2 * LSTM_HIDDEN
    G = 4 * NH
    return pl.pallas_call(
        _enc_kernel,
        grid=(2,),
        in_specs=[
            pl.BlockSpec((L, B, Hd), lambda g: (0, 0, 0)),
            pl.BlockSpec((1, Hd, G), lambda g: (g, 0, 0)),
            pl.BlockSpec((1, Hd, G), lambda g: (g, 0, 0)),
            pl.BlockSpec((1, NH, G), lambda g: (g, 0, 0)),
            pl.BlockSpec((1, 1, G), lambda g: (g, 0, 0)),
        ],
        out_specs=pl.BlockSpec((1, L, B, NH), lambda g: (g, 0, 0, 0)),
        out_shape=jax.ShapeDtypeStruct((2, L, B, NH), jnp.float32),
        compiler_params=pltpu.CompilerParams(dimension_semantics=("parallel",)),
    )(x_tm, kp['enc_wf'], kp['enc_wb'], kp['enc_whh'], kp['enc_bias'])


# ---------------------------------------------------------------------------
# Kernel 2: boundary decoder recurrence with the trigram + input projection
#   folded in.  The frozen all-ones Conv1d(2H, 2H, 3, pad=1) output equals the
#   3-window sum of the per-token channel sum of bh broadcast over channels, so
#   the decoder gate input is  tri_t * colsum(W_ih) + b  (one lane-reduce + one
#   broadcast-mul per step — rides in idle VPU/XLU slots).
# ---------------------------------------------------------------------------
def _dec_kernel(bh_ref, wsum_ref, b_ref, whh_ref, out_ref):
    L, B, _ = bh_ref.shape
    H = whh_ref.shape[0]           # 16
    wsum = wsum_ref[...]           # (1, 4H)
    bias = b_ref[...]              # (1, 4H)
    whh = whh_ref[...]             # (H, 4H)

    def s_at(idx):                 # per-token channel sum of boundary_hidden
        return jnp.sum(bh_ref[idx], axis=-1, keepdims=True)   # (B, 1)

    def step(t, carry):
        h, c = carry
        if isinstance(t, int):     # unrolled path: static neighbours
            tri = s_at(t)
            if t > 0:
                tri = tri + s_at(t - 1)
            if t < L - 1:
                tri = tri + s_at(t + 1)
        else:                      # fori path: clamped + masked neighbours
            tri = s_at(t)
            tri = tri + jnp.where(t > 0, s_at(jnp.maximum(t - 1, 0)), 0.0)
            tri = tri + jnp.where(t < L - 1, s_at(jnp.minimum(t + 1, L - 1)), 0.0)
        gates = (tri * wsum + bias
                 + jnp.dot(h, whh, preferred_element_type=jnp.float32))
        i = _sigmoid(gates[:, 0 * H:1 * H])
        f = _sigmoid(gates[:, 1 * H:2 * H])
        g = jnp.tanh(gates[:, 2 * H:3 * H])
        o = _sigmoid(gates[:, 3 * H:4 * H])
        c = f * c + i * g
        h = o * jnp.tanh(c)
        out_ref[t] = h
        return h, c

    h0 = jnp.zeros((B, H), jnp.float32)
    if L <= 64:
        carry = (h0, h0)
        for t in range(L):
            carry = step(t, carry)
    else:
        lax.fori_loop(0, L, step, (h0, h0), unroll=4)


def decoder_recurrence(bh_tm, kp):
    L, B, _ = bh_tm.shape
    return pl.pallas_call(
        _dec_kernel,
        out_shape=jax.ShapeDtypeStruct((L, B, LSTM_HIDDEN), jnp.float32),
    )(bh_tm, kp['dec_wsum'], kp['dec_b'], kp['dec_whh'])


# ---------------------------------------------------------------------------
# Kernel 3: BoundaryBiaffine in augmented form.
#   out[b, o, i, j] = [x1 , 1] @ W_aug[o] @ [x2 ; 1]
#   with W_aug[o] (D1+1, D2+1) holding the (torch-view-faithful) bilinear weight,
#   the U column, the V row and the summed biases.  Inputs:
#     x1a  : (B, L1, D1+1)   (seg_result with a ones column appended)
#     x2ta : (B, D2+1, L2)   (boundary_hidden pre-transposed, ones row appended)
#   Output is lane-dense (B, O, L1, L2): each per-o store is a full (TL1, TL2) tile.
# ---------------------------------------------------------------------------
def _biaffine_kernel(x1_ref, x2t_ref, w_ref, out_ref):
    x1 = x1_ref[0]                 # (TL1, D1+1)
    x2t = x2t_ref[0]               # (D2+1, TL2)
    O = w_ref.shape[0]
    for o in range(O):             # static unroll, O = 4
        t_o = jnp.dot(x1, w_ref[o], preferred_element_type=jnp.float32)   # (TL1, D2+1)
        out_ref[0, o, :, :] = jnp.dot(t_o, x2t, preferred_element_type=jnp.float32)


def boundary_biaffine(x1a, x2ta, w_aug):
    B, L1, D1A = x1a.shape
    _, D2A, L2 = x2ta.shape
    O = w_aug.shape[0]
    # tile caps keep the double-buffered output block <= ~2 MB (fits the v7x
    # 32 MiB default scoped VMEM with lots of headroom; no vmem_limit override needed)
    TL1 = L1 if L1 <= 128 else 128
    TL2 = L2 if L2 <= 512 else 512
    return pl.pallas_call(
        _biaffine_kernel,
        grid=(B, pl.cdiv(L1, TL1), pl.cdiv(L2, TL2)),
        in_specs=[
            pl.BlockSpec((1, TL1, D1A), lambda b, i, j: (b, i, 0)),
            pl.BlockSpec((1, D2A, TL2), lambda b, i, j: (b, 0, j)),
            pl.BlockSpec((O, D1A, D2A), lambda b, i, j: (0, 0, 0)),
        ],
        out_specs=pl.BlockSpec((1, O, TL1, TL2), lambda b, i, j: (b, 0, i, j)),
        out_shape=jax.ShapeDtypeStruct((B, O, L1, L2), jnp.float32),
        compiler_params=pltpu.CompilerParams(
            dimension_semantics=("parallel", "parallel", "parallel")),
    )(x1a, x2ta, w_aug)


# ---------------------------------------------------------------------------
# Kernel 4: fused per-token head with a single packed (N, 24) output
#   columns [ner(9) | boundary_fc(7) | type_fc(8)]  — one lane-dense store,
#   split into the three logits outside.  The 112-wide ner concat never exists
#   (sum of partial matmuls).  The dead seg_final0/seg_final1 gate is skipped.
# ---------------------------------------------------------------------------
def _head_kernel(so_ref, bh_ref, th_ref, sr_ref,
                 w0_ref, b0_ref, wb1_ref, wt1_ref,
                 wpso_ref, wpbr_ref, wptr_ref, wpsr_ref,
                 wpbh_ref, wpth_ref, bp_ref, out_ref):
    so = so_ref[...]
    bh = bh_ref[...]
    th = th_ref[...]
    sr = sr_ref[...]
    C = bh.shape[-1]
    # one matmul covers boundary_final0 and type_final0 (both take sequence_output)
    zpre = jnp.dot(so, w0_ref[...], preferred_element_type=jnp.float32) + b0_ref[...]
    zb = zpre[:, :C] + jnp.dot(bh, wb1_ref[...], preferred_element_type=jnp.float32)
    zt = zpre[:, C:] + jnp.dot(th, wt1_ref[...], preferred_element_type=jnp.float32)
    br = _logsigmoid(zb) * bh                     # boundary_result
    tr = _logsigmoid(zt) * th                     # type_result
    out_ref[...] = (bp_ref[...]
                    + jnp.dot(so, wpso_ref[...], preferred_element_type=jnp.float32)
                    + jnp.dot(br, wpbr_ref[...], preferred_element_type=jnp.float32)
                    + jnp.dot(tr, wptr_ref[...], preferred_element_type=jnp.float32)
                    + jnp.dot(sr, wpsr_ref[...], preferred_element_type=jnp.float32)
                    + jnp.dot(bh, wpbh_ref[...], preferred_element_type=jnp.float32)
                    + jnp.dot(th, wpth_ref[...], preferred_element_type=jnp.float32))


def head(so, bh, th, sr, kp):
    N = so.shape[0]
    TR = N if N <= 512 else 512
    W = kp['hp_bias'].shape[1]     # 24

    def row_spec(width):
        return pl.BlockSpec((TR, width), lambda i: (i, 0))

    def full_spec(arr):
        nd = arr.ndim
        return pl.BlockSpec(arr.shape, lambda i, _nd=nd: (0,) * _nd)

    weights = (kp['head_w0'], kp['head_b0'], kp['head_wb1'], kp['head_wt1'],
               kp['hp_so'], kp['hp_br'], kp['hp_tr'], kp['hp_sr'],
               kp['hp_bh'], kp['hp_th'], kp['hp_bias'])
    in_specs = [row_spec(so.shape[1]), row_spec(bh.shape[1]),
                row_spec(th.shape[1]), row_spec(sr.shape[1])]
    in_specs += [full_spec(w) for w in weights]

    return pl.pallas_call(
        _head_kernel,
        grid=(pl.cdiv(N, TR),),
        in_specs=in_specs,
        out_specs=row_spec(W),
        out_shape=jax.ShapeDtypeStruct((N, W), jnp.float32),
        compiler_params=pltpu.CompilerParams(dimension_semantics=("parallel",)),
    )(so, bh, th, sr, *weights)


# ---------------------------------------------------------------------------
# Parameters: deterministic per-layer init (shapes per TModel.__init__) + packing
# into the fused-kernel layouts.
# ---------------------------------------------------------------------------
def init_params(key):
    def nrm(k, shape, scale=0.1):
        return scale * jax.random.normal(k, shape, jnp.float32)

    keys = iter(jax.random.split(key, 64))

    def lstm_p(din, h):
        return (nrm(next(keys), (din, 4 * h)),    # W_ih^T, gate order [i, f, g, o]
                nrm(next(keys), (h, 4 * h)),      # W_hh^T
                nrm(next(keys), (1, 4 * h)))      # b_ih + b_hh

    def lin_p(din, dout):
        return (nrm(next(keys), (din, dout)), nrm(next(keys), (1, dout)))

    Lh = LSTM_HIDDEN
    p = {}
    p['benc_f'] = lstm_p(HIDDEN, Lh)             # boundary_encoder (bidirectional)
    p['benc_b'] = lstm_p(HIDDEN, Lh)
    p['bdec'] = lstm_p(2 * Lh, Lh)               # boundary_decoder (unidirectional)
    p['type_f'] = lstm_p(HIDDEN, Lh)             # type_lstm (bidirectional)
    p['type_b'] = lstm_p(HIDDEN, Lh)
    p['bilin_w'] = nrm(next(keys), (Lh, 2 * Lh, N_BOUNDARY_UNI))
    p['bilin_b'] = nrm(next(keys), (1, N_BOUNDARY_UNI))
    p['U'] = lin_p(Lh, N_BOUNDARY_UNI)
    p['V'] = lin_p(2 * Lh, N_BOUNDARY_UNI)
    p['bf0'] = lin_p(HIDDEN, 2 * Lh)             # boundary_final0
    p['bf1'] = lin_p(2 * Lh, 2 * Lh)             # boundary_final1
    p['bfc'] = lin_p(2 * Lh, N_BOUNDARY)         # boundary_fc
    p['sf0'] = lin_p(HIDDEN, Lh)                 # seg_final0 (dead: torch overwrites it)
    p['sf1'] = lin_p(Lh, Lh)                     # seg_final1 (dead)
    p['tf0'] = lin_p(HIDDEN, 2 * Lh)             # type_final0
    p['tf1'] = lin_p(2 * Lh, 2 * Lh)             # type_final1
    p['tfc'] = lin_p(2 * Lh, N_TYPE)             # type_fc
    p['ner'] = lin_p(5 * Lh + HIDDEN, N_BIO)     # ner_final
    # get_trigram (frozen all-ones Conv1d) is folded analytically; no weight kept.
    return p


def pack_params(p):
    H = LSTM_HIDDEN                # 16
    NH = 2 * H                     # 32 hidden lanes per pair [fwd | bwd]
    G = 4 * NH                     # 128 gate lanes per pair
    kp = {}

    # ---- encoder: 2 bidirectional pairs (boundary, type), one per grid step ----
    pairs = [(p['benc_f'], p['benc_b']), (p['type_f'], p['type_b'])]
    wf = jnp.zeros((2, HIDDEN, G), jnp.float32)
    wb = jnp.zeros((2, HIDDEN, G), jnp.float32)
    whh = jnp.zeros((2, NH, G), jnp.float32)
    bias = jnp.zeros((2, 1, G), jnp.float32)
    for pi, ((wi_f, wh_f, b_f), (wi_b, wh_b, b_b)) in enumerate(pairs):
        for g in range(4):
            src = slice(g * H, (g + 1) * H)
            dst_f = slice(g * NH, g * NH + H)
            dst_b = slice(g * NH + H, (g + 1) * NH)
            wf = wf.at[pi, :, dst_f].set(wi_f[:, src])
            wb = wb.at[pi, :, dst_b].set(wi_b[:, src])
            whh = whh.at[pi, 0:H, dst_f].set(wh_f[:, src])
            whh = whh.at[pi, H:NH, dst_b].set(wh_b[:, src])
            bias = bias.at[pi, :, dst_f].set(b_f[:, src])
            bias = bias.at[pi, :, dst_b].set(b_b[:, src])
    kp['enc_wf'], kp['enc_wb'], kp['enc_whh'], kp['enc_bias'] = wf, wb, whh, bias

    # ---- boundary decoder: trigram folded -> input projection = tri * colsum(W_ih)+b
    wi, wh, bd = p['bdec']
    kp['dec_wsum'] = jnp.sum(wi, axis=0, keepdims=True)       # (1, 4H)
    kp['dec_whh'] = wh
    kp['dec_b'] = bd

    # ---- biaffine (augmented weight).  torch's PairwiseBilinear does
    #   weight.view(D1, D2*O) then re-views the column axis as (O, D2); that
    #   reinterpretation equals a plain row-major reshape of the raw buffer to
    #   (D1, O, D2) — used here, so it matches pretrained torch weights too.
    D1, D2, O = p['bilin_w'].shape
    w_eff = p['bilin_w'].reshape(D1, O, D2)                   # torch-faithful
    w_per_o = jnp.transpose(w_eff, (1, 0, 2))                 # (O, D1, D2)
    Uw, Ub = p['U']                                           # (D1, O), (1, O)
    Vw, Vb = p['V']                                           # (D2, O), (1, O)
    waug = jnp.zeros((O, D1 + 1, D2 + 1), jnp.float32)
    waug = waug.at[:, :D1, :D2].set(w_per_o)
    waug = waug.at[:, :D1, D2].set(Uw.T)
    waug = waug.at[:, D1, :D2].set(Vw.T)
    waug = waug.at[:, D1, D2].set(p['bilin_b'][0] + Ub[0] + Vb[0])
    kp['bi_waug'] = waug

    # ---- fused per-token head, packed 24-wide output [ner(9) | bfc(7) | tfc(8)]
    W24 = N_BIO + N_BOUNDARY + N_TYPE
    kp['head_w0'] = jnp.concatenate([p['bf0'][0], p['tf0'][0]], axis=1)   # (32, 64)
    kp['head_b0'] = jnp.concatenate([p['bf0'][1] + p['bf1'][1],
                                     p['tf0'][1] + p['tf1'][1]], axis=1)  # (1, 64)
    kp['head_wb1'] = p['bf1'][0]
    kp['head_wt1'] = p['tf1'][0]
    wner, bner = p['ner']                                     # (112, 9), (1, 9)

    def pack_cols(w, col0):
        out = jnp.zeros((w.shape[0], W24), jnp.float32)
        return out.at[:, col0:col0 + w.shape[1]].set(w)

    # ner_final concat order: [sequence_output, boundary_result, type_result, seg_result]
    kp['hp_so'] = pack_cols(wner[0:HIDDEN], 0)
    kp['hp_br'] = pack_cols(wner[HIDDEN:HIDDEN + NH], 0)
    kp['hp_tr'] = pack_cols(wner[HIDDEN + NH:HIDDEN + 2 * NH], 0)
    kp['hp_sr'] = pack_cols(wner[HIDDEN + 2 * NH:], 0)
    kp['hp_bh'] = pack_cols(p['bfc'][0], N_BIO)
    kp['hp_th'] = pack_cols(p['tfc'][0], N_BIO + N_BOUNDARY)
    kp['hp_bias'] = jnp.concatenate([bner, p['bfc'][1], p['tfc'][1]], axis=1)
    return kp


# ---------------------------------------------------------------------------
# Full forward (non-BASELINE branch)
# ---------------------------------------------------------------------------
def tmodel_forward(kp, sequence_output, *, seg_matrix_torch_layout=True):
    B, L, Hd = sequence_output.shape
    H = LSTM_HIDDEN

    # time-major view for the recurrences (tiny relayout)
    x_tm = jnp.transpose(sequence_output, (1, 0, 2))                       # (L, B, 32)

    # encoder: boundary pair + type pair in one gridded recurrence kernel
    enc_out = encoder_recurrence(x_tm, kp)                                 # (2, L, B, 32)
    bh_tm = enc_out[0]                                                     # boundary_hidden
    th_tm = enc_out[1]                                                     # type_hidden
    # dropout == identity (eval mode)

    # boundary decoder (trigram + input projection folded inside the kernel)
    sr_tm = decoder_recurrence(bh_tm, kp)                                  # (L, B, 16)

    # biaffine inputs: ones-augmented seg_result and pre-transposed boundary_hidden
    x1a = jnp.concatenate([jnp.transpose(sr_tm, (1, 0, 2)),
                           jnp.ones((B, L, 1), jnp.float32)], axis=2)      # (B, L, 17)
    x2ta = jnp.concatenate([jnp.transpose(bh_tm, (1, 2, 0)),
                            jnp.ones((B, 1, L), jnp.float32)], axis=1)     # (B, 33, L)
    seg_oll = boundary_biaffine(x1a, x2ta, kp['bi_waug'])                  # (B, O, L, L)
    if seg_matrix_torch_layout:
        # torch layout (B, L1, L2, O).  For Longformer-scale L, set
        # seg_matrix_torch_layout=False and consume the lane-dense (B, O, L1, L2)
        # layout directly to avoid an extra HBM round trip of the only L^2 tensor.
        seg_matrix = jnp.transpose(seg_oll, (0, 2, 3, 1))
    else:
        seg_matrix = seg_oll

    # fused per-token head (time-major rows; seg_final0/seg_final1 gate is dead)
    so2 = x_tm.reshape(L * B, Hd)
    bh2 = bh_tm.reshape(L * B, 2 * H)
    th2 = th_tm.reshape(L * B, 2 * H)
    sr2 = sr_tm.reshape(L * B, H)
    packed = head(so2, bh2, th2, sr2, kp)                                  # (L*B, 24)
    packed = jnp.transpose(packed.reshape(L, B, -1), (1, 0, 2))            # (B, L, 24)
    ner_result = packed[..., 0:N_BIO]
    boundary_logits = packed[..., N_BIO:N_BIO + N_BOUNDARY]
    type_logits = packed[..., N_BIO + N_BOUNDARY:]

    return ner_result, boundary_logits, type_logits, seg_matrix


if __name__ == "__main__":
    key = jax.random.PRNGKey(0)
    kparam, kx = jax.random.split(key)
    params = pack_params(init_params(kparam))

    B, L = 2, 8
    sequence_output = jax.random.normal(kx, (B, L, HIDDEN), jnp.float32)

    outs = jax.jit(tmodel_forward)(params, sequence_output)
    outs = jax.block_until_ready(outs)

    assert outs[0].shape == (B, L, N_BIO)
    assert outs[1].shape == (B, L, N_BOUNDARY)
    assert outs[2].shape == (B, L, N_TYPE)
    assert outs[3].shape == (B, L, L, N_BOUNDARY_UNI)
    assert all(bool(jnp.all(jnp.isfinite(o))) for o in outs)
    print("KERNEL_OK")
</pallas_src>

<mosaic_0001>
module attributes {stable_mosaic.version = 11 : i64} {
  func.func @_enc_kernel(%arg0: i32, %arg1: memref<8x2x32xf32, #tpu.memory_space<vmem>>, %arg2: memref<1x32x128xf32, #tpu.memory_space<vmem>>, %arg3: memref<1x32x128xf32, #tpu.memory_space<vmem>>, %arg4: memref<1x32x128xf32, #tpu.memory_space<vmem>>, %arg5: memref<1x1x128xf32, #tpu.memory_space<vmem>>, %arg6: memref<1x8x2x32xf32, #tpu.memory_space<vmem>>) attributes {dimension_semantics = [#tpu.dimension_semantics<parallel>], iteration_bounds = array<i64: 2>, scalar_prefetch = 0 : i64, scratch_operands = 0 : i64, tpu.core_type = #tpu.core_type<tc>, window_params = [{pipeline_mode = #tpu.pipeline_mode<synchronous>, transform_indices = @transform_0, window_bounds = array<i64: 8, 2, 32>}, {transform_indices = @transform_1, window_bounds = array<i64: 1, 32, 128>}, {transform_indices = @transform_2, window_bounds = array<i64: 1, 32, 128>}, {transform_indices = @transform_3, window_bounds = array<i64: 1, 32, 128>}, {transform_indices = @transform_4, window_bounds = array<i64: 1, 1, 128>}, {transform_indices = @transform_5, window_bounds = array<i64: 1, 8, 2, 32>}]} {
    %c0 = arith.constant 0 : index
    %c0_0 = arith.constant 0 : index
    %c0_1 = arith.constant 0 : index
    %0 = vector.load %arg2[%c0, %c0_0, %c0_1] : memref<1x32x128xf32, #tpu.memory_space<vmem>>, vector<1x32x128xf32>
    %1 = vector.shape_cast %0 : vector<1x32x128xf32> to vector<32x128xf32>
    %c0_2 = arith.constant 0 : index
    %c0_3 = arith.constant 0 : index
    %c0_4 = arith.constant 0 : index
    %2 = vector.load %arg3[%c0_2, %c0_3, %c0_4] : memref<1x32x128xf32, #tpu.memory_space<vmem>>, vector<1x32x128xf32>
    %3 = vector.shape_cast %2 : vector<1x32x128xf32> to vector<32x128xf32>
    %c0_5 = arith.constant 0 : index
    %c0_6 = arith.constant 0 : index
    %c0_7 = arith.constant 0 : index
    %4 = vector.load %arg4[%c0_5, %c0_6, %c0_7] : memref<1x32x128xf32, #tpu.memory_space<vmem>>, vector<1x32x128xf32>
    %5 = vector.shape_cast %4 : vector<1x32x128xf32> to vector<32x128xf32>
    %c0_8 = arith.constant 0 : index
    %c0_9 = arith.constant 0 : index
    %c0_10 = arith.constant 0 : index
    %6 = vector.load %arg5[%c0_8, %c0_9, %c0_10] : memref<1x1x128xf32, #tpu.memory_space<vmem>>, vector<1x1x128xf32>
    %7 = vector.shape_cast %6 : vector<1x1x128xf32> to vector<1x128xf32>
    %cst = arith.constant 0.000000e+00 : f32
    %8 = vector.broadcast %cst : f32 to vector<2x32xf32>
    %c0_11 = arith.constant 0 : index
    %c0_12 = arith.constant 0 : index
    %c0_13 = arith.constant 0 : index
    %9 = vector.load %arg1[%c0_11, %c0_12, %c0_13] : memref<8x2x32xf32, #tpu.memory_space<vmem>>, vector<1x2x32xf32>
    %10 = vector.shape_cast %9 : vector<1x2x32xf32> to vector<2x32xf32>
    %cst_14 = arith.constant dense<0.000000e+00> : vector<2x128xf32>
    %11 = tpu.matmul %10, %1, %cst_14 {dimension_numbers = #tpu.dot_dimension_numbers<[1], [0], [0], [1], [0, 0, 1, 1], [], []>} : vector<2x32xf32>, vector<32x128xf32>, vector<2x128xf32> -> vector<2x128xf32>
    %c7 = arith.constant 7 : index
    %c0_15 = arith.constant 0 : index
    %c0_16 = arith.constant 0 : index
    %12 = vector.load %arg1[%c7, %c0_15, %c0_16] : memref<8x2x32xf32, #tpu.memory_space<vmem>>, vector<1x2x32xf32>
    %13 = vector.shape_cast %12 : vector<1x2x32xf32> to vector<2x32xf32>
    %cst_17 = arith.constant dense<0.000000e+00> : vector<2x128xf32>
    %14 = tpu.matmul %13, %3, %cst_17 {dimension_numbers = #tpu.dot_dimension_numbers<[1], [0], [0], [1], [0, 0, 1, 1], [], []>} : vector<2x32xf32>, vector<32x128xf32>, vector<2x128xf32> -> vector<2x128xf32>
    %15 = arith.addf %11, %14 : vector<2x128xf32>
    %cst_18 = arith.constant dense<0.000000e+00> : vector<2x128xf32>
    %16 = tpu.matmul %8, %5, %cst_18 {dimension_numbers = #tpu.dot_dimension_numbers<[1], [0], [0], [1], [0, 0, 1, 1], [], []>} : vector<2x32xf32>, vector<32x128xf32>, vector<2x128xf32> -> vector<2x128xf32>
    %17 = arith.addf %15, %16 : vector<2x128xf32>
    %18 = vector.broadcast %7 : vector<1x128xf32> to vector<2x128xf32>
    %19 = arith.addf %17, %18 : vector<2x128xf32>
    %20 = vector.extract_strided_slice %19 {offsets = [0, 0], sizes = [2, 32], strides = [1, 1]} : vector<2x128xf32> to vector<2x32xf32>
    %cst_19 = arith.constant 0.000000e+00 : f32
    %21 = vector.broadcast %cst_19 : f32 to vector<2x32xf32>
    %22 = arith.subf %21, %20 : vector<2x32xf32>
    %23 = math.exp %22 : vector<2x32xf32>
    %cst_20 = arith.constant 1.000000e+00 : f32
    %24 = vector.broadcast %cst_20 : f32 to vector<2x32xf32>
    %25 = arith.addf %24, %23 : vector<2x32xf32>
    %cst_21 = arith.constant 1.000000e+00 : f32
    %26 = vector.broadcast %cst_21 : f32 to vector<2x32xf32>
    %27 = arith.divf %26, %25 : vector<2x32xf32>
    %28 = vector.extract_strided_slice %19 {offsets = [0, 32], sizes = [2, 32], strides = [1, 1]} : vector<2x128xf32> to vector<2x32xf32>
    %cst_22 = arith.constant 0.000000e+00 : f32
    %29 = vector.broadcast %cst_22 : f32 to vector<2x32xf32>
    %30 = arith.subf %29, %28 : vector<2x32xf32>
    %31 = math.exp %30 : vector<2x32xf32>
    %cst_23 = arith.constant 1.000000e+00 : f32
    %32 = vector.broadcast %cst_23 : f32 to vector<2x32xf32>
    %33 = arith.addf %32, %31 : vector<2x32xf32>
    %cst_24 = arith.constant 1.000000e+00 : f32
    %34 = vector.broadcast %cst_24 : f32 to vector<2x32xf32>
    %35 = arith.divf %34, %33 : vector<2x32xf32>
    %36 = vector.extract_strided_slice %19 {offsets = [0, 64], sizes = [2, 32], strides = [1, 1]} : vector<2x128xf32> to vector<2x32xf32>
    %37 = math.tanh %36 : vector<2x32xf32>
    %38 = vector.extract_strided_slice %19 {offsets = [0, 96], sizes = [2, 32], strides = [1, 1]} : vector<2x128xf32> to vector<2x32xf32>
    %cst_25 = arith.constant 0.000000e+00 : f32
    %39 = vector.broadcast %cst_25 : f32 to vector<2x32xf32>
    %40 = arith.subf %39, %38 : vector<2x32xf32>
    %41 = math.exp %40 : vector<2x32xf32>
    %cst_26 = arith.constant 1.000000e+00 : f32
    %42 = vector.broadcast %cst_26 : f32 to vector<2x32xf32>
    %43 = arith.addf %42, %41 : vector<2x32xf32>
    %cst_27 = arith.constant 1.000000e+00 : f32
    %44 = vector.broadcast %cst_27 : f32 to vector<2x32xf32>
    %45 = arith.divf %44, %43 : vector<2x32xf32>
    %46 = arith.mulf %35, %8 : vector<2x32xf32>
    %47 = arith.mulf %27, %37 : vector<2x32xf32>
    %48 = arith.addf %46, %47 : vector<2x32xf32>
    %49 = math.tanh %48 : vector<2x32xf32>
    %50 = arith.mulf %45, %49 : vector<2x32xf32>
    %51 = vector.extract_strided_slice %50 {offsets = [0, 0], sizes = [2, 16], strides = [1, 1]} : vector<2x32xf32> to vector<2x16xf32>
    %c0_28 = arith.constant 0 : index
    %c0_29 = arith.constant 0 : index
    %c0_30 = arith.constant 0 : index
    %c0_31 = arith.constant 0 : index
    %52 = vector.load %arg6[%c0_28, %c0_29, %c0_30, %c0_31] : memref<1x8x2x32xf32, #tpu.memory_space<vmem>>, vector<1x1x2x16xf32>
    %53 = vector.shape_cast %52 : vector<1x1x2x16xf32> to vector<2x16xf32>
    %54 = vector.shape_cast %51 : vector<2x16xf32> to vector<1x1x2x16xf32>
    tpu.vector_store %arg6[%c0_28, %c0_29, %c0_30, %c0_31], %54 {strides = array<i32>} : memref<1x8x2x32xf32, #tpu.memory_space<vmem>>, vector<1x1x2x16xf32>,
    %55 = vector.extract_strided_slice %50 {offsets = [0, 16], sizes = [2, 16], strides = [1, 1]} : vector<2x32xf32> to vector<2x16xf32>
    %c0_32 = arith.constant 0 : index
    %c7_33 = arith.constant 7 : index
    %c0_34 = arith.constant 0 : index
    %c16 = arith.constant 16 : index
    %56 = vector.load %arg6[%c0_32, %c7_33, %c0_34, %c16] : memref<1x8x2x32xf32, #tpu.memory_space<vmem>>, vector<1x1x2x16xf32>
    %57 = vector.shape_cast %56 : vector<1x1x2x16xf32> to vector<2x16xf32>
    %58 = vector.shape_cast %55 : vector<2x16xf32> to vector<1x1x2x16xf32>
    tpu.vector_store %arg6[%c0_32, %c7_33, %c0_34, %c16], %58 {strides = array<i32>} : memref<1x8x2x32xf32, #tpu.memory_space<vmem>>, vector<1x1x2x16xf32>,
    %c1 = arith.constant 1 : index
    %c0_35 = arith.constant 0 : index
    %c0_36 = arith.constant 0 : index
    %59 = vector.load %arg1[%c1, %c0_35, %c0_36] : memref<8x2x32xf32, #tpu.memory_space<vmem>>, vector<1x2x32xf32>
    %60 = vector.shape_cast %59 : vector<1x2x32xf32> to vector<2x32xf32>
    %cst_37 = arith.constant dense<0.000000e+00> : vector<2x128xf32>
    %61 = tpu.matmul %60, %1, %cst_37 {dimension_numbers = #tpu.dot_dimension_numbers<[1], [0], [0], [1], [0, 0, 1, 1], [], []>} : vector<2x32xf32>, vector<32x128xf32>, vector<2x128xf32> -> vector<2x128xf32>
    %c6 = arith.constant 6 : index
    %c0_38 = arith.constant 0 : index
    %c0_39 = arith.constant 0 : index
    %62 = vector.load %arg1[%c6, %c0_38, %c0_39] : memref<8x2x32xf32, #tpu.memory_space<vmem>>, vector<1x2x32xf32>
    %63 = vector.shape_cast %62 : vector<1x2x32xf32> to vector<2x32xf32>
    %cst_40 = arith.constant dense<0.000000e+00> : vector<2x128xf32>
    %64 = tpu.matmul %63, %3, %cst_40 {dimension_numbers = #tpu.dot_dimension_numbers<[1], [0], [0], [1], [0, 0, 1, 1], [], []>} : vector<2x32xf32>, vector<32x128xf32>, vector<2x128xf32> -> vector<2x128xf32>
    %65 = arith.addf %61, %64 : vector<2x128xf32>
    %cst_41 = arith.constant dense<0.000000e+00> : vector<2x128xf32>
    %66 = tpu.matmul %50, %5, %cst_41 {dimension_numbers = #tpu.dot_dimension_numbers<[1], [0], [0], [1], [0, 0, 1, 1], [], []>} : vector<2x32xf32>, vector<32x128xf32>, vector<2x128xf32> -> vector<2x128xf32>
    %67 = arith.addf %65, %66 : vector<2x128xf32>
    %68 = vector.broadcast %7 : vector<1x128xf32> to vector<2x128xf32>
    %69 = arith.addf %67, %68 : vector<2x128xf32>
    %70 = vector.extract_strided_slice %69 {offsets = [0, 0], sizes = [2, 32], strides = [1, 1]} : vector<2x128xf32> to vector<2x32xf32>
    %cst_42 = arith.constant 0.000000e+00 : f32
    %71 = vector.broadcast %cst_42 : f32 to vector<2x32xf32>
    %72 = arith.subf %71, %70 : vector<2x32xf32>
    %73 = math.exp %72 : vector<2x32xf32>
    %cst_43 = arith.constant 1.000000e+00 : f32
    %74 = vector.broadcast %cst_43 : f32 to vector<2x32xf32>
    %75 = arith.addf %74, %73 : vector<2x32xf32>
    %cst_44 = arith.constant 1.000000e+00 : f32
    %76 = vector.broadcast %cst_44 : f32 to vector<2x32xf32>
    %77 = arith.divf %76, %75 : vector<2x32xf32>
    %78 = vector.extract_strided_slice %69 {offsets = [0, 32], sizes = [2, 32], strides = [1, 1]} : vector<2x128xf32> to vector<2x32xf32>
    %cst_45 = arith.constant 0.000000e+00 : f32
    %79 = vector.broadcast %cst_45 : f32 to vector<2x32xf32>
    %80 = arith.subf %79, %78 : vector<2x32xf32>
    %81 = math.exp %80 : vector<2x32xf32>
    %cst_46 = arith.constant 1.000000e+00 : f32
    %82 = vector.broadcast %cst_46 : f32 to vector<2x32xf32>
    %83 = arith.addf %82, %81 : vector<2x32xf32>
    %cst_47 = arith.constant 1.000000e+00 : f32
    %84 = vector.broadcast %cst_47 : f32 to vector<2x32xf32>
    %85 = arith.divf %84, %83 : vector<2x32xf32>
    %86 = vector.extract_strided_slice %69 {offsets = [0, 64], sizes = [2, 32], strides = [1, 1]} : vector<2x128xf32> to vector<2x32xf32>
    %87 = math.tanh %86 : vector<2x32xf32>
    %88 = vector.extract_strided_slice %69 {offsets = [0, 96], sizes = [2, 32], strides = [1, 1]} : vector<2x128xf32> to vector<2x32xf32>
    %cst_48 = arith.constant 0.000000e+00 : f32
    %89 = vector.broadcast %cst_48 : f32 to vector<2x32xf32>
    %90 = arith.subf %89, %88 : vector<2x32xf32>
    %91 = math.exp %90 : vector<2x32xf32>
    %cst_49 = arith.constant 1.000000e+00 : f32
    %92 = vector.broadcast %cst_49 : f32 to vector<2x32xf32>
    %93 = arith.addf %92, %91 : vector<2x32xf32>
    %cst_50 = arith.constant 1.000000e+00 : f32
    %94 = vector.broadcast %cst_50 : f32 to vector<2x32xf32>
    %95 = arith.divf %94, %93 : vector<2x32xf32>
    %96 = arith.mulf %85, %48 : vector<2x32xf32>
    %97 = arith.mulf %77, %87 : vector<2x32xf32>
    %98 = arith.addf %96, %97 : vector<2x32xf32>
    %99 = math.tanh %98 : vector<2x32xf32>
    %100 = arith.mulf %95, %99 : vector<2x32xf32>
    %101 = vector.extract_strided_slice %100 {offsets = [0, 0], sizes = [2, 16], strides = [1, 1]} : vector<2x32xf32> to vector<2x16xf32>
    %c0_51 = arith.constant 0 : index
    %c1_52 = arith.constant 1 : index
    %c0_53 = arith.constant 0 : index
    %c0_54 = arith.constant 0 : index
    %102 = vector.load %arg6[%c0_51, %c1_52, %c0_53, %c0_54] : memref<1x8x2x32xf32, #tpu.memory_space<vmem>>, vector<1x1x2x16xf32>
    %103 = vector.shape_cast %102 : vector<1x1x2x16xf32> to vector<2x16xf32>
    %104 = vector.shape_cast %101 : vector<2x16xf32> to vector<1x1x2x16xf32>
    tpu.vector_store %arg6[%c0_51, %c1_52, %c0_53, %c0_54], %104 {strides = array<i32>} : memref<1x8x2x32xf32, #tpu.memory_space<vmem>>, vector<1x1x2x16xf32>,
    %105 = vector.extract_strided_slice %100 {offsets = [0, 16], sizes = [2, 16], strides = [1, 1]} : vector<2x32xf32> to vector<2x16xf32>
    %c0_55 = arith.constant 0 : index
    %c6_56 = arith.constant 6 : index
    %c0_57 = arith.constant 0 : index
    %c16_58 = arith.constant 16 : index
    %106 = vector.load %arg6[%c0_55, %c6_56, %c0_57, %c16_58] : memref<1x8x2x32xf32, #tpu.memory_space<vmem>>, vector<1x1x2x16xf32>
    %107 = vector.shape_cast %106 : vector<1x1x2x16xf32> to vector<2x16xf32>
    %108 = vector.shape_cast %105 : vector<2x16xf32> to vector<1x1x2x16xf32>
    tpu.vector_store %arg6[%c0_55, %c6_56, %c0_57, %c16_58], %108 {strides = array<i32>} : memref<1x8x2x32xf32, #tpu.memory_space<vmem>>, vector<1x1x2x16xf32>,
    %c2 = arith.constant 2 : index
    %c0_59 = arith.constant 0 : index
    %c0_60 = arith.constant 0 : index
    %109 = vector.load %arg1[%c2, %c0_59, %c0_60] : memref<8x2x32xf32, #tpu.memory_space<vmem>>, vector<1x2x32xf32>
    %110 = vector.shape_cast %109 : vector<1x2x32xf32> to vector<2x32xf32>
    %cst_61 = arith.constant dense<0.000000e+00> : vector<2x128xf32>
    %111 = tpu.matmul %110, %1, %cst_61 {dimension_numbers = #tpu.dot_dimension_numbers<[1], [0], [0], [1], [0, 0, 1, 1], [], []>} : vector<2x32xf32>, vector<32x128xf32>, vector<2x128xf32> -> vector<2x128xf32>
    %c5 = arith.constant 5 : index
    %c0_62 = arith.constant 0 : index
    %c0_63 = arith.constant 0 : index
    %112 = vector.load %arg1[%c5, %c0_62, %c0_63] : memref<8x2x32xf32, #tpu.memory_space<vmem>>, vector<1x2x32xf32>
    %113 = vector.shape_cast %112 : vector<1x2x32xf32> to vector<2x32xf32>
    %cst_64 = arith.constant dense<0.000000e+00> : vector<2x128xf32>
    %114 = tpu.matmul %113, %3, %cst_64 {dimension_numbers = #tpu.dot_dimension_numbers<[1], [0], [0], [1], [0, 0, 1, 1], [], []>} : vector<2x32xf32>, vector<32x128xf32>, vector<2x128xf32> -> vector<2x128xf32>
    %115 = arith.addf %111, %114 : vector<2x128xf32>
    %cst_65 = arith.constant dense<0.000000e+00> : vector<2x128xf32>
    %116 = tpu.matmul %100, %5, %cst_65 {dimension_numbers = #tpu.dot_dimension_numbers<[1], [0], [0], [1], [0, 0, 1, 1], [], []>} : vector<2x32xf32>, vector<32x128xf32>, vector<2x128xf32> -> vector<2x128xf32>
    %117 = arith.addf %115, %116 : vector<2x128xf32>
    %118 = vector.broadcast %7 : vector<1x128xf32> to vector<2x128xf32>
    %119 = arith.addf %117, %118 : vector<2x128xf32>
    %120 = vector.extract_strided_slice %119 {offsets = [0, 0], sizes = [2, 32], strides = [1, 1]} : vector<2x128xf32> to vector<2x32xf32>
    %cst_66 = arith.constant 0.000000e+00 : f32
    %121 = vector.broadcast %cst_66 : f32 to vector<2x32xf32>
    %122 = arith.subf %121, %120 : vector<2x32xf32>
    %123 = math.exp %122 : vector<2x32xf32>
    %cst_67 = arith.constant 1.000000e+00 : f32
    %124 = vector.broadcast %cst_67 : f32 to vector<2x32xf32>
    %125 = arith.addf %124, %123 : vector<2x32xf32>
    %cst_68 = arith.constant 1.000000e+00 : f32
    %126 = vector.broadcast %cst_68 : f32 to vector<2x32xf32>
    %127 = arith.divf %126, %125 : vector<2x32xf32>
    %128 = vector.extract_strided_slice %119 {offsets = [0, 32], sizes = [2, 32], strides = [1, 1]} : vector<2x128xf32> to vector<2x32xf32>
    %cst_69 = arith.constant 0.000000e+00 : f32
    %129 = vector.broadcast %cst_69 : f32 to vector<2x32xf32>
    %130 = arith.subf %129, %128 : vector<2x32xf32>
    %131 = math.exp %130 : vector<2x32xf32>
    %cst_70 = arith.constant 1.000000e+00 : f32
    %132 = vector.broadcast %cst_70 : f32 to vector<2x32xf32>
    %133 = arith.addf %132, %131 : vector<2x32xf32>
    %cst_71 = arith.constant 1.000000e+00 : f32
    %134 = vector.broadcast %cst_71 : f32 to vector<2x32xf32>
    %135 = arith.divf %134, %133 : vector<2x32xf32>
    %136 = vector.extract_strided_slice %119 {offsets = [0, 64], sizes = [2, 32], strides = [1, 1]} : vector<2x128xf32> to vector<2x32xf32>
    %137 = math.tanh %136 : vector<2x32xf32>
    %138 = vector.extract_strided_slice %119 {offsets = [0, 96], sizes = [2, 32], strides = [1, 1]} : vector<2x128xf32> to vector<2x32xf32>
    %cst_72 = arith.constant 0.000000e+00 : f32
    %139 = vector.broadcast %cst_72 : f32 to vector<2x32xf32>
    %140 = arith.subf %139, %138 : vector<2x32xf32>
    %141 = math.exp %140 : vector<2x32xf32>
    %cst_73 = arith.constant 1.000000e+00 : f32
    %142 = vector.broadcast %cst_73 : f32 to vector<2x32xf32>
    %143 = arith.addf %142, %141 : vector<2x32xf32>
    %cst_74 = arith.constant 1.000000e+00 : f32
    %144 = vector.broadcast %cst_74 : f32 to vector<2x32xf32>
    %145 = arith.divf %144, %143 : vector<2x32xf32>
    %146 = arith.mulf %135, %98 : vector<2x32xf32>
    %147 = arith.mulf %127, %137 : vector<2x32xf32>
    %148 = arith.addf %146, %147 : vector<2x32xf32>
    %149 = math.tanh %148 : vector<2x32xf32>
    %150 = arith.mulf %145, %149 : vector<2x32xf32>
    %151 = vector.extract_strided_slice %150 {offsets = [0, 0], sizes = [2, 16], strides = [1, 1]} : vector<2x32xf32> to vector<2x16xf32>
    %c0_75 = arith.constant 0 : index
    %c2_76 = arith.constant 2 : index
    %c0_77 = arith.constant 0 : index
    %c0_78 = arith.constant 0 : index
    %152 = vector.load %arg6[%c0_75, %c2_76, %c0_77, %c0_78] : memref<1x8x2x32xf32, #tpu.memory_space<vmem>>, vector<1x1x2x16xf32>
    %153 = vector.shape_cast %152 : vector<1x1x2x16xf32> to vector<2x16xf32>
    %154 = vector.shape_cast %151 : vector<2x16xf32> to vector<1x1x2x16xf32>
    tpu.vector_store %arg6[%c0_75, %c2_76, %c0_77, %c0_78], %154 {strides = array<i32>} : memref<1x8x2x32xf32, #tpu.memory_space<vmem>>, vector<1x1x2x16xf32>,
    %155 = vector.extract_strided_slice %150 {offsets = [0, 16], sizes = [2, 16], strides = [1, 1]} : vector<2x32xf32> to vector<2x16xf32>
    %c0_79 = arith.constant 0 : index
    %c5_80 = arith.constant 5 : index
    %c0_81 = arith.constant 0 : index
    %c16_82 = arith.constant 16 : index
    %156 = vector.load %arg6[%c0_79, %c5_80, %c0_81, %c16_82] : memref<1x8x2x32xf32, #tpu.memory_space<vmem>>, vector<1x1x2x16xf32>
    %157 = vector.shape_cast %156 : vector<1x1x2x16xf32> to vector<2x16xf32>
    %158 = vector.shape_cast %155 : vector<2x16xf32> to vector<1x1x2x16xf32>
    tpu.vector_store %arg6[%c0_79, %c5_80, %c0_81, %c16_82], %158 {strides = array<i32>} : memref<1x8x2x32xf32, #tpu.memory_space<vmem>>, vector<1x1x2x16xf32>,
    %c3 = arith.constant 3 : index
    %c0_83 = arith.constant 0 : index
    %c0_84 = arith.constant 0 : index
    %159 = vector.load %arg1[%c3, %c0_83, %c0_84] : memref<8x2x32xf32, #tpu.memory_space<vmem>>, vector<1x2x32xf32>
    %160 = vector.shape_cast %159 : vector<1x2x32xf32> to vector<2x32xf32>
    %cst_85 = arith.constant dense<0.000000e+00> : vector<2x128xf32>
    %161 = tpu.matmul %160, %1, %cst_85 {dimension_numbers = #tpu.dot_dimension_numbers<[1], [0], [0], [1], [0, 0, 1, 1], [], []>} : vector<2x32xf32>, vector<32x128xf32>, vector<2x128xf32> -> vector<2x128xf32>
    %c4 = arith.constant 4 : index
    %c0_86 = arith.constant 0 : index
    %c0_87 = arith.constant 0 : index
    %162 = vector.load %arg1[%c4, %c0_86, %c0_87] : memref<8x2x32xf32, #tpu.memory_space<vmem>>, vector<1x2x32xf32>
    %163 = vector.shape_cast %162 : vector<1x2x32xf32> to vector<2x32xf32>
    %cst_88 = arith.constant dense<0.000000e+00> : vector<2x128xf32>
    %164 = tpu.matmul %163, %3, %cst_88 {dimension_numbers = #tpu.dot_dimension_numbers<[1], [0], [0], [1], [0, 0, 1, 1], [], []>} : vector<2x32xf32>, vector<32x128xf32>, vector<2x128xf32> -> vector<2x128xf32>
    %165 = arith.addf %161, %164 : vector<2x128xf32>
    %cst_89 = arith.constant dense<0.000000e+00> : vector<2x128xf32>
    %166 = tpu.matmul %150, %5, %cst_89 {dimension_numbers = #tpu.dot_dimension_numbers<[1], [0], [0], [1], [0, 0, 1, 1], [], []>} : vector<2x32xf32>, vector<32x128xf32>, vector<2x128xf32> -> vector<2x128xf32>
    %167 = arith.addf %165, %166 : vector<2x128xf32>
    %168 = vector.broadcast %7 : vector<1x128xf32> to vector<2x128xf32>
    %169 = arith.addf %167, %168 : vector<2x128xf32>
    %170 = vector.extract_strided_slice %169 {offsets = [0, 0], sizes = [2, 32], strides = [1, 1]} : vector<2x128xf32> to vector<2x32xf32>
    %cst_90 = arith.constant 0.000000e+00 : f32
    %171 = vector.broadcast %cst_90 : f32 to vector<2x32xf32>
    %172 = arith.subf %171, %170 : vector<2x32xf32>
    %173 = math.exp %172 : vector<2x32xf32>
    %cst_91 = arith.constant 1.000000e+00 : f32
    %174 = vector.broadcast %cst_91 : f32 to vector<2x32xf32>
    %175 = arith.addf %174, %173 : vector<2x32xf32>
    %cst_92 = arith.constant 1.000000e+00 : f32
    %176 = vector.broadcast %cst_92 : f32 to vector<2x32xf32>
    %177 = arith.divf %176, %175 : vector<2x32xf32>
    %178 = vector.extract_strided_slice %169 {offsets = [0, 32], sizes = [2, 32], strides = [1, 1]} : vector<2x128xf32> to vector<2x32xf32>
    %cst_93 = arith.constant 0.000000e+00 : f32
    %179 = vector.broadcast %cst_93 : f32 to vector<2x32xf32>
    %180 = arith.subf %179, %178 : vector<2x32xf32>
    %181 = math.exp %180 : vector<2x32xf32>
    %cst_94 = arith.constant 1.000000e+00 : f32
    %182 = vector.broadcast %cst_94 : f32 to vector<2x32xf32>
    %183 = arith.addf %182, %181 : vector<2x32xf32>
    %cst_95 = arith.constant 1.000000e+00 : f32
    %184 = vector.broadcast %cst_95 : f32 to vector<2x32xf32>
    %185 = arith.divf %184, %183 : vector<2x32xf32>
    %186 = vector.extract_strided_slice %169 {offsets = [0, 64], sizes = [2, 32], strides = [1, 1]} : vector<2x128xf32> to vector<2x32xf32>
    %187 = math.tanh %186 : vector<2x32xf32>
    %188 = vector.extract_strided_slice %169 {offsets = [0, 96], sizes = [2, 32], strides = [1, 1]} : vector<2x128xf32> to vector<2x32xf32>
    %cst_96 = arith.constant 0.000000e+00 : f32
    %189 = vector.broadcast %cst_96 : f32 to vector<2x32xf32>
    %190 = arith.subf %189, %188 : vector<2x32xf32>
    %191 = math.exp %190 : vector<2x32xf32>
    %cst_97 = arith.constant 1.000000e+00 : f32
    %192 = vector.broadcast %cst_97 : f32 to vector<2x32xf32>
    %193 = arith.addf %192, %191 : vector<2x32xf32>
    %cst_98 = arith.constant 1.000000e+00 : f32
    %194 = vector.broadcast %cst_98 : f32 to vector<2x32xf32>
    %195 = arith.divf %194, %193 : vector<2x32xf32>
    %196 = arith.mulf %185, %148 : vector<2x32xf32>
    %197 = arith.mulf %177, %187 : vector<2x32xf32>
    %198 = arith.addf %196, %197 : vector<2x32xf32>
    %199 = math.tanh %198 : vector<2x32xf32>
    %200 = arith.mulf %195, %199 : vector<2x32xf32>
    %201 = vector.extract_strided_slice %200 {offsets = [0, 0], sizes = [2, 16], strides = [1, 1]} : vector<2x32xf32> to vector<2x16xf32>
    %c0_99 = arith.constant 0 : index
    %c3_100 = arith.constant 3 : index
    %c0_101 = arith.constant 0 : index
    %c0_102 = arith.constant 0 : index
    %202 = vector.load %arg6[%c0_99, %c3_100, %c0_101, %c0_102] : memref<1x8x2x32xf32, #tpu.memory_space<vmem>>, vector<1x1x2x16xf32>
    %203 = vector.shape_cast %202 : vector<1x1x2x16xf32> to vector<2x16xf32>
    %204 = vector.shape_cast %201 : vector<2x16xf32> to vector<1x1x2x16xf32>
    tpu.vector_store %arg6[%c0_99, %c3_100, %c0_101, %c0_102], %204 {strides = array<i32>} : memref<1x8x2x32xf32, #tpu.memory_space<vmem>>, vector<1x1x2x16xf32>,
    %205 = vector.extract_strided_slice %200 {offsets = [0, 16], sizes = [2, 16], strides = [1, 1]} : vector<2x32xf32> to vector<2x16xf32>
    %c0_103 = arith.constant 0 : index
    %c4_104 = arith.constant 4 : index
    %c0_105 = arith.constant 0 : index
    %c16_106 = arith.constant 16 : index
    %206 = vector.load %arg6[%c0_103, %c4_104, %c0_105, %c16_106] : memref<1x8x2x32xf32, #tpu.memory_space<vmem>>, vector<1x1x2x16xf32>
    %207 = vector.shape_cast %206 : vector<1x1x2x16xf32> to vector<2x16xf32>
    %208 = vector.shape_cast %205 : vector<2x16xf32> to vector<1x1x2x16xf32>
    tpu.vector_store %arg6[%c0_103, %c4_104, %c0_105, %c16_106], %208 {strides = array<i32>} : memref<1x8x2x32xf32, #tpu.memory_space<vmem>>, vector<1x1x2x16xf32>,
    %c4_107 = arith.constant 4 : index
    %c0_108 = arith.constant 0 : index
    %c0_109 = arith.constant 0 : index
    %209 = vector.load %arg1[%c4_107, %c0_108, %c0_109] : memref<8x2x32xf32, #tpu.memory_space<vmem>>, vector<1x2x32xf32>
    %210 = vector.shape_cast %209 : vector<1x2x32xf32> to vector<2x32xf32>
    %cst_110 = arith.constant dense<0.000000e+00> : vector<2x128xf32>
    %211 = tpu.matmul %210, %1, %cst_110 {dimension_numbers = #tpu.dot_dimension_numbers<[1], [0], [0], [1], [0, 0, 1, 1], [], []>} : vector<2x32xf32>, vector<32x128xf32>, vector<2x128xf32> -> vector<2x128xf32>
    %c3_111 = arith.constant 3 : index
    %c0_112 = arith.constant 0 : index
    %c0_113 = arith.constant 0 : index
    %212 = vector.load %arg1[%c3_111, %c0_112, %c0_113] : memref<8x2x32xf32, #tpu.memory_space<vmem>>, vector<1x2x32xf32>
    %213 = vector.shape_cast %212 : vector<1x2x32xf32> to vector<2x32xf32>
    %cst_114 = arith.constant dense<0.000000e+00> : vector<2x128xf32>
    %214 = tpu.matmul %213, %3, %cst_114 {dimension_numbers = #tpu.dot_dimension_numbers<[1], [0], [0], [1], [0, 0, 1, 1], [], []>} : vector<2x32xf32>, vector<32x128xf32>, vector<2x128xf32> -> vector<2x128xf32>
    %215 = arith.addf %211, %214 : vector<2x128xf32>
    %cst_115 = arith.constant dense<0.000000e+00> : vector<2x128xf32>
    %216 = tpu.matmul %200, %5, %cst_115 {dimension_numbers = #tpu.dot_dimension_numbers<[1], [0], [0], [1], [0, 0, 1, 1], [], []>} : vector<2x32xf32>, vector<32x128xf32>, vector<2x128xf32> -> vector<2x128xf32>
    %217 = arith.addf %215, %216 : vector<2x128xf32>
    %218 = vector.broadcast %7 : vector<1x128xf32> to vector<2x128xf32>
    %219 = arith.addf %217, %218 : vector<2x128xf32>
    %220 = vector.extract_strided_slice %219 {offsets = [0, 0], sizes = [2, 32], strides = [1, 1]} : vector<2x128xf32> to vector<2x32xf32>
    %cst_116 = arith.constant 0.000000e+00 : f32
    %221 = vector.broadcast %cst_116 : f32 to vector<2x32xf32>
    %222 = arith.subf %221, %220 : vector<2x32xf32>
    %223 = math.exp %222 : vector<2x32xf32>
    %cst_117 = arith.constant 1.000000e+00 : f32
    %224 = vector.broadcast %cst_117 : f32 to vector<2x32xf32>
    %225 = arith.addf %224, %223 : vector<2x32xf32>
    %cst_118 = arith.constant 1.000000e+00 : f32
    %226 = vector.broadcast %cst_118 : f32 to vector<2x32xf32>
    %227 = arith.divf %226, %225 : vector<2x32xf32>
    %228 = vector.extract_strided_slice %219 {offsets = [0, 32], sizes = [2, 32], strides = [1, 1]} : vector<2x128xf32> to vector<2x32xf32>
    %cst_119 = arith.constant 0.000000e+00 : f32
    %229 = vector.broadcast %cst_119 : f32 to vector<2x32xf32>
    %230 = arith.subf %229, %228 : vector<2x32xf32>
    %231 = math.exp %230 : vector<2x32xf32>
    %cst_120 = arith.constant 1.000000e+00 : f32
    %232 = vector.broadcast %cst_120 : f32 to vector<2x32xf32>
    %233 = arith.addf %232, %231 : vector<2x32xf32>
    %cst_121 = arith.constant 1.000000e+00 : f32
    %234 = vector.broadcast %cst_121 : f32 to vector<2x32xf32>
    %235 = arith.divf %234, %233 : vector<2x32xf32>
    %236 = vector.extract_strided_slice %219 {offsets = [0, 64], sizes = [2, 32], strides = [1, 1]} : vector<2x128xf32> to vector<2x32xf32>
    %237 = math.tanh %236 : vector<2x32xf32>
    %238 = vector.extract_strided_slice %219 {offsets = [0, 96], sizes = [2, 32], strides = [1, 1]} : vector<2x128xf32> to vector<2x32xf32>
    %cst_122 = arith.constant 0.000000e+00 : f32
    %239 = vector.broadcast %cst_122 : f32 to vector<2x32xf32>
    %240 = arith.subf %239, %238 : vector<2x32xf32>
    %241 = math.exp %240 : vector<2x32xf32>
    %cst_123 = arith.constant 1.000000e+00 : f32
    %242 = vector.broadcast %cst_123 : f32 to vector<2x32xf32>
    %243 = arith.addf %242, %241 : vector<2x32xf32>
    %cst_124 = arith.constant 1.000000e+00 : f32
    %244 = vector.broadcast %cst_124 : f32 to vector<2x32xf32>
    %245 = arith.divf %244, %243 : vector<2x32xf32>
    %246 = arith.mulf %235, %198 : vector<2x32xf32>
    %247 = arith.mulf %227, %237 : vector<2x32xf32>
    %248 = arith.addf %246, %247 : vector<2x32xf32>
    %249 = math.tanh %248 : vector<2x32xf32>
    %250 = arith.mulf %245, %249 : vector<2x32xf32>
    %251 = vector.extract_strided_slice %250 {offsets = [0, 0], sizes = [2, 16], strides = [1, 1]} : vector<2x32xf32> to vector<2x16xf32>
    %c0_125 = arith.constant 0 : index
    %c4_126 = arith.constant 4 : index
    %c0_127 = arith.constant 0 : index
    %c0_128 = arith.constant 0 : index
    %252 = vector.load %arg6[%c0_125, %c4_126, %c0_127, %c0_128] : memref<1x8x2x32xf32, #tpu.memory_space<vmem>>, vector<1x1x2x16xf32>
    %253 = vector.shape_cast %252 : vector<1x1x2x16xf32> to vector<2x16xf32>
    %254 = vector.shape_cast %251 : vector<2x16xf32> to vector<1x1x2x16xf32>
    tpu.vector_store %arg6[%c0_125, %c4_126, %c0_127, %c0_128], %254 {strides = array<i32>} : memref<1x8x2x32xf32, #tpu.memory_space<vmem>>, vector<1x1x2x16xf32>,
    %255 = vector.extract_strided_slice %250 {offsets = [0, 16], sizes = [2, 16], strides = [1, 1]} : vector<2x32xf32> to vector<2x16xf32>
    %c0_129 = arith.constant 0 : index
    %c3_130 = arith.constant 3 : index
    %c0_131 = arith.constant 0 : index
    %c16_132 = arith.constant 16 : index
    %256 = vector.load %arg6[%c0_129, %c3_130, %c0_131, %c16_132] : memref<1x8x2x32xf32, #tpu.memory_space<vmem>>, vector<1x1x2x16xf32>
    %257 = vector.shape_cast %256 : vector<1x1x2x16xf32> to vector<2x16xf32>
    %258 = vector.shape_cast %255 : vector<2x16xf32> to vector<1x1x2x16xf32>
    tpu.vector_store %arg6[%c0_129, %c3_130, %c0_131, %c16_132], %258 {strides = array<i32>} : memref<1x8x2x32xf32, #tpu.memory_space<vmem>>, vector<1x1x2x16xf32>,
    %c5_133 = arith.constant 5 : index
    %c0_134 = arith.constant 0 : index
    %c0_135 = arith.constant 0 : index
    %259 = vector.load %arg1[%c5_133, %c0_134, %c0_135] : memref<8x2x32xf32, #tpu.memory_space<vmem>>, vector<1x2x32xf32>
    %260 = vector.shape_cast %259 : vector<1x2x32xf32> to vector<2x32xf32>
    %cst_136 = arith.constant dense<0.000000e+00> : vector<2x128xf32>
    %261 = tpu.matmul %260, %1, %cst_136 {dimension_numbers = #tpu.dot_dimension_numbers<[1], [0], [0], [1], [0, 0, 1, 1], [], []>} : vector<2x32xf32>, vector<32x128xf32>, vector<2x128xf32> -> vector<2x128xf32>
    %c2_137 = arith.constant 2 : index
    %c0_138 = arith.constant 0 : index
    %c0_139 = arith.constant 0 : index
    %262 = vector.load %arg1[%c2_137, %c0_138, %c0_139] : memref<8x2x32xf32, #tpu.memory_space<vmem>>, vector<1x2x32xf32>
    %263 = vector.shape_cast %262 : vector<1x2x32xf32> to vector<2x32xf32>
    %cst_140 = arith.constant dense<0.000000e+00> : vector<2x128xf32>
    %264 = tpu.matmul %263, %3, %cst_140 {dimension_numbers = #tpu.dot_dimension_numbers<[1], [0], [0], [1], [0, 0, 1, 1], [], []>} : vector<2x32xf32>, vector<32x128xf32>, vector<2x128xf32> -> vector<2x128xf32>
    %265 = arith.addf %261, %264 : vector<2x128xf32>
    %cst_141 = arith.constant dense<0.000000e+00> : vector<2x128xf32>
    %266 = tpu.matmul %250, %5, %cst_141 {dimension_numbers = #tpu.dot_dimension_numbers<[1], [0], [0], [1], [0, 0, 1, 1], [], []>} : vector<2x32xf32>, vector<32x128xf32>, vector<2x128xf32> -> vector<2x128xf32>
    %267 = arith.addf %265, %266 : vector<2x128xf32>
    %268 = vector.broadcast %7 : vector<1x128xf32> to vector<2x128xf32>
    %269 = arith.addf %267, %268 : vector<2x128xf32>
    %270 = vector.extract_strided_slice %269 {offsets = [0, 0], sizes = [2, 32], strides = [1, 1]} : vector<2x128xf32> to vector<2x32xf32>
    %cst_142 = arith.constant 0.000000e+00 : f32
    %271 = vector.broadcast %cst_142 : f32 to vector<2x32xf32>
    %272 = arith.subf %271, %270 : vector<2x32xf32>
    %273 = math.exp %272 : vector<2x32xf32>
    %cst_143 = arith.constant 1.000000e+00 : f32
    %274 = vector.broadcast %cst_143 : f32 to vector<2x32xf32>
    %275 = arith.addf %274, %273 : vector<2x32xf32>
    %cst_144 = arith.constant 1.000000e+00 : f32
    %276 = vector.broadcast %cst_144 : f32 to vector<2x32xf32>
    %277 = arith.divf %276, %275 : vector<2x32xf32>
    %278 = vector.extract_strided_slice %269 {offsets = [0, 32], sizes = [2, 32], strides = [1, 1]} : vector<2x128xf32> to vector<2x32xf32>
    %cst_145 = arith.constant 0.000000e+00 : f32
    %279 = vector.broadcast %cst_145 : f32 to vector<2x32xf32>
    %280 = arith.subf %279, %278 : vector<2x32xf32>
    %281 = math.exp %280 : vector<2x32xf32>
    %cst_146 = arith.constant 1.000000e+00 : f32
    %282 = vector.broadcast %cst_146 : f32 to vector<2x32xf32>
    %283 = arith.addf %282, %281 : vector<2x32xf32>
    %cst_147 = arith.constant 1.000000e+00 : f32
    %284 = vector.broadcast %cst_147 : f32 to vector<2x32xf32>
    %285 = arith.divf %284, %283 : vector<2x32xf32>
    %286 = vector.extract_strided_slice %269 {offsets = [0, 64], sizes = [2, 32], strides = [1, 1]} : vector<2x128xf32> to vector<2x32xf32>
    %287 = math.tanh %286 : vector<2x32xf32>
    %288 = vector.extract_strided_slice %269 {offsets = [0, 96], sizes = [2, 32], strides = [1, 1]} : vector<2x128xf32> to vector<2x32xf32>
    %cst_148 = arith.constant 0.000000e+00 : f32
    %289 = vector.broadcast %cst_148 : f32 to vector<2x32xf32>
    %290 = arith.subf %289, %288 : vector<2x32xf32>
    %291 = math.exp %290 : vector<2x32xf32>
    %cst_149 = arith.constant 1.000000e+00 : f32
    %292 = vector.broadcast %cst_149 : f32 to vector<2x32xf32>
    %293 = arith.addf %292, %291 : vector<2x32xf32>
    %cst_150 = arith.constant 1.000000e+00 : f32
    %294 = vector.broadcast %cst_150 : f32 to vector<2x32xf32>
    %295 = arith.divf %294, %293 : vector<2x32xf32>
    %296 = arith.mulf %285, %248 : vector<2x32xf32>
    %297 = arith.mulf %277, %287 : vector<2x32xf32>
    %298 = arith.addf %296, %297 : vector<2x32xf32>
    %299 = math.tanh %298 : vector<2x32xf32>
    %300 = arith.mulf %295, %299 : vector<2x32xf32>
    %301 = vector.extract_strided_slice %300 {offsets = [0, 0], sizes = [2, 16], strides = [1, 1]} : vector<2x32xf32> to vector<2x16xf32>
    %c0_151 = arith.constant 0 : index
    %c5_152 = arith.constant 5 : index
    %c0_153 = arith.constant 0 : index
    %c0_154 = arith.constant 0 : index
    %302 = vector.load %arg6[%c0_151, %c5_152, %c0_153, %c0_154] : memref<1x8x2x32xf32, #tpu.memory_space<vmem>>, vector<1x1x2x16xf32>
    %303 = vector.shape_cast %302 : vector<1x1x2x16xf32> to vector<2x16xf32>
    %304 = vector.shape_cast %301 : vector<2x16xf32> to vector<1x1x2x16xf32>
    tpu.vector_store %arg6[%c0_151, %c5_152, %c0_153, %c0_154], %304 {strides = array<i32>} : memref<1x8x2x32xf32, #tpu.memory_space<vmem>>, vector<1x1x2x16xf32>,
    %305 = vector.extract_strided_slice %300 {offsets = [0, 16], sizes = [2, 16], strides = [1, 1]} : vector<2x32xf32> to vector<2x16xf32>
    %c0_155 = arith.constant 0 : index
    %c2_156 = arith.constant 2 : index
    %c0_157 = arith.constant 0 : index
    %c16_158 = arith.constant 16 : index
    %306 = vector.load %arg6[%c0_155, %c2_156, %c0_157, %c16_158] : memref<1x8x2x32xf32, #tpu.memory_space<vmem>>, vector<1x1x2x16xf32>
    %307 = vector.shape_cast %306 : vector<1x1x2x16xf32> to vector<2x16xf32>
    %308 = vector.shape_cast %305 : vector<2x16xf32> to vector<1x1x2x16xf32>
    tpu.vector_store %arg6[%c0_155, %c2_156, %c0_157, %c16_158], %308 {strides = array<i32>} : memref<1x8x2x32xf32, #tpu.memory_space<vmem>>, vector<1x1x2x16xf32>,
    %c6_159 = arith.constant 6 : index
    %c0_160 = arith.constant 0 : index
    %c0_161 = arith.constant 0 : index
    %309 = vector.load %arg1[%c6_159, %c0_160, %c0_161] : memref<8x2x32xf32, #tpu.memory_space<vmem>>, vector<1x2x32xf32>
    %310 = vector.shape_cast %309 : vector<1x2x32xf32> to vector<2x32xf32>
    %cst_162 = arith.constant dense<0.000000e+00> : vector<2x128xf32>
    %311 = tpu.matmul %310, %1, %cst_162 {dimension_numbers = #tpu.dot_dimension_numbers<[1], [0], [0], [1], [0, 0, 1, 1], [], []>} : vector<2x32xf32>, vector<32x128xf32>, vector<2x128xf32> -> vector<2x128xf32>
    %c1_163 = arith.constant 1 : index
    %c0_164 = arith.constant 0 : index
    %c0_165 = arith.constant 0 : index
    %312 = vector.load %arg1[%c1_163, %c0_164, %c0_165] : memref<8x2x32xf32, #tpu.memory_space<vmem>>, vector<1x2x32xf32>
    %313 = vector.shape_cast %312 : vector<1x2x32xf32> to vector<2x32xf32>
    %cst_166 = arith.constant dense<0.000000e+00> : vector<2x128xf32>
    %314 = tpu.matmul %313, %3, %cst_166 {dimension_numbers = #tpu.dot_dimension_numbers<[1], [0], [0], [1], [0, 0, 1, 1], [], []>} : vector<2x32xf32>, vector<32x128xf32>, vector<2x128xf32> -> vector<2x128xf32>
    %315 = arith.addf %311, %314 : vector<2x128xf32>
    %cst_167 = arith.constant dense<0.000000e+00> : vector<2x128xf32>
    %316 = tpu.matmul %300, %5, %cst_167 {dimension_numbers = #tpu.dot_dimension_numbers<[1], [0], [0], [1], [0, 0, 1, 1], [], []>} : vector<2x32xf32>, vector<32x128xf32>, vector<2x128xf32> -> vector<2x128xf32>
    %317 = arith.addf %315, %316 : vector<2x128xf32>
    %318 = vector.broadcast %7 : vector<1x128xf32> to vector<2x128xf32>
    %319 = arith.addf %317, %318 : vector<2x128xf32>
    %320 = vector.extract_strided_slice %319 {offsets = [0, 0], sizes = [2, 32], strides = [1, 1]} : vector<2x128xf32> to vector<2x32xf32>
    %cst_168 = arith.constant 0.000000e+00 : f32
    %321 = vector.broadcast %cst_168 : f32 to vector<2x32xf32>
    %322 = arith.subf %321, %320 : vector<2x32xf32>
    %323 = math.exp %322 : vector<2x32xf32>
    %cst_169 = arith.constant 1.000000e+00 : f32
    %324 = vector.broadcast %cst_169 : f32 to vector<2x32xf32>
    %325 = arith.addf %324, %323 : vector<2x32xf32>
    %cst_170 = arith.constant 1.000000e+00 : f32
    %326 = vector.broadcast %cst_170 : f32 to vector<2x32xf32>
    %327 = arith.divf %326, %325 : vector<2x32xf32>
    %328 = vector.extract_strided_slice %319 {offsets = [0, 32], sizes = [2, 32], strides = [1, 1]} : vector<2x128xf32> to vector<2x32xf32>
    %cst_171 = arith.constant 0.000000e+00 : f32
    %329 = vector.broadcast %cst_171 : f32 to vector<2x32xf32>
    %330 = arith.subf %329, %328 : vector<2x32xf32>
    %331 = math.exp %330 : vector<2x32xf32>
    %cst_172 = arith.constant 1.000000e+00 : f32
    %332 = vector.broadcast %cst_172 : f32 to vector<2x32xf32>
    %333 = arith.addf %332, %331 : vector<2x32xf32>
    %cst_173 = arith.constant 1.000000e+00 : f32
    %334 = vector.broadcast %cst_173 : f32 to vector<2x32xf32>
    %335 = arith.divf %334, %333 : vector<2x32xf32>
    %336 = vector.extract_strided_slice %319 {offsets = [0, 64], sizes = [2, 32], strides = [1, 1]} : vector<2x128xf32> to vector<2x32xf32>
    %337 = math.tanh %336 : vector<2x32xf32>
    %338 = vector.extract_strided_slice %319 {offsets = [0, 96], sizes = [2, 32], strides = [1, 1]} : vector<2x128xf32> to vector<2x32xf32>
    %cst_174 = arith.constant 0.000000e+00 : f32
    %339 = vector.broadcast %cst_174 : f32 to vector<2x32xf32>
    %340 = arith.subf %339, %338 : vector<2x32xf32>
    %341 = math.exp %340 : vector<2x32xf32>
    %cst_175 = arith.constant 1.000000e+00 : f32
    %342 = vector.broadcast %cst_175 : f32 to vector<2x32xf32>
    %343 = arith.addf %342, %341 : vector<2x32xf32>
    %cst_176 = arith.constant 1.000000e+00 : f32
    %344 = vector.broadcast %cst_176 : f32 to vector<2x32xf32>
    %345 = arith.divf %344, %343 : vector<2x32xf32>
    %346 = arith.mulf %335, %298 : vector<2x32xf32>
    %347 = arith.mulf %327, %337 : vector<2x32xf32>
    %348 = arith.addf %346, %347 : vector<2x32xf32>
    %349 = math.tanh %348 : vector<2x32xf32>
    %350 = arith.mulf %345, %349 : vector<2x32xf32>
    %351 = vector.extract_strided_slice %350 {offsets = [0, 0], sizes = [2, 16], strides = [1, 1]} : vector<2x32xf32> to vector<2x16xf32>
    %c0_177 = arith.constant 0 : index
    %c6_178 = arith.constant 6 : index
    %c0_179 = arith.constant 0 : index
    %c0_180 = arith.constant 0 : index
    %352 = vector.load %arg6[%c0_177, %c6_178, %c0_179, %c0_180] : memref<1x8x2x32xf32, #tpu.memory_space<vmem>>, vector<1x1x2x16xf32>
    %353 = vector.shape_cast %352 : vector<1x1x2x16xf32> to vector<2x16xf32>
    %354 = vector.shape_cast %351 : vector<2x16xf32> to vector<1x1x2x16xf32>
    tpu.vector_store %arg6[%c0_177, %c6_178, %c0_179, %c0_180], %354 {strides = array<i32>} : memref<1x8x2x32xf32, #tpu.memory_space<vmem>>, vector<1x1x2x16xf32>,
    %355 = vector.extract_strided_slice %350 {offsets = [0, 16], sizes = [2, 16], strides = [1, 1]} : vector<2x32xf32> to vector<2x16xf32>
    %c0_181 = arith.constant 0 : index
    %c1_182 = arith.constant 1 : index
    %c0_183 = arith.constant 0 : index
    %c16_184 = arith.constant 16 : index
    %356 = vector.load %arg6[%c0_181, %c1_182, %c0_183, %c16_184] : memref<1x8x2x32xf32, #tpu.memory_space<vmem>>, vector<1x1x2x16xf32>
    %357 = vector.shape_cast %356 : vector<1x1x2x16xf32> to vector<2x16xf32>
    %358 = vector.shape_cast %355 : vector<2x16xf32> to vector<1x1x2x16xf32>
    tpu.vector_store %arg6[%c0_181, %c1_182, %c0_183, %c16_184], %358 {strides = array<i32>} : memref<1x8x2x32xf32, #tpu.memory_space<vmem>>, vector<1x1x2x16xf32>,
    %c7_185 = arith.constant 7 : index
    %c0_186 = arith.constant 0 : index
    %c0_187 = arith.constant 0 : index
    %359 = vector.load %arg1[%c7_185, %c0_186, %c0_187] : memref<8x2x32xf32, #tpu.memory_space<vmem>>, vector<1x2x32xf32>
    %360 = vector.shape_cast %359 : vector<1x2x32xf32> to vector<2x32xf32>
    %cst_188 = arith.constant dense<0.000000e+00> : vector<2x128xf32>
    %361 = tpu.matmul %360, %1, %cst_188 {dimension_numbers = #tpu.dot_dimension_numbers<[1], [0], [0], [1], [0, 0, 1, 1], [], []>} : vector<2x32xf32>, vector<32x128xf32>, vector<2x128xf32> -> vector<2x128xf32>
    %c0_189 = arith.constant 0 : index
    %c0_190 = arith.constant 0 : index
    %c0_191 = arith.constant 0 : index
    %362 = vector.load %arg1[%c0_189, %c0_190, %c0_191] : memref<8x2x32xf32, #tpu.memory_space<vmem>>, vector<1x2x32xf32>
    %363 = vector.shape_cast %362 : vector<1x2x32xf32> to vector<2x32xf32>
    %cst_192 = arith.constant dense<0.000000e+00> : vector<2x128xf32>
    %364 = tpu.matmul %363, %3, %cst_192 {dimension_numbers = #tpu.dot_dimension_numbers<[1], [0], [0], [1], [0, 0, 1, 1], [], []>} : vector<2x32xf32>, vector<32x128xf32>, vector<2x128xf32> -> vector<2x128xf32>
    %365 = arith.addf %361, %364 : vector<2x128xf32>
    %cst_193 = arith.constant dense<0.000000e+00> : vector<2x128xf32>
    %366 = tpu.matmul %350, %5, %cst_193 {dimension_numbers = #tpu.dot_dimension_numbers<[1], [0], [0], [1], [0, 0, 1, 1], [], []>} : vector<2x32xf32>, vector<32x128xf32>, vector<2x128xf32> -> vector<2x128xf32>
    %367 = arith.addf %365, %366 : vector<2x128xf32>
    %368 = vector.broadcast %7 : vector<1x128xf32> to vector<2x128xf32>
    %369 = arith.addf %367, %368 : vector<2x128xf32>
    %370 = vector.extract_strided_slice %369 {offsets = [0, 0], sizes = [2, 32], strides = [1, 1]} : vector<2x128xf32> to vector<2x32xf32>
    %cst_194 = arith.constant 0.000000e+00 : f32
    %371 = vector.broadcast %cst_194 : f32 to vector<2x32xf32>
    %372 = arith.subf %371, %370 : vector<2x32xf32>
    %373 = math.exp %372 : vector<2x32xf32>
    %cst_195 = arith.constant 1.000000e+00 : f32
    %374 = vector.broadcast %cst_195 : f32 to vector<2x32xf32>
    %375 = arith.addf %374, %373 : vector<2x32xf32>
    %cst_196 = arith.constant 1.000000e+00 : f32
    %376 = vector.broadcast %cst_196 : f32 to vector<2x32xf32>
    %377 = arith.divf %376, %375 : vector<2x32xf32>
    %378 = vector.extract_strided_slice %369 {offsets = [0, 32], sizes = [2, 32], strides = [1, 1]} : vector<2x128xf32> to vector<2x32xf32>
    %cst_197 = arith.constant 0.000000e+00 : f32
    %379 = vector.broadcast %cst_197 : f32 to vector<2x32xf32>
    %380 = arith.subf %379, %378 : vector<2x32xf32>
    %381 = math.exp %380 : vector<2x32xf32>
    %cst_198 = arith.constant 1.000000e+00 : f32
    %382 = vector.broadcast %cst_198 : f32 to vector<2x32xf32>
    %383 = arith.addf %382, %381 : vector<2x32xf32>
    %cst_199 = arith.constant 1.000000e+00 : f32
    %384 = vector.broadcast %cst_199 : f32 to vector<2x32xf32>
    %385 = arith.divf %384, %383 : vector<2x32xf32>
    %386 = vector.extract_strided_slice %369 {offsets = [0, 64], sizes = [2, 32], strides = [1, 1]} : vector<2x128xf32> to vector<2x32xf32>
    %387 = math.tanh %386 : vector<2x32xf32>
    %388 = vector.extract_strided_slice %369 {offsets = [0, 96], sizes = [2, 32], strides = [1, 1]} : vector<2x128xf32> to vector<2x32xf32>
    %cst_200 = arith.constant 0.000000e+00 : f32
    %389 = vector.broadcast %cst_200 : f32 to vector<2x32xf32>
    %390 = arith.subf %389, %388 : vector<2x32xf32>
    %391 = math.exp %390 : vector<2x32xf32>
    %cst_201 = arith.constant 1.000000e+00 : f32
    %392 = vector.broadcast %cst_201 : f32 to vector<2x32xf32>
    %393 = arith.addf %392, %391 : vector<2x32xf32>
    %cst_202 = arith.constant 1.000000e+00 : f32
    %394 = vector.broadcast %cst_202 : f32 to vector<2x32xf32>
    %395 = arith.divf %394, %393 : vector<2x32xf32>
    %396 = arith.mulf %385, %348 : vector<2x32xf32>
    %397 = arith.mulf %377, %387 : vector<2x32xf32>
    %398 = arith.addf %396, %397 : vector<2x32xf32>
    %399 = math.tanh %398 : vector<2x32xf32>
    %400 = arith.mulf %395, %399 : vector<2x32xf32>
    %401 = vector.extract_strided_slice %400 {offsets = [0, 0], sizes = [2, 16], strides = [1, 1]} : vector<2x32xf32> to vector<2x16xf32>
    %c0_203 = arith.constant 0 : index
    %c7_204 = arith.constant 7 : index
    %c0_205 = arith.constant 0 : index
    %c0_206 = arith.constant 0 : index
    %402 = vector.load %arg6[%c0_203, %c7_204, %c0_205, %c0_206] : memref<1x8x2x32xf32, #tpu.memory_space<vmem>>, vector<1x1x2x16xf32>
    %403 = vector.shape_cast %402 : vector<1x1x2x16xf32> to vector<2x16xf32>
    %404 = vector.shape_cast %401 : vector<2x16xf32> to vector<1x1x2x16xf32>
    tpu.vector_store %arg6[%c0_203, %c7_204, %c0_205, %c0_206], %404 {strides = array<i32>} : memref<1x8x2x32xf32, #tpu.memory_space<vmem>>, vector<1x1x2x16xf32>,
    %405 = vector.extract_strided_slice %400 {offsets = [0, 16], sizes = [2, 16], strides = [1, 1]} : vector<2x32xf32> to vector<2x16xf32>
    %c0_207 = arith.constant 0 : index
    %c0_208 = arith.constant 0 : index
    %c0_209 = arith.constant 0 : index
    %c16_210 = arith.constant 16 : index
    %406 = vector.load %arg6[%c0_207, %c0_208, %c0_209, %c16_210] : memref<1x8x2x32xf32, #tpu.memory_space<vmem>>, vector<1x1x2x16xf32>
    %407 = vector.shape_cast %406 : vector<1x1x2x16xf32> to vector<2x16xf32>
    %408 = vector.shape_cast %405 : vector<2x16xf32> to vector<1x1x2x16xf32>
    tpu.vector_store %arg6[%c0_207, %c0_208, %c0_209, %c16_210], %408 {strides = array<i32>} : memref<1x8x2x32xf32, #tpu.memory_space<vmem>>, vector<1x1x2x16xf32>,
    return
  }
  func.func @transform_0(%arg0: i32) -> (i32, i32, i32) {
    %c0_i32 = arith.constant 0 : i32
    %c0_i32_0 = arith.constant 0 : i32
    %c0_i32_1 = arith.constant 0 : i32
    %c0_i32_2 = arith.constant 0 : i32
    return %c0_i32, %c0_i32_0, %c0_i32_1 : i32, i32, i32
  }
  func.func @transform_1(%arg0: i32) -> (i32, i32, i32) {
    %c0_i32 = arith.constant 0 : i32
    %c0_i32_0 = arith.constant 0 : i32
    %c0_i32_1 = arith.constant 0 : i32
    return %arg0, %c0_i32, %c0_i32_0 : i32, i32, i32
  }
  func.func @transform_2(%arg0: i32) -> (i32, i32, i32) {
    %c0_i32 = arith.constant 0 : i32
    %c0_i32_0 = arith.constant 0 : i32
    %c0_i32_1 = arith.constant 0 : i32
    return %arg0, %c0_i32, %c0_i32_0 : i32, i32, i32
  }
  func.func @transform_3(%arg0: i32) -> (i32, i32, i32) {
    %c0_i32 = arith.constant 0 : i32
    %c0_i32_0 = arith.constant 0 : i32
    %c0_i32_1 = arith.constant 0 : i32
    return %arg0, %c0_i32, %c0_i32_0 : i32, i32, i32
  }
  func.func @transform_4(%arg0: i32) -> (i32, i32, i32) {
    %c0_i32 = arith.constant 0 : i32
    %c0_i32_0 = arith.constant 0 : i32
    %c0_i32_1 = arith.constant 0 : i32
    return %arg0, %c0_i32, %c0_i32_0 : i32, i32, i32
  }
  func.func @transform_5(%arg0: i32) -> (i32, i32, i32, i32) {
    %c0_i32 = arith.constant 0 : i32
    %c0_i32_0 = arith.constant 0 : i32
    %c0_i32_1 = arith.constant 0 : i32
    %c0_i32_2 = arith.constant 0 : i32
    return %arg0, %c0_i32, %c0_i32_0, %c0_i32_1 : i32, i32, i32, i32
  }
}

module attributes {stable_mosaic.version = 11 : i64} {
  func.func @_head_kernel(%arg0: i32, %arg1: memref<16x32xf32, #tpu.memory_space<vmem>>, %arg2: memref<16x32xf32, #tpu.memory_space<vmem>>, %arg3: memref<16x32xf32, #tpu.memory_space<vmem>>, %arg4: memref<16x16xf32, #tpu.memory_space<vmem>>, %arg5: memref<32x64xf32, #tpu.memory_space<vmem>>, %arg6: memref<1x64xf32, #tpu.memory_space<vmem>>, %arg7: memref<32x32xf32, #tpu.memory_space<vmem>>, %arg8: memref<32x32xf32, #tpu.memory_space<vmem>>, %arg9: memref<32x24xf32, #tpu.memory_space<vmem>>, %arg10: memref<32x24xf32, #tpu.memory_space<vmem>>, %arg11: memref<32x24xf32, #tpu.memory_space<vmem>>, %arg12: memref<16x24xf32, #tpu.memory_space<vmem>>, %arg13: memref<32x24xf32, #tpu.memory_space<vmem>>, %arg14: memref<32x24xf32, #tpu.memory_space<vmem>>, %arg15: memref<1x24xf32, #tpu.memory_space<vmem>>, %arg16: memref<16x24xf32, #tpu.memory_space<vmem>>) attributes {dimension_semantics = [#tpu.dimension_semantics<parallel>], iteration_bounds = array<i64: 1>, scalar_prefetch = 0 : i64, scratch_operands = 0 : i64, tpu.core_type = #tpu.core_type<tc>, window_params = [{transform_indices = @transform_0, window_bounds = array<i64: 16, 32>}, {transform_indices = @transform_1, window_bounds = array<i64: 16, 32>}, {transform_indices = @transform_2, window_bounds = array<i64: 16, 32>}, {transform_indices = @transform_3, window_bounds = array<i64: 16, 16>}, {pipeline_mode = #tpu.pipeline_mode<synchronous>, transform_indices = @transform_4, window_bounds = array<i64: 32, 64>}, {pipeline_mode = #tpu.pipeline_mode<synchronous>, transform_indices = @transform_5, window_bounds = array<i64: 1, 64>}, {pipeline_mode = #tpu.pipeline_mode<synchronous>, transform_indices = @transform_6, window_bounds = array<i64: 32, 32>}, {pipeline_mode = #tpu.pipeline_mode<synchronous>, transform_indices = @transform_7, window_bounds = array<i64: 32, 32>}, {pipeline_mode = #tpu.pipeline_mode<synchronous>, transform_indices = @transform_8, window_bounds = array<i64: 32, 24>}, {pipeline_mode = #tpu.pipeline_mode<synchronous>, transform_indices = @transform_9, window_bounds = array<i64: 32, 24>}, {pipeline_mode = #tpu.pipeline_mode<synchronous>, transform_indices = @transform_10, window_bounds = array<i64: 32, 24>}, {pipeline_mode = #tpu.pipeline_mode<synchronous>, transform_indices = @transform_11, window_bounds = array<i64: 16, 24>}, {pipeline_mode = #tpu.pipeline_mode<synchronous>, transform_indices = @transform_12, window_bounds = array<i64: 32, 24>}, {pipeline_mode = #tpu.pipeline_mode<synchronous>, transform_indices = @transform_13, window_bounds = array<i64: 32, 24>}, {pipeline_mode = #tpu.pipeline_mode<synchronous>, transform_indices = @transform_14, window_bounds = array<i64: 1, 24>}, {transform_indices = @transform_15, window_bounds = array<i64: 16, 24>}]} {
    %c0 = arith.constant 0 : index
    %c0_0 = arith.constant 0 : index
    %0 = vector.load %arg1[%c0, %c0_0] : memref<16x32xf32, #tpu.memory_space<vmem>>, vector<16x32xf32>
    %c0_1 = arith.constant 0 : index
    %c0_2 = arith.constant 0 : index
    %1 = vector.load %arg2[%c0_1, %c0_2] : memref<16x32xf32, #tpu.memory_space<vmem>>, vector<16x32xf32>
    %c0_3 = arith.constant 0 : index
    %c0_4 = arith.constant 0 : index
    %2 = vector.load %arg3[%c0_3, %c0_4] : memref<16x32xf32, #tpu.memory_space<vmem>>, vector<16x32xf32>
    %c0_5 = arith.constant 0 : index
    %c0_6 = arith.constant 0 : index
    %3 = vector.load %arg4[%c0_5, %c0_6] : memref<16x16xf32, #tpu.memory_space<vmem>>, vector<16x16xf32>
    %c0_7 = arith.constant 0 : index
    %c0_8 = arith.constant 0 : index
    %4 = vector.load %arg5[%c0_7, %c0_8] : memref<32x64xf32, #tpu.memory_space<vmem>>, vector<32x64xf32>
    %cst = arith.constant dense<0.000000e+00> : vector<16x64xf32>
    %5 = tpu.matmul %0, %4, %cst {dimension_numbers = #tpu.dot_dimension_numbers<[1], [0], [0], [1], [0, 0, 1, 1], [], []>} : vector<16x32xf32>, vector<32x64xf32>, vector<16x64xf32> -> vector<16x64xf32>
    %c0_9 = arith.constant 0 : index
    %c0_10 = arith.constant 0 : index
    %6 = vector.load %arg6[%c0_9, %c0_10] : memref<1x64xf32, #tpu.memory_space<vmem>>, vector<1x64xf32>
    %7 = vector.broadcast %6 : vector<1x64xf32> to vector<16x64xf32>
    %8 = arith.addf %5, %7 : vector<16x64xf32>
    %9 = vector.extract_strided_slice %8 {offsets = [0, 0], sizes = [16, 32], strides = [1, 1]} : vector<16x64xf32> to vector<16x32xf32>
    %c0_11 = arith.constant 0 : index
    %c0_12 = arith.constant 0 : index
    %10 = vector.load %arg7[%c0_11, %c0_12] : memref<32x32xf32, #tpu.memory_space<vmem>>, vector<32x32xf32>
    %cst_13 = arith.constant dense<0.000000e+00> : vector<16x32xf32>
    %11 = tpu.matmul %1, %10, %cst_13 {dimension_numbers = #tpu.dot_dimension_numbers<[1], [0], [0], [1], [0, 0, 1, 1], [], []>} : vector<16x32xf32>, vector<32x32xf32>, vector<16x32xf32> -> vector<16x32xf32>
    %12 = arith.addf %9, %11 : vector<16x32xf32>
    %13 = vector.extract_strided_slice %8 {offsets = [0, 32], sizes = [16, 32], strides = [1, 1]} : vector<16x64xf32> to vector<16x32xf32>
    %c0_14 = arith.constant 0 : index
    %c0_15 = arith.constant 0 : index
    %14 = vector.load %arg8[%c0_14, %c0_15] : memref<32x32xf32, #tpu.memory_space<vmem>>, vector<32x32xf32>
    %cst_16 = arith.constant dense<0.000000e+00> : vector<16x32xf32>
    %15 = tpu.matmul %2, %14, %cst_16 {dimension_numbers = #tpu.dot_dimension_numbers<[1], [0], [0], [1], [0, 0, 1, 1], [], []>} : vector<16x32xf32>, vector<32x32xf32>, vector<16x32xf32> -> vector<16x32xf32>
    %16 = arith.addf %13, %15 : vector<16x32xf32>
    %cst_17 = arith.constant 0.000000e+00 : f32
    %17 = vector.broadcast %cst_17 : f32 to vector<16x32xf32>
    %18 = arith.minimumf %12, %17 : vector<16x32xf32>
    %19 = math.absf %12 : vector<16x32xf32>
    %cst_18 = arith.constant 0.000000e+00 : f32
    %20 = vector.broadcast %cst_18 : f32 to vector<16x32xf32>
    %21 = arith.subf %20, %19 : vector<16x32xf32>
    %22 = math.exp %21 : vector<16x32xf32>
    %cst_19 = arith.constant 1.000000e+00 : f32
    %23 = vector.broadcast %cst_19 : f32 to vector<16x32xf32>
    %24 = arith.addf %23, %22 : vector<16x32xf32>
    %25 = math.log %24 : vector<16x32xf32>
    %cst_20 = arith.constant 1.000000e+00 : f32
    %26 = vector.broadcast %cst_20 : f32 to vector<16x32xf32>
    %27 = arith.subf %24, %26 : vector<16x32xf32>
    %28 = arith.subf %27, %22 : vector<16x32xf32>
    %29 = arith.divf %28, %24 : vector<16x32xf32>
    %30 = arith.subf %25, %29 : vector<16x32xf32>
    %31 = arith.subf %18, %30 : vector<16x32xf32>
    %32 = arith.mulf %31, %1 : vector<16x32xf32>
    %cst_21 = arith.constant 0.000000e+00 : f32
    %33 = vector.broadcast %cst_21 : f32 to vector<16x32xf32>
    %34 = arith.minimumf %16, %33 : vector<16x32xf32>
    %35 = math.absf %16 : vector<16x32xf32>
    %cst_22 = arith.constant 0.000000e+00 : f32
    %36 = vector.broadcast %cst_22 : f32 to vector<16x32xf32>
    %37 = arith.subf %36, %35 : vector<16x32xf32>
    %38 = math.exp %37 : vector<16x32xf32>
    %cst_23 = arith.constant 1.000000e+00 : f32
    %39 = vector.broadcast %cst_23 : f32 to vector<16x32xf32>
    %40 = arith.addf %39, %38 : vector<16x32xf32>
    %41 = math.log %40 : vector<16x32xf32>
    %cst_24 = arith.constant 1.000000e+00 : f32
    %42 = vector.broadcast %cst_24 : f32 to vector<16x32xf32>
    %43 = arith.subf %40, %42 : vector<16x32xf32>
    %44 = arith.subf %43, %38 : vector<16x32xf32>
    %45 = arith.divf %44, %40 : vector<16x32xf32>
    %46 = arith.subf %41, %45 : vector<16x32xf32>
    %47 = arith.subf %34, %46 : vector<16x32xf32>
    %48 = arith.mulf %47, %2 : vector<16x32xf32>
    %c0_25 = arith.constant 0 : index
    %c0_26 = arith.constant 0 : index
    %49 = vector.load %arg15[%c0_25, %c0_26] : memref<1x24xf32, #tpu.memory_space<vmem>>, vector<1x24xf32>
    %c0_27 = arith.constant 0 : index
    %c0_28 = arith.constant 0 : index
    %50 = vector.load %arg9[%c0_27, %c0_28] : memref<32x24xf32, #tpu.memory_space<vmem>>, vector<32x24xf32>
    %cst_29 = arith.constant dense<0.000000e+00> : vector<16x24xf32>
    %51 = tpu.matmul %0, %50, %cst_29 {dimension_numbers = #tpu.dot_dimension_numbers<[1], [0], [0], [1], [0, 0, 1, 1], [], []>} : vector<16x32xf32>, vector<32x24xf32>, vector<16x24xf32> -> vector<16x24xf32>
    %52 = vector.broadcast %49 : vector<1x24xf32> to vector<16x24xf32>
    %53 = arith.addf %52, %51 : vector<16x24xf32>
    %c0_30 = arith.constant 0 : index
    %c0_31 = arith.constant 0 : index
    %54 = vector.load %arg10[%c0_30, %c0_31] : memref<32x24xf32, #tpu.memory_space<vmem>>, vector<32x24xf32>
    %cst_32 = arith.constant dense<0.000000e+00> : vector<16x24xf32>
    %55 = tpu.matmul %32, %54, %cst_32 {dimension_numbers = #tpu.dot_dimension_numbers<[1], [0], [0], [1], [0, 0, 1, 1], [], []>} : vector<16x32xf32>, vector<32x24xf32>, vector<16x24xf32> -> vector<16x24xf32>
    %56 = arith.addf %53, %55 : vector<16x24xf32>
    %c0_33 = arith.constant 0 : index
    %c0_34 = arith.constant 0 : index
    %57 = vector.load %arg11[%c0_33, %c0_34] : memref<32x24xf32, #tpu.memory_space<vmem>>, vector<32x24xf32>
    %cst_35 = arith.constant dense<0.000000e+00> : vector<16x24xf32>
    %58 = tpu.matmul %48, %57, %cst_35 {dimension_numbers = #tpu.dot_dimension_numbers<[1], [0], [0], [1], [0, 0, 1, 1], [], []>} : vector<16x32xf32>, vector<32x24xf32>, vector<16x24xf32> -> vector<16x24xf32>
    %59 = arith.addf %56, %58 : vector<16x24xf32>
    %c0_36 = arith.constant 0 : index
    %c0_37 = arith.constant 0 : index
    %60 = vector.load %arg12[%c0_36, %c0_37] : memref<16x24xf32, #tpu.memory_space<vmem>>, vector<16x24xf32>
    %cst_38 = arith.constant dense<0.000000e+00> : vector<16x24xf32>
    %61 = tpu.matmul %3, %60, %cst_38 {dimension_numbers = #tpu.dot_dimension_numbers<[1], [0], [0], [1], [0, 0, 1, 1], [], []>} : vector<16x16xf32>, vector<16x24xf32>, vector<16x24xf32> -> vector<16x24xf32>
    %62 = arith.addf %59, %61 : vector<16x24xf32>
    %c0_39 = arith.constant 0 : index
    %c0_40 = arith.constant 0 : index
    %63 = vector.load %arg13[%c0_39, %c0_40] : memref<32x24xf32, #tpu.memory_space<vmem>>, vector<32x24xf32>
    %cst_41 = arith.constant dense<0.000000e+00> : vector<16x24xf32>
    %64 = tpu.matmul %1, %63, %cst_41 {dimension_numbers = #tpu.dot_dimension_numbers<[1], [0], [0], [1], [0, 0, 1, 1], [], []>} : vector<16x32xf32>, vector<32x24xf32>, vector<16x24xf32> -> vector<16x24xf32>
    %65 = arith.addf %62, %64 : vector<16x24xf32>
    %c0_42 = arith.constant 0 : index
    %c0_43 = arith.constant 0 : index
    %66 = vector.load %arg14[%c0_42, %c0_43] : memref<32x24xf32, #tpu.memory_space<vmem>>, vector<32x24xf32>
    %cst_44 = arith.constant dense<0.000000e+00> : vector<16x24xf32>
    %67 = tpu.matmul %2, %66, %cst_44 {dimension_numbers = #tpu.dot_dimension_numbers<[1], [0], [0], [1], [0, 0, 1, 1], [], []>} : vector<16x32xf32>, vector<32x24xf32>, vector<16x24xf32> -> vector<16x24xf32>
    %68 = arith.addf %65, %67 : vector<16x24xf32>
    %c0_45 = arith.constant 0 : index
    %c0_46 = arith.constant 0 : index
    %69 = vector.load %arg16[%c0_45, %c0_46] : memref<16x24xf32, #tpu.memory_space<vmem>>, vector<16x24xf32>
    tpu.vector_store %arg16[%c0_45, %c0_46], %68 {strides = array<i32>} : memref<16x24xf32, #tpu.memory_space<vmem>>, vector<16x24xf32>,
    return
  }
  func.func @transform_0(%arg0: i32) -> (i32, i32) {
    %c0_i32 = arith.constant 0 : i32
    %c0_i32_0 = arith.constant 0 : i32
    return %arg0, %c0_i32 : i32, i32
  }
  func.func @transform_1(%arg0: i32) -> (i32, i32) {
    %c0_i32 = arith.constant 0 : i32
    %c0_i32_0 = arith.constant 0 : i32
    return %arg0, %c0_i32 : i32, i32
  }
  func.func @transform_2(%arg0: i32) -> (i32, i32) {
    %c0_i32 = arith.constant 0 : i32
    %c0_i32_0 = arith.constant 0 : i32
    return %arg0, %c0_i32 : i32, i32
  }
  func.func @transform_3(%arg0: i32) -> (i32, i32) {
    %c0_i32 = arith.constant 0 : i32
    %c0_i32_0 = arith.constant 0 : i32
    return %arg0, %c0_i32 : i32, i32
  }
  func.func @transform_4(%arg0: i32) -> (i32, i32) {
    %c0_i32 = arith.constant 0 : i32
    %c0_i32_0 = arith.constant 0 : i32
    %c0_i32_1 = arith.constant 0 : i32
    return %c0_i32, %c0_i32_0 : i32, i32
  }
  func.func @transform_5(%arg0: i32) -> (i32, i32) {
    %c0_i32 = arith.constant 0 : i32
    %c0_i32_0 = arith.constant 0 : i32
    %c0_i32_1 = arith.constant 0 : i32
    return %c0_i32, %c0_i32_0 : i32, i32
  }
  func.func @transform_6(%arg0: i32) -> (i32, i32) {
    %c0_i32 = arith.constant 0 : i32
    %c0_i32_0 = arith.constant 0 : i32
    %c0_i32_1 = arith.constant 0 : i32
    return %c0_i32, %c0_i32_0 : i32, i32
  }
  func.func @transform_7(%arg0: i32) -> (i32, i32) {
    %c0_i32 = arith.constant 0 : i32
    %c0_i32_0 = arith.constant 0 : i32
    %c0_i32_1 = arith.constant 0 : i32
    return %c0_i32, %c0_i32_0 : i32, i32
  }
  func.func @transform_8(%arg0: i32) -> (i32, i32) {
    %c0_i32 = arith.constant 0 : i32
    %c0_i32_0 = arith.constant 0 : i32
    %c0_i32_1 = arith.constant 0 : i32
    return %c0_i32, %c0_i32_0 : i32, i32
  }
  func.func @transform_9(%arg0: i32) -> (i32, i32) {
    %c0_i32 = arith.constant 0 : i32
    %c0_i32_0 = arith.constant 0 : i32
    %c0_i32_1 = arith.constant 0 : i32
    return %c0_i32, %c0_i32_0 : i32, i32
  }
  func.func @transform_10(%arg0: i32) -> (i32, i32) {
    %c0_i32 = arith.constant 0 : i32
    %c0_i32_0 = arith.constant 0 : i32
    %c0_i32_1 = arith.constant 0 : i32
    return %c0_i32, %c0_i32_0 : i32, i32
  }
  func.func @transform_11(%arg0: i32) -> (i32, i32) {
    %c0_i32 = arith.constant 0 : i32
    %c0_i32_0 = arith.constant 0 : i32
    %c0_i32_1 = arith.constant 0 : i32
    return %c0_i32, %c0_i32_0 : i32, i32
  }
  func.func @transform_12(%arg0: i32) -> (i32, i32) {
    %c0_i32 = arith.constant 0 : i32
    %c0_i32_0 = arith.constant 0 : i32
    %c0_i32_1 = arith.constant 0 : i32
    return %c0_i32, %c0_i32_0 : i32, i32
  }
  func.func @transform_13(%arg0: i32) -> (i32, i32) {
    %c0_i32 = arith.constant 0 : i32
    %c0_i32_0 = arith.constant 0 : i32
    %c0_i32_1 = arith.constant 0 : i32
    return %c0_i32, %c0_i32_0 : i32, i32
  }
  func.func @transform_14(%arg0: i32) -> (i32, i32) {
    %c0_i32 = arith.constant 0 : i32
    %c0_i32_0 = arith.constant 0 : i32
    %c0_i32_1 = arith.constant 0 : i32
    return %c0_i32, %c0_i32_0 : i32, i32
  }
  func.func @transform_15(%arg0: i32) -> (i32, i32) {
    %c0_i32 = arith.constant 0 : i32
    %c0_i32_0 = arith.constant 0 : i32
    return %arg0, %c0_i32 : i32, i32
  }
}

module attributes {stable_mosaic.version = 11 : i64} {
  func.func @_dec_kernel(%arg0: memref<8x2x32xf32, #tpu.memory_space<vmem>>, %arg1: memref<1x64xf32, #tpu.memory_space<vmem>>, %arg2: memref<1x64xf32, #tpu.memory_space<vmem>>, %arg3: memref<16x64xf32, #tpu.memory_space<vmem>>, %arg4: memref<8x2x16xf32, #tpu.memory_space<vmem>>) attributes {dimension_semantics = [], scalar_prefetch = 0 : i64, scratch_operands = 0 : i64, tpu.core_type = #tpu.core_type<tc>} {
    %c0 = arith.constant 0 : index
    %c0_0 = arith.constant 0 : index
    %0 = vector.load %arg1[%c0, %c0_0] : memref<1x64xf32, #tpu.memory_space<vmem>>, vector<1x64xf32>
    %c0_1 = arith.constant 0 : index
    %c0_2 = arith.constant 0 : index
    %1 = vector.load %arg2[%c0_1, %c0_2] : memref<1x64xf32, #tpu.memory_space<vmem>>, vector<1x64xf32>
    %c0_3 = arith.constant 0 : index
    %c0_4 = arith.constant 0 : index
    %2 = vector.load %arg3[%c0_3, %c0_4] : memref<16x64xf32, #tpu.memory_space<vmem>>, vector<16x64xf32>
    %cst = arith.constant 0.000000e+00 : f32
    %3 = vector.broadcast %cst : f32 to vector<2x16xf32>
    %c0_5 = arith.constant 0 : index
    %c0_6 = arith.constant 0 : index
    %c0_7 = arith.constant 0 : index
    %4 = vector.load %arg0[%c0_5, %c0_6, %c0_7] : memref<8x2x32xf32, #tpu.memory_space<vmem>>, vector<1x2x32xf32>
    %5 = vector.shape_cast %4 : vector<1x2x32xf32> to vector<2x32xf32>
    %cst_8 = arith.constant dense<0.000000e+00> : vector<2xf32>
    %6 = vector.multi_reduction <add>, %5, %cst_8 [1] : vector<2x32xf32> to vector<2xf32>
    %7 = vector.shape_cast %6 : vector<2xf32> to vector<2x1xf32>
    %c1 = arith.constant 1 : index
    %c0_9 = arith.constant 0 : index
    %c0_10 = arith.constant 0 : index
    %8 = vector.load %arg0[%c1, %c0_9, %c0_10] : memref<8x2x32xf32, #tpu.memory_space<vmem>>, vector<1x2x32xf32>
    %9 = vector.shape_cast %8 : vector<1x2x32xf32> to vector<2x32xf32>
    %cst_11 = arith.constant dense<0.000000e+00> : vector<2xf32>
    %10 = vector.multi_reduction <add>, %9, %cst_11 [1] : vector<2x32xf32> to vector<2xf32>
    %11 = vector.shape_cast %10 : vector<2xf32> to vector<2x1xf32>
    %12 = arith.addf %7, %11 : vector<2x1xf32>
    %13 = vector.broadcast %12 : vector<2x1xf32> to vector<2x64xf32>
    %14 = vector.broadcast %0 : vector<1x64xf32> to vector<2x64xf32>
    %15 = arith.mulf %13, %14 : vector<2x64xf32>
    %16 = vector.broadcast %1 : vector<1x64xf32> to vector<2x64xf32>
    %17 = arith.addf %15, %16 : vector<2x64xf32>
    %cst_12 = arith.constant dense<0.000000e+00> : vector<2x64xf32>
    %18 = tpu.matmul %3, %2, %cst_12 {dimension_numbers = #tpu.dot_dimension_numbers<[1], [0], [0], [1], [0, 0, 1, 1], [], []>} : vector<2x16xf32>, vector<16x64xf32>, vector<2x64xf32> -> vector<2x64xf32>
    %19 = arith.addf %17, %18 : vector<2x64xf32>
    %20 = vector.extract_strided_slice %19 {offsets = [0, 0], sizes = [2, 16], strides = [1, 1]} : vector<2x64xf32> to vector<2x16xf32>
    %cst_13 = arith.constant 0.000000e+00 : f32
    %21 = vector.broadcast %cst_13 : f32 to vector<2x16xf32>
    %22 = arith.subf %21, %20 : vector<2x16xf32>
    %23 = math.exp %22 : vector<2x16xf32>
    %cst_14 = arith.constant 1.000000e+00 : f32
    %24 = vector.broadcast %cst_14 : f32 to vector<2x16xf32>
    %25 = arith.addf %24, %23 : vector<2x16xf32>
    %cst_15 = arith.constant 1.000000e+00 : f32
    %26 = vector.broadcast %cst_15 : f32 to vector<2x16xf32>
    %27 = arith.divf %26, %25 : vector<2x16xf32>
    %28 = vector.extract_strided_slice %19 {offsets = [0, 16], sizes = [2, 16], strides = [1, 1]} : vector<2x64xf32> to vector<2x16xf32>
    %cst_16 = arith.constant 0.000000e+00 : f32
    %29 = vector.broadcast %cst_16 : f32 to vector<2x16xf32>
    %30 = arith.subf %29, %28 : vector<2x16xf32>
    %31 = math.exp %30 : vector<2x16xf32>
    %cst_17 = arith.constant 1.000000e+00 : f32
    %32 = vector.broadcast %cst_17 : f32 to vector<2x16xf32>
    %33 = arith.addf %32, %31 : vector<2x16xf32>
    %cst_18 = arith.constant 1.000000e+00 : f32
    %34 = vector.broadcast %cst_18 : f32 to vector<2x16xf32>
    %35 = arith.divf %34, %33 : vector<2x16xf32>
    %36 = vector.extract_strided_slice %19 {offsets = [0, 32], sizes = [2, 16], strides = [1, 1]} : vector<2x64xf32> to vector<2x16xf32>
    %37 = math.tanh %36 : vector<2x16xf32>
    %38 = vector.extract_strided_slice %19 {offsets = [0, 48], sizes = [2, 16], strides = [1, 1]} : vector<2x64xf32> to vector<2x16xf32>
    %cst_19 = arith.constant 0.000000e+00 : f32
    %39 = vector.broadcast %cst_19 : f32 to vector<2x16xf32>
    %40 = arith.subf %39, %38 : vector<2x16xf32>
    %41 = math.exp %40 : vector<2x16xf32>
    %cst_20 = arith.constant 1.000000e+00 : f32
    %42 = vector.broadcast %cst_20 : f32 to vector<2x16xf32>
    %43 = arith.addf %42, %41 : vector<2x16xf32>
    %cst_21 = arith.constant 1.000000e+00 : f32
    %44 = vector.broadcast %cst_21 : f32 to vector<2x16xf32>
    %45 = arith.divf %44, %43 : vector<2x16xf32>
    %46 = arith.mulf %35, %3 : vector<2x16xf32>
    %47 = arith.mulf %27, %37 : vector<2x16xf32>
    %48 = arith.addf %46, %47 : vector<2x16xf32>
    %49 = math.tanh %48 : vector<2x16xf32>
    %50 = arith.mulf %45, %49 : vector<2x16xf32>
    %c0_22 = arith.constant 0 : index
    %c0_23 = arith.constant 0 : index
    %c0_24 = arith.constant 0 : index
    %51 = vector.load %arg4[%c0_22, %c0_23, %c0_24] : memref<8x2x16xf32, #tpu.memory_space<vmem>>, vector<1x2x16xf32>
    %52 = vector.shape_cast %51 : vector<1x2x16xf32> to vector<2x16xf32>
    %53 = vector.shape_cast %50 : vector<2x16xf32> to vector<1x2x16xf32>
    tpu.vector_store %arg4[%c0_22, %c0_23, %c0_24], %53 {strides = array<i32>} : memref<8x2x16xf32, #tpu.memory_space<vmem>>, vector<1x2x16xf32>,
    %c1_25 = arith.constant 1 : index
    %c0_26 = arith.constant 0 : index
    %c0_27 = arith.constant 0 : index
    %54 = vector.load %arg0[%c1_25, %c0_26, %c0_27] : memref<8x2x32xf32, #tpu.memory_space<vmem>>, vector<1x2x32xf32>
    %55 = vector.shape_cast %54 : vector<1x2x32xf32> to vector<2x32xf32>
    %cst_28 = arith.constant dense<0.000000e+00> : vector<2xf32>
    %56 = vector.multi_reduction <add>, %55, %cst_28 [1] : vector<2x32xf32> to vector<2xf32>
    %57 = vector.shape_cast %56 : vector<2xf32> to vector<2x1xf32>
    %c0_29 = arith.constant 0 : index
    %c0_30 = arith.constant 0 : index
    %c0_31 = arith.constant 0 : index
    %58 = vector.load %arg0[%c0_29, %c0_30, %c0_31] : memref<8x2x32xf32, #tpu.memory_space<vmem>>, vector<1x2x32xf32>
    %59 = vector.shape_cast %58 : vector<1x2x32xf32> to vector<2x32xf32>
    %cst_32 = arith.constant dense<0.000000e+00> : vector<2xf32>
    %60 = vector.multi_reduction <add>, %59, %cst_32 [1] : vector<2x32xf32> to vector<2xf32>
    %61 = vector.shape_cast %60 : vector<2xf32> to vector<2x1xf32>
    %62 = arith.addf %57, %61 : vector<2x1xf32>
    %c2 = arith.constant 2 : index
    %c0_33 = arith.constant 0 : index
    %c0_34 = arith.constant 0 : index
    %63 = vector.load %arg0[%c2, %c0_33, %c0_34] : memref<8x2x32xf32, #tpu.memory_space<vmem>>, vector<1x2x32xf32>
    %64 = vector.shape_cast %63 : vector<1x2x32xf32> to vector<2x32xf32>
    %cst_35 = arith.constant dense<0.000000e+00> : vector<2xf32>
    %65 = vector.multi_reduction <add>, %64, %cst_35 [1] : vector<2x32xf32> to vector<2xf32>
    %66 = vector.shape_cast %65 : vector<2xf32> to vector<2x1xf32>
    %67 = arith.addf %62, %66 : vector<2x1xf32>
    %68 = vector.broadcast %67 : vector<2x1xf32> to vector<2x64xf32>
    %69 = vector.broadcast %0 : vector<1x64xf32> to vector<2x64xf32>
    %70 = arith.mulf %68, %69 : vector<2x64xf32>
    %71 = vector.broadcast %1 : vector<1x64xf32> to vector<2x64xf32>
    %72 = arith.addf %70, %71 : vector<2x64xf32>
    %cst_36 = arith.constant dense<0.000000e+00> : vector<2x64xf32>
    %73 = tpu.matmul %50, %2, %cst_36 {dimension_numbers = #tpu.dot_dimension_numbers<[1], [0], [0], [1], [0, 0, 1, 1], [], []>} : vector<2x16xf32>, vector<16x64xf32>, vector<2x64xf32> -> vector<2x64xf32>
    %74 = arith.addf %72, %73 : vector<2x64xf32>
    %75 = vector.extract_strided_slice %74 {offsets = [0, 0], sizes = [2, 16], strides = [1, 1]} : vector<2x64xf32> to vector<2x16xf32>
    %cst_37 = arith.constant 0.000000e+00 : f32
    %76 = vector.broadcast %cst_37 : f32 to vector<2x16xf32>
    %77 = arith.subf %76, %75 : vector<2x16xf32>
    %78 = math.exp %77 : vector<2x16xf32>
    %cst_38 = arith.constant 1.000000e+00 : f32
    %79 = vector.broadcast %cst_38 : f32 to vector<2x16xf32>
    %80 = arith.addf %79, %78 : vector<2x16xf32>
    %cst_39 = arith.constant 1.000000e+00 : f32
    %81 = vector.broadcast %cst_39 : f32 to vector<2x16xf32>
    %82 = arith.divf %81, %80 : vector<2x16xf32>
    %83 = vector.extract_strided_slice %74 {offsets = [0, 16], sizes = [2, 16], strides = [1, 1]} : vector<2x64xf32> to vector<2x16xf32>
    %cst_40 = arith.constant 0.000000e+00 : f32
    %84 = vector.broadcast %cst_40 : f32 to vector<2x16xf32>
    %85 = arith.subf %84, %83 : vector<2x16xf32>
    %86 = math.exp %85 : vector<2x16xf32>
    %cst_41 = arith.constant 1.000000e+00 : f32
    %87 = vector.broadcast %cst_41 : f32 to vector<2x16xf32>
    %88 = arith.addf %87, %86 : vector<2x16xf32>
    %cst_42 = arith.constant 1.000000e+00 : f32
    %89 = vector.broadcast %cst_42 : f32 to vector<2x16xf32>
    %90 = arith.divf %89, %88 : vector<2x16xf32>
    %91 = vector.extract_strided_slice %74 {offsets = [0, 32], sizes = [2, 16], strides = [1, 1]} : vector<2x64xf32> to vector<2x16xf32>
    %92 = math.tanh %91 : vector<2x16xf32>
    %93 = vector.extract_strided_slice %74 {offsets = [0, 48], sizes = [2, 16], strides = [1, 1]} : vector<2x64xf32> to vector<2x16xf32>
    %cst_43 = arith.constant 0.000000e+00 : f32
    %94 = vector.broadcast %cst_43 : f32 to vector<2x16xf32>
    %95 = arith.subf %94, %93 : vector<2x16xf32>
    %96 = math.exp %95 : vector<2x16xf32>
    %cst_44 = arith.constant 1.000000e+00 : f32
    %97 = vector.broadcast %cst_44 : f32 to vector<2x16xf32>
    %98 = arith.addf %97, %96 : vector<2x16xf32>
    %cst_45 = arith.constant 1.000000e+00 : f32
    %99 = vector.broadcast %cst_45 : f32 to vector<2x16xf32>
    %100 = arith.divf %99, %98 : vector<2x16xf32>
    %101 = arith.mulf %90, %48 : vector<2x16xf32>
    %102 = arith.mulf %82, %92 : vector<2x16xf32>
    %103 = arith.addf %101, %102 : vector<2x16xf32>
    %104 = math.tanh %103 : vector<2x16xf32>
    %105 = arith.mulf %100, %104 : vector<2x16xf32>
    %c1_46 = arith.constant 1 : index
    %c0_47 = arith.constant 0 : index
    %c0_48 = arith.constant 0 : index
    %106 = vector.load %arg4[%c1_46, %c0_47, %c0_48] : memref<8x2x16xf32, #tpu.memory_space<vmem>>, vector<1x2x16xf32>
    %107 = vector.shape_cast %106 : vector<1x2x16xf32> to vector<2x16xf32>
    %108 = vector.shape_cast %105 : vector<2x16xf32> to vector<1x2x16xf32>
    tpu.vector_store %arg4[%c1_46, %c0_47, %c0_48], %108 {strides = array<i32>} : memref<8x2x16xf32, #tpu.memory_space<vmem>>, vector<1x2x16xf32>,
    %c2_49 = arith.constant 2 : index
    %c0_50 = arith.constant 0 : index
    %c0_51 = arith.constant 0 : index
    %109 = vector.load %arg0[%c2_49, %c0_50, %c0_51] : memref<8x2x32xf32, #tpu.memory_space<vmem>>, vector<1x2x32xf32>
    %110 = vector.shape_cast %109 : vector<1x2x32xf32> to vector<2x32xf32>
    %cst_52 = arith.constant dense<0.000000e+00> : vector<2xf32>
    %111 = vector.multi_reduction <add>, %110, %cst_52 [1] : vector<2x32xf32> to vector<2xf32>
    %112 = vector.shape_cast %111 : vector<2xf32> to vector<2x1xf32>
    %c1_53 = arith.constant 1 : index
    %c0_54 = arith.constant 0 : index
    %c0_55 = arith.constant 0 : index
    %113 = vector.load %arg0[%c1_53, %c0_54, %c0_55] : memref<8x2x32xf32, #tpu.memory_space<vmem>>, vector<1x2x32xf32>
    %114 = vector.shape_cast %113 : vector<1x2x32xf32> to vector<2x32xf32>
    %cst_56 = arith.constant dense<0.000000e+00> : vector<2xf32>
    %115 = vector.multi_reduction <add>, %114, %cst_56 [1] : vector<2x32xf32> to vector<2xf32>
    %116 = vector.shape_cast %115 : vector<2xf32> to vector<2x1xf32>
    %117 = arith.addf %112, %116 : vector<2x1xf32>
    %c3 = arith.constant 3 : index
    %c0_57 = arith.constant 0 : index
    %c0_58 = arith.constant 0 : index
    %118 = vector.load %arg0[%c3, %c0_57, %c0_58] : memref<8x2x32xf32, #tpu.memory_space<vmem>>, vector<1x2x32xf32>
    %119 = vector.shape_cast %118 : vector<1x2x32xf32> to vector<2x32xf32>
    %cst_59 = arith.constant dense<0.000000e+00> : vector<2xf32>
    %120 = vector.multi_reduction <add>, %119, %cst_59 [1] : vector<2x32xf32> to vector<2xf32>
    %121 = vector.shape_cast %120 : vector<2xf32> to vector<2x1xf32>
    %122 = arith.addf %117, %121 : vector<2x1xf32>
    %123 = vector.broadcast %122 : vector<2x1xf32> to vector<2x64xf32>
    %124 = vector.broadcast %0 : vector<1x64xf32> to vector<2x64xf32>
    %125 = arith.mulf %123, %124 : vector<2x64xf32>
    %126 = vector.broadcast %1 : vector<1x64xf32> to vector<2x64xf32>
    %127 = arith.addf %125, %126 : vector<2x64xf32>
    %cst_60 = arith.constant dense<0.000000e+00> : vector<2x64xf32>
    %128 = tpu.matmul %105, %2, %cst_60 {dimension_numbers = #tpu.dot_dimension_numbers<[1], [0], [0], [1], [0, 0, 1, 1], [], []>} : vector<2x16xf32>, vector<16x64xf32>, vector<2x64xf32> -> vector<2x64xf32>
    %129 = arith.addf %127, %128 : vector<2x64xf32>
    %130 = vector.extract_strided_slice %129 {offsets = [0, 0], sizes = [2, 16], strides = [1, 1]} : vector<2x64xf32> to vector<2x16xf32>
    %cst_61 = arith.constant 0.000000e+00 : f32
    %131 = vector.broadcast %cst_61 : f32 to vector<2x16xf32>
    %132 = arith.subf %131, %130 : vector<2x16xf32>
    %133 = math.exp %132 : vector<2x16xf32>
    %cst_62 = arith.constant 1.000000e+00 : f32
    %134 = vector.broadcast %cst_62 : f32 to vector<2x16xf32>
    %135 = arith.addf %134, %133 : vector<2x16xf32>
    %cst_63 = arith.constant 1.000000e+00 : f32
    %136 = vector.broadcast %cst_63 : f32 to vector<2x16xf32>
    %137 = arith.divf %136, %135 : vector<2x16xf32>
    %138 = vector.extract_strided_slice %129 {offsets = [0, 16], sizes = [2, 16], strides = [1, 1]} : vector<2x64xf32> to vector<2x16xf32>
    %cst_64 = arith.constant 0.000000e+00 : f32
    %139 = vector.broadcast %cst_64 : f32 to vector<2x16xf32>
    %140 = arith.subf %139, %138 : vector<2x16xf32>
    %141 = math.exp %140 : vector<2x16xf32>
    %cst_65 = arith.constant 1.000000e+00 : f32
    %142 = vector.broadcast %cst_65 : f32 to vector<2x16xf32>
    %143 = arith.addf %142, %141 : vector<2x16xf32>
    %cst_66 = arith.constant 1.000000e+00 : f32
    %144 = vector.broadcast %cst_66 : f32 to vector<2x16xf32>
    %145 = arith.divf %144, %143 : vector<2x16xf32>
    %146 = vector.extract_strided_slice %129 {offsets = [0, 32], sizes = [2, 16], strides = [1, 1]} : vector<2x64xf32> to vector<2x16xf32>
    %147 = math.tanh %146 : vector<2x16xf32>
    %148 = vector.extract_strided_slice %129 {offsets = [0, 48], sizes = [2, 16], strides = [1, 1]} : vector<2x64xf32> to vector<2x16xf32>
    %cst_67 = arith.constant 0.000000e+00 : f32
    %149 = vector.broadcast %cst_67 : f32 to vector<2x16xf32>
    %150 = arith.subf %149, %148 : vector<2x16xf32>
    %151 = math.exp %150 : vector<2x16xf32>
    %cst_68 = arith.constant 1.000000e+00 : f32
    %152 = vector.broadcast %cst_68 : f32 to vector<2x16xf32>
    %153 = arith.addf %152, %151 : vector<2x16xf32>
    %cst_69 = arith.constant 1.000000e+00 : f32
    %154 = vector.broadcast %cst_69 : f32 to vector<2x16xf32>
    %155 = arith.divf %154, %153 : vector<2x16xf32>
    %156 = arith.mulf %145, %103 : vector<2x16xf32>
    %157 = arith.mulf %137, %147 : vector<2x16xf32>
    %158 = arith.addf %156, %157 : vector<2x16xf32>
    %159 = math.tanh %158 : vector<2x16xf32>
    %160 = arith.mulf %155, %159 : vector<2x16xf32>
    %c2_70 = arith.constant 2 : index
    %c0_71 = arith.constant 0 : index
    %c0_72 = arith.constant 0 : index
    %161 = vector.load %arg4[%c2_70, %c0_71, %c0_72] : memref<8x2x16xf32, #tpu.memory_space<vmem>>, vector<1x2x16xf32>
    %162 = vector.shape_cast %161 : vector<1x2x16xf32> to vector<2x16xf32>
    %163 = vector.shape_cast %160 : vector<2x16xf32> to vector<1x2x16xf32>
    tpu.vector_store %arg4[%c2_70, %c0_71, %c0_72], %163 {strides = array<i32>} : memref<8x2x16xf32, #tpu.memory_space<vmem>>, vector<1x2x16xf32>,
    %c3_73 = arith.constant 3 : index
    %c0_74 = arith.constant 0 : index
    %c0_75 = arith.constant 0 : index
    %164 = vector.load %arg0[%c3_73, %c0_74, %c0_75] : memref<8x2x32xf32, #tpu.memory_space<vmem>>, vector<1x2x32xf32>
    %165 = vector.shape_cast %164 : vector<1x2x32xf32> to vector<2x32xf32>
    %cst_76 = arith.constant dense<0.000000e+00> : vector<2xf32>
    %166 = vector.multi_reduction <add>, %165, %cst_76 [1] : vector<2x32xf32> to vector<2xf32>
    %167 = vector.shape_cast %166 : vector<2xf32> to vector<2x1xf32>
    %c2_77 = arith.constant 2 : index
    %c0_78 = arith.constant 0 : index
    %c0_79 = arith.constant 0 : index
    %168 = vector.load %arg0[%c2_77, %c0_78, %c0_79] : memref<8x2x32xf32, #tpu.memory_space<vmem>>, vector<1x2x32xf32>
    %169 = vector.shape_cast %168 : vector<1x2x32xf32> to vector<2x32xf32>
    %cst_80 = arith.constant dense<0.000000e+00> : vector<2xf32>
    %170 = vector.multi_reduction <add>, %169, %cst_80 [1] : vector<2x32xf32> to vector<2xf32>
    %171 = vector.shape_cast %170 : vector<2xf32> to vector<2x1xf32>
    %172 = arith.addf %167, %171 : vector<2x1xf32>
    %c4 = arith.constant 4 : index
    %c0_81 = arith.constant 0 : index
    %c0_82 = arith.constant 0 : index
    %173 = vector.load %arg0[%c4, %c0_81, %c0_82] : memref<8x2x32xf32, #tpu.memory_space<vmem>>, vector<1x2x32xf32>
    %174 = vector.shape_cast %173 : vector<1x2x32xf32> to vector<2x32xf32>
    %cst_83 = arith.constant dense<0.000000e+00> : vector<2xf32>
    %175 = vector.multi_reduction <add>, %174, %cst_83 [1] : vector<2x32xf32> to vector<2xf32>
    %176 = vector.shape_cast %175 : vector<2xf32> to vector<2x1xf32>
    %177 = arith.addf %172, %176 : vector<2x1xf32>
    %178 = vector.broadcast %177 : vector<2x1xf32> to vector<2x64xf32>
    %179 = vector.broadcast %0 : vector<1x64xf32> to vector<2x64xf32>
    %180 = arith.mulf %178, %179 : vector<2x64xf32>
    %181 = vector.broadcast %1 : vector<1x64xf32> to vector<2x64xf32>
    %182 = arith.addf %180, %181 : vector<2x64xf32>
    %cst_84 = arith.constant dense<0.000000e+00> : vector<2x64xf32>
    %183 = tpu.matmul %160, %2, %cst_84 {dimension_numbers = #tpu.dot_dimension_numbers<[1], [0], [0], [1], [0, 0, 1, 1], [], []>} : vector<2x16xf32>, vector<16x64xf32>, vector<2x64xf32> -> vector<2x64xf32>
    %184 = arith.addf %182, %183 : vector<2x64xf32>
    %185 = vector.extract_strided_slice %184 {offsets = [0, 0], sizes = [2, 16], strides = [1, 1]} : vector<2x64xf32> to vector<2x16xf32>
    %cst_85 = arith.constant 0.000000e+00 : f32
    %186 = vector.broadcast %cst_85 : f32 to vector<2x16xf32>
    %187 = arith.subf %186, %185 : vector<2x16xf32>
    %188 = math.exp %187 : vector<2x16xf32>
    %cst_86 = arith.constant 1.000000e+00 : f32
    %189 = vector.broadcast %cst_86 : f32 to vector<2x16xf32>
    %190 = arith.addf %189, %188 : vector<2x16xf32>
    %cst_87 = arith.constant 1.000000e+00 : f32
    %191 = vector.broadcast %cst_87 : f32 to vector<2x16xf32>
    %192 = arith.divf %191, %190 : vector<2x16xf32>
    %193 = vector.extract_strided_slice %184 {offsets = [0, 16], sizes = [2, 16], strides = [1, 1]} : vector<2x64xf32> to vector<2x16xf32>
    %cst_88 = arith.constant 0.000000e+00 : f32
    %194 = vector.broadcast %cst_88 : f32 to vector<2x16xf32>
    %195 = arith.subf %194, %193 : vector<2x16xf32>
    %196 = math.exp %195 : vector<2x16xf32>
    %cst_89 = arith.constant 1.000000e+00 : f32
    %197 = vector.broadcast %cst_89 : f32 to vector<2x16xf32>
    %198 = arith.addf %197, %196 : vector<2x16xf32>
    %cst_90 = arith.constant 1.000000e+00 : f32
    %199 = vector.broadcast %cst_90 : f32 to vector<2x16xf32>
    %200 = arith.divf %199, %198 : vector<2x16xf32>
    %201 = vector.extract_strided_slice %184 {offsets = [0, 32], sizes = [2, 16], strides = [1, 1]} : vector<2x64xf32> to vector<2x16xf32>
    %202 = math.tanh %201 : vector<2x16xf32>
    %203 = vector.extract_strided_slice %184 {offsets = [0, 48], sizes = [2, 16], strides = [1, 1]} : vector<2x64xf32> to vector<2x16xf32>
    %cst_91 = arith.constant 0.000000e+00 : f32
    %204 = vector.broadcast %cst_91 : f32 to vector<2x16xf32>
    %205 = arith.subf %204, %203 : vector<2x16xf32>
    %206 = math.exp %205 : vector<2x16xf32>
    %cst_92 = arith.constant 1.000000e+00 : f32
    %207 = vector.broadcast %cst_92 : f32 to vector<2x16xf32>
    %208 = arith.addf %207, %206 : vector<2x16xf32>
    %cst_93 = arith.constant 1.000000e+00 : f32
    %209 = vector.broadcast %cst_93 : f32 to vector<2x16xf32>
    %210 = arith.divf %209, %208 : vector<2x16xf32>
    %211 = arith.mulf %200, %158 : vector<2x16xf32>
    %212 = arith.mulf %192, %202 : vector<2x16xf32>
    %213 = arith.addf %211, %212 : vector<2x16xf32>
    %214 = math.tanh %213 : vector<2x16xf32>
    %215 = arith.mulf %210, %214 : vector<2x16xf32>
    %c3_94 = arith.constant 3 : index
    %c0_95 = arith.constant 0 : index
    %c0_96 = arith.constant 0 : index
    %216 = vector.load %arg4[%c3_94, %c0_95, %c0_96] : memref<8x2x16xf32, #tpu.memory_space<vmem>>, vector<1x2x16xf32>
    %217 = vector.shape_cast %216 : vector<1x2x16xf32> to vector<2x16xf32>
    %218 = vector.shape_cast %215 : vector<2x16xf32> to vector<1x2x16xf32>
    tpu.vector_store %arg4[%c3_94, %c0_95, %c0_96], %218 {strides = array<i32>} : memref<8x2x16xf32, #tpu.memory_space<vmem>>, vector<1x2x16xf32>,
    %c4_97 = arith.constant 4 : index
    %c0_98 = arith.constant 0 : index
    %c0_99 = arith.constant 0 : index
    %219 = vector.load %arg0[%c4_97, %c0_98, %c0_99] : memref<8x2x32xf32, #tpu.memory_space<vmem>>, vector<1x2x32xf32>
    %220 = vector.shape_cast %219 : vector<1x2x32xf32> to vector<2x32xf32>
    %cst_100 = arith.constant dense<0.000000e+00> : vector<2xf32>
    %221 = vector.multi_reduction <add>, %220, %cst_100 [1] : vector<2x32xf32> to vector<2xf32>
    %222 = vector.shape_cast %221 : vector<2xf32> to vector<2x1xf32>
    %c3_101 = arith.constant 3 : index
    %c0_102 = arith.constant 0 : index
    %c0_103 = arith.constant 0 : index
    %223 = vector.load %arg0[%c3_101, %c0_102, %c0_103] : memref<8x2x32xf32, #tpu.memory_space<vmem>>, vector<1x2x32xf32>
    %224 = vector.shape_cast %223 : vector<1x2x32xf32> to vector<2x32xf32>
    %cst_104 = arith.constant dense<0.000000e+00> : vector<2xf32>
    %225 = vector.multi_reduction <add>, %224, %cst_104 [1] : vector<2x32xf32> to vector<2xf32>
    %226 = vector.shape_cast %225 : vector<2xf32> to vector<2x1xf32>
    %227 = arith.addf %222, %226 : vector<2x1xf32>
    %c5 = arith.constant 5 : index
    %c0_105 = arith.constant 0 : index
    %c0_106 = arith.constant 0 : index
    %228 = vector.load %arg0[%c5, %c0_105, %c0_106] : memref<8x2x32xf32, #tpu.memory_space<vmem>>, vector<1x2x32xf32>
    %229 = vector.shape_cast %228 : vector<1x2x32xf32> to vector<2x32xf32>
    %cst_107 = arith.constant dense<0.000000e+00> : vector<2xf32>
    %230 = vector.multi_reduction <add>, %229, %cst_107 [1] : vector<2x32xf32> to vector<2xf32>
    %231 = vector.shape_cast %230 : vector<2xf32> to vector<2x1xf32>
    %232 = arith.addf %227, %231 : vector<2x1xf32>
    %233 = vector.broadcast %232 : vector<2x1xf32> to vector<2x64xf32>
    %234 = vector.broadcast %0 : vector<1x64xf32> to vector<2x64xf32>
    %235 = arith.mulf %233, %234 : vector<2x64xf32>
    %236 = vector.broadcast %1 : vector<1x64xf32> to vector<2x64xf32>
    %237 = arith.addf %235, %236 : vector<2x64xf32>
    %cst_108 = arith.constant dense<0.000000e+00> : vector<2x64xf32>
    %238 = tpu.matmul %215, %2, %cst_108 {dimension_numbers = #tpu.dot_dimension_numbers<[1], [0], [0], [1], [0, 0, 1, 1], [], []>} : vector<2x16xf32>, vector<16x64xf32>, vector<2x64xf32> -> vector<2x64xf32>
    %239 = arith.addf %237, %238 : vector<2x64xf32>
    %240 = vector.extract_strided_slice %239 {offsets = [0, 0], sizes = [2, 16], strides = [1, 1]} : vector<2x64xf32> to vector<2x16xf32>
    %cst_109 = arith.constant 0.000000e+00 : f32
    %241 = vector.broadcast %cst_109 : f32 to vector<2x16xf32>
    %242 = arith.subf %241, %240 : vector<2x16xf32>
    %243 = math.exp %242 : vector<2x16xf32>
    %cst_110 = arith.constant 1.000000e+00 : f32
    %244 = vector.broadcast %cst_110 : f32 to vector<2x16xf32>
    %245 = arith.addf %244, %243 : vector<2x16xf32>
    %cst_111 = arith.constant 1.000000e+00 : f32
    %246 = vector.broadcast %cst_111 : f32 to vector<2x16xf32>
    %247 = arith.divf %246, %245 : vector<2x16xf32>
    %248 = vector.extract_strided_slice %239 {offsets = [0, 16], sizes = [2, 16], strides = [1, 1]} : vector<2x64xf32> to vector<2x16xf32>
    %cst_112 = arith.constant 0.000000e+00 : f32
    %249 = vector.broadcast %cst_112 : f32 to vector<2x16xf32>
    %250 = arith.subf %249, %248 : vector<2x16xf32>
    %251 = math.exp %250 : vector<2x16xf32>
    %cst_113 = arith.constant 1.000000e+00 : f32
    %252 = vector.broadcast %cst_113 : f32 to vector<2x16xf32>
    %253 = arith.addf %252, %251 : vector<2x16xf32>
    %cst_114 = arith.constant 1.000000e+00 : f32
    %254 = vector.broadcast %cst_114 : f32 to vector<2x16xf32>
    %255 = arith.divf %254, %253 : vector<2x16xf32>
    %256 = vector.extract_strided_slice %239 {offsets = [0, 32], sizes = [2, 16], strides = [1, 1]} : vector<2x64xf32> to vector<2x16xf32>
    %257 = math.tanh %256 : vector<2x16xf32>
    %258 = vector.extract_strided_slice %239 {offsets = [0, 48], sizes = [2, 16], strides = [1, 1]} : vector<2x64xf32> to vector<2x16xf32>
    %cst_115 = arith.constant 0.000000e+00 : f32
    %259 = vector.broadcast %cst_115 : f32 to vector<2x16xf32>
    %260 = arith.subf %259, %258 : vector<2x16xf32>
    %261 = math.exp %260 : vector<2x16xf32>
    %cst_116 = arith.constant 1.000000e+00 : f32
    %262 = vector.broadcast %cst_116 : f32 to vector<2x16xf32>
    %263 = arith.addf %262, %261 : vector<2x16xf32>
    %cst_117 = arith.constant 1.000000e+00 : f32
    %264 = vector.broadcast %cst_117 : f32 to vector<2x16xf32>
    %265 = arith.divf %264, %263 : vector<2x16xf32>
    %266 = arith.mulf %255, %213 : vector<2x16xf32>
    %267 = arith.mulf %247, %257 : vector<2x16xf32>
    %268 = arith.addf %266, %267 : vector<2x16xf32>
    %269 = math.tanh %268 : vector<2x16xf32>
    %270 = arith.mulf %265, %269 : vector<2x16xf32>
    %c4_118 = arith.constant 4 : index
    %c0_119 = arith.constant 0 : index
    %c0_120 = arith.constant 0 : index
    %271 = vector.load %arg4[%c4_118, %c0_119, %c0_120] : memref<8x2x16xf32, #tpu.memory_space<vmem>>, vector<1x2x16xf32>
    %272 = vector.shape_cast %271 : vector<1x2x16xf32> to vector<2x16xf32>
    %273 = vector.shape_cast %270 : vector<2x16xf32> to vector<1x2x16xf32>
    tpu.vector_store %arg4[%c4_118, %c0_119, %c0_120], %273 {strides = array<i32>} : memref<8x2x16xf32, #tpu.memory_space<vmem>>, vector<1x2x16xf32>,
    %c5_121 = arith.constant 5 : index
    %c0_122 = arith.constant 0 : index
    %c0_123 = arith.constant 0 : index
    %274 = vector.load %arg0[%c5_121, %c0_122, %c0_123] : memref<8x2x32xf32, #tpu.memory_space<vmem>>, vector<1x2x32xf32>
    %275 = vector.shape_cast %274 : vector<1x2x32xf32> to vector<2x32xf32>
    %cst_124 = arith.constant dense<0.000000e+00> : vector<2xf32>
    %276 = vector.multi_reduction <add>, %275, %cst_124 [1] : vector<2x32xf32> to vector<2xf32>
    %277 = vector.shape_cast %276 : vector<2xf32> to vector<2x1xf32>
    %c4_125 = arith.constant 4 : index
    %c0_126 = arith.constant 0 : index
    %c0_127 = arith.constant 0 : index
    %278 = vector.load %arg0[%c4_125, %c0_126, %c0_127] : memref<8x2x32xf32, #tpu.memory_space<vmem>>, vector<1x2x32xf32>
    %279 = vector.shape_cast %278 : vector<1x2x32xf32> to vector<2x32xf32>
    %cst_128 = arith.constant dense<0.000000e+00> : vector<2xf32>
    %280 = vector.multi_reduction <add>, %279, %cst_128 [1] : vector<2x32xf32> to vector<2xf32>
    %281 = vector.shape_cast %280 : vector<2xf32> to vector<2x1xf32>
    %282 = arith.addf %277, %281 : vector<2x1xf32>
    %c6 = arith.constant 6 : index
    %c0_129 = arith.constant 0 : index
    %c0_130 = arith.constant 0 : index
    %283 = vector.load %arg0[%c6, %c0_129, %c0_130] : memref<8x2x32xf32, #tpu.memory_space<vmem>>, vector<1x2x32xf32>
    %284 = vector.shape_cast %283 : vector<1x2x32xf32> to vector<2x32xf32>
    %cst_131 = arith.constant dense<0.000000e+00> : vector<2xf32>
    %285 = vector.multi_reduction <add>, %284, %cst_131 [1] : vector<2x32xf32> to vector<2xf32>
    %286 = vector.shape_cast %285 : vector<2xf32> to vector<2x1xf32>
    %287 = arith.addf %282, %286 : vector<2x1xf32>
    %288 = vector.broadcast %287 : vector<2x1xf32> to vector<2x64xf32>
    %289 = vector.broadcast %0 : vector<1x64xf32> to vector<2x64xf32>
    %290 = arith.mulf %288, %289 : vector<2x64xf32>
    %291 = vector.broadcast %1 : vector<1x64xf32> to vector<2x64xf32>
    %292 = arith.addf %290, %291 : vector<2x64xf32>
    %cst_132 = arith.constant dense<0.000000e+00> : vector<2x64xf32>
    %293 = tpu.matmul %270, %2, %cst_132 {dimension_numbers = #tpu.dot_dimension_numbers<[1], [0], [0], [1], [0, 0, 1, 1], [], []>} : vector<2x16xf32>, vector<16x64xf32>, vector<2x64xf32> -> vector<2x64xf32>
    %294 = arith.addf %292, %293 : vector<2x64xf32>
    %295 = vector.extract_strided_slice %294 {offsets = [0, 0], sizes = [2, 16], strides = [1, 1]} : vector<2x64xf32> to vector<2x16xf32>
    %cst_133 = arith.constant 0.000000e+00 : f32
    %296 = vector.broadcast %cst_133 : f32 to vector<2x16xf32>
    %297 = arith.subf %296, %295 : vector<2x16xf32>
    %298 = math.exp %297 : vector<2x16xf32>
    %cst_134 = arith.constant 1.000000e+00 : f32
    %299 = vector.broadcast %cst_134 : f32 to vector<2x16xf32>
    %300 = arith.addf %299, %298 : vector<2x16xf32>
    %cst_135 = arith.constant 1.000000e+00 : f32
    %301 = vector.broadcast %cst_135 : f32 to vector<2x16xf32>
    %302 = arith.divf %301, %300 : vector<2x16xf32>
    %303 = vector.extract_strided_slice %294 {offsets = [0, 16], sizes = [2, 16], strides = [1, 1]} : vector<2x64xf32> to vector<2x16xf32>
    %cst_136 = arith.constant 0.000000e+00 : f32
    %304 = vector.broadcast %cst_136 : f32 to vector<2x16xf32>
    %305 = arith.subf %304, %303 : vector<2x16xf32>
    %306 = math.exp %305 : vector<2x16xf32>
    %cst_137 = arith.constant 1.000000e+00 : f32
    %307 = vector.broadcast %cst_137 : f32 to vector<2x16xf32>
    %308 = arith.addf %307, %306 : vector<2x16xf32>
    %cst_138 = arith.constant 1.000000e+00 : f32
    %309 = vector.broadcast %cst_138 : f32 to vector<2x16xf32>
    %310 = arith.divf %309, %308 : vector<2x16xf32>
    %311 = vector.extract_strided_slice %294 {offsets = [0, 32], sizes = [2, 16], strides = [1, 1]} : vector<2x64xf32> to vector<2x16xf32>
    %312 = math.tanh %311 : vector<2x16xf32>
    %313 = vector.extract_strided_slice %294 {offsets = [0, 48], sizes = [2, 16], strides = [1, 1]} : vector<2x64xf32> to vector<2x16xf32>
    %cst_139 = arith.constant 0.000000e+00 : f32
    %314 = vector.broadcast %cst_139 : f32 to vector<2x16xf32>
    %315 = arith.subf %314, %313 : vector<2x16xf32>
    %316 = math.exp %315 : vector<2x16xf32>
    %cst_140 = arith.constant 1.000000e+00 : f32
    %317 = vector.broadcast %cst_140 : f32 to vector<2x16xf32>
    %318 = arith.addf %317, %316 : vector<2x16xf32>
    %cst_141 = arith.constant 1.000000e+00 : f32
    %319 = vector.broadcast %cst_141 : f32 to vector<2x16xf32>
    %320 = arith.divf %319, %318 : vector<2x16xf32>
    %321 = arith.mulf %310, %268 : vector<2x16xf32>
    %322 = arith.mulf %302, %312 : vector<2x16xf32>
    %323 = arith.addf %321, %322 : vector<2x16xf32>
    %324 = math.tanh %323 : vector<2x16xf32>
    %325 = arith.mulf %320, %324 : vector<2x16xf32>
    %c5_142 = arith.constant 5 : index
    %c0_143 = arith.constant 0 : index
    %c0_144 = arith.constant 0 : index
    %326 = vector.load %arg4[%c5_142, %c0_143, %c0_144] : memref<8x2x16xf32, #tpu.memory_space<vmem>>, vector<1x2x16xf32>
    %327 = vector.shape_cast %326 : vector<1x2x16xf32> to vector<2x16xf32>
    %328 = vector.shape_cast %325 : vector<2x16xf32> to vector<1x2x16xf32>
    tpu.vector_store %arg4[%c5_142, %c0_143, %c0_144], %328 {strides = array<i32>} : memref<8x2x16xf32, #tpu.memory_space<vmem>>, vector<1x2x16xf32>,
    %c6_145 = arith.constant 6 : index
    %c0_146 = arith.constant 0 : index
    %c0_147 = arith.constant 0 : index
    %329 = vector.load %arg0[%c6_145, %c0_146, %c0_147] : memref<8x2x32xf32, #tpu.memory_space<vmem>>, vector<1x2x32xf32>
    %330 = vector.shape_cast %329 : vector<1x2x32xf32> to vector<2x32xf32>
    %cst_148 = arith.constant dense<0.000000e+00> : vector<2xf32>
    %331 = vector.multi_reduction <add>, %330, %cst_148 [1] : vector<2x32xf32> to vector<2xf32>
    %332 = vector.shape_cast %331 : vector<2xf32> to vector<2x1xf32>
    %c5_149 = arith.constant 5 : index
    %c0_150 = arith.constant 0 : index
    %c0_151 = arith.constant 0 : index
    %333 = vector.load %arg0[%c5_149, %c0_150, %c0_151] : memref<8x2x32xf32, #tpu.memory_space<vmem>>, vector<1x2x32xf32>
    %334 = vector.shape_cast %333 : vector<1x2x32xf32> to vector<2x32xf32>
    %cst_152 = arith.constant dense<0.000000e+00> : vector<2xf32>
    %335 = vector.multi_reduction <add>, %334, %cst_152 [1] : vector<2x32xf32> to vector<2xf32>
    %336 = vector.shape_cast %335 : vector<2xf32> to vector<2x1xf32>
    %337 = arith.addf %332, %336 : vector<2x1xf32>
    %c7 = arith.constant 7 : index
    %c0_153 = arith.constant 0 : index
    %c0_154 = arith.constant 0 : index
    %338 = vector.load %arg0[%c7, %c0_153, %c0_154] : memref<8x2x32xf32, #tpu.memory_space<vmem>>, vector<1x2x32xf32>
    %339 = vector.shape_cast %338 : vector<1x2x32xf32> to vector<2x32xf32>
    %cst_155 = arith.constant dense<0.000000e+00> : vector<2xf32>
    %340 = vector.multi_reduction <add>, %339, %cst_155 [1] : vector<2x32xf32> to vector<2xf32>
    %341 = vector.shape_cast %340 : vector<2xf32> to vector<2x1xf32>
    %342 = arith.addf %337, %341 : vector<2x1xf32>
    %343 = vector.broadcast %342 : vector<2x1xf32> to vector<2x64xf32>
    %344 = vector.broadcast %0 : vector<1x64xf32> to vector<2x64xf32>
    %345 = arith.mulf %343, %344 : vector<2x64xf32>
    %346 = vector.broadcast %1 : vector<1x64xf32> to vector<2x64xf32>
    %347 = arith.addf %345, %346 : vector<2x64xf32>
    %cst_156 = arith.constant dense<0.000000e+00> : vector<2x64xf32>
    %348 = tpu.matmul %325, %2, %cst_156 {dimension_numbers = #tpu.dot_dimension_numbers<[1], [0], [0], [1], [0, 0, 1, 1], [], []>} : vector<2x16xf32>, vector<16x64xf32>, vector<2x64xf32> -> vector<2x64xf32>
    %349 = arith.addf %347, %348 : vector<2x64xf32>
    %350 = vector.extract_strided_slice %349 {offsets = [0, 0], sizes = [2, 16], strides = [1, 1]} : vector<2x64xf32> to vector<2x16xf32>
    %cst_157 = arith.constant 0.000000e+00 : f32
    %351 = vector.broadcast %cst_157 : f32 to vector<2x16xf32>
    %352 = arith.subf %351, %350 : vector<2x16xf32>
    %353 = math.exp %352 : vector<2x16xf32>
    %cst_158 = arith.constant 1.000000e+00 : f32
    %354 = vector.broadcast %cst_158 : f32 to vector<2x16xf32>
    %355 = arith.addf %354, %353 : vector<2x16xf32>
    %cst_159 = arith.constant 1.000000e+00 : f32
    %356 = vector.broadcast %cst_159 : f32 to vector<2x16xf32>
    %357 = arith.divf %356, %355 : vector<2x16xf32>
    %358 = vector.extract_strided_slice %349 {offsets = [0, 16], sizes = [2, 16], strides = [1, 1]} : vector<2x64xf32> to vector<2x16xf32>
    %cst_160 = arith.constant 0.000000e+00 : f32
    %359 = vector.broadcast %cst_160 : f32 to vector<2x16xf32>
    %360 = arith.subf %359, %358 : vector<2x16xf32>
    %361 = math.exp %360 : vector<2x16xf32>
    %cst_161 = arith.constant 1.000000e+00 : f32
    %362 = vector.broadcast %cst_161 : f32 to vector<2x16xf32>
    %363 = arith.addf %362, %361 : vector<2x16xf32>
    %cst_162 = arith.constant 1.000000e+00 : f32
    %364 = vector.broadcast %cst_162 : f32 to vector<2x16xf32>
    %365 = arith.divf %364, %363 : vector<2x16xf32>
    %366 = vector.extract_strided_slice %349 {offsets = [0, 32], sizes = [2, 16], strides = [1, 1]} : vector<2x64xf32> to vector<2x16xf32>
    %367 = math.tanh %366 : vector<2x16xf32>
    %368 = vector.extract_strided_slice %349 {offsets = [0, 48], sizes = [2, 16], strides = [1, 1]} : vector<2x64xf32> to vector<2x16xf32>
    %cst_163 = arith.constant 0.000000e+00 : f32
    %369 = vector.broadcast %cst_163 : f32 to vector<2x16xf32>
    %370 = arith.subf %369, %368 : vector<2x16xf32>
    %371 = math.exp %370 : vector<2x16xf32>
    %cst_164 = arith.constant 1.000000e+00 : f32
    %372 = vector.broadcast %cst_164 : f32 to vector<2x16xf32>
    %373 = arith.addf %372, %371 : vector<2x16xf32>
    %cst_165 = arith.constant 1.000000e+00 : f32
    %374 = vector.broadcast %cst_165 : f32 to vector<2x16xf32>
    %375 = arith.divf %374, %373 : vector<2x16xf32>
    %376 = arith.mulf %365, %323 : vector<2x16xf32>
    %377 = arith.mulf %357, %367 : vector<2x16xf32>
    %378 = arith.addf %376, %377 : vector<2x16xf32>
    %379 = math.tanh %378 : vector<2x16xf32>
    %380 = arith.mulf %375, %379 : vector<2x16xf32>
    %c6_166 = arith.constant 6 : index
    %c0_167 = arith.constant 0 : index
    %c0_168 = arith.constant 0 : index
    %381 = vector.load %arg4[%c6_166, %c0_167, %c0_168] : memref<8x2x16xf32, #tpu.memory_space<vmem>>, vector<1x2x16xf32>
    %382 = vector.shape_cast %381 : vector<1x2x16xf32> to vector<2x16xf32>
    %383 = vector.shape_cast %380 : vector<2x16xf32> to vector<1x2x16xf32>
    tpu.vector_store %arg4[%c6_166, %c0_167, %c0_168], %383 {strides = array<i32>} : memref<8x2x16xf32, #tpu.memory_space<vmem>>, vector<1x2x16xf32>,
    %c7_169 = arith.constant 7 : index
    %c0_170 = arith.constant 0 : index
    %c0_171 = arith.constant 0 : index
    %384 = vector.load %arg0[%c7_169, %c0_170, %c0_171] : memref<8x2x32xf32, #tpu.memory_space<vmem>>, vector<1x2x32xf32>
    %385 = vector.shape_cast %384 : vector<1x2x32xf32> to vector<2x32xf32>
    %cst_172 = arith.constant dense<0.000000e+00> : vector<2xf32>
    %386 = vector.multi_reduction <add>, %385, %cst_172 [1] : vector<2x32xf32> to vector<2xf32>
    %387 = vector.shape_cast %386 : vector<2xf32> to vector<2x1xf32>
    %c6_173 = arith.constant 6 : index
    %c0_174 = arith.constant 0 : index
    %c0_175 = arith.constant 0 : index
    %388 = vector.load %arg0[%c6_173, %c0_174, %c0_175] : memref<8x2x32xf32, #tpu.memory_space<vmem>>, vector<1x2x32xf32>
    %389 = vector.shape_cast %388 : vector<1x2x32xf32> to vector<2x32xf32>
    %cst_176 = arith.constant dense<0.000000e+00> : vector<2xf32>
    %390 = vector.multi_reduction <add>, %389, %cst_176 [1] : vector<2x32xf32> to vector<2xf32>
    %391 = vector.shape_cast %390 : vector<2xf32> to vector<2x1xf32>
    %392 = arith.addf %387, %391 : vector<2x1xf32>
    %393 = vector.broadcast %392 : vector<2x1xf32> to vector<2x64xf32>
    %394 = vector.broadcast %0 : vector<1x64xf32> to vector<2x64xf32>
    %395 = arith.mulf %393, %394 : vector<2x64xf32>
    %396 = vector.broadcast %1 : vector<1x64xf32> to vector<2x64xf32>
    %397 = arith.addf %395, %396 : vector<2x64xf32>
    %cst_177 = arith.constant dense<0.000000e+00> : vector<2x64xf32>
    %398 = tpu.matmul %380, %2, %cst_177 {dimension_numbers = #tpu.dot_dimension_numbers<[1], [0], [0], [1], [0, 0, 1, 1], [], []>} : vector<2x16xf32>, vector<16x64xf32>, vector<2x64xf32> -> vector<2x64xf32>
    %399 = arith.addf %397, %398 : vector<2x64xf32>
    %400 = vector.extract_strided_slice %399 {offsets = [0, 0], sizes = [2, 16], strides = [1, 1]} : vector<2x64xf32> to vector<2x16xf32>
    %cst_178 = arith.constant 0.000000e+00 : f32
    %401 = vector.broadcast %cst_178 : f32 to vector<2x16xf32>
    %402 = arith.subf %401, %400 : vector<2x16xf32>
    %403 = math.exp %402 : vector<2x16xf32>
    %cst_179 = arith.constant 1.000000e+00 : f32
    %404 = vector.broadcast %cst_179 : f32 to vector<2x16xf32>
    %405 = arith.addf %404, %403 : vector<2x16xf32>
    %cst_180 = arith.constant 1.000000e+00 : f32
    %406 = vector.broadcast %cst_180 : f32 to vector<2x16xf32>
    %407 = arith.divf %406, %405 : vector<2x16xf32>
    %408 = vector.extract_strided_slice %399 {offsets = [0, 16], sizes = [2, 16], strides = [1, 1]} : vector<2x64xf32> to vector<2x16xf32>
    %cst_181 = arith.constant 0.000000e+00 : f32
    %409 = vector.broadcast %cst_181 : f32 to vector<2x16xf32>
    %410 = arith.subf %409, %408 : vector<2x16xf32>
    %411 = math.exp %410 : vector<2x16xf32>
    %cst_182 = arith.constant 1.000000e+00 : f32
    %412 = vector.broadcast %cst_182 : f32 to vector<2x16xf32>
    %413 = arith.addf %412, %411 : vector<2x16xf32>
    %cst_183 = arith.constant 1.000000e+00 : f32
    %414 = vector.broadcast %cst_183 : f32 to vector<2x16xf32>
    %415 = arith.divf %414, %413 : vector<2x16xf32>
    %416 = vector.extract_strided_slice %399 {offsets = [0, 32], sizes = [2, 16], strides = [1, 1]} : vector<2x64xf32> to vector<2x16xf32>
    %417 = math.tanh %416 : vector<2x16xf32>
    %418 = vector.extract_strided_slice %399 {offsets = [0, 48], sizes = [2, 16], strides = [1, 1]} : vector<2x64xf32> to vector<2x16xf32>
    %cst_184 = arith.constant 0.000000e+00 : f32
    %419 = vector.broadcast %cst_184 : f32 to vector<2x16xf32>
    %420 = arith.subf %419, %418 : vector<2x16xf32>
    %421 = math.exp %420 : vector<2x16xf32>
    %cst_185 = arith.constant 1.000000e+00 : f32
    %422 = vector.broadcast %cst_185 : f32 to vector<2x16xf32>
    %423 = arith.addf %422, %421 : vector<2x16xf32>
    %cst_186 = arith.constant 1.000000e+00 : f32
    %424 = vector.broadcast %cst_186 : f32 to vector<2x16xf32>
    %425 = arith.divf %424, %423 : vector<2x16xf32>
    %426 = arith.mulf %415, %378 : vector<2x16xf32>
    %427 = arith.mulf %407, %417 : vector<2x16xf32>
    %428 = arith.addf %426, %427 : vector<2x16xf32>
    %429 = math.tanh %428 : vector<2x16xf32>
    %430 = arith.mulf %425, %429 : vector<2x16xf32>
    %c7_187 = arith.constant 7 : index
    %c0_188 = arith.constant 0 : index
    %c0_189 = arith.constant 0 : index
    %431 = vector.load %arg4[%c7_187, %c0_188, %c0_189] : memref<8x2x16xf32, #tpu.memory_space<vmem>>, vector<1x2x16xf32>
    %432 = vector.shape_cast %431 : vector<1x2x16xf32> to vector<2x16xf32>
    %433 = vector.shape_cast %430 : vector<2x16xf32> to vector<1x2x16xf32>
    tpu.vector_store %arg4[%c7_187, %c0_188, %c0_189], %433 {strides = array<i32>} : memref<8x2x16xf32, #tpu.memory_space<vmem>>, vector<1x2x16xf32>,
    return
  }
}

module attributes {stable_mosaic.version = 11 : i64} {
  func.func @_biaffine_kernel(%arg0: i32, %arg1: i32, %arg2: i32, %arg3: memref<1x8x17xf32, #tpu.memory_space<vmem>>, %arg4: memref<1x33x8xf32, #tpu.memory_space<vmem>>, %arg5: memref<4x17x33xf32, #tpu.memory_space<vmem>>, %arg6: memref<1x4x8x8xf32, #tpu.memory_space<vmem>>) attributes {dimension_semantics = [#tpu.dimension_semantics<parallel>, #tpu.dimension_semantics<parallel>, #tpu.dimension_semantics<parallel>], iteration_bounds = array<i64: 2, 1, 1>, scalar_prefetch = 0 : i64, scratch_operands = 0 : i64, tpu.core_type = #tpu.core_type<tc>, window_params = [{transform_indices = @transform_0, window_bounds = array<i64: 1, 8, 17>}, {transform_indices = @transform_1, window_bounds = array<i64: 1, 33, 8>}, {pipeline_mode = #tpu.pipeline_mode<synchronous>, transform_indices = @transform_2, window_bounds = array<i64: 4, 17, 33>}, {transform_indices = @transform_3, window_bounds = array<i64: 1, 4, 8, 8>}]} {
    %c0 = arith.constant 0 : index
    %c0_0 = arith.constant 0 : index
    %c0_1 = arith.constant 0 : index
    %0 = vector.load %arg3[%c0, %c0_0, %c0_1] : memref<1x8x17xf32, #tpu.memory_space<vmem>>, vector<1x8x17xf32>
    %1 = vector.shape_cast %0 : vector<1x8x17xf32> to vector<8x17xf32>
    %c0_2 = arith.constant 0 : index
    %c0_3 = arith.constant 0 : index
    %c0_4 = arith.constant 0 : index
    %2 = vector.load %arg4[%c0_2, %c0_3, %c0_4] : memref<1x33x8xf32, #tpu.memory_space<vmem>>, vector<1x33x8xf32>
    %3 = vector.shape_cast %2 : vector<1x33x8xf32> to vector<33x8xf32>
    %c0_5 = arith.constant 0 : index
    %c0_6 = arith.constant 0 : index
    %c0_7 = arith.constant 0 : index
    %4 = vector.load %arg5[%c0_5, %c0_6, %c0_7] : memref<4x17x33xf32, #tpu.memory_space<vmem>>, vector<1x17x33xf32>
    %5 = vector.shape_cast %4 : vector<1x17x33xf32> to vector<17x33xf32>
    %cst = arith.constant dense<0.000000e+00> : vector<8x33xf32>
    %6 = tpu.matmul %1, %5, %cst {dimension_numbers = #tpu.dot_dimension_numbers<[1], [0], [0], [1], [0, 0, 1, 1], [], []>} : vector<8x17xf32>, vector<17x33xf32>, vector<8x33xf32> -> vector<8x33xf32>
    %cst_8 = arith.constant dense<0.000000e+00> : vector<8x8xf32>
    %7 = tpu.matmul %6, %3, %cst_8 {dimension_numbers = #tpu.dot_dimension_numbers<[1], [0], [0], [1], [0, 0, 1, 1], [], []>} : vector<8x33xf32>, vector<33x8xf32>, vector<8x8xf32> -> vector<8x8xf32>
    %c0_9 = arith.constant 0 : index
    %c0_10 = arith.constant 0 : index
    %c0_11 = arith.constant 0 : index
    %c0_12 = arith.constant 0 : index
    %8 = vector.load %arg6[%c0_9, %c0_10, %c0_11, %c0_12] : memref<1x4x8x8xf32, #tpu.memory_space<vmem>>, vector<1x1x8x8xf32>
    %9 = vector.shape_cast %8 : vector<1x1x8x8xf32> to vector<8x8xf32>
    %10 = vector.shape_cast %7 : vector<8x8xf32> to vector<1x1x8x8xf32>
    tpu.vector_store %arg6[%c0_9, %c0_10, %c0_11, %c0_12], %10 {strides = array<i32>} : memref<1x4x8x8xf32, #tpu.memory_space<vmem>>, vector<1x1x8x8xf32>,
    %c1 = arith.constant 1 : index
    %c0_13 = arith.constant 0 : index
    %c0_14 = arith.constant 0 : index
    %11 = vector.load %arg5[%c1, %c0_13, %c0_14] : memref<4x17x33xf32, #tpu.memory_space<vmem>>, vector<1x17x33xf32>
    %12 = vector.shape_cast %11 : vector<1x17x33xf32> to vector<17x33xf32>
    %cst_15 = arith.constant dense<0.000000e+00> : vector<8x33xf32>
    %13 = tpu.matmul %1, %12, %cst_15 {dimension_numbers = #tpu.dot_dimension_numbers<[1], [0], [0], [1], [0, 0, 1, 1], [], []>} : vector<8x17xf32>, vector<17x33xf32>, vector<8x33xf32> -> vector<8x33xf32>
    %cst_16 = arith.constant dense<0.000000e+00> : vector<8x8xf32>
    %14 = tpu.matmul %13, %3, %cst_16 {dimension_numbers = #tpu.dot_dimension_numbers<[1], [0], [0], [1], [0, 0, 1, 1], [], []>} : vector<8x33xf32>, vector<33x8xf32>, vector<8x8xf32> -> vector<8x8xf32>
    %c0_17 = arith.constant 0 : index
    %c1_18 = arith.constant 1 : index
    %c0_19 = arith.constant 0 : index
    %c0_20 = arith.constant 0 : index
    %15 = vector.load %arg6[%c0_17, %c1_18, %c0_19, %c0_20] : memref<1x4x8x8xf32, #tpu.memory_space<vmem>>, vector<1x1x8x8xf32>
    %16 = vector.shape_cast %15 : vector<1x1x8x8xf32> to vector<8x8xf32>
    %17 = vector.shape_cast %14 : vector<8x8xf32> to vector<1x1x8x8xf32>
    tpu.vector_store %arg6[%c0_17, %c1_18, %c0_19, %c0_20], %17 {strides = array<i32>} : memref<1x4x8x8xf32, #tpu.memory_space<vmem>>, vector<1x1x8x8xf32>,
    %c2 = arith.constant 2 : index
    %c0_21 = arith.constant 0 : index
    %c0_22 = arith.constant 0 : index
    %18 = vector.load %arg5[%c2, %c0_21, %c0_22] : memref<4x17x33xf32, #tpu.memory_space<vmem>>, vector<1x17x33xf32>
    %19 = vector.shape_cast %18 : vector<1x17x33xf32> to vector<17x33xf32>
    %cst_23 = arith.constant dense<0.000000e+00> : vector<8x33xf32>
    %20 = tpu.matmul %1, %19, %cst_23 {dimension_numbers = #tpu.dot_dimension_numbers<[1], [0], [0], [1], [0, 0, 1, 1], [], []>} : vector<8x17xf32>, vector<17x33xf32>, vector<8x33xf32> -> vector<8x33xf32>
    %cst_24 = arith.constant dense<0.000000e+00> : vector<8x8xf32>
    %21 = tpu.matmul %20, %3, %cst_24 {dimension_numbers = #tpu.dot_dimension_numbers<[1], [0], [0], [1], [0, 0, 1, 1], [], []>} : vector<8x33xf32>, vector<33x8xf32>, vector<8x8xf32> -> vector<8x8xf32>
    %c0_25 = arith.constant 0 : index
    %c2_26 = arith.constant 2 : index
    %c0_27 = arith.constant 0 : index
    %c0_28 = arith.constant 0 : index
    %22 = vector.load %arg6[%c0_25, %c2_26, %c0_27, %c0_28] : memref<1x4x8x8xf32, #tpu.memory_space<vmem>>, vector<1x1x8x8xf32>
    %23 = vector.shape_cast %22 : vector<1x1x8x8xf32> to vector<8x8xf32>
    %24 = vector.shape_cast %21 : vector<8x8xf32> to vector<1x1x8x8xf32>
    tpu.vector_store %arg6[%c0_25, %c2_26, %c0_27, %c0_28], %24 {strides = array<i32>} : memref<1x4x8x8xf32, #tpu.memory_space<vmem>>, vector<1x1x8x8xf32>,
    %c3 = arith.constant 3 : index
    %c0_29 = arith.constant 0 : index
    %c0_30 = arith.constant 0 : index
    %25 = vector.load %arg5[%c3, %c0_29, %c0_30] : memref<4x17x33xf32, #tpu.memory_space<vmem>>, vector<1x17x33xf32>
    %26 = vector.shape_cast %25 : vector<1x17x33xf32> to vector<17x33xf32>
    %cst_31 = arith.constant dense<0.000000e+00> : vector<8x33xf32>
    %27 = tpu.matmul %1, %26, %cst_31 {dimension_numbers = #tpu.dot_dimension_numbers<[1], [0], [0], [1], [0, 0, 1, 1], [], []>} : vector<8x17xf32>, vector<17x33xf32>, vector<8x33xf32> -> vector<8x33xf32>
    %cst_32 = arith.constant dense<0.000000e+00> : vector<8x8xf32>
    %28 = tpu.matmul %27, %3, %cst_32 {dimension_numbers = #tpu.dot_dimension_numbers<[1], [0], [0], [1], [0, 0, 1, 1], [], []>} : vector<8x33xf32>, vector<33x8xf32>, vector<8x8xf32> -> vector<8x8xf32>
    %c0_33 = arith.constant 0 : index
    %c3_34 = arith.constant 3 : index
    %c0_35 = arith.constant 0 : index
    %c0_36 = arith.constant 0 : index
    %29 = vector.load %arg6[%c0_33, %c3_34, %c0_35, %c0_36] : memref<1x4x8x8xf32, #tpu.memory_space<vmem>>, vector<1x1x8x8xf32>
    %30 = vector.shape_cast %29 : vector<1x1x8x8xf32> to vector<8x8xf32>
    %31 = vector.shape_cast %28 : vector<8x8xf32> to vector<1x1x8x8xf32>
    tpu.vector_store %arg6[%c0_33, %c3_34, %c0_35, %c0_36], %31 {strides = array<i32>} : memref<1x4x8x8xf32, #tpu.memory_space<vmem>>, vector<1x1x8x8xf32>,
    return
  }
  func.func @transform_0(%arg0: i32, %arg1: i32, %arg2: i32) -> (i32, i32, i32) {
    %c0_i32 = arith.constant 0 : i32
    %c0_i32_0 = arith.constant 0 : i32
    return %arg0, %arg1, %c0_i32 : i32, i32, i32
  }
  func.func @transform_1(%arg0: i32, %arg1: i32, %arg2: i32) -> (i32, i32, i32) {
    %c0_i32 = arith.constant 0 : i32
    %c0_i32_0 = arith.constant 0 : i32
    return %arg0, %c0_i32, %arg2 : i32, i32, i32
  }
  func.func @transform_2(%arg0: i32, %arg1: i32, %arg2: i32) -> (i32, i32, i32) {
    %c0_i32 = arith.constant 0 : i32
    %c0_i32_0 = arith.constant 0 : i32
    %c0_i32_1 = arith.constant 0 : i32
    %c0_i32_2 = arith.constant 0 : i32
    return %c0_i32, %c0_i32_0, %c0_i32_1 : i32, i32, i32
  }
  func.func @transform_3(%arg0: i32, %arg1: i32, %arg2: i32) -> (i32, i32, i32, i32) {
    %c0_i32 = arith.constant 0 : i32
    %c0_i32_0 = arith.constant 0 : i32
    return %arg0, %c0_i32, %arg1, %arg2 : i32, i32, i32, i32
  }
}

</mosaic_0001>

<llo_original>
// kernel: tmodel_forward.6
$region0: #{tmodel_forward.6}
  #allocation0 [shape = 'u32[]', space=smem, size = 0x4, offset = 0x4, fixed_abs, tag = 'smem constant byte address 0x4 - core index']
  #allocation1 [shape = 'u32[144,128]{1,0:T(1,128)}', space=vmem, size = 0x12000, scoped, tag = 'internal scratch']
  %s0 = inlined_call_operand.vmem [shape: f32[2,8,17], index: 0, kind: input, shape index: {}]
  %s1 = inlined_call_operand.vmem [shape: f32[2,33,8], index: 1, kind: input, shape index: {}]
  %s2 = inlined_call_operand.vmem [shape: f32[4,17,33], index: 2, kind: input, shape index: {}]
  %s3 = inlined_call_operand.vmem [shape: f32[2,4,8,8], index: 3, kind: output, shape index: {}]
  %s4 = sld [smem:[#allocation0]]
  $region45: #{tmodel_forward.6} parent=0
    _
  %s6 = ssub.s32 1, %s4
  %s7 = scalar_select 0, %s6, %s4
  loop: start=0, step=1, limit=4
  $region2: #{tmodel_forward.6} parent=0 // loop_pre_header
    _
  $region3: #{tmodel_forward.6} parent=0 // loop_header
    %s9 = sphi 0, %s13
    %p10 = scmp.ge.s32.totalorder %s9, 4
    %s16 = sphi 0, %s35
    %s17 = sphi 0, %s31
    %s18 = sphi 0, %s27
    %s19 = sphi 0, %s16
    %s20 = sphi 0, %s17
    %s21 = sphi 0, %s18
    %s22 = sphi 0, %s19
    %s23 = sphi 0, %s20
    %s24 = sphi 0, %s21
    %s40 = sphi 0, %s42
    %s43 = sphi 0, %s40
    %s44 = sphi 0, %s43
    %s60 = sphi 0, %s44
    %s68 = sphi 0, %s70
    %s71 = sphi 0, %s68
    %s72 = sphi 0, %s71
    %s88 = sphi 0, %s72
    %s92 = sphi 0, %s92
    %s94 = sphi 0, %s92
    %s95 = sphi 0, %s94
    %s109 = sphi 0, %s95
    %s119 = sphi 0, %s121
    %s122 = sphi 0, %s119
    %s123 = sphi 0, %s122
    %s139 = sphi 0, %s123
  $region4: #{tmodel_forward.6} parent=0 // loop_header_branch
    %12 = sbr.rel (%p10) target = $region8
  $region5: #{tmodel_forward.6} parent=0 // loop_body
    %s14 = ssub.s32 %s9, 1
    %s15 = ssub.s32 %s9, 2
    %s25 = sadd.s32 1, %s18
    %p26 = scmp.ge.s32.totalorder %s25, 1
    %s27 = scalar_select %p26, 0, %s25
    %s28 = sadd.s32 1, %s17
    %s29 = scalar_select %p26, %s28, %s17
    %p30 = scmp.ge.s32.totalorder %s29, 1
    %s31 = scalar_select %p30, 0, %s29
    %s32 = sadd.s32 1, %s16
    %s33 = scalar_select %p30, %s32, %s16
    %p34 = scmp.ge.s32.totalorder %s33, 2
    %s35 = scalar_select %p34, 0, %s33
    %s36 = ssub.s32 %s16, %s35
    %s37 = ssub.s32 %s17, %s31
    %s38 = sor.u32 %s36, %s37
    %p39 = scmp.eq.s32.totalorder %s38, 0
    %s41 = sadd.s32 %s40, 1
    %s42 = scalar_select %p39, %s40, %s41
    %p45 = pneg %p39
    %p46 = scmp.eq.s32.totalorder %s9, 1
    %p47 = por %p45, %p46
    %p48 = scmp.ne.s32.totalorder %s40, %s43
    %p49 = scmp.eq.s32.totalorder %s9, 0
    %p50 = por %p48, %p49
    %p51 = scmp.ne.s32.totalorder %s40, %s43
    %p52 = scmp.eq.s32.totalorder %s14, 1
    %p53 = por %p51, %p52
    %p54 = scmp.ne.s32.totalorder %s43, %s44
    %p55 = scmp.eq.s32.totalorder %s14, 0
    %p56 = por %p54, %p55
    %p57 = scmp.ne.s32.totalorder %s43, %s44
    %p58 = scmp.eq.s32.totalorder %s15, 1
    %p59 = por %p57, %p58
    %p61 = scmp.ne.s32.totalorder %s44, %s60
    %p62 = scmp.eq.s32.totalorder %s15, 0
    %p63 = por %p61, %p62
    %s64 = ssub.s32 %s16, %s35
    %s65 = ssub.s32 %s18, %s27
    %s66 = sor.u32 %s64, %s65
    %p67 = scmp.eq.s32.totalorder %s66, 0
    %s69 = sadd.s32 %s68, 1
    %s70 = scalar_select %p67, %s68, %s69
    %p73 = pneg %p67
    %p74 = scmp.eq.s32.totalorder %s9, 1
    %p75 = por %p73, %p74
    %p76 = scmp.ne.s32.totalorder %s68, %s71
    %p77 = scmp.eq.s32.totalorder %s9, 0
    %p78 = por %p76, %p77
    %p79 = scmp.ne.s32.totalorder %s68, %s71
    %p80 = scmp.eq.s32.totalorder %s14, 1
    %p81 = por %p79, %p80
    %p82 = scmp.ne.s32.totalorder %s71, %s72
    %p83 = scmp.eq.s32.totalorder %s14, 0
    %p84 = por %p82, %p83
    %p85 = scmp.ne.s32.totalorder %s71, %s72
    %p86 = scmp.eq.s32.totalorder %s15, 1
    %p87 = por %p85, %p86
    %p89 = scmp.ne.s32.totalorder %s72, %s88
    %p90 = scmp.eq.s32.totalorder %s15, 0
    %p91 = por %p89, %p90
    %s93 = sadd.s32 %s92, 1
    %p96 = scmp.eq.s32.totalorder %s9, 1
    %p97 = scmp.ne.s32.totalorder %s92, %s94
    %p98 = scmp.eq.s32.totalorder %s9, 0
    %p99 = por %p97, %p98
    %p100 = scmp.ne.s32.totalorder %s92, %s94
    %p101 = scmp.eq.s32.totalorder %s14, 1
    %p102 = por %p100, %p101
    %p103 = scmp.ne.s32.totalorder %s94, %s95
    %p104 = scmp.eq.s32.totalorder %s14, 0
    %p105 = por %p103, %p104
    %p106 = scmp.ne.s32.totalorder %s94, %s95
    %p107 = scmp.eq.s32.totalorder %s15, 1
    %p108 = por %p106, %p107
    %p110 = scmp.ne.s32.totalorder %s95, %s109
    %p111 = scmp.eq.s32.totalorder %s15, 0
    %p112 = por %p110, %p111
    %s113 = ssub.s32 %s16, %s35
    %s114 = ssub.s32 %s17, %s31
    %s115 = sor.u32 %s113, %s114
    %s116 = ssub.s32 %s18, %s27
    %s117 = sor.u32 %s115, %s116
    %p118 = scmp.eq.s32.totalorder %s117, 0
    %s120 = sadd.s32 %s119, 1
    %s121 = scalar_select %p118, %s119, %s120
    %p124 = pneg %p118
    %p125 = scmp.eq.s32.totalorder %s9, 1
    %p126 = por %p124, %p125
    %p127 = scmp.ne.s32.totalorder %s119, %s122
    %p128 = scmp.eq.s32.totalorder %s9, 0
    %p129 = por %p127, %p128
    %p130 = scmp.ne.s32.totalorder %s119, %s122
    %p131 = scmp.eq.s32.totalorder %s14, 1
    %p132 = por %p130, %p131
    %p133 = scmp.ne.s32.totalorder %s122, %s123
    %p134 = scmp.eq.s32.totalorder %s14, 0
    %p135 = por %p133, %p134
    %p136 = scmp.ne.s32.totalorder %s122, %s123
    %p137 = scmp.eq.s32.totalorder %s15, 1
    %p138 = por %p136, %p137
    %p140 = scmp.ne.s32.totalorder %s123, %s139
    %p141 = scmp.eq.s32.totalorder %s15, 0
    %p142 = por %p140, %p141
    %p143 = scmp.le.s32.totalorder 1, %s9
    %p144 = scmp.lt.s32.totalorder %s9, 3
    %p145 = pnand %p143, %p144
    %p146 = pneg %p145
    // Predicated region
    $region9: #{tmodel_forward.6} parent=5 // pred_check
      _
    $region10: #{tmodel_forward.6} parent=5 // pred_check_branch
      %148 = sbr.rel (%p145) target = $region12
    $region11: #{tmodel_forward.6} parent=5 // pred_region
      %s149 = ssub.s32 %s9, 1
      // Predicated region
      $region13: #{tmodel_forward.6} parent=11 // pred_check
        %p150 = pneg %p105
      $region14: #{tmodel_forward.6} parent=11 // pred_check_branch
        %152 = sbr.rel (%p150) target = $region16
      $region15: #{tmodel_forward.6} parent=11 // pred_region
        _
      $region16: #{tmodel_forward.6} parent=11 // pred_fallthru
        _
    $region12: #{tmodel_forward.6} parent=5 // pred_fallthru
      _
    %p153 = scmp.lt.s32.totalorder %s9, 2
    // Predicated region
    $region17: #{tmodel_forward.6} parent=5 // pred_check
      %p154 = pneg %p153
    $region18: #{tmodel_forward.6} parent=5 // pred_check_branch
      %156 = sbr.rel (%p154) target = $region20
    $region19: #{tmodel_forward.6} parent=5 // pred_region
      // Predicated region
      $region21: #{tmodel_forward.6} parent=19 // pred_check
        %p157 = pneg %p50
      $region22: #{tmodel_forward.6} parent=19 // pred_check_branch
        %159 = sbr.rel (%p157) target = $region24
      $region23: #{tmodel_forward.6} parent=19 // pred_region
        %p160 = scmp.lt.s32.totalorder %s16, 1
        %s161 = scalar_select %p160, %s16, 1
        %p162 = scmp.lt.s32.totalorder %s17, 0
        %s163 = scalar_select %p162, %s17, 0
        %s164 = sadd.s32 %s163, %s161
        %s165 = smul.addr %s164, 8
        %s166 = scalar_lea.vmem %s0, %s165
      $region24: #{tmodel_forward.6} parent=19 // pred_fallthru
        _
      // Predicated region
      $region25: #{tmodel_forward.6} parent=19 // pred_check
        %p167 = pneg %p78
      $region26: #{tmodel_forward.6} parent=19 // pred_check_branch
        %169 = sbr.rel (%p167) target = $region28
      $region27: #{tmodel_forward.6} parent=19 // pred_region
        %p170 = scmp.lt.s32.totalorder %s16, 1
        %s171 = scalar_select %p170, %s16, 1
        %p172 = scmp.lt.s32.totalorder %s18, 0
        %s173 = scalar_select %p172, %s18, 0
        %s174 = smul.addr %s171, 5
        %s175 = sadd.s32 %s173, %s174
        %s176 = smul.addr %s175, 8
        %s177 = scalar_lea.vmem %s1, %s176
      $region28: #{tmodel_forward.6} parent=19 // pred_fallthru
        _
    $region20: #{tmodel_forward.6} parent=5 // pred_fallthru
      _
    %p178 = scmp.le.s32.totalorder 1, %s9
    %p179 = scmp.lt.s32.totalorder %s9, 3
    %p180 = pnand %p178, %p179
    %p181 = pneg %p180
    // Predicated region
    $region29: #{tmodel_forward.6} parent=5 // pred_check
      _
    $region30: #{tmodel_forward.6} parent=5 // pred_check_branch
      %183 = sbr.rel (%p180) target = $region32
    $region31: #{tmodel_forward.6} parent=5 // pred_region
      %s184 = ssub.s32 %s9, 1
      %p185 = scmp.lt.s32.totalorder %s19, 1
      %s186 = scalar_select %p185, %s19, 1
      %p187 = scmp.lt.s32.totalorder %s20, 0
      %s188 = scalar_select %p187, %s20, 0
      %s189 = sadd.s32 %s188, %s186
      %s190 = smul.addr %s189, 8
      %s191 = scalar_lea.vmem %s0, %s190
      %p192 = pneg %p56
      %p193 = pneg %p53
      %p194 = scmp.lt.s32.totalorder %s19, 1
      %s195 = scalar_select %p194, %s19, 1
      %p196 = scmp.lt.s32.totalorder %s21, 0
      %s197 = scalar_select %p196, %s21, 0
      %s198 = smul.addr %s195, 5
      %s199 = sadd.s32 %s197, %s198
      %s200 = smul.addr %s199, 8
      %s201 = scalar_lea.vmem %s1, %s200
      %p202 = pneg %p84
      %p203 = pneg %p81
      %p204 = pneg %p105
      %p205 = pneg %p102
      %p206 = pneg %p135
      %p207 = pneg %p132
      %p208 = scmp.lt.s32.totalorder %s19, 1
      %s209 = scalar_select %p208, %s19, 1
      %p210 = scmp.lt.s32.totalorder %s20, 0
      %s211 = scalar_select %p210, %s20, 0
      %p212 = scmp.lt.s32.totalorder %s21, 0
      %s213 = scalar_select %p212, %s21, 0
      %s214 = sadd.s32 %s213, %s211
      %s215 = smul.addr %s209, 4
      %s216 = sadd.s32 %s214, %s215
      %s217 = smul.addr %s216, 8
      %s218 = scalar_lea.vmem %s3, %s217
      %p219 = scmp.lt.s32.totalorder %s19, 1
      %s220 = scalar_select %p219, %s19, 1
      %p221 = scmp.lt.s32.totalorder %s20, 0
      %s222 = scalar_select %p221, %s20, 0
      %s223 = sadd.s32 %s222, %s220
      %s224 = smul.addr %s223, 8
      %s225 = scalar_lea.vmem %s0, %s224
      %p226 = scmp.lt.s32.totalorder %s19, 1
      %s227 = scalar_select %p226, %s19, 1
      %p228 = scmp.lt.s32.totalorder %s21, 0
      %s229 = scalar_select %p228, %s21, 0
      %s230 = smul.addr %s227, 5
      %s231 = sadd.s32 %s229, %s230
      %s232 = smul.addr %s231, 8
      %s233 = scalar_lea.vmem %s1, %s232
      %p234 = scmp.lt.s32.totalorder %s19, 1
      %s235 = scalar_select %p234, %s19, 1
      %p236 = scmp.lt.s32.totalorder %s20, 0
      %s237 = scalar_select %p236, %s20, 0
      %p238 = scmp.lt.s32.totalorder %s21, 0
      %s239 = scalar_select %p238, %s21, 0
      %s240 = sadd.s32 %s239, %s237
      %s241 = smul.addr %s235, 4
      %s242 = sadd.s32 %s240, %s241
      %s243 = smul.addr %s242, 8
      %s244 = scalar_lea.vmem %s3, %s243
      %v245 = vld [vmem:[%s225] sm:$0xff]
      %v246 = vld [vmem:[%s233] sm:$0xff]
      %v247 = vld [vmem:[%s233 + $0x8] sm:$0xff]
      %v248 = vld [vmem:[%s233 + $0x10] sm:$0xff]
      %v249 = vld [vmem:[%s233 + $0x18] sm:$0xff]
      %v250 = vld [vmem:[%s233 + $0x20] sm:$0x1]
      %v251 = vld [vmem:[%s2] sm:$0xff]
      %v252 = vld [vmem:[%s2 + $0x8] sm:$0xff]
      %v253 = vld [vmem:[%s2 + $0x10] sm:$0x1]
      %vm254 = vcmask 138240
      %v256 = vsel %vm254, %v245, 0
      %vm258 = vcmask 1040384
      %v260 = vsel %vm258, %v253, 0
      %262 = vmatprep.subr.mxu0 0.0
      %263 = vmatpush1.msra.mxu0 0.0
      %264 = vmatprep.subr.mxu0 0.0
      %265 = vmatpush1.msra.mxu0 0.0
      %266 = vmatprep.subr.mxu0 0.0
      %267 = vmatpush1.msra.mxu0 0.0
      %268 = vmatprep.subr.mxu0 0.0
      %269 = vmatpush1.msra.mxu0 0.0
      %270 = vmatprep.subr.mxu0 0.0
      %271 = vmatpush1.msra.mxu0 0.0
      %272 = vmatprep.subr.mxu0 0.0
      %273 = vmatpush1.msra.mxu0 0.0
      %274 = vmatprep.subr.mxu0 0.0
      %275 = vmatpush1.msra.mxu0 0.0
      %276 = vmatprep.subr.mxu0 0.0
      %277 = vmatpush1.msra.mxu0 0.0
      %278 = vmatprep.subr.mxu0 0.0
      %279 = vmatpush1.msra.mxu0 0.0
      %280 = vmatprep.subr.mxu0 0.0
      %281 = vmatpush1.msra.mxu0 0.0
      %282 = vmatprep.subr.mxu0 0.0
      %283 = vmatpush1.msra.mxu0 0.0
      %284 = vmatprep.subr.mxu0 0.0
      %285 = vmatpush1.msra.mxu0 0.0
      %286 = vmatprep.subr.mxu0 0.0
      %287 = vmatpush1.msra.mxu0 0.0
      %288 = vmatprep.subr.mxu0 0.0
      %289 = vmatpush1.msra.mxu0 %v260
      %290 = vmatprep.subr.mxu0 0.0
      %291 = vmatpush1.msra.mxu0 %v252
      %292 = vmatprep.subr.mxu0 0.0
      %293 = vmatpush1.msra.mxu0 %v251
      %294 = vmatprep.subr.mxu0 0.0
      %295 = vmatpush2.msra.mxu0 0.0
      %296 = vmatprep.subr.mxu0 0.0
      %297 = vmatpush2.msra.mxu0 0.0
      %298 = vmatprep.subr.mxu0 0.0
      %299 = vmatpush2.msra.mxu0 0.0
      %300 = vmatprep.subr.mxu0 0.0
      %301 = vmatpush2.msra.mxu0 0.0
      %302 = vmatprep.subr.mxu0 0.0
      %303 = vmatpush2.msra.mxu0 0.0
      %304 = vmatprep.subr.mxu0 0.0
      %305 = vmatpush2.msra.mxu0 0.0
      %306 = vmatprep.subr.mxu0 0.0
      %307 = vmatpush2.msra.mxu0 0.0
      %308 = vmatprep.subr.mxu0 0.0
      %309 = vmatpush2.msra.mxu0 0.0
      %310 = vmatprep.subr.mxu0 0.0
      %311 = vmatpush2.msra.mxu0 0.0
      %312 = vmatprep.subr.mxu0 0.0
      %313 = vmatpush2.msra.mxu0 0.0
      %314 = vmatprep.subr.mxu0 0.0
      %315 = vmatpush2.msra.mxu0 0.0
      %316 = vmatprep.subr.mxu0 0.0
      %317 = vmatpush2.msra.mxu0 0.0
      %318 = vmatprep.subr.mxu0 0.0
      %319 = vmatpush2.msra.mxu0 0.0
      %320 = vmatprep.subr.mxu0 0.0
      %321 = vmatpush2.msra.mxu0 0.0
      %322 = vmatprep.subr.mxu0 0.0
      %323 = vmatpush2.msra.mxu0 0.0
      %324 = vmatprep.subr.mxu0 0.0
      %325 = vmatpush2.msra.mxu0 0.0
      %326 = vmatprep.mubr.f32.mxu0 0.0
      %327 = vmatmul.mubr.f32.gmra.mxu0 %v256
      %v328 = vpop.f32.mrf.mxu0
      %v329 = vadd.f32 0.0, %v328
      %v330 = vpop.f32.mrf.mxu0
      %331 = vdwg.mxu0
      %vm332 = vcmask 269312
      %v334 = vsel %vm332, %v329, 0
      %v337 = vsel %vm258, %v250, 0
      %339 = vmatprep.subr.mxu0 0.0
      %340 = vmatpush1.msra.mxu0 0.0
      %341 = vmatprep.subr.mxu0 0.0
      %342 = vmatpush1.msra.mxu0 0.0
      %343 = vmatprep.subr.mxu0 0.0
      %344 = vmatpush1.msra.mxu0 0.0
      %345 = vmatprep.subr.mxu0 0.0
      %346 = vmatpush1.msra.mxu0 0.0
      %347 = vmatprep.subr.mxu0 0.0
      %348 = vmatpush1.msra.mxu0 0.0
      %349 = vmatprep.subr.mxu0 0.0
      %350 = vmatpush1.msra.mxu0 0.0
      %351 = vmatprep.subr.mxu0 0.0
      %352 = vmatpush1.msra.mxu0 0.0
      %353 = vmatprep.subr.mxu0 0.0
      %354 = vmatpush1.msra.mxu0 0.0
      %355 = vmatprep.subr.mxu0 0.0
      %356 = vmatpush1.msra.mxu0 0.0
      %357 = vmatprep.subr.mxu0 0.0
      %358 = vmatpush1.msra.mxu0 0.0
      %359 = vmatprep.subr.mxu0 0.0
      %360 = vmatpush1.msra.mxu0 0.0
      %361 = vmatprep.subr.mxu0 0.0
      %362 = vmatpush1.msra.mxu0 %v337
      %363 = vmatprep.subr.mxu0 0.0
      %364 = vmatpush1.msra.mxu0 %v249
      %365 = vmatprep.subr.mxu0 0.0
      %366 = vmatpush1.msra.mxu0 %v248
      %367 = vmatprep.subr.mxu0 0.0
      %368 = vmatpush1.msra.mxu0 %v247
      %369 = vmatprep.subr.mxu0 0.0
      %370 = vmatpush1.msra.mxu0 %v246
      %371 = vmatprep.subr.mxu0 0.0
      %372 = vmatpush2.msra.mxu0 0.0
      %373 = vmatprep.subr.mxu0 0.0
      %374 = vmatpush2.msra.mxu0 0.0
      %375 = vmatprep.subr.mxu0 0.0
      %376 = vmatpush2.msra.mxu0 0.0
      %377 = vmatprep.subr.mxu0 0.0
      %378 = vmatpush2.msra.mxu0 0.0
      %379 = vmatprep.subr.mxu0 0.0
      %380 = vmatpush2.msra.mxu0 0.0
      %381 = vmatprep.subr.mxu0 0.0
      %382 = vmatpush2.msra.mxu0 0.0
      %383 = vmatprep.subr.mxu0 0.0
      %384 = vmatpush2.msra.mxu0 0.0
      %385 = vmatprep.subr.mxu0 0.0
      %386 = vmatpush2.msra.mxu0 0.0
      %387 = vmatprep.subr.mxu0 0.0
      %388 = vmatpush2.msra.mxu0 0.0
      %389 = vmatprep.subr.mxu0 0.0
      %390 = vmatpush2.msra.mxu0 0.0
      %391 = vmatprep.subr.mxu0 0.0
      %392 = vmatpush2.msra.mxu0 0.0
      %393 = vmatprep.subr.mxu0 0.0
      %394 = vmatpush2.msra.mxu0 0.0
      %395 = vmatprep.subr.mxu0 0.0
      %396 = vmatpush2.msra.mxu0 0.0
      %397 = vmatprep.subr.mxu0 0.0
      %398 = vmatpush2.msra.mxu0 0.0
      %399 = vmatprep.subr.mxu0 0.0
      %400 = vmatpush2.msra.mxu0 0.0
      %401 = vmatprep.subr.mxu0 0.0
      %402 = vmatpush2.msra.mxu0 0.0
      %403 = vmatprep.mubr.f32.mxu0 0.0
      %404 = vmatmul.mubr.f32.gmra.mxu0 %v334
      %v405 = vpop.f32.mrf.mxu0
      %v406 = vadd.f32 0.0, %v405
      %v407 = vpop.f32.mrf.mxu0
      %408 = vdwg.mxu0
      %vm409 = vcmask 64512
      %410 = vst.msk [vmem:[%s244] sm:$0xff] %vm409, %v406
      %s411 = scalar_lea.vmem %s2, 24
      %v412 = vld [vmem:[%s411] sm:$0xff]
      %v413 = vld [vmem:[%s411 + $0x8] sm:$0xff]
      %v414 = vld [vmem:[%s411 + $0x10] sm:$0x1]
      %v416 = vsel %vm258, %v414, 0
      %418 = vmatprep.subr.mxu0 0.0
      %419 = vmatpush1.msra.mxu0 0.0
      %420 = vmatprep.subr.mxu0 0.0
      %421 = vmatpush1.msra.mxu0 0.0
      %422 = vmatprep.subr.mxu0 0.0
      %423 = vmatpush1.msra.mxu0 0.0
      %424 = vmatprep.subr.mxu0 0.0
      %425 = vmatpush1.msra.mxu0 0.0
      %426 = vmatprep.subr.mxu0 0.0
      %427 = vmatpush1.msra.mxu0 0.0
      %428 = vmatprep.subr.mxu0 0.0
      %429 = vmatpush1.msra.mxu0 0.0
      %430 = vmatprep.subr.mxu0 0.0
      %431 = vmatpush1.msra.mxu0 0.0
      %432 = vmatprep.subr.mxu0 0.0
      %433 = vmatpush1.msra.mxu0 0.0
      %434 = vmatprep.subr.mxu0 0.0
      %435 = vmatpush1.msra.mxu0 0.0
      %436 = vmatprep.subr.mxu0 0.0
      %437 = vmatpush1.msra.mxu0 0.0
      %438 = vmatprep.subr.mxu0 0.0
      %439 = vmatpush1.msra.mxu0 0.0
      %440 = vmatprep.subr.mxu0 0.0
      %441 = vmatpush1.msra.mxu0 0.0
      %442 = vmatprep.subr.mxu0 0.0
      %443 = vmatpush1.msra.mxu0 0.0
      %444 = vmatprep.subr.mxu0 0.0
      %445 = vmatpush1.msra.mxu0 %v416
      %446 = vmatprep.subr.mxu0 0.0
      %447 = vmatpush1.msra.mxu0 %v413
      %448 = vmatprep.subr.mxu0 0.0
      %449 = vmatpush1.msra.mxu0 %v412
      %450 = vmatprep.subr.mxu0 0.0
      %451 = vmatpush2.msra.mxu0 0.0
      %452 = vmatprep.subr.mxu0 0.0
      %453 = vmatpush2.msra.mxu0 0.0
      %454 = vmatprep.subr.mxu0 0.0
      %455 = vmatpush2.msra.mxu0 0.0
      %456 = vmatprep.subr.mxu0 0.0
      %457 = vmatpush2.msra.mxu0 0.0
      %458 = vmatprep.subr.mxu0 0.0
      %459 = vmatpush2.msra.mxu0 0.0
      %460 = vmatprep.subr.mxu0 0.0
      %461 = vmatpush2.msra.mxu0 0.0
      %462 = vmatprep.subr.mxu0 0.0
      %463 = vmatpush2.msra.mxu0 0.0
      %464 = vmatprep.subr.mxu0 0.0
      %465 = vmatpush2.msra.mxu0 0.0
      %466 = vmatprep.subr.mxu0 0.0
      %467 = vmatpush2.msra.mxu0 0.0
      %468 = vmatprep.subr.mxu0 0.0
      %469 = vmatpush2.msra.mxu0 0.0
      %470 = vmatprep.subr.mxu0 0.0
      %471 = vmatpush2.msra.mxu0 0.0
      %472 = vmatprep.subr.mxu0 0.0
      %473 = vmatpush2.msra.mxu0 0.0
      %474 = vmatprep.subr.mxu0 0.0
      %475 = vmatpush2.msra.mxu0 0.0
      %476 = vmatprep.subr.mxu0 0.0
      %477 = vmatpush2.msra.mxu0 0.0
      %478 = vmatprep.subr.mxu0 0.0
      %479 = vmatpush2.msra.mxu0 0.0
      %480 = vmatprep.subr.mxu0 0.0
      %481 = vmatpush2.msra.mxu0 0.0
      %482 = vmatprep.mubr.f32.mxu0 0.0
      %483 = vmatmul.mubr.f32.gmra.mxu0 %v256
      %v484 = vpop.f32.mrf.mxu0
      %v485 = vadd.f32 0.0, %v484
      %v486 = vpop.f32.mrf.mxu0
      %487 = vdwg.mxu0
      %v489 = vsel %vm332, %v485, 0
      %491 = vmatprep.subr.mxu0 0.0
      %492 = vmatpush1.msra.mxu0 0.0
      %493 = vmatprep.subr.mxu0 0.0
      %494 = vmatpush1.msra.mxu0 0.0
      %495 = vmatprep.subr.mxu0 0.0
      %496 = vmatpush1.msra.mxu0 0.0
      %497 = vmatprep.subr.mxu0 0.0
      %498 = vmatpush1.msra.mxu0 0.0
      %499 = vmatprep.subr.mxu0 0.0
      %500 = vmatpush1.msra.mxu0 0.0
      %501 = vmatprep.subr.mxu0 0.0
      %502 = vmatpush1.msra.mxu0 0.0
      %503 = vmatprep.subr.mxu0 0.0
      %504 = vmatpush1.msra.mxu0 0.0
      %505 = vmatprep.subr.mxu0 0.0
      %506 = vmatpush1.msra.mxu0 0.0
      %507 = vmatprep.subr.mxu0 0.0
      %508 = vmatpush1.msra.mxu0 0.0
      %509 = vmatprep.subr.mxu0 0.0
      %510 = vmatpush1.msra.mxu0 0.0
      %511 = vmatprep.subr.mxu0 0.0
      %512 = vmatpush1.msra.mxu0 0.0
      %513 = vmatprep.subr.mxu0 0.0
      %514 = vmatpush1.msra.mxu0 %v337
      %515 = vmatprep.subr.mxu0 0.0
      %516 = vmatpush1.msra.mxu0 %v249
      %517 = vmatprep.subr.mxu0 0.0
      %518 = vmatpush1.msra.mxu0 %v248
      %519 = vmatprep.subr.mxu0 0.0
      %520 = vmatpush1.msra.mxu0 %v247
      %521 = vmatprep.subr.mxu0 0.0
      %522 = vmatpush1.msra.mxu0 %v246
      %523 = vmatprep.subr.mxu0 0.0
      %524 = vmatpush2.msra.mxu0 0.0
      %525 = vmatprep.subr.mxu0 0.0
      %526 = vmatpush2.msra.mxu0 0.0
      %527 = vmatprep.subr.mxu0 0.0
      %528 = vmatpush2.msra.mxu0 0.0
      %529 = vmatprep.subr.mxu0 0.0
      %530 = vmatpush2.msra.mxu0 0.0
      %531 = vmatprep.subr.mxu0 0.0
      %532 = vmatpush2.msra.mxu0 0.0
      %533 = vmatprep.subr.mxu0 0.0
      %534 = vmatpush2.msra.mxu0 0.0
      %535 = vmatprep.subr.mxu0 0.0
      %536 = vmatpush2.msra.mxu0 0.0
      %537 = vmatprep.subr.mxu0 0.0
      %538 = vmatpush2.msra.mxu0 0.0
      %539 = vmatprep.subr.mxu0 0.0
      %540 = vmatpush2.msra.mxu0 0.0
      %541 = vmatprep.subr.mxu0 0.0
      %542 = vmatpush2.msra.mxu0 0.0
      %543 = vmatprep.subr.mxu0 0.0
      %544 = vmatpush2.msra.mxu0 0.0
      %545 = vmatprep.subr.mxu0 0.0
      %546 = vmatpush2.msra.mxu0 0.0
      %547 = vmatprep.subr.mxu0 0.0
      %548 = vmatpush2.msra.mxu0 0.0
      %549 = vmatprep.subr.mxu0 0.0
      %550 = vmatpush2.msra.mxu0 0.0
      %551 = vmatprep.subr.mxu0 0.0
      %552 = vmatpush2.msra.mxu0 0.0
      %553 = vmatprep.subr.mxu0 0.0
      %554 = vmatpush2.msra.mxu0 0.0
      %555 = vmatprep.mubr.f32.mxu0 0.0
      %556 = vmatmul.mubr.f32.gmra.mxu0 %v489
      %v557 = vpop.f32.mrf.mxu0
      %v558 = vadd.f32 0.0, %v557
      %v559 = vpop.f32.mrf.mxu0
      %560 = vdwg.mxu0
      %s561 = scalar_lea.vmem %s244, 8
      %562 = vst.msk [vmem:[%s561] sm:$0xff] %vm409, %v558
      %s563 = scalar_lea.vmem %s2, 48
      %v564 = vld [vmem:[%s563] sm:$0xff]
      %v565 = vld [vmem:[%s563 + $0x8] sm:$0xff]
      %v566 = vld [vmem:[%s563 + $0x10] sm:$0x1]
      %v568 = vsel %vm258, %v566, 0
      %570 = vmatprep.subr.mxu0 0.0
      %571 = vmatpush1.msra.mxu0 0.0
      %572 = vmatprep.subr.mxu0 0.0
      %573 = vmatpush1.msra.mxu0 0.0
      %574 = vmatprep.subr.mxu0 0.0
      %575 = vmatpush1.msra.mxu0 0.0
      %576 = vmatprep.subr.mxu0 0.0
      %577 = vmatpush1.msra.mxu0 0.0
      %578 = vmatprep.subr.mxu0 0.0
      %579 = vmatpush1.msra.mxu0 0.0
      %580 = vmatprep.subr.mxu0 0.0
      %581 = vmatpush1.msra.mxu0 0.0
      %582 = vmatprep.subr.mxu0 0.0
      %583 = vmatpush1.msra.mxu0 0.0
      %584 = vmatprep.subr.mxu0 0.0
      %585 = vmatpush1.msra.mxu0 0.0
      %586 = vmatprep.subr.mxu0 0.0
      %587 = vmatpush1.msra.mxu0 0.0
      %588 = vmatprep.subr.mxu0 0.0
      %589 = vmatpush1.msra.mxu0 0.0
      %590 = vmatprep.subr.mxu0 0.0
      %591 = vmatpush1.msra.mxu0 0.0
      %592 = vmatprep.subr.mxu0 0.0
      %593 = vmatpush1.msra.mxu0 0.0
      %594 = vmatprep.subr.mxu0 0.0
      %595 = vmatpush1.msra.mxu0 0.0
      %596 = vmatprep.subr.mxu0 0.0
      %597 = vmatpush1.msra.mxu0 %v568
      %598 = vmatprep.subr.mxu0 0.0
      %599 = vmatpush1.msra.mxu0 %v565
      %600 = vmatprep.subr.mxu0 0.0
      %601 = vmatpush1.msra.mxu0 %v564
      %602 = vmatprep.subr.mxu0 0.0
      %603 = vmatpush2.msra.mxu0 0.0
      %604 = vmatprep.subr.mxu0 0.0
      %605 = vmatpush2.msra.mxu0 0.0
      %606 = vmatprep.subr.mxu0 0.0
      %607 = vmatpush2.msra.mxu0 0.0
      %608 = vmatprep.subr.mxu0 0.0
      %609 = vmatpush2.msra.mxu0 0.0
      %610 = vmatprep.subr.mxu0 0.0
      %611 = vmatpush2.msra.mxu0 0.0
      %612 = vmatprep.subr.mxu0 0.0
      %613 = vmatpush2.msra.mxu0 0.0
      %614 = vmatprep.subr.mxu0 0.0
      %615 = vmatpush2.msra.mxu0 0.0
      %616 = vmatprep.subr.mxu0 0.0
      %617 = vmatpush2.msra.mxu0 0.0
      %618 = vmatprep.subr.mxu0 0.0
      %619 = vmatpush2.msra.mxu0 0.0
      %620 = vmatprep.subr.mxu0 0.0
      %621 = vmatpush2.msra.mxu0 0.0
      %622 = vmatprep.subr.mxu0 0.0
      %623 = vmatpush2.msra.mxu0 0.0
      %624 = vmatprep.subr.mxu0 0.0
      %625 = vmatpush2.msra.mxu0 0.0
      %626 = vmatprep.subr.mxu0 0.0
      %627 = vmatpush2.msra.mxu0 0.0
      %628 = vmatprep.subr.mxu0 0.0
      %629 = vmatpush2.msra.mxu0 0.0
      %630 = vmatprep.subr.mxu0 0.0
      %631 = vmatpush2.msra.mxu0 0.0
      %632 = vmatprep.subr.mxu0 0.0
      %633 = vmatpush2.msra.mxu0 0.0
      %634 = vmatprep.mubr.f32.mxu0 0.0
      %635 = vmatmul.mubr.f32.gmra.mxu0 %v256
      %v636 = vpop.f32.mrf.mxu0
      %v637 = vadd.f32 0.0, %v636
      %v638 = vpop.f32.mrf.mxu0
      %639 = vdwg.mxu0
      %v641 = vsel %vm332, %v637, 0
      %643 = vmatprep.subr.mxu0 0.0
      %644 = vmatpush1.msra.mxu0 0.0
      %645 = vmatprep.subr.mxu0 0.0
      %646 = vmatpush1.msra.mxu0 0.0
      %647 = vmatprep.subr.mxu0 0.0
      %648 = vmatpush1.msra.mxu0 0.0
      %649 = vmatprep.subr.mxu0 0.0
      %650 = vmatpush1.msra.mxu0 0.0
      %651 = vmatprep.subr.mxu0 0.0
      %652 = vmatpush1.msra.mxu0 0.0
      %653 = vmatprep.subr.mxu0 0.0
      %654 = vmatpush1.msra.mxu0 0.0
      %655 = vmatprep.subr.mxu0 0.0
      %656 = vmatpush1.msra.mxu0 0.0
      %657 = vmatprep.subr.mxu0 0.0
      %658 = vmatpush1.msra.mxu0 0.0
      %659 = vmatprep.subr.mxu0 0.0
      %660 = vmatpush1.msra.mxu0 0.0
      %661 = vmatprep.subr.mxu0 0.0
      %662 = vmatpush1.msra.mxu0 0.0
      %663 = vmatprep.subr.mxu0 0.0
      %664 = vmatpush1.msra.mxu0 0.0
      %665 = vmatprep.subr.mxu0 0.0
      %666 = vmatpush1.msra.mxu0 %v337
      %667 = vmatprep.subr.mxu0 0.0
      %668 = vmatpush1.msra.mxu0 %v249
      %669 = vmatprep.subr.mxu0 0.0
      %670 = vmatpush1.msra.mxu0 %v248
      %671 = vmatprep.subr.mxu0 0.0
      %672 = vmatpush1.msra.mxu0 %v247
      %673 = vmatprep.subr.mxu0 0.0
      %674 = vmatpush1.msra.mxu0 %v246
      %675 = vmatprep.subr.mxu0 0.0
      %676 = vmatpush2.msra.mxu0 0.0
      %677 = vmatprep.subr.mxu0 0.0
      %678 = vmatpush2.msra.mxu0 0.0
      %679 = vmatprep.subr.mxu0 0.0
      %680 = vmatpush2.msra.mxu0 0.0
      %681 = vmatprep.subr.mxu0 0.0
      %682 = vmatpush2.msra.mxu0 0.0
      %683 = vmatprep.subr.mxu0 0.0
      %684 = vmatpush2.msra.mxu0 0.0
      %685 = vmatprep.subr.mxu0 0.0
      %686 = vmatpush2.msra.mxu0 0.0
      %687 = vmatprep.subr.mxu0 0.0
      %688 = vmatpush2.msra.mxu0 0.0
      %689 = vmatprep.subr.mxu0 0.0
      %690 = vmatpush2.msra.mxu0 0.0
      %691 = vmatprep.subr.mxu0 0.0
      %692 = vmatpush2.msra.mxu0 0.0
      %693 = vmatprep.subr.mxu0 0.0
      %694 = vmatpush2.msra.mxu0 0.0
      %695 = vmatprep.subr.mxu0 0.0
      %696 = vmatpush2.msra.mxu0 0.0
      %697 = vmatprep.subr.mxu0 0.0
      %698 = vmatpush2.msra.mxu0 0.0
      %699 = vmatprep.subr.mxu0 0.0
      %700 = vmatpush2.msra.mxu0 0.0
      %701 = vmatprep.subr.mxu0 0.0
      %702 = vmatpush2.msra.mxu0 0.0
      %703 = vmatprep.subr.mxu0 0.0
      %704 = vmatpush2.msra.mxu0 0.0
      %705 = vmatprep.subr.mxu0 0.0
      %706 = vmatpush2.msra.mxu0 0.0
      %707 = vmatprep.mubr.f32.mxu0 0.0
      %708 = vmatmul.mubr.f32.gmra.mxu0 %v641
      %v709 = vpop.f32.mrf.mxu0
      %v710 = vadd.f32 0.0, %v709
      %v711 = vpop.f32.mrf.mxu0
      %712 = vdwg.mxu0
      %s713 = scalar_lea.vmem %s244, 16
      %714 = vst.msk [vmem:[%s713] sm:$0xff] %vm409, %v710
      %s715 = scalar_lea.vmem %s2, 72
      %v716 = vld [vmem:[%s715] sm:$0xff]
      %v717 = vld [vmem:[%s715 + $0x8] sm:$0xff]
      %v718 = vld [vmem:[%s715 + $0x10] sm:$0x1]
      %v720 = vsel %vm258, %v718, 0
      %722 = vmatprep.subr.mxu0 0.0
      %723 = vmatpush1.msra.mxu0 0.0
      %724 = vmatprep.subr.mxu0 0.0
      %725 = vmatpush1.msra.mxu0 0.0
      %726 = vmatprep.subr.mxu0 0.0
      %727 = vmatpush1.msra.mxu0 0.0
      %728 = vmatprep.subr.mxu0 0.0
      %729 = vmatpush1.msra.mxu0 0.0
      %730 = vmatprep.subr.mxu0 0.0
      %731 = vmatpush1.msra.mxu0 0.0
      %732 = vmatprep.subr.mxu0 0.0
      %733 = vmatpush1.msra.mxu0 0.0
      %734 = vmatprep.subr.mxu0 0.0
      %735 = vmatpush1.msra.mxu0 0.0
      %736 = vmatprep.subr.mxu0 0.0
      %737 = vmatpush1.msra.mxu0 0.0
      %738 = vmatprep.subr.mxu0 0.0
      %739 = vmatpush1.msra.mxu0 0.0
      %740 = vmatprep.subr.mxu0 0.0
      %741 = vmatpush1.msra.mxu0 0.0
      %742 = vmatprep.subr.mxu0 0.0
      %743 = vmatpush1.msra.mxu0 0.0
      %744 = vmatprep.subr.mxu0 0.0
      %745 = vmatpush1.msra.mxu0 0.0
      %746 = vmatprep.subr.mxu0 0.0
      %747 = vmatpush1.msra.mxu0 0.0
      %748 = vmatprep.subr.mxu0 0.0
      %749 = vmatpush1.msra.mxu0 %v720
      %750 = vmatprep.subr.mxu0 0.0
      %751 = vmatpush1.msra.mxu0 %v717
      %752 = vmatprep.subr.mxu0 0.0
      %753 = vmatpush1.msra.mxu0 %v716
      %754 = vmatprep.subr.mxu0 0.0
      %755 = vmatpush2.msra.mxu0 0.0
      %756 = vmatprep.subr.mxu0 0.0
      %757 = vmatpush2.msra.mxu0 0.0
      %758 = vmatprep.subr.mxu0 0.0
      %759 = vmatpush2.msra.mxu0 0.0
      %760 = vmatprep.subr.mxu0 0.0
      %761 = vmatpush2.msra.mxu0 0.0
      %762 = vmatprep.subr.mxu0 0.0
      %763 = vmatpush2.msra.mxu0 0.0
      %764 = vmatprep.subr.mxu0 0.0
      %765 = vmatpush2.msra.mxu0 0.0
      %766 = vmatprep.subr.mxu0 0.0
      %767 = vmatpush2.msra.mxu0 0.0
      %768 = vmatprep.subr.mxu0 0.0
      %769 = vmatpush2.msra.mxu0 0.0
      %770 = vmatprep.subr.mxu0 0.0
      %771 = vmatpush2.msra.mxu0 0.0
      %772 = vmatprep.subr.mxu0 0.0
      %773 = vmatpush2.msra.mxu0 0.0
      %774 = vmatprep.subr.mxu0 0.0
      %775 = vmatpush2.msra.mxu0 0.0
      %776 = vmatprep.subr.mxu0 0.0
      %777 = vmatpush2.msra.mxu0 0.0
      %778 = vmatprep.subr.mxu0 0.0
      %779 = vmatpush2.msra.mxu0 0.0
      %780 = vmatprep.subr.mxu0 0.0
      %781 = vmatpush2.msra.mxu0 0.0
      %782 = vmatprep.subr.mxu0 0.0
      %783 = vmatpush2.msra.mxu0 0.0
      %784 = vmatprep.subr.mxu0 0.0
      %785 = vmatpush2.msra.mxu0 0.0
      %786 = vmatprep.mubr.f32.mxu0 0.0
      %787 = vmatmul.mubr.f32.gmra.mxu0 %v256
      %v788 = vpop.f32.mrf.mxu0
      %v789 = vadd.f32 0.0, %v788
      %v790 = vpop.f32.mrf.mxu0
      %791 = vdwg.mxu0
      %v793 = vsel %vm332, %v789, 0
      %795 = vmatprep.subr.mxu0 0.0
      %796 = vmatpush1.msra.mxu0 0.0
      %797 = vmatprep.subr.mxu0 0.0
      %798 = vmatpush1.msra.mxu0 0.0
      %799 = vmatprep.subr.mxu0 0.0
      %800 = vmatpush1.msra.mxu0 0.0
      %801 = vmatprep.subr.mxu0 0.0
      %802 = vmatpush1.msra.mxu0 0.0
      %803 = vmatprep.subr.mxu0 0.0
      %804 = vmatpush1.msra.mxu0 0.0
      %805 = vmatprep.subr.mxu0 0.0
      %806 = vmatpush1.msra.mxu0 0.0
      %807 = vmatprep.subr.mxu0 0.0
      %808 = vmatpush1.msra.mxu0 0.0
      %809 = vmatprep.subr.mxu0 0.0
      %810 = vmatpush1.msra.mxu0 0.0
      %811 = vmatprep.subr.mxu0 0.0
      %812 = vmatpush1.msra.mxu0 0.0
      %813 = vmatprep.subr.mxu0 0.0
      %814 = vmatpush1.msra.mxu0 0.0
      %815 = vmatprep.subr.mxu0 0.0
      %816 = vmatpush1.msra.mxu0 0.0
      %817 = vmatprep.subr.mxu0 0.0
      %818 = vmatpush1.msra.mxu0 %v337
      %819 = vmatprep.subr.mxu0 0.0
      %820 = vmatpush1.msra.mxu0 %v249
      %821 = vmatprep.subr.mxu0 0.0
      %822 = vmatpush1.msra.mxu0 %v248
      %823 = vmatprep.subr.mxu0 0.0
      %824 = vmatpush1.msra.mxu0 %v247
      %825 = vmatprep.subr.mxu0 0.0
      %826 = vmatpush1.msra.mxu0 %v246
      %827 = vmatprep.subr.mxu0 0.0
      %828 = vmatpush2.msra.mxu0 0.0
      %829 = vmatprep.subr.mxu0 0.0
      %830 = vmatpush2.msra.mxu0 0.0
      %831 = vmatprep.subr.mxu0 0.0
      %832 = vmatpush2.msra.mxu0 0.0
      %833 = vmatprep.subr.mxu0 0.0
      %834 = vmatpush2.msra.mxu0 0.0
      %835 = vmatprep.subr.mxu0 0.0
      %836 = vmatpush2.msra.mxu0 0.0
      %837 = vmatprep.subr.mxu0 0.0
      %838 = vmatpush2.msra.mxu0 0.0
      %839 = vmatprep.subr.mxu0 0.0
      %840 = vmatpush2.msra.mxu0 0.0
      %841 = vmatprep.subr.mxu0 0.0
      %842 = vmatpush2.msra.mxu0 0.0
      %843 = vmatprep.subr.mxu0 0.0
      %844 = vmatpush2.msra.mxu0 0.0
      %845 = vmatprep.subr.mxu0 0.0
      %846 = vmatpush2.msra.mxu0 0.0
      %847 = vmatprep.subr.mxu0 0.0
      %848 = vmatpush2.msra.mxu0 0.0
      %849 = vmatprep.subr.mxu0 0.0
      %850 = vmatpush2.msra.mxu0 0.0
      %851 = vmatprep.subr.mxu0 0.0
      %852 = vmatpush2.msra.mxu0 0.0
      %853 = vmatprep.subr.mxu0 0.0
      %854 = vmatpush2.msra.mxu0 0.0
      %855 = vmatprep.subr.mxu0 0.0
      %856 = vmatpush2.msra.mxu0 0.0
      %857 = vmatprep.subr.mxu0 0.0
      %858 = vmatpush2.msra.mxu0 0.0
      %859 = vmatprep.mubr.f32.mxu0 0.0
      %860 = vmatmul.mubr.f32.gmra.mxu0 %v793
      %v861 = vpop.f32.mrf.mxu0
      %v862 = vadd.f32 0.0, %v861
      %v863 = vpop.f32.mrf.mxu0
      %864 = vdwg.mxu0
      %s865 = scalar_lea.vmem %s244, 24
      %866 = vst.msk [vmem:[%s865] sm:$0xff] %vm409, %v862
      %p867 = scmp.lt.s32.totalorder %s19, 1
      %s868 = scalar_select %p867, %s19, 1
      %p869 = scmp.lt.s32.totalorder %s20, 0
      %s870 = scalar_select %p869, %s20, 0
      %p871 = scmp.lt.s32.totalorder %s21, 0
      %s872 = scalar_select %p871, %s21, 0
      %s873 = sadd.s32 %s872, %s870
      %s874 = smul.addr %s868, 4
      %s875 = sadd.s32 %s873, %s874
      %s876 = smul.addr %s875, 8
      %s877 = scalar_lea.vmem %s3, %s876
      // Predicated region
      $region33: #{tmodel_forward.6} parent=31 // pred_check
        %p878 = pneg %p132
      $region34: #{tmodel_forward.6} parent=31 // pred_check_branch
        %880 = sbr.rel (%p878) target = $region36
      $region35: #{tmodel_forward.6} parent=31 // pred_region
        _
      $region36: #{tmodel_forward.6} parent=31 // pred_fallthru
        _
    $region32: #{tmodel_forward.6} parent=5 // pred_fallthru
      _
    %p881 = scmp.le.s32.totalorder 2, %s9
    // Predicated region
    $region37: #{tmodel_forward.6} parent=5 // pred_check
      %p882 = pneg %p881
    $region38: #{tmodel_forward.6} parent=5 // pred_check_branch
      %884 = sbr.rel (%p882) target = $region40
    $region39: #{tmodel_forward.6} parent=5 // pred_region
      %s885 = ssub.s32 %s9, 2
      // Predicated region
      $region41: #{tmodel_forward.6} parent=39 // pred_check
        %p886 = pneg %p138
      $region42: #{tmodel_forward.6} parent=39 // pred_check_branch
        %888 = sbr.rel (%p886) target = $region44
      $region43: #{tmodel_forward.6} parent=39 // pred_region
        %p889 = scmp.lt.s32.totalorder %s22, 1
        %s890 = scalar_select %p889, %s22, 1
        %p891 = scmp.lt.s32.totalorder %s23, 0
        %s892 = scalar_select %p891, %s23, 0
        %p893 = scmp.lt.s32.totalorder %s24, 0
        %s894 = scalar_select %p893, %s24, 0
        %s895 = sadd.s32 %s894, %s892
        %s896 = smul.addr %s890, 4
        %s897 = sadd.s32 %s895, %s896
        %s898 = smul.addr %s897, 8
        %s899 = scalar_lea.vmem %s3, %s898
      $region44: #{tmodel_forward.6} parent=39 // pred_fallthru
        _
    $region40: #{tmodel_forward.6} parent=5 // pred_fallthru
      _
  $region6: #{tmodel_forward.6} parent=0 // loop_footer
    %s13 = sadd.s32 1, %s9
  $region7: #{tmodel_forward.6} parent=0 // loop_footer_branch
    %8 = sbr.rel target = $region3
  $region8: #{tmodel_forward.6} parent=0 // loop_exit
    _

// kernel: tmodel_forward.7
$region0: #{tmodel_forward.7}
  #allocation0 [shape = 'u32[]', space=smem, size = 0x4, offset = 0x4, fixed_abs, tag = 'smem constant byte address 0x4 - core index']
  #allocation1 [shape = 'u32[144,128]{1,0:T(1,128)}', space=vmem, size = 0x12000, scoped, tag = 'internal scratch']
  %s0 = inlined_call_operand.vmem [shape: f32[16,32], index: 0, kind: input, shape index: {}]
  %s1 = inlined_call_operand.vmem [shape: f32[16,32], index: 1, kind: input, shape index: {}]
  %s2 = inlined_call_operand.vmem [shape: f32[16,32], index: 2, kind: input, shape index: {}]
  %s3 = inlined_call_operand.vmem [shape: f32[16,16], index: 3, kind: input, shape index: {}]
  %s4 = inlined_call_operand.vmem [shape: f32[32,64], index: 4, kind: input, shape index: {}]
  %s5 = inlined_call_operand.vmem [shape: f32[1,64], index: 5, kind: input, shape index: {}]
  %s6 = inlined_call_operand.vmem [shape: f32[32,32], index: 6, kind: input, shape index: {}]
  %s7 = inlined_call_operand.vmem [shape: f32[32,32], index: 7, kind: input, shape index: {}]
  %s8 = inlined_call_operand.vmem [shape: f32[32,24], index: 8, kind: input, shape index: {}]
  %s9 = inlined_call_operand.vmem [shape: f32[32,24], index: 9, kind: input, shape index: {}]
  %s10 = inlined_call_operand.vmem [shape: f32[32,24], index: 10, kind: input, shape index: {}]
  %s11 = inlined_call_operand.vmem [shape: f32[16,24], index: 11, kind: input, shape index: {}]
  %s12 = inlined_call_operand.vmem [shape: f32[32,24], index: 12, kind: input, shape index: {}]
  %s13 = inlined_call_operand.vmem [shape: f32[32,24], index: 13, kind: input, shape index: {}]
  %s14 = inlined_call_operand.vmem [shape: f32[1,24], index: 14, kind: input, shape index: {}]
  %s15 = inlined_call_operand.vmem [shape: f32[16,24], index: 15, kind: output, shape index: {}]
  %s16 = sld [smem:[#allocation0]]
  $region70: #{tmodel_forward.7} parent=0
    _
  %s18 = ssub.s32 1, %s16
  %s19 = scalar_select 0, %s18, %s16
  // Predicated region
  $region2: #{tmodel_forward.7} parent=0 // pred_check
    _
  $region3: #{tmodel_forward.7} parent=0 // pred_check_branch
    %21 = sbr.rel (0) target = $region5
  $region4: #{tmodel_forward.7} parent=0 // pred_region
    _
  $region5: #{tmodel_forward.7} parent=0 // pred_fallthru
    _
  // Predicated region
  $region6: #{tmodel_forward.7} parent=0 // pred_check
    _
  $region7: #{tmodel_forward.7} parent=0 // pred_check_branch
    %23 = sbr.rel (0) target = $region9
  $region8: #{tmodel_forward.7} parent=0 // pred_region
    _
  $region9: #{tmodel_forward.7} parent=0 // pred_fallthru
    _
  // Predicated region
  $region10: #{tmodel_forward.7} parent=0 // pred_check
    _
  $region11: #{tmodel_forward.7} parent=0 // pred_check_branch
    %25 = sbr.rel (0) target = $region13
  $region12: #{tmodel_forward.7} parent=0 // pred_region
    _
  $region13: #{tmodel_forward.7} parent=0 // pred_fallthru
    _
  // Predicated region
  $region14: #{tmodel_forward.7} parent=0 // pred_check
    _
  $region15: #{tmodel_forward.7} parent=0 // pred_check_branch
    %27 = sbr.rel (0) target = $region17
  $region16: #{tmodel_forward.7} parent=0 // pred_region
    _
  $region17: #{tmodel_forward.7} parent=0 // pred_fallthru
    _
  // Predicated region
  $region18: #{tmodel_forward.7} parent=0 // pred_check
    _
  $region19: #{tmodel_forward.7} parent=0 // pred_check_branch
    %29 = sbr.rel (0) target = $region21
  $region20: #{tmodel_forward.7} parent=0 // pred_region
    _
  $region21: #{tmodel_forward.7} parent=0 // pred_fallthru
    _
  // Predicated region
  $region22: #{tmodel_forward.7} parent=0 // pred_check
    _
  $region23: #{tmodel_forward.7} parent=0 // pred_check_branch
    %31 = sbr.rel (0) target = $region25
  $region24: #{tmodel_forward.7} parent=0 // pred_region
    _
  $region25: #{tmodel_forward.7} parent=0 // pred_fallthru
    _
  // Predicated region
  $region26: #{tmodel_forward.7} parent=0 // pred_check
    _
  $region27: #{tmodel_forward.7} parent=0 // pred_check_branch
    %33 = sbr.rel (0) target = $region29
  $region28: #{tmodel_forward.7} parent=0 // pred_region
    _
  $region29: #{tmodel_forward.7} parent=0 // pred_fallthru
    _
  // Predicated region
  $region30: #{tmodel_forward.7} parent=0 // pred_check
    _
  $region31: #{tmodel_forward.7} parent=0 // pred_check_branch
    %35 = sbr.rel (0) target = $region33
  $region32: #{tmodel_forward.7} parent=0 // pred_region
    _
  $region33: #{tmodel_forward.7} parent=0 // pred_fallthru
    _
  // Predicated region
  $region34: #{tmodel_forward.7} parent=0 // pred_check
    _
  $region35: #{tmodel_forward.7} parent=0 // pred_check_branch
    %37 = sbr.rel (0) target = $region37
  $region36: #{tmodel_forward.7} parent=0 // pred_region
    _
  $region37: #{tmodel_forward.7} parent=0 // pred_fallthru
    _
  // Predicated region
  $region38: #{tmodel_forward.7} parent=0 // pred_check
    _
  $region39: #{tmodel_forward.7} parent=0 // pred_check_branch
    %39 = sbr.rel (0) target = $region41
  $region40: #{tmodel_forward.7} parent=0 // pred_region
    _
  $region41: #{tmodel_forward.7} parent=0 // pred_fallthru
    _
  // Predicated region
  $region42: #{tmodel_forward.7} parent=0 // pred_check
    _
  $region43: #{tmodel_forward.7} parent=0 // pred_check_branch
    %41 = sbr.rel (0) target = $region45
  $region44: #{tmodel_forward.7} parent=0 // pred_region
    _
  $region45: #{tmodel_forward.7} parent=0 // pred_fallthru
    _
  // Predicated region
  $region46: #{tmodel_forward.7} parent=0 // pred_check
    _
  $region47: #{tmodel_forward.7} parent=0 // pred_check_branch
    %43 = sbr.rel (0) target = $region49
  $region48: #{tmodel_forward.7} parent=0 // pred_region
    _
  $region49: #{tmodel_forward.7} parent=0 // pred_fallthru
    _
  // Predicated region
  $region50: #{tmodel_forward.7} parent=0 // pred_check
    _
  $region51: #{tmodel_forward.7} parent=0 // pred_check_branch
    %45 = sbr.rel (0) target = $region53
  $region52: #{tmodel_forward.7} parent=0 // pred_region
    _
  $region53: #{tmodel_forward.7} parent=0 // pred_fallthru
    _
  // Predicated region
  $region54: #{tmodel_forward.7} parent=0 // pred_check
    _
  $region55: #{tmodel_forward.7} parent=0 // pred_check_branch
    %47 = sbr.rel (0) target = $region57
  $region56: #{tmodel_forward.7} parent=0 // pred_region
    _
  $region57: #{tmodel_forward.7} parent=0 // pred_fallthru
    _
  // Predicated region
  $region58: #{tmodel_forward.7} parent=0 // pred_check
    _
  $region59: #{tmodel_forward.7} parent=0 // pred_check_branch
    %49 = sbr.rel (0) target = $region61
  $region60: #{tmodel_forward.7} parent=0 // pred_region
    _
  $region61: #{tmodel_forward.7} parent=0 // pred_fallthru
    _
  %v50 = vld [vmem:[%s0] sm:$0xff]
  %v51 = vld [vmem:[%s0 + $0x8] sm:$0xff]
  %v52 = vld [vmem:[%s1] sm:$0xff]
  %v53 = vld [vmem:[%s1 + $0x8] sm:$0xff]
  %v54 = vld [vmem:[%s2] sm:$0xff]
  %v55 = vld [vmem:[%s2 + $0x8] sm:$0xff]
  %v56 = vld [vmem:[%s3] sm:$0xff]
  %v57 = vld [vmem:[%s3 + $0x8] sm:$0xff]
  %v58 = vld [vmem:[%s4] sm:$0xff]
  %v59 = vld [vmem:[%s4 + $0x8] sm:$0xff]
  %v60 = vld [vmem:[%s4 + $0x10] sm:$0xff]
  %v61 = vld [vmem:[%s4 + $0x18] sm:$0xff]
  %v62 = vld [vmem:[%s5] sm:$0x1]
  %v64 = vlaneseq
  %v65 = vshrl.u32 %v64, 7
  %v66 = vsub.s32 0, %v65
  %v67 = vrot.slane %v62, %v66
  %vm69 = vcmask 261120
  %v71 = vsel %vm69, %v50, 0
  %v74 = vsel %vm69, %v51, 0
  %76 = vmatprep.subr.mxu0 0.0
  %77 = vmatpush1.msra.mxu0 0.0
  %78 = vmatprep.subr.mxu0 0.0
  %79 = vmatpush1.msra.mxu0 0.0
  %80 = vmatprep.subr.mxu0 0.0
  %81 = vmatpush1.msra.mxu0 0.0
  %82 = vmatprep.subr.mxu0 0.0
  %83 = vmatpush1.msra.mxu0 0.0
  %84 = vmatprep.subr.mxu0 0.0
  %85 = vmatpush1.msra.mxu0 0.0
  %86 = vmatprep.subr.mxu0 0.0
  %87 = vmatpush1.msra.mxu0 0.0
  %88 = vmatprep.subr.mxu0 0.0
  %89 = vmatpush1.msra.mxu0 0.0
  %90 = vmatprep.subr.mxu0 0.0
  %91 = vmatpush1.msra.mxu0 0.0
  %92 = vmatprep.subr.mxu0 0.0
  %93 = vmatpush1.msra.mxu0 0.0
  %94 = vmatprep.subr.mxu0 0.0
  %95 = vmatpush1.msra.mxu0 0.0
  %96 = vmatprep.subr.mxu0 0.0
  %97 = vmatpush1.msra.mxu0 0.0
  %98 = vmatprep.subr.mxu0 0.0
  %99 = vmatpush1.msra.mxu0 0.0
  %100 = vmatprep.subr.mxu0 0.0
  %101 = vmatpush1.msra.mxu0 %v61
  %102 = vmatprep.subr.mxu0 0.0
  %103 = vmatpush1.msra.mxu0 %v60
  %104 = vmatprep.subr.mxu0 0.0
  %105 = vmatpush1.msra.mxu0 %v59
  %106 = vmatprep.subr.mxu0 0.0
  %107 = vmatpush1.msra.mxu0 %v58
  %108 = vmatprep.subr.mxu0 0.0
  %109 = vmatpush2.msra.mxu0 0.0
  %110 = vmatprep.subr.mxu0 0.0
  %111 = vmatpush2.msra.mxu0 0.0
  %112 = vmatprep.subr.mxu0 0.0
  %113 = vmatpush2.msra.mxu0 0.0
  %114 = vmatprep.subr.mxu0 0.0
  %115 = vmatpush2.msra.mxu0 0.0
  %116 = vmatprep.subr.mxu0 0.0
  %117 = vmatpush2.msra.mxu0 0.0
  %118 = vmatprep.subr.mxu0 0.0
  %119 = vmatpush2.msra.mxu0 0.0
  %120 = vmatprep.subr.mxu0 0.0
  %121 = vmatpush2.msra.mxu0 0.0
  %122 = vmatprep.subr.mxu0 0.0
  %123 = vmatpush2.msra.mxu0 0.0
  %124 = vmatprep.subr.mxu0 0.0
  %125 = vmatpush2.msra.mxu0 0.0
  %126 = vmatprep.subr.mxu0 0.0
  %127 = vmatpush2.msra.mxu0 0.0
  %128 = vmatprep.subr.mxu0 0.0
  %129 = vmatpush2.msra.mxu0 0.0
  %130 = vmatprep.subr.mxu0 0.0
  %131 = vmatpush2.msra.mxu0 0.0
  %132 = vmatprep.subr.mxu0 0.0
  %133 = vmatpush2.msra.mxu0 0.0
  %134 = vmatprep.subr.mxu0 0.0
  %135 = vmatpush2.msra.mxu0 0.0
  %136 = vmatprep.subr.mxu0 0.0
  %137 = vmatpush2.msra.mxu0 0.0
  %138 = vmatprep.subr.mxu0 0.0
  %139 = vmatpush2.msra.mxu0 0.0
  %140 = vmatprep.mubr.f32.mxu0 0.0
  %141 = vmatmul.mubr.f32.gmra.mxu0 %v71
  %v142 = vpop.f32.mrf.mxu0
  %v143 = vadd.f32 %v67, %v142
  %v144 = vpop.f32.mrf.mxu0
  %145 = vmatprep.mubr.f32.mxu0 0.0
  %146 = vmatmul.mubr.f32.gmra.mxu0 %v74
  %v147 = vpop.f32.mrf.mxu0
  %v148 = vadd.f32 %v67, %v147
  %v149 = vpop.f32.mrf.mxu0
  %150 = vdwg.mxu0
  %v151 = vld [vmem:[%s6] sm:$0xff]
  %v152 = vld [vmem:[%s6 + $0x8] sm:$0xff]
  %v153 = vld [vmem:[%s6 + $0x10] sm:$0xff]
  %v154 = vld [vmem:[%s6 + $0x18] sm:$0xff]
  %v156 = vsel %vm69, %v52, 0
  %v159 = vsel %vm69, %v53, 0
  %161 = vmatprep.subr.mxu0 0.0
  %162 = vmatpush1.msra.mxu0 0.0
  %163 = vmatprep.subr.mxu0 0.0
  %164 = vmatpush1.msra.mxu0 0.0
  %165 = vmatprep.subr.mxu0 0.0
  %166 = vmatpush1.msra.mxu0 0.0
  %167 = vmatprep.subr.mxu0 0.0
  %168 = vmatpush1.msra.mxu0 0.0
  %169 = vmatprep.subr.mxu0 0.0
  %170 = vmatpush1.msra.mxu0 0.0
  %171 = vmatprep.subr.mxu0 0.0
  %172 = vmatpush1.msra.mxu0 0.0
  %173 = vmatprep.subr.mxu0 0.0
  %174 = vmatpush1.msra.mxu0 0.0
  %175 = vmatprep.subr.mxu0 0.0
  %176 = vmatpush1.msra.mxu0 0.0
  %177 = vmatprep.subr.mxu0 0.0
  %178 = vmatpush1.msra.mxu0 0.0
  %179 = vmatprep.subr.mxu0 0.0
  %180 = vmatpush1.msra.mxu0 0.0
  %181 = vmatprep.subr.mxu0 0.0
  %182 = vmatpush1.msra.mxu0 0.0
  %183 = vmatprep.subr.mxu0 0.0
  %184 = vmatpush1.msra.mxu0 0.0
  %185 = vmatprep.subr.mxu0 0.0
  %186 = vmatpush1.msra.mxu0 %v154
  %187 = vmatprep.subr.mxu0 0.0
  %188 = vmatpush1.msra.mxu0 %v153
  %189 = vmatprep.subr.mxu0 0.0
  %190 = vmatpush1.msra.mxu0 %v152
  %191 = vmatprep.subr.mxu0 0.0
  %192 = vmatpush1.msra.mxu0 %v151
  %193 = vmatprep.subr.mxu0 0.0
  %194 = vmatpush2.msra.mxu0 0.0
  %195 = vmatprep.subr.mxu0 0.0
  %196 = vmatpush2.msra.mxu0 0.0
  %197 = vmatprep.subr.mxu0 0.0
  %198 = vmatpush2.msra.mxu0 0.0
  %199 = vmatprep.subr.mxu0 0.0
  %200 = vmatpush2.msra.mxu0 0.0
  %201 = vmatprep.subr.mxu0 0.0
  %202 = vmatpush2.msra.mxu0 0.0
  %203 = vmatprep.subr.mxu0 0.0
  %204 = vmatpush2.msra.mxu0 0.0
  %205 = vmatprep.subr.mxu0 0.0
  %206 = vmatpush2.msra.mxu0 0.0
  %207 = vmatprep.subr.mxu0 0.0
  %208 = vmatpush2.msra.mxu0 0.0
  %209 = vmatprep.subr.mxu0 0.0
  %210 = vmatpush2.msra.mxu0 0.0
  %211 = vmatprep.subr.mxu0 0.0
  %212 = vmatpush2.msra.mxu0 0.0
  %213 = vmatprep.subr.mxu0 0.0
  %214 = vmatpush2.msra.mxu0 0.0
  %215 = vmatprep.subr.mxu0 0.0
  %216 = vmatpush2.msra.mxu0 0.0
  %217 = vmatprep.subr.mxu0 0.0
  %218 = vmatpush2.msra.mxu0 0.0
  %219 = vmatprep.subr.mxu0 0.0
  %220 = vmatpush2.msra.mxu0 0.0
  %221 = vmatprep.subr.mxu0 0.0
  %222 = vmatpush2.msra.mxu0 0.0
  %223 = vmatprep.subr.mxu0 0.0
  %224 = vmatpush2.msra.mxu0 0.0
  %225 = vmatprep.mubr.f32.mxu0 0.0
  %226 = vmatmul.mubr.f32.gmra.mxu0 %v156
  %v227 = vpop.f32.mrf.mxu0
  %v228 = vadd.f32 0.0, %v227
  %v229 = vpop.f32.mrf.mxu0
  %230 = vmatprep.mubr.f32.mxu0 0.0
  %231 = vmatmul.mubr.f32.gmra.mxu0 %v159
  %v232 = vpop.f32.mrf.mxu0
  %v233 = vadd.f32 0.0, %v232
  %v234 = vpop.f32.mrf.mxu0
  %235 = vdwg.mxu0
  %v236 = vadd.f32 %v143, %v228
  %v237 = vadd.f32 %v148, %v233
  %v238 = vld [vmem:[%s7] sm:$0xff]
  %v239 = vld [vmem:[%s7 + $0x8] sm:$0xff]
  %v240 = vld [vmem:[%s7 + $0x10] sm:$0xff]
  %v241 = vld [vmem:[%s7 + $0x18] sm:$0xff]
  %v243 = vsel %vm69, %v54, 0
  %v246 = vsel %vm69, %v55, 0
  %248 = vmatprep.subr.mxu0 0.0
  %249 = vmatpush1.msra.mxu0 0.0
  %250 = vmatprep.subr.mxu0 0.0
  %251 = vmatpush1.msra.mxu0 0.0
  %252 = vmatprep.subr.mxu0 0.0
  %253 = vmatpush1.msra.mxu0 0.0
  %254 = vmatprep.subr.mxu0 0.0
  %255 = vmatpush1.msra.mxu0 0.0
  %256 = vmatprep.subr.mxu0 0.0
  %257 = vmatpush1.msra.mxu0 0.0
  %258 = vmatprep.subr.mxu0 0.0
  %259 = vmatpush1.msra.mxu0 0.0
  %260 = vmatprep.subr.mxu0 0.0
  %261 = vmatpush1.msra.mxu0 0.0
  %262 = vmatprep.subr.mxu0 0.0
  %263 = vmatpush1.msra.mxu0 0.0
  %264 = vmatprep.subr.mxu0 0.0
  %265 = vmatpush1.msra.mxu0 0.0
  %266 = vmatprep.subr.mxu0 0.0
  %267 = vmatpush1.msra.mxu0 0.0
  %268 = vmatprep.subr.mxu0 0.0
  %269 = vmatpush1.msra.mxu0 0.0
  %270 = vmatprep.subr.mxu0 0.0
  %271 = vmatpush1.msra.mxu0 0.0
  %272 = vmatprep.subr.mxu0 0.0
  %273 = vmatpush1.msra.mxu0 %v241
  %274 = vmatprep.subr.mxu0 0.0
  %275 = vmatpush1.msra.mxu0 %v240
  %276 = vmatprep.subr.mxu0 0.0
  %277 = vmatpush1.msra.mxu0 %v239
  %278 = vmatprep.subr.mxu0 0.0
  %279 = vmatpush1.msra.mxu0 %v238
  %280 = vmatprep.subr.mxu0 0.0
  %281 = vmatpush2.msra.mxu0 0.0
  %282 = vmatprep.subr.mxu0 0.0
  %283 = vmatpush2.msra.mxu0 0.0
  %284 = vmatprep.subr.mxu0 0.0
  %285 = vmatpush2.msra.mxu0 0.0
  %286 = vmatprep.subr.mxu0 0.0
  %287 = vmatpush2.msra.mxu0 0.0
  %288 = vmatprep.subr.mxu0 0.0
  %289 = vmatpush2.msra.mxu0 0.0
  %290 = vmatprep.subr.mxu0 0.0
  %291 = vmatpush2.msra.mxu0 0.0
  %292 = vmatprep.subr.mxu0 0.0
  %293 = vmatpush2.msra.mxu0 0.0
  %294 = vmatprep.subr.mxu0 0.0
  %295 = vmatpush2.msra.mxu0 0.0
  %296 = vmatprep.subr.mxu0 0.0
  %297 = vmatpush2.msra.mxu0 0.0
  %298 = vmatprep.subr.mxu0 0.0
  %299 = vmatpush2.msra.mxu0 0.0
  %300 = vmatprep.subr.mxu0 0.0
  %301 = vmatpush2.msra.mxu0 0.0
  %302 = vmatprep.subr.mxu0 0.0
  %303 = vmatpush2.msra.mxu0 0.0
  %304 = vmatprep.subr.mxu0 0.0
  %305 = vmatpush2.msra.mxu0 0.0
  %306 = vmatprep.subr.mxu0 0.0
  %307 = vmatpush2.msra.mxu0 0.0
  %308 = vmatprep.subr.mxu0 0.0
  %309 = vmatpush2.msra.mxu0 0.0
  %310 = vmatprep.subr.mxu0 0.0
  %311 = vmatpush2.msra.mxu0 0.0
  %312 = vmatprep.mubr.f32.mxu0 0.0
  %313 = vmatmul.mubr.f32.gmra.mxu0 %v243
  %v314 = vpop.f32.mrf.mxu0
  %v315 = vadd.f32 0.0, %v314
  %v316 = vpop.f32.mrf.mxu0
  %317 = vmatprep.mubr.f32.mxu0 0.0
  %318 = vmatmul.mubr.f32.gmra.mxu0 %v246
  %v319 = vpop.f32.mrf.mxu0
  %v320 = vadd.f32 0.0, %v319
  %v321 = vpop.f32.mrf.mxu0
  %322 = vdwg.mxu0
  %325 = vrot.lane.b32.xlu0 %v315, 32
  %v326 = vpop.permute.xlu0 %325
  %327 = vrot.lane.b32.xlu0 %v320, 32
  %v328 = vpop.permute.xlu0 %327
  %v331 = vadd.f32 %v143, %v326
  %v332 = vadd.f32 %v148, %v328
  %v333 = vmin.f32 %v236, 0.0
  %v334 = vmin.f32 %v237, 0.0
  %v335 = vand.u32 2147483647, %v236
  %v336 = vand.u32 2147483647, %v237
  %v337 = vsub.f32 0.0, %v335
  %v338 = vsub.f32 0.0, %v336
  %v339 = vmul.f32 %v337, 1.442695
  %v340 = vpow.pop %v339
  %v341 = vmul.f32 %v338, 1.442695
  %v342 = vpow.pop %v341
  %v343 = vadd.f32 %v340, 1.0
  %v344 = vadd.f32 %v342, 1.0
  %v345 = vlog2.pop %v343
  %v346 = vmul.f32 %v345, 0.6931472
  %v347 = vlog2.pop %v344
  %v348 = vmul.f32 %v347, 0.6931472
  %v349 = vsub.f32 %v343, 1.0
  %v350 = vsub.f32 %v344, 1.0
  %v351 = vsub.f32 %v349, %v340
  %v352 = vsub.f32 %v350, %v342
  %v353 = vrcp.pop %v343
  %v354 = vmul.f32 %v351, %v353
  %v355 = vrcp.pop %v344
  %v356 = vmul.f32 %v352, %v355
  %v357 = vsub.f32 %v346, %v354
  %v358 = vsub.f32 %v348, %v356
  %v359 = vsub.f32 %v333, %v357
  %v360 = vsub.f32 %v334, %v358
  %v361 = vmul.f32 %v359, %v52
  %v362 = vmul.f32 %v360, %v53
  %v363 = vmin.f32 %v331, 0.0
  %v364 = vmin.f32 %v332, 0.0
  %v365 = vand.u32 2147483647, %v331
  %v366 = vand.u32 2147483647, %v332
  %v367 = vsub.f32 0.0, %v365
  %v368 = vsub.f32 0.0, %v366
  %v369 = vmul.f32 %v367, 1.442695
  %v370 = vpow.pop %v369
  %v371 = vmul.f32 %v368, 1.442695
  %v372 = vpow.pop %v371
  %v373 = vadd.f32 %v370, 1.0
  %v374 = vadd.f32 %v372, 1.0
  %v375 = vlog2.pop %v373
  %v376 = vmul.f32 %v375, 0.6931472
  %v377 = vlog2.pop %v374
  %v378 = vmul.f32 %v377, 0.6931472
  %v379 = vsub.f32 %v373, 1.0
  %v380 = vsub.f32 %v374, 1.0
  %v381 = vsub.f32 %v379, %v370
  %v382 = vsub.f32 %v380, %v372
  %v383 = vrcp.pop %v373
  %v384 = vmul.f32 %v381, %v383
  %v385 = vrcp.pop %v374
  %v386 = vmul.f32 %v382, %v385
  %v387 = vsub.f32 %v376, %v384
  %v388 = vsub.f32 %v378, %v386
  %v389 = vsub.f32 %v363, %v387
  %v390 = vsub.f32 %v364, %v388
  %391 = vrot.lane.b32.xlu0 %v54, 32
  %v392 = vpop.permute.xlu0 %391
  %393 = vrot.lane.b32.xlu0 %v55, 32
  %v394 = vpop.permute.xlu0 %393
  %v397 = vmul.f32 %v389, %v392
  %v398 = vmul.f32 %v390, %v394
  %v399 = vld [vmem:[%s14] sm:$0x1]
  %v400 = vld [vmem:[%s8] sm:$0xff]
  %v401 = vld [vmem:[%s8 + $0x8] sm:$0xff]
  %v402 = vld [vmem:[%s8 + $0x10] sm:$0xff]
  %v403 = vld [vmem:[%s8 + $0x18] sm:$0xff]
  %404 = vmatprep.subr.mxu0 0.0
  %405 = vmatpush1.msra.mxu0 0.0
  %406 = vmatprep.subr.mxu0 0.0
  %407 = vmatpush1.msra.mxu0 0.0
  %408 = vmatprep.subr.mxu0 0.0
  %409 = vmatpush1.msra.mxu0 0.0
  %410 = vmatprep.subr.mxu0 0.0
  %411 = vmatpush1.msra.mxu0 0.0
  %412 = vmatprep.subr.mxu0 0.0
  %413 = vmatpush1.msra.mxu0 0.0
  %414 = vmatprep.subr.mxu0 0.0
  %415 = vmatpush1.msra.mxu0 0.0
  %416 = vmatprep.subr.mxu0 0.0
  %417 = vmatpush1.msra.mxu0 0.0
  %418 = vmatprep.subr.mxu0 0.0
  %419 = vmatpush1.msra.mxu0 0.0
  %420 = vmatprep.subr.mxu0 0.0
  %421 = vmatpush1.msra.mxu0 0.0
  %422 = vmatprep.subr.mxu0 0.0
  %423 = vmatpush1.msra.mxu0 0.0
  %424 = vmatprep.subr.mxu0 0.0
  %425 = vmatpush1.msra.mxu0 0.0
  %426 = vmatprep.subr.mxu0 0.0
  %427 = vmatpush1.msra.mxu0 0.0
  %428 = vmatprep.subr.mxu0 0.0
  %429 = vmatpush1.msra.mxu0 %v403
  %430 = vmatprep.subr.mxu0 0.0
  %431 = vmatpush1.msra.mxu0 %v402
  %432 = vmatprep.subr.mxu0 0.0
  %433 = vmatpush1.msra.mxu0 %v401
  %434 = vmatprep.subr.mxu0 0.0
  %435 = vmatpush1.msra.mxu0 %v400
  %436 = vmatprep.subr.mxu0 0.0
  %437 = vmatpush2.msra.mxu0 0.0
  %438 = vmatprep.subr.mxu0 0.0
  %439 = vmatpush2.msra.mxu0 0.0
  %440 = vmatprep.subr.mxu0 0.0
  %441 = vmatpush2.msra.mxu0 0.0
  %442 = vmatprep.subr.mxu0 0.0
  %443 = vmatpush2.msra.mxu0 0.0
  %444 = vmatprep.subr.mxu0 0.0
  %445 = vmatpush2.msra.mxu0 0.0
  %446 = vmatprep.subr.mxu0 0.0
  %447 = vmatpush2.msra.mxu0 0.0
  %448 = vmatprep.subr.mxu0 0.0
  %449 = vmatpush2.msra.mxu0 0.0
  %450 = vmatprep.subr.mxu0 0.0
  %451 = vmatpush2.msra.mxu0 0.0
  %452 = vmatprep.subr.mxu0 0.0
  %453 = vmatpush2.msra.mxu0 0.0
  %454 = vmatprep.subr.mxu0 0.0
  %455 = vmatpush2.msra.mxu0 0.0
  %456 = vmatprep.subr.mxu0 0.0
  %457 = vmatpush2.msra.mxu0 0.0
  %458 = vmatprep.subr.mxu0 0.0
  %459 = vmatpush2.msra.mxu0 0.0
  %460 = vmatprep.subr.mxu0 0.0
  %461 = vmatpush2.msra.mxu0 0.0
  %462 = vmatprep.subr.mxu0 0.0
  %463 = vmatpush2.msra.mxu0 0.0
  %464 = vmatprep.subr.mxu0 0.0
  %465 = vmatpush2.msra.mxu0 0.0
  %466 = vmatprep.subr.mxu0 0.0
  %467 = vmatpush2.msra.mxu0 0.0
  %468 = vmatprep.mubr.f32.mxu0 0.0
  %469 = vmatmul.mubr.f32.gmra.mxu0 %v71
  %v470 = vpop.f32.mrf.mxu0
  %v471 = vadd.f32 0.0, %v470
  %v472 = vpop.f32.mrf.mxu0
  %473 = vmatprep.mubr.f32.mxu0 0.0
  %474 = vmatmul.mubr.f32.gmra.mxu0 %v74
  %v475 = vpop.f32.mrf.mxu0
  %v476 = vadd.f32 0.0, %v475
  %v477 = vpop.f32.mrf.mxu0
  %478 = vdwg.mxu0
  %v480 = vlaneseq
  %v481 = vshrl.u32 %v480, 7
  %v482 = vsub.s32 0, %v481
  %v483 = vrot.slane %v399, %v482
  %v485 = vadd.f32 %v483, %v471
  %v486 = vadd.f32 %v483, %v476
  %v487 = vld [vmem:[%s9] sm:$0xff]
  %v488 = vld [vmem:[%s9 + $0x8] sm:$0xff]
  %v489 = vld [vmem:[%s9 + $0x10] sm:$0xff]
  %v490 = vld [vmem:[%s9 + $0x18] sm:$0xff]
  %v492 = vsel %vm69, %v361, 0
  %v495 = vsel %vm69, %v362, 0
  %497 = vmatprep.subr.mxu0 0.0
  %498 = vmatpush1.msra.mxu0 0.0
  %499 = vmatprep.subr.mxu0 0.0
  %500 = vmatpush1.msra.mxu0 0.0
  %501 = vmatprep.subr.mxu0 0.0
  %502 = vmatpush1.msra.mxu0 0.0
  %503 = vmatprep.subr.mxu0 0.0
  %504 = vmatpush1.msra.mxu0 0.0
  %505 = vmatprep.subr.mxu0 0.0
  %506 = vmatpush1.msra.mxu0 0.0
  %507 = vmatprep.subr.mxu0 0.0
  %508 = vmatpush1.msra.mxu0 0.0
  %509 = vmatprep.subr.mxu0 0.0
  %510 = vmatpush1.msra.mxu0 0.0
  %511 = vmatprep.subr.mxu0 0.0
  %512 = vmatpush1.msra.mxu0 0.0
  %513 = vmatprep.subr.mxu0 0.0
  %514 = vmatpush1.msra.mxu0 0.0
  %515 = vmatprep.subr.mxu0 0.0
  %516 = vmatpush1.msra.mxu0 0.0
  %517 = vmatprep.subr.mxu0 0.0
  %518 = vmatpush1.msra.mxu0 0.0
  %519 = vmatprep.subr.mxu0 0.0
  %520 = vmatpush1.msra.mxu0 0.0
  %521 = vmatprep.subr.mxu0 0.0
  %522 = vmatpush1.msra.mxu0 %v490
  %523 = vmatprep.subr.mxu0 0.0
  %524 = vmatpush1.msra.mxu0 %v489
  %525 = vmatprep.subr.mxu0 0.0
  %526 = vmatpush1.msra.mxu0 %v488
  %527 = vmatprep.subr.mxu0 0.0
  %528 = vmatpush1.msra.mxu0 %v487
  %529 = vmatprep.subr.mxu0 0.0
  %530 = vmatpush2.msra.mxu0 0.0
  %531 = vmatprep.subr.mxu0 0.0
  %532 = vmatpush2.msra.mxu0 0.0
  %533 = vmatprep.subr.mxu0 0.0
  %534 = vmatpush2.msra.mxu0 0.0
  %535 = vmatprep.subr.mxu0 0.0
  %536 = vmatpush2.msra.mxu0 0.0
  %537 = vmatprep.subr.mxu0 0.0
  %538 = vmatpush2.msra.mxu0 0.0
  %539 = vmatprep.subr.mxu0 0.0
  %540 = vmatpush2.msra.mxu0 0.0
  %541 = vmatprep.subr.mxu0 0.0
  %542 = vmatpush2.msra.mxu0 0.0
  %543 = vmatprep.subr.mxu0 0.0
  %544 = vmatpush2.msra.mxu0 0.0
  %545 = vmatprep.subr.mxu0 0.0
  %546 = vmatpush2.msra.mxu0 0.0
  %547 = vmatprep.subr.mxu0 0.0
  %548 = vmatpush2.msra.mxu0 0.0
  %549 = vmatprep.subr.mxu0 0.0
  %550 = vmatpush2.msra.mxu0 0.0
  %551 = vmatprep.subr.mxu0 0.0
  %552 = vmatpush2.msra.mxu0 0.0
  %553 = vmatprep.subr.mxu0 0.0
  %554 = vmatpush2.msra.mxu0 0.0
  %555 = vmatprep.subr.mxu0 0.0
  %556 = vmatpush2.msra.mxu0 0.0
  %557 = vmatprep.subr.mxu0 0.0
  %558 = vmatpush2.msra.mxu0 0.0
  %559 = vmatprep.subr.mxu0 0.0
  %560 = vmatpush2.msra.mxu0 0.0
  %561 = vmatprep.mubr.f32.mxu0 0.0
  %562 = vmatmul.mubr.f32.gmra.mxu0 %v492
  %v563 = vpop.f32.mrf.mxu0
  %v564 = vadd.f32 0.0, %v563
  %v565 = vpop.f32.mrf.mxu0
  %566 = vmatprep.mubr.f32.mxu0 0.0
  %567 = vmatmul.mubr.f32.gmra.mxu0 %v495
  %v568 = vpop.f32.mrf.mxu0
  %v569 = vadd.f32 0.0, %v568
  %v570 = vpop.f32.mrf.mxu0
  %571 = vdwg.mxu0
  %v572 = vadd.f32 %v485, %v564
  %v573 = vadd.f32 %v486, %v569
  %v574 = vld [vmem:[%s10] sm:$0xff]
  %v575 = vld [vmem:[%s10 + $0x8] sm:$0xff]
  %v576 = vld [vmem:[%s10 + $0x10] sm:$0xff]
  %v577 = vld [vmem:[%s10 + $0x18] sm:$0xff]
  %580 = vrot.lane.b32.xlu0 %v397, 96
  %v581 = vpop.permute.xlu0 %580
  %582 = vrot.lane.b32.xlu0 %v398, 96
  %v583 = vpop.permute.xlu0 %582
  %v584 = vsel %vm69, %v581, 0
  %v586 = vsel %vm69, %v583, 0
  %588 = vmatprep.subr.mxu0 0.0
  %589 = vmatpush1.msra.mxu0 0.0
  %590 = vmatprep.subr.mxu0 0.0
  %591 = vmatpush1.msra.mxu0 0.0
  %592 = vmatprep.subr.mxu0 0.0
  %593 = vmatpush1.msra.mxu0 0.0
  %594 = vmatprep.subr.mxu0 0.0
  %595 = vmatpush1.msra.mxu0 0.0
  %596 = vmatprep.subr.mxu0 0.0
  %597 = vmatpush1.msra.mxu0 0.0
  %598 = vmatprep.subr.mxu0 0.0
  %599 = vmatpush1.msra.mxu0 0.0
  %600 = vmatprep.subr.mxu0 0.0
  %601 = vmatpush1.msra.mxu0 0.0
  %602 = vmatprep.subr.mxu0 0.0
  %603 = vmatpush1.msra.mxu0 0.0
  %604 = vmatprep.subr.mxu0 0.0
  %605 = vmatpush1.msra.mxu0 0.0
  %606 = vmatprep.subr.mxu0 0.0
  %607 = vmatpush1.msra.mxu0 0.0
  %608 = vmatprep.subr.mxu0 0.0
  %609 = vmatpush1.msra.mxu0 0.0
  %610 = vmatprep.subr.mxu0 0.0
  %611 = vmatpush1.msra.mxu0 0.0
  %612 = vmatprep.subr.mxu0 0.0
  %613 = vmatpush1.msra.mxu0 %v577
  %614 = vmatprep.subr.mxu0 0.0
  %615 = vmatpush1.msra.mxu0 %v576
  %616 = vmatprep.subr.mxu0 0.0
  %617 = vmatpush1.msra.mxu0 %v575
  %618 = vmatprep.subr.mxu0 0.0
  %619 = vmatpush1.msra.mxu0 %v574
  %620 = vmatprep.subr.mxu0 0.0
  %621 = vmatpush2.msra.mxu0 0.0
  %622 = vmatprep.subr.mxu0 0.0
  %623 = vmatpush2.msra.mxu0 0.0
  %624 = vmatprep.subr.mxu0 0.0
  %625 = vmatpush2.msra.mxu0 0.0
  %626 = vmatprep.subr.mxu0 0.0
  %627 = vmatpush2.msra.mxu0 0.0
  %628 = vmatprep.subr.mxu0 0.0
  %629 = vmatpush2.msra.mxu0 0.0
  %630 = vmatprep.subr.mxu0 0.0
  %631 = vmatpush2.msra.mxu0 0.0
  %632 = vmatprep.subr.mxu0 0.0
  %633 = vmatpush2.msra.mxu0 0.0
  %634 = vmatprep.subr.mxu0 0.0
  %635 = vmatpush2.msra.mxu0 0.0
  %636 = vmatprep.subr.mxu0 0.0
  %637 = vmatpush2.msra.mxu0 0.0
  %638 = vmatprep.subr.mxu0 0.0
  %639 = vmatpush2.msra.mxu0 0.0
  %640 = vmatprep.subr.mxu0 0.0
  %641 = vmatpush2.msra.mxu0 0.0
  %642 = vmatprep.subr.mxu0 0.0
  %643 = vmatpush2.msra.mxu0 0.0
  %644 = vmatprep.subr.mxu0 0.0
  %645 = vmatpush2.msra.mxu0 0.0
  %646 = vmatprep.subr.mxu0 0.0
  %647 = vmatpush2.msra.mxu0 0.0
  %648 = vmatprep.subr.mxu0 0.0
  %649 = vmatpush2.msra.mxu0 0.0
  %650 = vmatprep.subr.mxu0 0.0
  %651 = vmatpush2.msra.mxu0 0.0
  %652 = vmatprep.mubr.f32.mxu0 0.0
  %653 = vmatmul.mubr.f32.gmra.mxu0 %v584
  %v654 = vpop.f32.mrf.mxu0
  %v655 = vadd.f32 0.0, %v654
  %v656 = vpop.f32.mrf.mxu0
  %657 = vmatprep.mubr.f32.mxu0 0.0
  %658 = vmatmul.mubr.f32.gmra.mxu0 %v586
  %v659 = vpop.f32.mrf.mxu0
  %v660 = vadd.f32 0.0, %v659
  %v661 = vpop.f32.mrf.mxu0
  %662 = vdwg.mxu0
  %v663 = vadd.f32 %v572, %v655
  %v664 = vadd.f32 %v573, %v660
  %v665 = vld [vmem:[%s11] sm:$0xff]
  %v666 = vld [vmem:[%s11 + $0x8] sm:$0xff]
  %vm667 = vcmask 130048
  %v669 = vsel %vm667, %v56, 0
  %v672 = vsel %vm667, %v57, 0
  %674 = vmatprep.subr.mxu0 0.0
  %675 = vmatpush1.msra.mxu0 0.0
  %676 = vmatprep.subr.mxu0 0.0
  %677 = vmatpush1.msra.mxu0 0.0
  %678 = vmatprep.subr.mxu0 0.0
  %679 = vmatpush1.msra.mxu0 0.0
  %680 = vmatprep.subr.mxu0 0.0
  %681 = vmatpush1.msra.mxu0 0.0
  %682 = vmatprep.subr.mxu0 0.0
  %683 = vmatpush1.msra.mxu0 0.0
  %684 = vmatprep.subr.mxu0 0.0
  %685 = vmatpush1.msra.mxu0 0.0
  %686 = vmatprep.subr.mxu0 0.0
  %687 = vmatpush1.msra.mxu0 0.0
  %688 = vmatprep.subr.mxu0 0.0
  %689 = vmatpush1.msra.mxu0 0.0
  %690 = vmatprep.subr.mxu0 0.0
  %691 = vmatpush1.msra.mxu0 0.0
  %692 = vmatprep.subr.mxu0 0.0
  %693 = vmatpush1.msra.mxu0 0.0
  %694 = vmatprep.subr.mxu0 0.0
  %695 = vmatpush1.msra.mxu0 0.0
  %696 = vmatprep.subr.mxu0 0.0
  %697 = vmatpush1.msra.mxu0 0.0
  %698 = vmatprep.subr.mxu0 0.0
  %699 = vmatpush1.msra.mxu0 0.0
  %700 = vmatprep.subr.mxu0 0.0
  %701 = vmatpush1.msra.mxu0 0.0
  %702 = vmatprep.subr.mxu0 0.0
  %703 = vmatpush1.msra.mxu0 %v666
  %704 = vmatprep.subr.mxu0 0.0
  %705 = vmatpush1.msra.mxu0 %v665
  %706 = vmatprep.subr.mxu0 0.0
  %707 = vmatpush2.msra.mxu0 0.0
  %708 = vmatprep.subr.mxu0 0.0
  %709 = vmatpush2.msra.mxu0 0.0
  %710 = vmatprep.subr.mxu0 0.0
  %711 = vmatpush2.msra.mxu0 0.0
  %712 = vmatprep.subr.mxu0 0.0
  %713 = vmatpush2.msra.mxu0 0.0
  %714 = vmatprep.subr.mxu0 0.0
  %715 = vmatpush2.msra.mxu0 0.0
  %716 = vmatprep.subr.mxu0 0.0
  %717 = vmatpush2.msra.mxu0 0.0
  %718 = vmatprep.subr.mxu0 0.0
  %719 = vmatpush2.msra.mxu0 0.0
  %720 = vmatprep.subr.mxu0 0.0
  %721 = vmatpush2.msra.mxu0 0.0
  %722 = vmatprep.subr.mxu0 0.0
  %723 = vmatpush2.msra.mxu0 0.0
  %724 = vmatprep.subr.mxu0 0.0
  %725 = vmatpush2.msra.mxu0 0.0
  %726 = vmatprep.subr.mxu0 0.0
  %727 = vmatpush2.msra.mxu0 0.0
  %728 = vmatprep.subr.mxu0 0.0
  %729 = vmatpush2.msra.mxu0 0.0
  %730 = vmatprep.subr.mxu0 0.0
  %731 = vmatpush2.msra.mxu0 0.0
  %732 = vmatprep.subr.mxu0 0.0
  %733 = vmatpush2.msra.mxu0 0.0
  %734 = vmatprep.subr.mxu0 0.0
  %735 = vmatpush2.msra.mxu0 0.0
  %736 = vmatprep.subr.mxu0 0.0
  %737 = vmatpush2.msra.mxu0 0.0
  %738 = vmatprep.mubr.f32.mxu0 0.0
  %739 = vmatmul.mubr.f32.gmra.mxu0 %v669
  %v740 = vpop.f32.mrf.mxu0
  %v741 = vadd.f32 0.0, %v740
  %v742 = vpop.f32.mrf.mxu0
  %743 = vmatprep.mubr.f32.mxu0 0.0
  %744 = vmatmul.mubr.f32.gmra.mxu0 %v672
  %v745 = vpop.f32.mrf.mxu0
  %v746 = vadd.f32 0.0, %v745
  %v747 = vpop.f32.mrf.mxu0
  %748 = vdwg.mxu0
  %v749 = vadd.f32 %v663, %v741
  %v750 = vadd.f32 %v664, %v746
  %v751 = vld [vmem:[%s12] sm:$0xff]
  %v752 = vld [vmem:[%s12 + $0x8] sm:$0xff]
  %v753 = vld [vmem:[%s12 + $0x10] sm:$0xff]
  %v754 = vld [vmem:[%s12 + $0x18] sm:$0xff]
  %755 = vmatprep.subr.mxu0 0.0
  %756 = vmatpush1.msra.mxu0 0.0
  %757 = vmatprep.subr.mxu0 0.0
  %758 = vmatpush1.msra.mxu0 0.0
  %759 = vmatprep.subr.mxu0 0.0
  %760 = vmatpush1.msra.mxu0 0.0
  %761 = vmatprep.subr.mxu0 0.0
  %762 = vmatpush1.msra.mxu0 0.0
  %763 = vmatprep.subr.mxu0 0.0
  %764 = vmatpush1.msra.mxu0 0.0
  %765 = vmatprep.subr.mxu0 0.0
  %766 = vmatpush1.msra.mxu0 0.0
  %767 = vmatprep.subr.mxu0 0.0
  %768 = vmatpush1.msra.mxu0 0.0
  %769 = vmatprep.subr.mxu0 0.0
  %770 = vmatpush1.msra.mxu0 0.0
  %771 = vmatprep.subr.mxu0 0.0
  %772 = vmatpush1.msra.mxu0 0.0
  %773 = vmatprep.subr.mxu0 0.0
  %774 = vmatpush1.msra.mxu0 0.0
  %775 = vmatprep.subr.mxu0 0.0
  %776 = vmatpush1.msra.mxu0 0.0
  %777 = vmatprep.subr.mxu0 0.0
  %778 = vmatpush1.msra.mxu0 0.0
  %779 = vmatprep.subr.mxu0 0.0
  %780 = vmatpush1.msra.mxu0 %v754
  %781 = vmatprep.subr.mxu0 0.0
  %782 = vmatpush1.msra.mxu0 %v753
  %783 = vmatprep.subr.mxu0 0.0
  %784 = vmatpush1.msra.mxu0 %v752
  %785 = vmatprep.subr.mxu0 0.0
  %786 = vmatpush1.msra.mxu0 %v751
  %787 = vmatprep.subr.mxu0 0.0
  %788 = vmatpush2.msra.mxu0 0.0
  %789 = vmatprep.subr.mxu0 0.0
  %790 = vmatpush2.msra.mxu0 0.0
  %791 = vmatprep.subr.mxu0 0.0
  %792 = vmatpush2.msra.mxu0 0.0
  %793 = vmatprep.subr.mxu0 0.0
  %794 = vmatpush2.msra.mxu0 0.0
  %795 = vmatprep.subr.mxu0 0.0
  %796 = vmatpush2.msra.mxu0 0.0
  %797 = vmatprep.subr.mxu0 0.0
  %798 = vmatpush2.msra.mxu0 0.0
  %799 = vmatprep.subr.mxu0 0.0
  %800 = vmatpush2.msra.mxu0 0.0
  %801 = vmatprep.subr.mxu0 0.0
  %802 = vmatpush2.msra.mxu0 0.0
  %803 = vmatprep.subr.mxu0 0.0
  %804 = vmatpush2.msra.mxu0 0.0
  %805 = vmatprep.subr.mxu0 0.0
  %806 = vmatpush2.msra.mxu0 0.0
  %807 = vmatprep.subr.mxu0 0.0
  %808 = vmatpush2.msra.mxu0 0.0
  %809 = vmatprep.subr.mxu0 0.0
  %810 = vmatpush2.msra.mxu0 0.0
  %811 = vmatprep.subr.mxu0 0.0
  %812 = vmatpush2.msra.mxu0 0.0
  %813 = vmatprep.subr.mxu0 0.0
  %814 = vmatpush2.msra.mxu0 0.0
  %815 = vmatprep.subr.mxu0 0.0
  %816 = vmatpush2.msra.mxu0 0.0
  %817 = vmatprep.subr.mxu0 0.0
  %818 = vmatpush2.msra.mxu0 0.0
  %819 = vmatprep.mubr.f32.mxu0 0.0
  %820 = vmatmul.mubr.f32.gmra.mxu0 %v156
  %v821 = vpop.f32.mrf.mxu0
  %v822 = vadd.f32 0.0, %v821
  %v823 = vpop.f32.mrf.mxu0
  %824 = vmatprep.mubr.f32.mxu0 0.0
  %825 = vmatmul.mubr.f32.gmra.mxu0 %v159
  %v826 = vpop.f32.mrf.mxu0
  %v827 = vadd.f32 0.0, %v826
  %v828 = vpop.f32.mrf.mxu0
  %829 = vdwg.mxu0
  %v830 = vadd.f32 %v749, %v822
  %v831 = vadd.f32 %v750, %v827
  %v832 = vld [vmem:[%s13] sm:$0xff]
  %v833 = vld [vmem:[%s13 + $0x8] sm:$0xff]
  %v834 = vld [vmem:[%s13 + $0x10] sm:$0xff]
  %v835 = vld [vmem:[%s13 + $0x18] sm:$0xff]
  %836 = vmatprep.subr.mxu0 0.0
  %837 = vmatpush1.msra.mxu0 0.0
  %838 = vmatprep.subr.mxu0 0.0
  %839 = vmatpush1.msra.mxu0 0.0
  %840 = vmatprep.subr.mxu0 0.0
  %841 = vmatpush1.msra.mxu0 0.0
  %842 = vmatprep.subr.mxu0 0.0
  %843 = vmatpush1.msra.mxu0 0.0
  %844 = vmatprep.subr.mxu0 0.0
  %845 = vmatpush1.msra.mxu0 0.0
  %846 = vmatprep.subr.mxu0 0.0
  %847 = vmatpush1.msra.mxu0 0.0
  %848 = vmatprep.subr.mxu0 0.0
  %849 = vmatpush1.msra.mxu0 0.0
  %850 = vmatprep.subr.mxu0 0.0
  %851 = vmatpush1.msra.mxu0 0.0
  %852 = vmatprep.subr.mxu0 0.0
  %853 = vmatpush1.msra.mxu0 0.0
  %854 = vmatprep.subr.mxu0 0.0
  %855 = vmatpush1.msra.mxu0 0.0
  %856 = vmatprep.subr.mxu0 0.0
  %857 = vmatpush1.msra.mxu0 0.0
  %858 = vmatprep.subr.mxu0 0.0
  %859 = vmatpush1.msra.mxu0 0.0
  %860 = vmatprep.subr.mxu0 0.0
  %861 = vmatpush1.msra.mxu0 %v835
  %862 = vmatprep.subr.mxu0 0.0
  %863 = vmatpush1.msra.mxu0 %v834
  %864 = vmatprep.subr.mxu0 0.0
  %865 = vmatpush1.msra.mxu0 %v833
  %866 = vmatprep.subr.mxu0 0.0
  %867 = vmatpush1.msra.mxu0 %v832
  %868 = vmatprep.subr.mxu0 0.0
  %869 = vmatpush2.msra.mxu0 0.0
  %870 = vmatprep.subr.mxu0 0.0
  %871 = vmatpush2.msra.mxu0 0.0
  %872 = vmatprep.subr.mxu0 0.0
  %873 = vmatpush2.msra.mxu0 0.0
  %874 = vmatprep.subr.mxu0 0.0
  %875 = vmatpush2.msra.mxu0 0.0
  %876 = vmatprep.subr.mxu0 0.0
  %877 = vmatpush2.msra.mxu0 0.0
  %878 = vmatprep.subr.mxu0 0.0
  %879 = vmatpush2.msra.mxu0 0.0
  %880 = vmatprep.subr.mxu0 0.0
  %881 = vmatpush2.msra.mxu0 0.0
  %882 = vmatprep.subr.mxu0 0.0
  %883 = vmatpush2.msra.mxu0 0.0
  %884 = vmatprep.subr.mxu0 0.0
  %885 = vmatpush2.msra.mxu0 0.0
  %886 = vmatprep.subr.mxu0 0.0
  %887 = vmatpush2.msra.mxu0 0.0
  %888 = vmatprep.subr.mxu0 0.0
  %889 = vmatpush2.msra.mxu0 0.0
  %890 = vmatprep.subr.mxu0 0.0
  %891 = vmatpush2.msra.mxu0 0.0
  %892 = vmatprep.subr.mxu0 0.0
  %893 = vmatpush2.msra.mxu0 0.0
  %894 = vmatprep.subr.mxu0 0.0
  %895 = vmatpush2.msra.mxu0 0.0
  %896 = vmatprep.subr.mxu0 0.0
  %897 = vmatpush2.msra.mxu0 0.0
  %898 = vmatprep.subr.mxu0 0.0
  %899 = vmatpush2.msra.mxu0 0.0
  %900 = vmatprep.mubr.f32.mxu0 0.0
  %901 = vmatmul.mubr.f32.gmra.mxu0 %v243
  %v902 = vpop.f32.mrf.mxu0
  %v903 = vadd.f32 0.0, %v902
  %v904 = vpop.f32.mrf.mxu0
  %905 = vmatprep.mubr.f32.mxu0 0.0
  %906 = vmatmul.mubr.f32.gmra.mxu0 %v246
  %v907 = vpop.f32.mrf.mxu0
  %v908 = vadd.f32 0.0, %v907
  %v909 = vpop.f32.mrf.mxu0
  %910 = vdwg.mxu0
  %v911 = vadd.f32 %v830, %v903
  %v912 = vadd.f32 %v831, %v908
  %vm913 = vcmask 195584
  %914 = vst.msk [vmem:[%s15] sm:$0xff] %vm913, %v911
  %915 = vst.msk [vmem:[%s15 + $0x8] sm:$0xff] %vm913, %v912
  // Predicated region
  $region62: #{tmodel_forward.7} parent=0 // pred_check
    _
  $region63: #{tmodel_forward.7} parent=0 // pred_check_branch
    %917 = sbr.rel (0) target = $region65
  $region64: #{tmodel_forward.7} parent=0 // pred_region
    _
  $region65: #{tmodel_forward.7} parent=0 // pred_fallthru
    _
  // Predicated region
  $region66: #{tmodel_forward.7} parent=0 // pred_check
    _
  $region67: #{tmodel_forward.7} parent=0 // pred_check_branch
    %919 = sbr.rel (0) target = $region69
  $region68: #{tmodel_forward.7} parent=0 // pred_region
    _
  $region69: #{tmodel_forward.7} parent=0 // pred_fallthru
    _

// kernel: tmodel_forward.5
$region0: #{tmodel_forward.5}
  #allocation0 [shape = 'u32[]', space=smem, size = 0x4, offset = 0x4, fixed_abs, tag = 'smem constant byte address 0x4 - core index']
  #allocation1 [shape = 'u32[144,128]{1,0:T(1,128)}', space=vmem, size = 0x12000, scoped, tag = 'internal scratch']
  %s0 = inlined_call_operand.vmem [shape: f32[8,2,32], index: 0, kind: input, shape index: {}]
  %s1 = inlined_call_operand.vmem [shape: f32[1,64], index: 1, kind: input, shape index: {}]
  %s2 = inlined_call_operand.vmem [shape: f32[1,64], index: 2, kind: input, shape index: {}]
  %s3 = inlined_call_operand.vmem [shape: f32[16,64], index: 3, kind: input, shape index: {}]
  %s4 = inlined_call_operand.vmem [shape: f32[8,2,16], index: 4, kind: output, shape index: {}]
  %s5 = sld [smem:[#allocation0]]
  $region26: #{tmodel_forward.5} parent=0
    _
  %s7 = ssub.s32 1, %s5
  %s8 = scalar_select 0, %s7, %s5
  // Predicated region
  $region2: #{tmodel_forward.5} parent=0 // pred_check
    _
  $region3: #{tmodel_forward.5} parent=0 // pred_check_branch
    %10 = sbr.rel (0) target = $region5
  $region4: #{tmodel_forward.5} parent=0 // pred_region
    _
  $region5: #{tmodel_forward.5} parent=0 // pred_fallthru
    _
  // Predicated region
  $region6: #{tmodel_forward.5} parent=0 // pred_check
    _
  $region7: #{tmodel_forward.5} parent=0 // pred_check_branch
    %12 = sbr.rel (0) target = $region9
  $region8: #{tmodel_forward.5} parent=0 // pred_region
    _
  $region9: #{tmodel_forward.5} parent=0 // pred_fallthru
    _
  // Predicated region
  $region10: #{tmodel_forward.5} parent=0 // pred_check
    _
  $region11: #{tmodel_forward.5} parent=0 // pred_check_branch
    %14 = sbr.rel (0) target = $region13
  $region12: #{tmodel_forward.5} parent=0 // pred_region
    _
  $region13: #{tmodel_forward.5} parent=0 // pred_fallthru
    _
  // Predicated region
  $region14: #{tmodel_forward.5} parent=0 // pred_check
    _
  $region15: #{tmodel_forward.5} parent=0 // pred_check_branch
    %16 = sbr.rel (0) target = $region17
  $region16: #{tmodel_forward.5} parent=0 // pred_region
    _
  $region17: #{tmodel_forward.5} parent=0 // pred_fallthru
    _
  %v17 = vld [vmem:[%s1] sm:$0x1]
  %v18 = vld [vmem:[%s2] sm:$0x1]
  %v19 = vld [vmem:[%s3] sm:$0xff]
  %v20 = vld [vmem:[%s3 + $0x8] sm:$0xff]
  %v21 = vld [vmem:[%s0] sm:$0x3]
  %vm22 = vcmask 254976
  %v23 = vsel %vm22, %v21, 0.0
  %24 = vadd.xlane.f32.xlu0 %v23
  %v25 = vpop.xlane.xlu0 %24
  %s26 = scalar_lea.vmem %s0, 2
  %v27 = vld [vmem:[%s26] sm:$0x3]
  %v28 = vsel %vm22, %v27, 0.0
  %29 = vadd.xlane.f32.xlu0 %v28
  %v30 = vpop.xlane.xlu0 %29
  %v31 = vadd.f32 %v25, %v30
  %v33 = vlaneseq
  %v34 = vshrl.u32 %v33, 7
  %v35 = vsub.s32 0, %v34
  %v36 = vrot.slane %v17, %v35
  %v38 = vmul.f32 %v31, %v36
  %v40 = vlaneseq
  %v41 = vshrl.u32 %v40, 7
  %v42 = vsub.s32 0, %v41
  %v43 = vrot.slane %v18, %v42
  %v45 = vadd.f32 %v38, %v43
  %vm46 = vcmask 130048
  %v48 = vsel %vm46, 0.0, 0
  %50 = vmatprep.subr.mxu0 0.0
  %51 = vmatpush1.msra.mxu0 0.0
  %52 = vmatprep.subr.mxu0 0.0
  %53 = vmatpush1.msra.mxu0 0.0
  %54 = vmatprep.subr.mxu0 0.0
  %55 = vmatpush1.msra.mxu0 0.0
  %56 = vmatprep.subr.mxu0 0.0
  %57 = vmatpush1.msra.mxu0 0.0
  %58 = vmatprep.subr.mxu0 0.0
  %59 = vmatpush1.msra.mxu0 0.0
  %60 = vmatprep.subr.mxu0 0.0
  %61 = vmatpush1.msra.mxu0 0.0
  %62 = vmatprep.subr.mxu0 0.0
  %63 = vmatpush1.msra.mxu0 0.0
  %64 = vmatprep.subr.mxu0 0.0
  %65 = vmatpush1.msra.mxu0 0.0
  %66 = vmatprep.subr.mxu0 0.0
  %67 = vmatpush1.msra.mxu0 0.0
  %68 = vmatprep.subr.mxu0 0.0
  %69 = vmatpush1.msra.mxu0 0.0
  %70 = vmatprep.subr.mxu0 0.0
  %71 = vmatpush1.msra.mxu0 0.0
  %72 = vmatprep.subr.mxu0 0.0
  %73 = vmatpush1.msra.mxu0 0.0
  %74 = vmatprep.subr.mxu0 0.0
  %75 = vmatpush1.msra.mxu0 0.0
  %76 = vmatprep.subr.mxu0 0.0
  %77 = vmatpush1.msra.mxu0 0.0
  %78 = vmatprep.subr.mxu0 0.0
  %79 = vmatpush1.msra.mxu0 %v20
  %80 = vmatprep.subr.mxu0 0.0
  %81 = vmatpush1.msra.mxu0 %v19
  %82 = vmatprep.subr.mxu0 0.0
  %83 = vmatpush2.msra.mxu0 0.0
  %84 = vmatprep.subr.mxu0 0.0
  %85 = vmatpush2.msra.mxu0 0.0
  %86 = vmatprep.subr.mxu0 0.0
  %87 = vmatpush2.msra.mxu0 0.0
  %88 = vmatprep.subr.mxu0 0.0
  %89 = vmatpush2.msra.mxu0 0.0
  %90 = vmatprep.subr.mxu0 0.0
  %91 = vmatpush2.msra.mxu0 0.0
  %92 = vmatprep.subr.mxu0 0.0
  %93 = vmatpush2.msra.mxu0 0.0
  %94 = vmatprep.subr.mxu0 0.0
  %95 = vmatpush2.msra.mxu0 0.0
  %96 = vmatprep.subr.mxu0 0.0
  %97 = vmatpush2.msra.mxu0 0.0
  %98 = vmatprep.subr.mxu0 0.0
  %99 = vmatpush2.msra.mxu0 0.0
  %100 = vmatprep.subr.mxu0 0.0
  %101 = vmatpush2.msra.mxu0 0.0
  %102 = vmatprep.subr.mxu0 0.0
  %103 = vmatpush2.msra.mxu0 0.0
  %104 = vmatprep.subr.mxu0 0.0
  %105 = vmatpush2.msra.mxu0 0.0
  %106 = vmatprep.subr.mxu0 0.0
  %107 = vmatpush2.msra.mxu0 0.0
  %108 = vmatprep.subr.mxu0 0.0
  %109 = vmatpush2.msra.mxu0 0.0
  %110 = vmatprep.subr.mxu0 0.0
  %111 = vmatpush2.msra.mxu0 0.0
  %112 = vmatprep.subr.mxu0 0.0
  %113 = vmatpush2.msra.mxu0 0.0
  %114 = vmatprep.mubr.f32.mxu0 0.0
  %115 = vmatmul.mubr.f32.gmra.mxu0 %v48
  %v116 = vpop.f32.mrf.mxu0
  %v117 = vadd.f32 0.0, %v116
  %v118 = vpop.f32.mrf.mxu0
  %119 = vdwg.mxu0
  %v120 = vadd.f32 %v45, %v117
  %v121 = vsub.f32 0.0, %v120
  %v122 = vmul.f32 %v121, 1.442695
  %v123 = vpow.pop %v122
  %v124 = vadd.f32 %v123, 1.0
  %v125 = vrcp.pop %v124
  %v126 = vmul.f32 1.0, %v125
  %v127 = vtanh.pop %v120
  %v128 = vmul.f32 %v126, 0.0
  %130 = vrot.lane.b32.xlu0 %v127, 96
  %v131 = vpop.permute.xlu0 %130
  %v133 = vmul.f32 %v126, %v131
  %135 = vrot.lane.b32.xlu0 %v133, 16
  %v136 = vpop.permute.xlu0 %135
  %v138 = vadd.f32 %v128, %v136
  %v139 = vtanh.pop %v138
  %141 = vrot.lane.b32.xlu0 %v139, 32
  %v142 = vpop.permute.xlu0 %141
  %v144 = vmul.f32 %v126, %v142
  %146 = vrot.lane.b32.xlu0 %v144, 80
  %v147 = vpop.permute.xlu0 %146
  %vm149 = vcmask 123904
  %150 = vst.msk [vmem:[%s4] sm:$0x3] %vm149, %v147
  %v151 = vld [vmem:[%s26] sm:$0x3]
  %v152 = vsel %vm22, %v151, 0.0
  %153 = vadd.xlane.f32.xlu0 %v152
  %v154 = vpop.xlane.xlu0 %153
  %v155 = vld [vmem:[%s0] sm:$0x3]
  %v156 = vsel %vm22, %v155, 0.0
  %157 = vadd.xlane.f32.xlu0 %v156
  %v158 = vpop.xlane.xlu0 %157
  %v159 = vadd.f32 %v154, %v158
  %s160 = scalar_lea.vmem %s0, 4
  %v161 = vld [vmem:[%s160] sm:$0x3]
  %v162 = vsel %vm22, %v161, 0.0
  %163 = vadd.xlane.f32.xlu0 %v162
  %v164 = vpop.xlane.xlu0 %163
  %v165 = vadd.f32 %v159, %v164
  %v166 = vmul.f32 %v165, %v36
  %v167 = vadd.f32 %v166, %v43
  %v168 = vsel %vm46, %v147, 0
  %170 = vmatprep.subr.mxu0 0.0
  %171 = vmatpush1.msra.mxu0 0.0
  %172 = vmatprep.subr.mxu0 0.0
  %173 = vmatpush1.msra.mxu0 0.0
  %174 = vmatprep.subr.mxu0 0.0
  %175 = vmatpush1.msra.mxu0 0.0
  %176 = vmatprep.subr.mxu0 0.0
  %177 = vmatpush1.msra.mxu0 0.0
  %178 = vmatprep.subr.mxu0 0.0
  %179 = vmatpush1.msra.mxu0 0.0
  %180 = vmatprep.subr.mxu0 0.0
  %181 = vmatpush1.msra.mxu0 0.0
  %182 = vmatprep.subr.mxu0 0.0
  %183 = vmatpush1.msra.mxu0 0.0
  %184 = vmatprep.subr.mxu0 0.0
  %185 = vmatpush1.msra.mxu0 0.0
  %186 = vmatprep.subr.mxu0 0.0
  %187 = vmatpush1.msra.mxu0 0.0
  %188 = vmatprep.subr.mxu0 0.0
  %189 = vmatpush1.msra.mxu0 0.0
  %190 = vmatprep.subr.mxu0 0.0
  %191 = vmatpush1.msra.mxu0 0.0
  %192 = vmatprep.subr.mxu0 0.0
  %193 = vmatpush1.msra.mxu0 0.0
  %194 = vmatprep.subr.mxu0 0.0
  %195 = vmatpush1.msra.mxu0 0.0
  %196 = vmatprep.subr.mxu0 0.0
  %197 = vmatpush1.msra.mxu0 0.0
  %198 = vmatprep.subr.mxu0 0.0
  %199 = vmatpush1.msra.mxu0 %v20
  %200 = vmatprep.subr.mxu0 0.0
  %201 = vmatpush1.msra.mxu0 %v19
  %202 = vmatprep.subr.mxu0 0.0
  %203 = vmatpush2.msra.mxu0 0.0
  %204 = vmatprep.subr.mxu0 0.0
  %205 = vmatpush2.msra.mxu0 0.0
  %206 = vmatprep.subr.mxu0 0.0
  %207 = vmatpush2.msra.mxu0 0.0
  %208 = vmatprep.subr.mxu0 0.0
  %209 = vmatpush2.msra.mxu0 0.0
  %210 = vmatprep.subr.mxu0 0.0
  %211 = vmatpush2.msra.mxu0 0.0
  %212 = vmatprep.subr.mxu0 0.0
  %213 = vmatpush2.msra.mxu0 0.0
  %214 = vmatprep.subr.mxu0 0.0
  %215 = vmatpush2.msra.mxu0 0.0
  %216 = vmatprep.subr.mxu0 0.0
  %217 = vmatpush2.msra.mxu0 0.0
  %218 = vmatprep.subr.mxu0 0.0
  %219 = vmatpush2.msra.mxu0 0.0
  %220 = vmatprep.subr.mxu0 0.0
  %221 = vmatpush2.msra.mxu0 0.0
  %222 = vmatprep.subr.mxu0 0.0
  %223 = vmatpush2.msra.mxu0 0.0
  %224 = vmatprep.subr.mxu0 0.0
  %225 = vmatpush2.msra.mxu0 0.0
  %226 = vmatprep.subr.mxu0 0.0
  %227 = vmatpush2.msra.mxu0 0.0
  %228 = vmatprep.subr.mxu0 0.0
  %229 = vmatpush2.msra.mxu0 0.0
  %230 = vmatprep.subr.mxu0 0.0
  %231 = vmatpush2.msra.mxu0 0.0
  %232 = vmatprep.subr.mxu0 0.0
  %233 = vmatpush2.msra.mxu0 0.0
  %234 = vmatprep.mubr.f32.mxu0 0.0
  %235 = vmatmul.mubr.f32.gmra.mxu0 %v168
  %v236 = vpop.f32.mrf.mxu0
  %v237 = vadd.f32 0.0, %v236
  %v238 = vpop.f32.mrf.mxu0
  %239 = vdwg.mxu0
  %v240 = vadd.f32 %v167, %v237
  %v241 = vsub.f32 0.0, %v240
  %v242 = vmul.f32 %v241, 1.442695
  %v243 = vpow.pop %v242
  %v244 = vadd.f32 %v243, 1.0
  %v245 = vrcp.pop %v244
  %v246 = vmul.f32 1.0, %v245
  %v247 = vtanh.pop %v240
  %v248 = vmul.f32 %v246, %v138
  %250 = vrot.lane.b32.xlu0 %v247, 96
  %v251 = vpop.permute.xlu0 %250
  %v253 = vmul.f32 %v246, %v251
  %255 = vrot.lane.b32.xlu0 %v253, 16
  %v256 = vpop.permute.xlu0 %255
  %v258 = vadd.f32 %v248, %v256
  %v259 = vtanh.pop %v258
  %261 = vrot.lane.b32.xlu0 %v259, 32
  %v262 = vpop.permute.xlu0 %261
  %v264 = vmul.f32 %v246, %v262
  %266 = vrot.lane.b32.xlu0 %v264, 80
  %v267 = vpop.permute.xlu0 %266
  %s269 = scalar_lea.vmem %s4, 2
  %270 = vst.msk [vmem:[%s269] sm:$0x3] %vm149, %v267
  %v271 = vld [vmem:[%s160] sm:$0x3]
  %v272 = vsel %vm22, %v271, 0.0
  %273 = vadd.xlane.f32.xlu0 %v272
  %v274 = vpop.xlane.xlu0 %273
  %v275 = vld [vmem:[%s26] sm:$0x3]
  %v276 = vsel %vm22, %v275, 0.0
  %277 = vadd.xlane.f32.xlu0 %v276
  %v278 = vpop.xlane.xlu0 %277
  %v279 = vadd.f32 %v274, %v278
  %s280 = scalar_lea.vmem %s0, 6
  %v281 = vld [vmem:[%s280] sm:$0x3]
  %v282 = vsel %vm22, %v281, 0.0
  %283 = vadd.xlane.f32.xlu0 %v282
  %v284 = vpop.xlane.xlu0 %283
  %v285 = vadd.f32 %v279, %v284
  %v286 = vmul.f32 %v285, %v36
  %v287 = vadd.f32 %v286, %v43
  %v288 = vsel %vm46, %v267, 0
  %290 = vmatprep.subr.mxu0 0.0
  %291 = vmatpush1.msra.mxu0 0.0
  %292 = vmatprep.subr.mxu0 0.0
  %293 = vmatpush1.msra.mxu0 0.0
  %294 = vmatprep.subr.mxu0 0.0
  %295 = vmatpush1.msra.mxu0 0.0
  %296 = vmatprep.subr.mxu0 0.0
  %297 = vmatpush1.msra.mxu0 0.0
  %298 = vmatprep.subr.mxu0 0.0
  %299 = vmatpush1.msra.mxu0 0.0
  %300 = vmatprep.subr.mxu0 0.0
  %301 = vmatpush1.msra.mxu0 0.0
  %302 = vmatprep.subr.mxu0 0.0
  %303 = vmatpush1.msra.mxu0 0.0
  %304 = vmatprep.subr.mxu0 0.0
  %305 = vmatpush1.msra.mxu0 0.0
  %306 = vmatprep.subr.mxu0 0.0
  %307 = vmatpush1.msra.mxu0 0.0
  %308 = vmatprep.subr.mxu0 0.0
  %309 = vmatpush1.msra.mxu0 0.0
  %310 = vmatprep.subr.mxu0 0.0
  %311 = vmatpush1.msra.mxu0 0.0
  %312 = vmatprep.subr.mxu0 0.0
  %313 = vmatpush1.msra.mxu0 0.0
  %314 = vmatprep.subr.mxu0 0.0
  %315 = vmatpush1.msra.mxu0 0.0
  %316 = vmatprep.subr.mxu0 0.0
  %317 = vmatpush1.msra.mxu0 0.0
  %318 = vmatprep.subr.mxu0 0.0
  %319 = vmatpush1.msra.mxu0 %v20
  %320 = vmatprep.subr.mxu0 0.0
  %321 = vmatpush1.msra.mxu0 %v19
  %322 = vmatprep.subr.mxu0 0.0
  %323 = vmatpush2.msra.mxu0 0.0
  %324 = vmatprep.subr.mxu0 0.0
  %325 = vmatpush2.msra.mxu0 0.0
  %326 = vmatprep.subr.mxu0 0.0
  %327 = vmatpush2.msra.mxu0 0.0
  %328 = vmatprep.subr.mxu0 0.0
  %329 = vmatpush2.msra.mxu0 0.0
  %330 = vmatprep.subr.mxu0 0.0
  %331 = vmatpush2.msra.mxu0 0.0
  %332 = vmatprep.subr.mxu0 0.0
  %333 = vmatpush2.msra.mxu0 0.0
  %334 = vmatprep.subr.mxu0 0.0
  %335 = vmatpush2.msra.mxu0 0.0
  %336 = vmatprep.subr.mxu0 0.0
  %337 = vmatpush2.msra.mxu0 0.0
  %338 = vmatprep.subr.mxu0 0.0
  %339 = vmatpush2.msra.mxu0 0.0
  %340 = vmatprep.subr.mxu0 0.0
  %341 = vmatpush2.msra.mxu0 0.0
  %342 = vmatprep.subr.mxu0 0.0
  %343 = vmatpush2.msra.mxu0 0.0
  %344 = vmatprep.subr.mxu0 0.0
  %345 = vmatpush2.msra.mxu0 0.0
  %346 = vmatprep.subr.mxu0 0.0
  %347 = vmatpush2.msra.mxu0 0.0
  %348 = vmatprep.subr.mxu0 0.0
  %349 = vmatpush2.msra.mxu0 0.0
  %350 = vmatprep.subr.mxu0 0.0
  %351 = vmatpush2.msra.mxu0 0.0
  %352 = vmatprep.subr.mxu0 0.0
  %353 = vmatpush2.msra.mxu0 0.0
  %354 = vmatprep.mubr.f32.mxu0 0.0
  %355 = vmatmul.mubr.f32.gmra.mxu0 %v288
  %v356 = vpop.f32.mrf.mxu0
  %v357 = vadd.f32 0.0, %v356
  %v358 = vpop.f32.mrf.mxu0
  %359 = vdwg.mxu0
  %v360 = vadd.f32 %v287, %v357
  %v361 = vsub.f32 0.0, %v360
  %v362 = vmul.f32 %v361, 1.442695
  %v363 = vpow.pop %v362
  %v364 = vadd.f32 %v363, 1.0
  %v365 = vrcp.pop %v364
  %v366 = vmul.f32 1.0, %v365
  %v367 = vtanh.pop %v360
  %v368 = vmul.f32 %v366, %v258
  %370 = vrot.lane.b32.xlu0 %v367, 96
  %v371 = vpop.permute.xlu0 %370
  %v373 = vmul.f32 %v366, %v371
  %375 = vrot.lane.b32.xlu0 %v373, 16
  %v376 = vpop.permute.xlu0 %375
  %v378 = vadd.f32 %v368, %v376
  %v379 = vtanh.pop %v378
  %381 = vrot.lane.b32.xlu0 %v379, 32
  %v382 = vpop.permute.xlu0 %381
  %v384 = vmul.f32 %v366, %v382
  %386 = vrot.lane.b32.xlu0 %v384, 80
  %v387 = vpop.permute.xlu0 %386
  %s389 = scalar_lea.vmem %s4, 4
  %390 = vst.msk [vmem:[%s389] sm:$0x3] %vm149, %v387
  %v391 = vld [vmem:[%s280] sm:$0x3]
  %v392 = vsel %vm22, %v391, 0.0
  %393 = vadd.xlane.f32.xlu0 %v392
  %v394 = vpop.xlane.xlu0 %393
  %v395 = vld [vmem:[%s160] sm:$0x3]
  %v396 = vsel %vm22, %v395, 0.0
  %397 = vadd.xlane.f32.xlu0 %v396
  %v398 = vpop.xlane.xlu0 %397
  %v399 = vadd.f32 %v394, %v398
  %s400 = scalar_lea.vmem %s0, 8
  %v401 = vld [vmem:[%s400] sm:$0x3]
  %v402 = vsel %vm22, %v401, 0.0
  %403 = vadd.xlane.f32.xlu0 %v402
  %v404 = vpop.xlane.xlu0 %403
  %v405 = vadd.f32 %v399, %v404
  %v406 = vmul.f32 %v405, %v36
  %v407 = vadd.f32 %v406, %v43
  %v408 = vsel %vm46, %v387, 0
  %410 = vmatprep.subr.mxu0 0.0
  %411 = vmatpush1.msra.mxu0 0.0
  %412 = vmatprep.subr.mxu0 0.0
  %413 = vmatpush1.msra.mxu0 0.0
  %414 = vmatprep.subr.mxu0 0.0
  %415 = vmatpush1.msra.mxu0 0.0
  %416 = vmatprep.subr.mxu0 0.0
  %417 = vmatpush1.msra.mxu0 0.0
  %418 = vmatprep.subr.mxu0 0.0
  %419 = vmatpush1.msra.mxu0 0.0
  %420 = vmatprep.subr.mxu0 0.0
  %421 = vmatpush1.msra.mxu0 0.0
  %422 = vmatprep.subr.mxu0 0.0
  %423 = vmatpush1.msra.mxu0 0.0
  %424 = vmatprep.subr.mxu0 0.0
  %425 = vmatpush1.msra.mxu0 0.0
  %426 = vmatprep.subr.mxu0 0.0
  %427 = vmatpush1.msra.mxu0 0.0
  %428 = vmatprep.subr.mxu0 0.0
  %429 = vmatpush1.msra.mxu0 0.0
  %430 = vmatprep.subr.mxu0 0.0
  %431 = vmatpush1.msra.mxu0 0.0
  %432 = vmatprep.subr.mxu0 0.0
  %433 = vmatpush1.msra.mxu0 0.0
  %434 = vmatprep.subr.mxu0 0.0
  %435 = vmatpush1.msra.mxu0 0.0
  %436 = vmatprep.subr.mxu0 0.0
  %437 = vmatpush1.msra.mxu0 0.0
  %438 = vmatprep.subr.mxu0 0.0
  %439 = vmatpush1.msra.mxu0 %v20
  %440 = vmatprep.subr.mxu0 0.0
  %441 = vmatpush1.msra.mxu0 %v19
  %442 = vmatprep.subr.mxu0 0.0
  %443 = vmatpush2.msra.mxu0 0.0
  %444 = vmatprep.subr.mxu0 0.0
  %445 = vmatpush2.msra.mxu0 0.0
  %446 = vmatprep.subr.mxu0 0.0
  %447 = vmatpush2.msra.mxu0 0.0
  %448 = vmatprep.subr.mxu0 0.0
  %449 = vmatpush2.msra.mxu0 0.0
  %450 = vmatprep.subr.mxu0 0.0
  %451 = vmatpush2.msra.mxu0 0.0
  %452 = vmatprep.subr.mxu0 0.0
  %453 = vmatpush2.msra.mxu0 0.0
  %454 = vmatprep.subr.mxu0 0.0
  %455 = vmatpush2.msra.mxu0 0.0
  %456 = vmatprep.subr.mxu0 0.0
  %457 = vmatpush2.msra.mxu0 0.0
  %458 = vmatprep.subr.mxu0 0.0
  %459 = vmatpush2.msra.mxu0 0.0
  %460 = vmatprep.subr.mxu0 0.0
  %461 = vmatpush2.msra.mxu0 0.0
  %462 = vmatprep.subr.mxu0 0.0
  %463 = vmatpush2.msra.mxu0 0.0
  %464 = vmatprep.subr.mxu0 0.0
  %465 = vmatpush2.msra.mxu0 0.0
  %466 = vmatprep.subr.mxu0 0.0
  %467 = vmatpush2.msra.mxu0 0.0
  %468 = vmatprep.subr.mxu0 0.0
  %469 = vmatpush2.msra.mxu0 0.0
  %470 = vmatprep.subr.mxu0 0.0
  %471 = vmatpush2.msra.mxu0 0.0
  %472 = vmatprep.subr.mxu0 0.0
  %473 = vmatpush2.msra.mxu0 0.0
  %474 = vmatprep.mubr.f32.mxu0 0.0
  %475 = vmatmul.mubr.f32.gmra.mxu0 %v408
  %v476 = vpop.f32.mrf.mxu0
  %v477 = vadd.f32 0.0, %v476
  %v478 = vpop.f32.mrf.mxu0
  %479 = vdwg.mxu0
  %v480 = vadd.f32 %v407, %v477
  %v481 = vsub.f32 0.0, %v480
  %v482 = vmul.f32 %v481, 1.442695
  %v483 = vpow.pop %v482
  %v484 = vadd.f32 %v483, 1.0
  %v485 = vrcp.pop %v484
  %v486 = vmul.f32 1.0, %v485
  %v487 = vtanh.pop %v480
  %v488 = vmul.f32 %v486, %v378
  %490 = vrot.lane.b32.xlu0 %v487, 96
  %v491 = vpop.permute.xlu0 %490
  %v493 = vmul.f32 %v486, %v491
  %495 = vrot.lane.b32.xlu0 %v493, 16
  %v496 = vpop.permute.xlu0 %495
  %v498 = vadd.f32 %v488, %v496
  %v499 = vtanh.pop %v498
  %501 = vrot.lane.b32.xlu0 %v499, 32
  %v502 = vpop.permute.xlu0 %501
  %v504 = vmul.f32 %v486, %v502
  %506 = vrot.lane.b32.xlu0 %v504, 80
  %v507 = vpop.permute.xlu0 %506
  %s509 = scalar_lea.vmem %s4, 6
  %510 = vst.msk [vmem:[%s509] sm:$0x3] %vm149, %v507
  %v511 = vld [vmem:[%s400] sm:$0x3]
  %v512 = vsel %vm22, %v511, 0.0
  %513 = vadd.xlane.f32.xlu0 %v512
  %v514 = vpop.xlane.xlu0 %513
  %v515 = vld [vmem:[%s280] sm:$0x3]
  %v516 = vsel %vm22, %v515, 0.0
  %517 = vadd.xlane.f32.xlu0 %v516
  %v518 = vpop.xlane.xlu0 %517
  %v519 = vadd.f32 %v514, %v518
  %s520 = scalar_lea.vmem %s0, 10
  %v521 = vld [vmem:[%s520] sm:$0x3]
  %v522 = vsel %vm22, %v521, 0.0
  %523 = vadd.xlane.f32.xlu0 %v522
  %v524 = vpop.xlane.xlu0 %523
  %v525 = vadd.f32 %v519, %v524
  %v526 = vmul.f32 %v525, %v36
  %v527 = vadd.f32 %v526, %v43
  %v528 = vsel %vm46, %v507, 0
  %530 = vmatprep.subr.mxu0 0.0
  %531 = vmatpush1.msra.mxu0 0.0
  %532 = vmatprep.subr.mxu0 0.0
  %533 = vmatpush1.msra.mxu0 0.0
  %534 = vmatprep.subr.mxu0 0.0
  %535 = vmatpush1.msra.mxu0 0.0
  %536 = vmatprep.subr.mxu0 0.0
  %537 = vmatpush1.msra.mxu0 0.0
  %538 = vmatprep.subr.mxu0 0.0
  %539 = vmatpush1.msra.mxu0 0.0
  %540 = vmatprep.subr.mxu0 0.0
  %541 = vmatpush1.msra.mxu0 0.0
  %542 = vmatprep.subr.mxu0 0.0
  %543 = vmatpush1.msra.mxu0 0.0
  %544 = vmatprep.subr.mxu0 0.0
  %545 = vmatpush1.msra.mxu0 0.0
  %546 = vmatprep.subr.mxu0 0.0
  %547 = vmatpush1.msra.mxu0 0.0
  %548 = vmatprep.subr.mxu0 0.0
  %549 = vmatpush1.msra.mxu0 0.0
  %550 = vmatprep.subr.mxu0 0.0
  %551 = vmatpush1.msra.mxu0 0.0
  %552 = vmatprep.subr.mxu0 0.0
  %553 = vmatpush1.msra.mxu0 0.0
  %554 = vmatprep.subr.mxu0 0.0
  %555 = vmatpush1.msra.mxu0 0.0
  %556 = vmatprep.subr.mxu0 0.0
  %557 = vmatpush1.msra.mxu0 0.0
  %558 = vmatprep.subr.mxu0 0.0
  %559 = vmatpush1.msra.mxu0 %v20
  %560 = vmatprep.subr.mxu0 0.0
  %561 = vmatpush1.msra.mxu0 %v19
  %562 = vmatprep.subr.mxu0 0.0
  %563 = vmatpush2.msra.mxu0 0.0
  %564 = vmatprep.subr.mxu0 0.0
  %565 = vmatpush2.msra.mxu0 0.0
  %566 = vmatprep.subr.mxu0 0.0
  %567 = vmatpush2.msra.mxu0 0.0
  %568 = vmatprep.subr.mxu0 0.0
  %569 = vmatpush2.msra.mxu0 0.0
  %570 = vmatprep.subr.mxu0 0.0
  %571 = vmatpush2.msra.mxu0 0.0
  %572 = vmatprep.subr.mxu0 0.0
  %573 = vmatpush2.msra.mxu0 0.0
  %574 = vmatprep.subr.mxu0 0.0
  %575 = vmatpush2.msra.mxu0 0.0
  %576 = vmatprep.subr.mxu0 0.0
  %577 = vmatpush2.msra.mxu0 0.0
  %578 = vmatprep.subr.mxu0 0.0
  %579 = vmatpush2.msra.mxu0 0.0
  %580 = vmatprep.subr.mxu0 0.0
  %581 = vmatpush2.msra.mxu0 0.0
  %582 = vmatprep.subr.mxu0 0.0
  %583 = vmatpush2.msra.mxu0 0.0
  %584 = vmatprep.subr.mxu0 0.0
  %585 = vmatpush2.msra.mxu0 0.0
  %586 = vmatprep.subr.mxu0 0.0
  %587 = vmatpush2.msra.mxu0 0.0
  %588 = vmatprep.subr.mxu0 0.0
  %589 = vmatpush2.msra.mxu0 0.0
  %590 = vmatprep.subr.mxu0 0.0
  %591 = vmatpush2.msra.mxu0 0.0
  %592 = vmatprep.subr.mxu0 0.0
  %593 = vmatpush2.msra.mxu0 0.0
  %594 = vmatprep.mubr.f32.mxu0 0.0
  %595 = vmatmul.mubr.f32.gmra.mxu0 %v528
  %v596 = vpop.f32.mrf.mxu0
  %v597 = vadd.f32 0.0, %v596
  %v598 = vpop.f32.mrf.mxu0
  %599 = vdwg.mxu0
  %v600 = vadd.f32 %v527, %v597
  %v601 = vsub.f32 0.0, %v600
  %v602 = vmul.f32 %v601, 1.442695
  %v603 = vpow.pop %v602
  %v604 = vadd.f32 %v603, 1.0
  %v605 = vrcp.pop %v604
  %v606 = vmul.f32 1.0, %v605
  %v607 = vtanh.pop %v600
  %v608 = vmul.f32 %v606, %v498
  %610 = vrot.lane.b32.xlu0 %v607, 96
  %v611 = vpop.permute.xlu0 %610
  %v613 = vmul.f32 %v606, %v611
  %615 = vrot.lane.b32.xlu0 %v613, 16
  %v616 = vpop.permute.xlu0 %615
  %v618 = vadd.f32 %v608, %v616
  %v619 = vtanh.pop %v618
  %621 = vrot.lane.b32.xlu0 %v619, 32
  %v622 = vpop.permute.xlu0 %621
  %v624 = vmul.f32 %v606, %v622
  %626 = vrot.lane.b32.xlu0 %v624, 80
  %v627 = vpop.permute.xlu0 %626
  %s629 = scalar_lea.vmem %s4, 8
  %630 = vst.msk [vmem:[%s629] sm:$0x3] %vm149, %v627
  %v631 = vld [vmem:[%s520] sm:$0x3]
  %v632 = vsel %vm22, %v631, 0.0
  %633 = vadd.xlane.f32.xlu0 %v632
  %v634 = vpop.xlane.xlu0 %633
  %v635 = vld [vmem:[%s400] sm:$0x3]
  %v636 = vsel %vm22, %v635, 0.0
  %637 = vadd.xlane.f32.xlu0 %v636
  %v638 = vpop.xlane.xlu0 %637
  %v639 = vadd.f32 %v634, %v638
  %s640 = scalar_lea.vmem %s0, 12
  %v641 = vld [vmem:[%s640] sm:$0x3]
  %v642 = vsel %vm22, %v641, 0.0
  %643 = vadd.xlane.f32.xlu0 %v642
  %v644 = vpop.xlane.xlu0 %643
  %v645 = vadd.f32 %v639, %v644
  %v646 = vmul.f32 %v645, %v36
  %v647 = vadd.f32 %v646, %v43
  %v648 = vsel %vm46, %v627, 0
  %650 = vmatprep.subr.mxu0 0.0
  %651 = vmatpush1.msra.mxu0 0.0
  %652 = vmatprep.subr.mxu0 0.0
  %653 = vmatpush1.msra.mxu0 0.0
  %654 = vmatprep.subr.mxu0 0.0
  %655 = vmatpush1.msra.mxu0 0.0
  %656 = vmatprep.subr.mxu0 0.0
  %657 = vmatpush1.msra.mxu0 0.0
  %658 = vmatprep.subr.mxu0 0.0
  %659 = vmatpush1.msra.mxu0 0.0
  %660 = vmatprep.subr.mxu0 0.0
  %661 = vmatpush1.msra.mxu0 0.0
  %662 = vmatprep.subr.mxu0 0.0
  %663 = vmatpush1.msra.mxu0 0.0
  %664 = vmatprep.subr.mxu0 0.0
  %665 = vmatpush1.msra.mxu0 0.0
  %666 = vmatprep.subr.mxu0 0.0
  %667 = vmatpush1.msra.mxu0 0.0
  %668 = vmatprep.subr.mxu0 0.0
  %669 = vmatpush1.msra.mxu0 0.0
  %670 = vmatprep.subr.mxu0 0.0
  %671 = vmatpush1.msra.mxu0 0.0
  %672 = vmatprep.subr.mxu0 0.0
  %673 = vmatpush1.msra.mxu0 0.0
  %674 = vmatprep.subr.mxu0 0.0
  %675 = vmatpush1.msra.mxu0 0.0
  %676 = vmatprep.subr.mxu0 0.0
  %677 = vmatpush1.msra.mxu0 0.0
  %678 = vmatprep.subr.mxu0 0.0
  %679 = vmatpush1.msra.mxu0 %v20
  %680 = vmatprep.subr.mxu0 0.0
  %681 = vmatpush1.msra.mxu0 %v19
  %682 = vmatprep.subr.mxu0 0.0
  %683 = vmatpush2.msra.mxu0 0.0
  %684 = vmatprep.subr.mxu0 0.0
  %685 = vmatpush2.msra.mxu0 0.0
  %686 = vmatprep.subr.mxu0 0.0
  %687 = vmatpush2.msra.mxu0 0.0
  %688 = vmatprep.subr.mxu0 0.0
  %689 = vmatpush2.msra.mxu0 0.0
  %690 = vmatprep.subr.mxu0 0.0
  %691 = vmatpush2.msra.mxu0 0.0
  %692 = vmatprep.subr.mxu0 0.0
  %693 = vmatpush2.msra.mxu0 0.0
  %694 = vmatprep.subr.mxu0 0.0
  %695 = vmatpush2.msra.mxu0 0.0
  %696 = vmatprep.subr.mxu0 0.0
  %697 = vmatpush2.msra.mxu0 0.0
  %698 = vmatprep.subr.mxu0 0.0
  %699 = vmatpush2.msra.mxu0 0.0
  %700 = vmatprep.subr.mxu0 0.0
  %701 = vmatpush2.msra.mxu0 0.0
  %702 = vmatprep.subr.mxu0 0.0
  %703 = vmatpush2.msra.mxu0 0.0
  %704 = vmatprep.subr.mxu0 0.0
  %705 = vmatpush2.msra.mxu0 0.0
  %706 = vmatprep.subr.mxu0 0.0
  %707 = vmatpush2.msra.mxu0 0.0
  %708 = vmatprep.subr.mxu0 0.0
  %709 = vmatpush2.msra.mxu0 0.0
  %710 = vmatprep.subr.mxu0 0.0
  %711 = vmatpush2.msra.mxu0 0.0
  %712 = vmatprep.subr.mxu0 0.0
  %713 = vmatpush2.msra.mxu0 0.0
  %714 = vmatprep.mubr.f32.mxu0 0.0
  %715 = vmatmul.mubr.f32.gmra.mxu0 %v648
  %v716 = vpop.f32.mrf.mxu0
  %v717 = vadd.f32 0.0, %v716
  %v718 = vpop.f32.mrf.mxu0
  %719 = vdwg.mxu0
  %v720 = vadd.f32 %v647, %v717
  %v721 = vsub.f32 0.0, %v720
  %v722 = vmul.f32 %v721, 1.442695
  %v723 = vpow.pop %v722
  %v724 = vadd.f32 %v723, 1.0
  %v725 = vrcp.pop %v724
  %v726 = vmul.f32 1.0, %v725
  %v727 = vtanh.pop %v720
  %v728 = vmul.f32 %v726, %v618
  %730 = vrot.lane.b32.xlu0 %v727, 96
  %v731 = vpop.permute.xlu0 %730
  %v733 = vmul.f32 %v726, %v731
  %735 = vrot.lane.b32.xlu0 %v733, 16
  %v736 = vpop.permute.xlu0 %735
  %v738 = vadd.f32 %v728, %v736
  %v739 = vtanh.pop %v738
  %741 = vrot.lane.b32.xlu0 %v739, 32
  %v742 = vpop.permute.xlu0 %741
  %v744 = vmul.f32 %v726, %v742
  %746 = vrot.lane.b32.xlu0 %v744, 80
  %v747 = vpop.permute.xlu0 %746
  %s749 = scalar_lea.vmem %s4, 10
  %750 = vst.msk [vmem:[%s749] sm:$0x3] %vm149, %v747
  %v751 = vld [vmem:[%s640] sm:$0x3]
  %v752 = vsel %vm22, %v751, 0.0
  %753 = vadd.xlane.f32.xlu0 %v752
  %v754 = vpop.xlane.xlu0 %753
  %v755 = vld [vmem:[%s520] sm:$0x3]
  %v756 = vsel %vm22, %v755, 0.0
  %757 = vadd.xlane.f32.xlu0 %v756
  %v758 = vpop.xlane.xlu0 %757
  %v759 = vadd.f32 %v754, %v758
  %s760 = scalar_lea.vmem %s0, 14
  %v761 = vld [vmem:[%s760] sm:$0x3]
  %v762 = vsel %vm22, %v761, 0.0
  %763 = vadd.xlane.f32.xlu0 %v762
  %v764 = vpop.xlane.xlu0 %763
  %v765 = vadd.f32 %v759, %v764
  %v766 = vmul.f32 %v765, %v36
  %v767 = vadd.f32 %v766, %v43
  %v768 = vsel %vm46, %v747, 0
  %770 = vmatprep.subr.mxu0 0.0
  %771 = vmatpush1.msra.mxu0 0.0
  %772 = vmatprep.subr.mxu0 0.0
  %773 = vmatpush1.msra.mxu0 0.0
  %774 = vmatprep.subr.mxu0 0.0
  %775 = vmatpush1.msra.mxu0 0.0
  %776 = vmatprep.subr.mxu0 0.0
  %777 = vmatpush1.msra.mxu0 0.0
  %778 = vmatprep.subr.mxu0 0.0
  %779 = vmatpush1.msra.mxu0 0.0
  %780 = vmatprep.subr.mxu0 0.0
  %781 = vmatpush1.msra.mxu0 0.0
  %782 = vmatprep.subr.mxu0 0.0
  %783 = vmatpush1.msra.mxu0 0.0
  %784 = vmatprep.subr.mxu0 0.0
  %785 = vmatpush1.msra.mxu0 0.0
  %786 = vmatprep.subr.mxu0 0.0
  %787 = vmatpush1.msra.mxu0 0.0
  %788 = vmatprep.subr.mxu0 0.0
  %789 = vmatpush1.msra.mxu0 0.0
  %790 = vmatprep.subr.mxu0 0.0
  %791 = vmatpush1.msra.mxu0 0.0
  %792 = vmatprep.subr.mxu0 0.0
  %793 = vmatpush1.msra.mxu0 0.0
  %794 = vmatprep.subr.mxu0 0.0
  %795 = vmatpush1.msra.mxu0 0.0
  %796 = vmatprep.subr.mxu0 0.0
  %797 = vmatpush1.msra.mxu0 0.0
  %798 = vmatprep.subr.mxu0 0.0
  %799 = vmatpush1.msra.mxu0 %v20
  %800 = vmatprep.subr.mxu0 0.0
  %801 = vmatpush1.msra.mxu0 %v19
  %802 = vmatprep.subr.mxu0 0.0
  %803 = vmatpush2.msra.mxu0 0.0
  %804 = vmatprep.subr.mxu0 0.0
  %805 = vmatpush2.msra.mxu0 0.0
  %806 = vmatprep.subr.mxu0 0.0
  %807 = vmatpush2.msra.mxu0 0.0
  %808 = vmatprep.subr.mxu0 0.0
  %809 = vmatpush2.msra.mxu0 0.0
  %810 = vmatprep.subr.mxu0 0.0
  %811 = vmatpush2.msra.mxu0 0.0
  %812 = vmatprep.subr.mxu0 0.0
  %813 = vmatpush2.msra.mxu0 0.0
  %814 = vmatprep.subr.mxu0 0.0
  %815 = vmatpush2.msra.mxu0 0.0
  %816 = vmatprep.subr.mxu0 0.0
  %817 = vmatpush2.msra.mxu0 0.0
  %818 = vmatprep.subr.mxu0 0.0
  %819 = vmatpush2.msra.mxu0 0.0
  %820 = vmatprep.subr.mxu0 0.0
  %821 = vmatpush2.msra.mxu0 0.0
  %822 = vmatprep.subr.mxu0 0.0
  %823 = vmatpush2.msra.mxu0 0.0
  %824 = vmatprep.subr.mxu0 0.0
  %825 = vmatpush2.msra.mxu0 0.0
  %826 = vmatprep.subr.mxu0 0.0
  %827 = vmatpush2.msra.mxu0 0.0
  %828 = vmatprep.subr.mxu0 0.0
  %829 = vmatpush2.msra.mxu0 0.0
  %830 = vmatprep.subr.mxu0 0.0
  %831 = vmatpush2.msra.mxu0 0.0
  %832 = vmatprep.subr.mxu0 0.0
  %833 = vmatpush2.msra.mxu0 0.0
  %834 = vmatprep.mubr.f32.mxu0 0.0
  %835 = vmatmul.mubr.f32.gmra.mxu0 %v768
  %v836 = vpop.f32.mrf.mxu0
  %v837 = vadd.f32 0.0, %v836
  %v838 = vpop.f32.mrf.mxu0
  %839 = vdwg.mxu0
  %v840 = vadd.f32 %v767, %v837
  %v841 = vsub.f32 0.0, %v840
  %v842 = vmul.f32 %v841, 1.442695
  %v843 = vpow.pop %v842
  %v844 = vadd.f32 %v843, 1.0
  %v845 = vrcp.pop %v844
  %v846 = vmul.f32 1.0, %v845
  %v847 = vtanh.pop %v840
  %v848 = vmul.f32 %v846, %v738
  %850 = vrot.lane.b32.xlu0 %v847, 96
  %v851 = vpop.permute.xlu0 %850
  %v853 = vmul.f32 %v846, %v851
  %855 = vrot.lane.b32.xlu0 %v853, 16
  %v856 = vpop.permute.xlu0 %855
  %v858 = vadd.f32 %v848, %v856
  %v859 = vtanh.pop %v858
  %861 = vrot.lane.b32.xlu0 %v859, 32
  %v862 = vpop.permute.xlu0 %861
  %v864 = vmul.f32 %v846, %v862
  %866 = vrot.lane.b32.xlu0 %v864, 80
  %v867 = vpop.permute.xlu0 %866
  %s869 = scalar_lea.vmem %s4, 12
  %870 = vst.msk [vmem:[%s869] sm:$0x3] %vm149, %v867
  %v871 = vld [vmem:[%s760] sm:$0x3]
  %v872 = vsel %vm22, %v871, 0.0
  %873 = vadd.xlane.f32.xlu0 %v872
  %v874 = vpop.xlane.xlu0 %873
  %v875 = vld [vmem:[%s640] sm:$0x3]
  %v876 = vsel %vm22, %v875, 0.0
  %877 = vadd.xlane.f32.xlu0 %v876
  %v878 = vpop.xlane.xlu0 %877
  %v879 = vadd.f32 %v874, %v878
  %v880 = vmul.f32 %v879, %v36
  %v881 = vadd.f32 %v880, %v43
  %v882 = vsel %vm46, %v867, 0
  %884 = vmatprep.subr.mxu0 0.0
  %885 = vmatpush1.msra.mxu0 0.0
  %886 = vmatprep.subr.mxu0 0.0
  %887 = vmatpush1.msra.mxu0 0.0
  %888 = vmatprep.subr.mxu0 0.0
  %889 = vmatpush1.msra.mxu0 0.0
  %890 = vmatprep.subr.mxu0 0.0
  %891 = vmatpush1.msra.mxu0 0.0
  %892 = vmatprep.subr.mxu0 0.0
  %893 = vmatpush1.msra.mxu0 0.0
  %894 = vmatprep.subr.mxu0 0.0
  %895 = vmatpush1.msra.mxu0 0.0
  %896 = vmatprep.subr.mxu0 0.0
  %897 = vmatpush1.msra.mxu0 0.0
  %898 = vmatprep.subr.mxu0 0.0
  %899 = vmatpush1.msra.mxu0 0.0
  %900 = vmatprep.subr.mxu0 0.0
  %901 = vmatpush1.msra.mxu0 0.0
  %902 = vmatprep.subr.mxu0 0.0
  %903 = vmatpush1.msra.mxu0 0.0
  %904 = vmatprep.subr.mxu0 0.0
  %905 = vmatpush1.msra.mxu0 0.0
  %906 = vmatprep.subr.mxu0 0.0
  %907 = vmatpush1.msra.mxu0 0.0
  %908 = vmatprep.subr.mxu0 0.0
  %909 = vmatpush1.msra.mxu0 0.0
  %910 = vmatprep.subr.mxu0 0.0
  %911 = vmatpush1.msra.mxu0 0.0
  %912 = vmatprep.subr.mxu0 0.0
  %913 = vmatpush1.msra.mxu0 %v20
  %914 = vmatprep.subr.mxu0 0.0
  %915 = vmatpush1.msra.mxu0 %v19
  %916 = vmatprep.subr.mxu0 0.0
  %917 = vmatpush2.msra.mxu0 0.0
  %918 = vmatprep.subr.mxu0 0.0
  %919 = vmatpush2.msra.mxu0 0.0
  %920 = vmatprep.subr.mxu0 0.0
  %921 = vmatpush2.msra.mxu0 0.0
  %922 = vmatprep.subr.mxu0 0.0
  %923 = vmatpush2.msra.mxu0 0.0
  %924 = vmatprep.subr.mxu0 0.0
  %925 = vmatpush2.msra.mxu0 0.0
  %926 = vmatprep.subr.mxu0 0.0
  %927 = vmatpush2.msra.mxu0 0.0
  %928 = vmatprep.subr.mxu0 0.0
  %929 = vmatpush2.msra.mxu0 0.0
  %930 = vmatprep.subr.mxu0 0.0
  %931 = vmatpush2.msra.mxu0 0.0
  %932 = vmatprep.subr.mxu0 0.0
  %933 = vmatpush2.msra.mxu0 0.0
  %934 = vmatprep.subr.mxu0 0.0
  %935 = vmatpush2.msra.mxu0 0.0
  %936 = vmatprep.subr.mxu0 0.0
  %937 = vmatpush2.msra.mxu0 0.0
  %938 = vmatprep.subr.mxu0 0.0
  %939 = vmatpush2.msra.mxu0 0.0
  %940 = vmatprep.subr.mxu0 0.0
  %941 = vmatpush2.msra.mxu0 0.0
  %942 = vmatprep.subr.mxu0 0.0
  %943 = vmatpush2.msra.mxu0 0.0
  %944 = vmatprep.subr.mxu0 0.0
  %945 = vmatpush2.msra.mxu0 0.0
  %946 = vmatprep.subr.mxu0 0.0
  %947 = vmatpush2.msra.mxu0 0.0
  %948 = vmatprep.mubr.f32.mxu0 0.0
  %949 = vmatmul.mubr.f32.gmra.mxu0 %v882
  %v950 = vpop.f32.mrf.mxu0
  %v951 = vadd.f32 0.0, %v950
  %v952 = vpop.f32.mrf.mxu0
  %953 = vdwg.mxu0
  %v954 = vadd.f32 %v881, %v951
  %v955 = vsub.f32 0.0, %v954
  %v956 = vmul.f32 %v955, 1.442695
  %v957 = vpow.pop %v956
  %v958 = vadd.f32 %v957, 1.0
  %v959 = vrcp.pop %v958
  %v960 = vmul.f32 1.0, %v959
  %v961 = vtanh.pop %v954
  %v962 = vmul.f32 %v960, %v858
  %964 = vrot.lane.b32.xlu0 %v961, 96
  %v965 = vpop.permute.xlu0 %964
  %v967 = vmul.f32 %v960, %v965
  %969 = vrot.lane.b32.xlu0 %v967, 16
  %v970 = vpop.permute.xlu0 %969
  %v972 = vadd.f32 %v962, %v970
  %v973 = vtanh.pop %v972
  %975 = vrot.lane.b32.xlu0 %v973, 32
  %v976 = vpop.permute.xlu0 %975
  %v978 = vmul.f32 %v960, %v976
  %980 = vrot.lane.b32.xlu0 %v978, 80
  %v981 = vpop.permute.xlu0 %980
  %s983 = scalar_lea.vmem %s4, 14
  %984 = vst.msk [vmem:[%s983] sm:$0x3] %vm149, %v981
  // Predicated region
  $region18: #{tmodel_forward.5} parent=0 // pred_check
    _
  $region19: #{tmodel_forward.5} parent=0 // pred_check_branch
    %986 = sbr.rel (0) target = $region21
  $region20: #{tmodel_forward.5} parent=0 // pred_region
    _
  $region21: #{tmodel_forward.5} parent=0 // pred_fallthru
    _
  // Predicated region
  $region22: #{tmodel_forward.5} parent=0 // pred_check
    _
  $region23: #{tmodel_forward.5} parent=0 // pred_check_branch
    %988 = sbr.rel (0) target = $region25
  $region24: #{tmodel_forward.5} parent=0 // pred_region
    _
  $region25: #{tmodel_forward.5} parent=0 // pred_fallthru
    _

// kernel: tmodel_forward.4
$region0: #{tmodel_forward.4}
  #allocation0 [shape = 'u32[]', space=smem, size = 0x4, offset = 0x4, fixed_abs, tag = 'smem constant byte address 0x4 - core index']
  #allocation1 [shape = 'u32[144,128]{1,0:T(1,128)}', space=vmem, size = 0x12000, scoped, tag = 'internal scratch']
  %s0 = inlined_call_operand.vmem [shape: f32[8,2,32], index: 0, kind: input, shape index: {}]
  %s1 = inlined_call_operand.vmem [shape: f32[2,32,128], index: 1, kind: input, shape index: {}]
  %s2 = inlined_call_operand.vmem [shape: f32[2,32,128], index: 2, kind: input, shape index: {}]
  %s3 = inlined_call_operand.vmem [shape: f32[2,32,128], index: 3, kind: input, shape index: {}]
  %s4 = inlined_call_operand.vmem [shape: f32[2,1,128], index: 4, kind: input, shape index: {}]
  %s5 = inlined_call_operand.vmem [shape: f32[2,8,2,32], index: 5, kind: output, shape index: {}]
  %s6 = sld [smem:[#allocation0]]
  $region53: #{tmodel_forward.4} parent=0
    _
  %s8 = ssub.s32 1, %s6
  %s9 = scalar_select 0, %s8, %s6
  loop: start=0, step=1, limit=4
  $region2: #{tmodel_forward.4} parent=0 // loop_pre_header
    _
  $region3: #{tmodel_forward.4} parent=0 // loop_header
    %s11 = sphi 0, %s15
    %p12 = scmp.ge.s32.totalorder %s11, 4
    %s19 = sphi 0, %s19
    %s21 = sphi 0, %s19
    %s22 = sphi 0, %s21
    %s36 = sphi 0, %s22
    %s42 = sphi 0, %s44
    %s45 = sphi 0, %s42
    %s46 = sphi 0, %s45
    %s62 = sphi 0, %s46
    %s68 = sphi 0, %s70
    %s71 = sphi 0, %s68
    %s72 = sphi 0, %s71
    %s88 = sphi 0, %s72
    %s94 = sphi 0, %s96
    %s97 = sphi 0, %s94
    %s98 = sphi 0, %s97
    %s114 = sphi 0, %s98
    %s120 = sphi 0, %s122
    %s123 = sphi 0, %s120
    %s124 = sphi 0, %s123
    %s140 = sphi 0, %s124
    %s146 = sphi 0, %s148
    %s149 = sphi 0, %s146
    %s150 = sphi 0, %s149
    %s166 = sphi 0, %s150
  $region4: #{tmodel_forward.4} parent=0 // loop_header_branch
    %14 = sbr.rel (%p12) target = $region8
  $region5: #{tmodel_forward.4} parent=0 // loop_body
    %s16 = ssub.s32 %s11, 1
    %s17 = ssub.s32 %s11, 2
    %s18 = sadd.s32 %s11, 1
    %s20 = sadd.s32 %s19, 1
    %p23 = scmp.eq.s32.totalorder %s11, 1
    %p24 = scmp.ne.s32.totalorder %s19, %s21
    %p25 = scmp.eq.s32.totalorder %s11, 0
    %p26 = por %p24, %p25
    %p27 = scmp.ne.s32.totalorder %s19, %s21
    %p28 = scmp.eq.s32.totalorder %s16, 1
    %p29 = por %p27, %p28
    %p30 = scmp.ne.s32.totalorder %s21, %s22
    %p31 = scmp.eq.s32.totalorder %s16, 0
    %p32 = por %p30, %p31
    %p33 = scmp.ne.s32.totalorder %s21, %s22
    %p34 = scmp.eq.s32.totalorder %s17, 1
    %p35 = por %p33, %p34
    %p37 = scmp.ne.s32.totalorder %s22, %s36
    %p38 = scmp.eq.s32.totalorder %s17, 0
    %p39 = por %p37, %p38
    %s40 = ssub.s32 %s11, %s18
    %p41 = scmp.eq.s32.totalorder %s40, 0
    %s43 = sadd.s32 %s42, 1
    %s44 = scalar_select %p41, %s42, %s43
    %p47 = pneg %p41
    %p48 = scmp.eq.s32.totalorder %s11, 1
    %p49 = por %p47, %p48
    %p50 = scmp.ne.s32.totalorder %s42, %s45
    %p51 = scmp.eq.s32.totalorder %s11, 0
    %p52 = por %p50, %p51
    %p53 = scmp.ne.s32.totalorder %s42, %s45
    %p54 = scmp.eq.s32.totalorder %s16, 1
    %p55 = por %p53, %p54
    %p56 = scmp.ne.s32.totalorder %s45, %s46
    %p57 = scmp.eq.s32.totalorder %s16, 0
    %p58 = por %p56, %p57
    %p59 = scmp.ne.s32.totalorder %s45, %s46
    %p60 = scmp.eq.s32.totalorder %s17, 1
    %p61 = por %p59, %p60
    %p63 = scmp.ne.s32.totalorder %s46, %s62
    %p64 = scmp.eq.s32.totalorder %s17, 0
    %p65 = por %p63, %p64
    %s66 = ssub.s32 %s11, %s18
    %p67 = scmp.eq.s32.totalorder %s66, 0
    %s69 = sadd.s32 %s68, 1
    %s70 = scalar_select %p67, %s68, %s69
    %p73 = pneg %p67
    %p74 = scmp.eq.s32.totalorder %s11, 1
    %p75 = por %p73, %p74
    %p76 = scmp.ne.s32.totalorder %s68, %s71
    %p77 = scmp.eq.s32.totalorder %s11, 0
    %p78 = por %p76, %p77
    %p79 = scmp.ne.s32.totalorder %s68, %s71
    %p80 = scmp.eq.s32.totalorder %s16, 1
    %p81 = por %p79, %p80
    %p82 = scmp.ne.s32.totalorder %s71, %s72
    %p83 = scmp.eq.s32.totalorder %s16, 0
    %p84 = por %p82, %p83
    %p85 = scmp.ne.s32.totalorder %s71, %s72
    %p86 = scmp.eq.s32.totalorder %s17, 1
    %p87 = por %p85, %p86
    %p89 = scmp.ne.s32.totalorder %s72, %s88
    %p90 = scmp.eq.s32.totalorder %s17, 0
    %p91 = por %p89, %p90
    %s92 = ssub.s32 %s11, %s18
    %p93 = scmp.eq.s32.totalorder %s92, 0
    %s95 = sadd.s32 %s94, 1
    %s96 = scalar_select %p93, %s94, %s95
    %p99 = pneg %p93
    %p100 = scmp.eq.s32.totalorder %s11, 1
    %p101 = por %p99, %p100
    %p102 = scmp.ne.s32.totalorder %s94, %s97
    %p103 = scmp.eq.s32.totalorder %s11, 0
    %p104 = por %p102, %p103
    %p105 = scmp.ne.s32.totalorder %s94, %s97
    %p106 = scmp.eq.s32.totalorder %s16, 1
    %p107 = por %p105, %p106
    %p108 = scmp.ne.s32.totalorder %s97, %s98
    %p109 = scmp.eq.s32.totalorder %s16, 0
    %p110 = por %p108, %p109
    %p111 = scmp.ne.s32.totalorder %s97, %s98
    %p112 = scmp.eq.s32.totalorder %s17, 1
    %p113 = por %p111, %p112
    %p115 = scmp.ne.s32.totalorder %s98, %s114
    %p116 = scmp.eq.s32.totalorder %s17, 0
    %p117 = por %p115, %p116
    %s118 = ssub.s32 %s11, %s18
    %p119 = scmp.eq.s32.totalorder %s118, 0
    %s121 = sadd.s32 %s120, 1
    %s122 = scalar_select %p119, %s120, %s121
    %p125 = pneg %p119
    %p126 = scmp.eq.s32.totalorder %s11, 1
    %p127 = por %p125, %p126
    %p128 = scmp.ne.s32.totalorder %s120, %s123
    %p129 = scmp.eq.s32.totalorder %s11, 0
    %p130 = por %p128, %p129
    %p131 = scmp.ne.s32.totalorder %s120, %s123
    %p132 = scmp.eq.s32.totalorder %s16, 1
    %p133 = por %p131, %p132
    %p134 = scmp.ne.s32.totalorder %s123, %s124
    %p135 = scmp.eq.s32.totalorder %s16, 0
    %p136 = por %p134, %p135
    %p137 = scmp.ne.s32.totalorder %s123, %s124
    %p138 = scmp.eq.s32.totalorder %s17, 1
    %p139 = por %p137, %p138
    %p141 = scmp.ne.s32.totalorder %s124, %s140
    %p142 = scmp.eq.s32.totalorder %s17, 0
    %p143 = por %p141, %p142
    %s144 = ssub.s32 %s11, %s18
    %p145 = scmp.eq.s32.totalorder %s144, 0
    %s147 = sadd.s32 %s146, 1
    %s148 = scalar_select %p145, %s146, %s147
    %p151 = pneg %p145
    %p152 = scmp.eq.s32.totalorder %s11, 1
    %p153 = por %p151, %p152
    %p154 = scmp.ne.s32.totalorder %s146, %s149
    %p155 = scmp.eq.s32.totalorder %s11, 0
    %p156 = por %p154, %p155
    %p157 = scmp.ne.s32.totalorder %s146, %s149
    %p158 = scmp.eq.s32.totalorder %s16, 1
    %p159 = por %p157, %p158
    %p160 = scmp.ne.s32.totalorder %s149, %s150
    %p161 = scmp.eq.s32.totalorder %s16, 0
    %p162 = por %p160, %p161
    %p163 = scmp.ne.s32.totalorder %s149, %s150
    %p164 = scmp.eq.s32.totalorder %s17, 1
    %p165 = por %p163, %p164
    %p167 = scmp.ne.s32.totalorder %s150, %s166
    %p168 = scmp.eq.s32.totalorder %s17, 0
    %p169 = por %p167, %p168
    %p170 = scmp.le.s32.totalorder 1, %s11
    %p171 = scmp.lt.s32.totalorder %s11, 3
    %p172 = pnand %p170, %p171
    %p173 = pneg %p172
    // Predicated region
    $region9: #{tmodel_forward.4} parent=5 // pred_check
      _
    $region10: #{tmodel_forward.4} parent=5 // pred_check_branch
      %175 = sbr.rel (%p172) target = $region12
    $region11: #{tmodel_forward.4} parent=5 // pred_region
      %s176 = ssub.s32 %s11, 1
      // Predicated region
      $region13: #{tmodel_forward.4} parent=11 // pred_check
        %p177 = pneg %p32
      $region14: #{tmodel_forward.4} parent=11 // pred_check_branch
        %179 = sbr.rel (%p177) target = $region16
      $region15: #{tmodel_forward.4} parent=11 // pred_region
        _
      $region16: #{tmodel_forward.4} parent=11 // pred_fallthru
        _
    $region12: #{tmodel_forward.4} parent=5 // pred_fallthru
      _
    %p180 = scmp.lt.s32.totalorder %s11, 2
    // Predicated region
    $region17: #{tmodel_forward.4} parent=5 // pred_check
      %p181 = pneg %p180
    $region18: #{tmodel_forward.4} parent=5 // pred_check_branch
      %183 = sbr.rel (%p181) target = $region20
    $region19: #{tmodel_forward.4} parent=5 // pred_region
      // Predicated region
      $region21: #{tmodel_forward.4} parent=19 // pred_check
        %p184 = pneg %p52
      $region22: #{tmodel_forward.4} parent=19 // pred_check_branch
        %186 = sbr.rel (%p184) target = $region24
      $region23: #{tmodel_forward.4} parent=19 // pred_region
        %p187 = scmp.lt.s32.totalorder %s11, 1
        %s188 = scalar_select %p187, %s11, 1
        %s189 = smul.addr %s188, 4
        %s190 = smul.addr %s189, 8
        %s191 = scalar_lea.vmem %s1, %s190
      $region24: #{tmodel_forward.4} parent=19 // pred_fallthru
        _
      // Predicated region
      $region25: #{tmodel_forward.4} parent=19 // pred_check
        %p192 = pneg %p78
      $region26: #{tmodel_forward.4} parent=19 // pred_check_branch
        %194 = sbr.rel (%p192) target = $region28
      $region27: #{tmodel_forward.4} parent=19 // pred_region
        %p195 = scmp.lt.s32.totalorder %s11, 1
        %s196 = scalar_select %p195, %s11, 1
        %s197 = smul.addr %s196, 4
        %s198 = smul.addr %s197, 8
        %s199 = scalar_lea.vmem %s2, %s198
      $region28: #{tmodel_forward.4} parent=19 // pred_fallthru
        _
      // Predicated region
      $region29: #{tmodel_forward.4} parent=19 // pred_check
        %p200 = pneg %p104
      $region30: #{tmodel_forward.4} parent=19 // pred_check_branch
        %202 = sbr.rel (%p200) target = $region32
      $region31: #{tmodel_forward.4} parent=19 // pred_region
        %p203 = scmp.lt.s32.totalorder %s11, 1
        %s204 = scalar_select %p203, %s11, 1
        %s205 = smul.addr %s204, 4
        %s206 = smul.addr %s205, 8
        %s207 = scalar_lea.vmem %s3, %s206
      $region32: #{tmodel_forward.4} parent=19 // pred_fallthru
        _
      // Predicated region
      $region33: #{tmodel_forward.4} parent=19 // pred_check
        %p208 = pneg %p130
      $region34: #{tmodel_forward.4} parent=19 // pred_check_branch
        %210 = sbr.rel (%p208) target = $region36
      $region35: #{tmodel_forward.4} parent=19 // pred_region
        %p211 = scmp.lt.s32.totalorder %s11, 1
        %s212 = scalar_select %p211, %s11, 1
        %s213 = scalar_lea.vmem %s4, %s212
      $region36: #{tmodel_forward.4} parent=19 // pred_fallthru
        _
    $region20: #{tmodel_forward.4} parent=5 // pred_fallthru
      _
    %p214 = scmp.le.s32.totalorder 1, %s11
    %p215 = scmp.lt.s32.totalorder %s11, 3
    %p216 = pnand %p214, %p215
    %p217 = pneg %p216
    // Predicated region
    $region37: #{tmodel_forward.4} parent=5 // pred_check
      _
    $region38: #{tmodel_forward.4} parent=5 // pred_check_branch
      %219 = sbr.rel (%p216) target = $region40
    $region39: #{tmodel_forward.4} parent=5 // pred_region
      %s220 = ssub.s32 %s11, 1
      %p221 = pneg %p32
      %p222 = pneg %p29
      %p223 = scmp.lt.s32.totalorder %s16, 1
      %s224 = scalar_select %p223, %s16, 1
      %s225 = smul.addr %s224, 4
      %s226 = smul.addr %s225, 8
      %s227 = scalar_lea.vmem %s1, %s226
      %p228 = pneg %p58
      %p229 = pneg %p55
      %p230 = scmp.lt.s32.totalorder %s16, 1
      %s231 = scalar_select %p230, %s16, 1
      %s232 = smul.addr %s231, 4
      %s233 = smul.addr %s232, 8
      %s234 = scalar_lea.vmem %s2, %s233
      %p235 = pneg %p84
      %p236 = pneg %p81
      %p237 = scmp.lt.s32.totalorder %s16, 1
      %s238 = scalar_select %p237, %s16, 1
      %s239 = smul.addr %s238, 4
      %s240 = smul.addr %s239, 8
      %s241 = scalar_lea.vmem %s3, %s240
      %p242 = pneg %p110
      %p243 = pneg %p107
      %p244 = scmp.lt.s32.totalorder %s16, 1
      %s245 = scalar_select %p244, %s16, 1
      %s246 = scalar_lea.vmem %s4, %s245
      %p247 = pneg %p136
      %p248 = pneg %p133
      %p249 = pneg %p162
      %p250 = pneg %p159
      %p251 = scmp.lt.s32.totalorder %s16, 1
      %s252 = scalar_select %p251, %s16, 1
      %s253 = smul.addr %s252, 8
      %s254 = smul.addr %s253, 2
      %s255 = scalar_lea.vmem %s5, %s254
      %p256 = scmp.lt.s32.totalorder %s16, 1
      %s257 = scalar_select %p256, %s16, 1
      %s258 = smul.addr %s257, 4
      %s259 = smul.addr %s258, 8
      %s260 = scalar_lea.vmem %s1, %s259
      %p261 = scmp.lt.s32.totalorder %s16, 1
      %s262 = scalar_select %p261, %s16, 1
      %s263 = smul.addr %s262, 4
      %s264 = smul.addr %s263, 8
      %s265 = scalar_lea.vmem %s2, %s264
      %p266 = scmp.lt.s32.totalorder %s16, 1
      %s267 = scalar_select %p266, %s16, 1
      %s268 = smul.addr %s267, 4
      %s269 = smul.addr %s268, 8
      %s270 = scalar_lea.vmem %s3, %s269
      %p271 = scmp.lt.s32.totalorder %s16, 1
      %s272 = scalar_select %p271, %s16, 1
      %s273 = scalar_lea.vmem %s4, %s272
      %p274 = scmp.lt.s32.totalorder %s16, 1
      %s275 = scalar_select %p274, %s16, 1
      %s276 = smul.addr %s275, 8
      %s277 = smul.addr %s276, 2
      %s278 = scalar_lea.vmem %s5, %s277
      %v279 = vld [vmem:[%s260] sm:$0xff]
      %v280 = vld [vmem:[%s260 + $0x8] sm:$0xff]
      %v281 = vld [vmem:[%s260 + $0x10] sm:$0xff]
      %v282 = vld [vmem:[%s260 + $0x18] sm:$0xff]
      %v283 = vld [vmem:[%s265] sm:$0xff]
      %v284 = vld [vmem:[%s265 + $0x8] sm:$0xff]
      %v285 = vld [vmem:[%s265 + $0x10] sm:$0xff]
      %v286 = vld [vmem:[%s265 + $0x18] sm:$0xff]
      %v287 = vld [vmem:[%s270] sm:$0xff]
      %v288 = vld [vmem:[%s270 + $0x8] sm:$0xff]
      %v289 = vld [vmem:[%s270 + $0x10] sm:$0xff]
      %v290 = vld [vmem:[%s270 + $0x18] sm:$0xff]
      %v291 = vld [vmem:[%s273] sm:$0x1]
      %v292 = vld [vmem:[%s0] sm:$0x3]
      %s293 = scalar_lea.vmem %s0, 14
      %v294 = vld [vmem:[%s293] sm:$0x3]
      %vm295 = vcmask 261120
      %v297 = vsel %vm295, %v294, 0
      %299 = vmatprep.subr.mxu0 0.0
      %300 = vmatpush1.msra.mxu0 0.0
      %301 = vmatprep.subr.mxu0 0.0
      %302 = vmatpush1.msra.mxu0 0.0
      %303 = vmatprep.subr.mxu0 0.0
      %304 = vmatpush1.msra.mxu0 0.0
      %305 = vmatprep.subr.mxu0 0.0
      %306 = vmatpush1.msra.mxu0 0.0
      %307 = vmatprep.subr.mxu0 0.0
      %308 = vmatpush1.msra.mxu0 0.0
      %309 = vmatprep.subr.mxu0 0.0
      %310 = vmatpush1.msra.mxu0 0.0
      %311 = vmatprep.subr.mxu0 0.0
      %312 = vmatpush1.msra.mxu0 0.0
      %313 = vmatprep.subr.mxu0 0.0
      %314 = vmatpush1.msra.mxu0 0.0
      %315 = vmatprep.subr.mxu0 0.0
      %316 = vmatpush1.msra.mxu0 0.0
      %317 = vmatprep.subr.mxu0 0.0
      %318 = vmatpush1.msra.mxu0 0.0
      %319 = vmatprep.subr.mxu0 0.0
      %320 = vmatpush1.msra.mxu0 0.0
      %321 = vmatprep.subr.mxu0 0.0
      %322 = vmatpush1.msra.mxu0 0.0
      %323 = vmatprep.subr.mxu0 0.0
      %324 = vmatpush1.msra.mxu0 %v286
      %325 = vmatprep.subr.mxu0 0.0
      %326 = vmatpush1.msra.mxu0 %v285
      %327 = vmatprep.subr.mxu0 0.0
      %328 = vmatpush1.msra.mxu0 %v284
      %329 = vmatprep.subr.mxu0 0.0
      %330 = vmatpush1.msra.mxu0 %v283
      %331 = vmatprep.subr.mxu0 0.0
      %332 = vmatpush2.msra.mxu0 0.0
      %333 = vmatprep.subr.mxu0 0.0
      %334 = vmatpush2.msra.mxu0 0.0
      %335 = vmatprep.subr.mxu0 0.0
      %336 = vmatpush2.msra.mxu0 0.0
      %337 = vmatprep.subr.mxu0 0.0
      %338 = vmatpush2.msra.mxu0 0.0
      %339 = vmatprep.subr.mxu0 0.0
      %340 = vmatpush2.msra.mxu0 0.0
      %341 = vmatprep.subr.mxu0 0.0
      %342 = vmatpush2.msra.mxu0 0.0
      %343 = vmatprep.subr.mxu0 0.0
      %344 = vmatpush2.msra.mxu0 0.0
      %345 = vmatprep.subr.mxu0 0.0
      %346 = vmatpush2.msra.mxu0 0.0
      %347 = vmatprep.subr.mxu0 0.0
      %348 = vmatpush2.msra.mxu0 0.0
      %349 = vmatprep.subr.mxu0 0.0
      %350 = vmatpush2.msra.mxu0 0.0
      %351 = vmatprep.subr.mxu0 0.0
      %352 = vmatpush2.msra.mxu0 0.0
      %353 = vmatprep.subr.mxu0 0.0
      %354 = vmatpush2.msra.mxu0 0.0
      %355 = vmatprep.subr.mxu0 0.0
      %356 = vmatpush2.msra.mxu0 0.0
      %357 = vmatprep.subr.mxu0 0.0
      %358 = vmatpush2.msra.mxu0 0.0
      %359 = vmatprep.subr.mxu0 0.0
      %360 = vmatpush2.msra.mxu0 0.0
      %361 = vmatprep.subr.mxu0 0.0
      %362 = vmatpush2.msra.mxu0 0.0
      %363 = vmatprep.mubr.f32.mxu0 0.0
      %364 = vmatmul.mubr.f32.gmra.mxu0 %v297
      %v365 = vpop.f32.mrf.mxu0
      %v366 = vadd.f32 0.0, %v365
      %v367 = vpop.f32.mrf.mxu0
      %368 = vdwg.mxu0
      %v370 = vsel %vm295, %v292, 0
      %372 = vmatprep.subr.mxu0 0.0
      %373 = vmatpush1.msra.mxu0 0.0
      %374 = vmatprep.subr.mxu0 0.0
      %375 = vmatpush1.msra.mxu0 0.0
      %376 = vmatprep.subr.mxu0 0.0
      %377 = vmatpush1.msra.mxu0 0.0
      %378 = vmatprep.subr.mxu0 0.0
      %379 = vmatpush1.msra.mxu0 0.0
      %380 = vmatprep.subr.mxu0 0.0
      %381 = vmatpush1.msra.mxu0 0.0
      %382 = vmatprep.subr.mxu0 0.0
      %383 = vmatpush1.msra.mxu0 0.0
      %384 = vmatprep.subr.mxu0 0.0
      %385 = vmatpush1.msra.mxu0 0.0
      %386 = vmatprep.subr.mxu0 0.0
      %387 = vmatpush1.msra.mxu0 0.0
      %388 = vmatprep.subr.mxu0 0.0
      %389 = vmatpush1.msra.mxu0 0.0
      %390 = vmatprep.subr.mxu0 0.0
      %391 = vmatpush1.msra.mxu0 0.0
      %392 = vmatprep.subr.mxu0 0.0
      %393 = vmatpush1.msra.mxu0 0.0
      %394 = vmatprep.subr.mxu0 0.0
      %395 = vmatpush1.msra.mxu0 0.0
      %396 = vmatprep.subr.mxu0 0.0
      %397 = vmatpush1.msra.mxu0 %v282
      %398 = vmatprep.subr.mxu0 0.0
      %399 = vmatpush1.msra.mxu0 %v281
      %400 = vmatprep.subr.mxu0 0.0
      %401 = vmatpush1.msra.mxu0 %v280
      %402 = vmatprep.subr.mxu0 0.0
      %403 = vmatpush1.msra.mxu0 %v279
      %404 = vmatprep.subr.mxu0 0.0
      %405 = vmatpush2.msra.mxu0 0.0
      %406 = vmatprep.subr.mxu0 0.0
      %407 = vmatpush2.msra.mxu0 0.0
      %408 = vmatprep.subr.mxu0 0.0
      %409 = vmatpush2.msra.mxu0 0.0
      %410 = vmatprep.subr.mxu0 0.0
      %411 = vmatpush2.msra.mxu0 0.0
      %412 = vmatprep.subr.mxu0 0.0
      %413 = vmatpush2.msra.mxu0 0.0
      %414 = vmatprep.subr.mxu0 0.0
      %415 = vmatpush2.msra.mxu0 0.0
      %416 = vmatprep.subr.mxu0 0.0
      %417 = vmatpush2.msra.mxu0 0.0
      %418 = vmatprep.subr.mxu0 0.0
      %419 = vmatpush2.msra.mxu0 0.0
      %420 = vmatprep.subr.mxu0 0.0
      %421 = vmatpush2.msra.mxu0 0.0
      %422 = vmatprep.subr.mxu0 0.0
      %423 = vmatpush2.msra.mxu0 0.0
      %424 = vmatprep.subr.mxu0 0.0
      %425 = vmatpush2.msra.mxu0 0.0
      %426 = vmatprep.subr.mxu0 0.0
      %427 = vmatpush2.msra.mxu0 0.0
      %428 = vmatprep.subr.mxu0 0.0
      %429 = vmatpush2.msra.mxu0 0.0
      %430 = vmatprep.subr.mxu0 0.0
      %431 = vmatpush2.msra.mxu0 0.0
      %432 = vmatprep.subr.mxu0 0.0
      %433 = vmatpush2.msra.mxu0 0.0
      %434 = vmatprep.subr.mxu0 0.0
      %435 = vmatpush2.msra.mxu0 0.0
      %436 = vmatprep.mubr.f32.mxu0 0.0
      %437 = vmatmul.mubr.f32.gmra.mxu0 %v370
      %v438 = vpop.f32.mrf.mxu0
      %v439 = vadd.f32 %v366, %v438
      %v440 = vpop.f32.mrf.mxu0
      %441 = vdwg.mxu0
      %v443 = vsel %vm295, 0.0, 0
      %445 = vmatprep.subr.mxu0 0.0
      %446 = vmatpush1.msra.mxu0 0.0
      %447 = vmatprep.subr.mxu0 0.0
      %448 = vmatpush1.msra.mxu0 0.0
      %449 = vmatprep.subr.mxu0 0.0
      %450 = vmatpush1.msra.mxu0 0.0
      %451 = vmatprep.subr.mxu0 0.0
      %452 = vmatpush1.msra.mxu0 0.0
      %453 = vmatprep.subr.mxu0 0.0
      %454 = vmatpush1.msra.mxu0 0.0
      %455 = vmatprep.subr.mxu0 0.0
      %456 = vmatpush1.msra.mxu0 0.0
      %457 = vmatprep.subr.mxu0 0.0
      %458 = vmatpush1.msra.mxu0 0.0
      %459 = vmatprep.subr.mxu0 0.0
      %460 = vmatpush1.msra.mxu0 0.0
      %461 = vmatprep.subr.mxu0 0.0
      %462 = vmatpush1.msra.mxu0 0.0
      %463 = vmatprep.subr.mxu0 0.0
      %464 = vmatpush1.msra.mxu0 0.0
      %465 = vmatprep.subr.mxu0 0.0
      %466 = vmatpush1.msra.mxu0 0.0
      %467 = vmatprep.subr.mxu0 0.0
      %468 = vmatpush1.msra.mxu0 0.0
      %469 = vmatprep.subr.mxu0 0.0
      %470 = vmatpush1.msra.mxu0 %v290
      %471 = vmatprep.subr.mxu0 0.0
      %472 = vmatpush1.msra.mxu0 %v289
      %473 = vmatprep.subr.mxu0 0.0
      %474 = vmatpush1.msra.mxu0 %v288
      %475 = vmatprep.subr.mxu0 0.0
      %476 = vmatpush1.msra.mxu0 %v287
      %477 = vmatprep.subr.mxu0 0.0
      %478 = vmatpush2.msra.mxu0 0.0
      %479 = vmatprep.subr.mxu0 0.0
      %480 = vmatpush2.msra.mxu0 0.0
      %481 = vmatprep.subr.mxu0 0.0
      %482 = vmatpush2.msra.mxu0 0.0
      %483 = vmatprep.subr.mxu0 0.0
      %484 = vmatpush2.msra.mxu0 0.0
      %485 = vmatprep.subr.mxu0 0.0
      %486 = vmatpush2.msra.mxu0 0.0
      %487 = vmatprep.subr.mxu0 0.0
      %488 = vmatpush2.msra.mxu0 0.0
      %489 = vmatprep.subr.mxu0 0.0
      %490 = vmatpush2.msra.mxu0 0.0
      %491 = vmatprep.subr.mxu0 0.0
      %492 = vmatpush2.msra.mxu0 0.0
      %493 = vmatprep.subr.mxu0 0.0
      %494 = vmatpush2.msra.mxu0 0.0
      %495 = vmatprep.subr.mxu0 0.0
      %496 = vmatpush2.msra.mxu0 0.0
      %497 = vmatprep.subr.mxu0 0.0
      %498 = vmatpush2.msra.mxu0 0.0
      %499 = vmatprep.subr.mxu0 0.0
      %500 = vmatpush2.msra.mxu0 0.0
      %501 = vmatprep.subr.mxu0 0.0
      %502 = vmatpush2.msra.mxu0 0.0
      %503 = vmatprep.subr.mxu0 0.0
      %504 = vmatpush2.msra.mxu0 0.0
      %505 = vmatprep.subr.mxu0 0.0
      %506 = vmatpush2.msra.mxu0 0.0
      %507 = vmatprep.subr.mxu0 0.0
      %508 = vmatpush2.msra.mxu0 0.0
      %509 = vmatprep.mubr.f32.mxu0 0.0
      %510 = vmatmul.mubr.f32.gmra.mxu0 %v443
      %v511 = vpop.f32.mrf.mxu0
      %v512 = vadd.f32 0.0, %v511
      %v513 = vpop.f32.mrf.mxu0
      %514 = vdwg.mxu0
      %v515 = vadd.f32 %v439, %v512
      %v517 = vlaneseq
      %v518 = vshrl.u32 %v517, 7
      %v519 = vsub.s32 0, %v518
      %v520 = vrot.slane %v291, %v519
      %v522 = vadd.f32 %v515, %v520
      %v523 = vsub.f32 0.0, %v522
      %v524 = vmul.f32 %v523, 1.442695
      %v525 = vpow.pop %v524
      %v526 = vadd.f32 %v525, 1.0
      %v527 = vrcp.pop %v526
      %v528 = vmul.f32 1.0, %v527
      %v529 = vtanh.pop %v522
      %v530 = vmul.f32 %v528, 0.0
      %532 = vrot.lane.b32.xlu0 %v529, 64
      %v533 = vpop.permute.xlu0 %532
      %v535 = vmul.f32 %v528, %v533
      %537 = vrot.lane.b32.xlu0 %v535, 32
      %v538 = vpop.permute.xlu0 %537
      %v540 = vadd.f32 %v530, %v538
      %v541 = vtanh.pop %v540
      %543 = vrot.lane.b32.xlu0 %v541, 64
      %v544 = vpop.permute.xlu0 %543
      %v546 = vmul.f32 %v528, %v544
      %548 = vrot.lane.b32.xlu0 %v546, 32
      %v549 = vpop.permute.xlu0 %548
      %vm551 = vcmask 123904
      %552 = vst.msk [vmem:[%s278] sm:$0x3] %vm551, %v549
      %s553 = scalar_lea.vmem %s278, 14
      %vm554 = vcmask 255104
      %555 = vst.msk [vmem:[%s553] sm:$0x3] %vm554, %v549
      %s556 = scalar_lea.vmem %s0, 2
      %v557 = vld [vmem:[%s556] sm:$0x3]
      %s558 = scalar_lea.vmem %s0, 12
      %v559 = vld [vmem:[%s558] sm:$0x3]
      %v561 = vsel %vm295, %v559, 0
      %563 = vmatprep.subr.mxu0 0.0
      %564 = vmatpush1.msra.mxu0 0.0
      %565 = vmatprep.subr.mxu0 0.0
      %566 = vmatpush1.msra.mxu0 0.0
      %567 = vmatprep.subr.mxu0 0.0
      %568 = vmatpush1.msra.mxu0 0.0
      %569 = vmatprep.subr.mxu0 0.0
      %570 = vmatpush1.msra.mxu0 0.0
      %571 = vmatprep.subr.mxu0 0.0
      %572 = vmatpush1.msra.mxu0 0.0
      %573 = vmatprep.subr.mxu0 0.0
      %574 = vmatpush1.msra.mxu0 0.0
      %575 = vmatprep.subr.mxu0 0.0
      %576 = vmatpush1.msra.mxu0 0.0
      %577 = vmatprep.subr.mxu0 0.0
      %578 = vmatpush1.msra.mxu0 0.0
      %579 = vmatprep.subr.mxu0 0.0
      %580 = vmatpush1.msra.mxu0 0.0
      %581 = vmatprep.subr.mxu0 0.0
      %582 = vmatpush1.msra.mxu0 0.0
      %583 = vmatprep.subr.mxu0 0.0
      %584 = vmatpush1.msra.mxu0 0.0
      %585 = vmatprep.subr.mxu0 0.0
      %586 = vmatpush1.msra.mxu0 0.0
      %587 = vmatprep.subr.mxu0 0.0
      %588 = vmatpush1.msra.mxu0 %v286
      %589 = vmatprep.subr.mxu0 0.0
      %590 = vmatpush1.msra.mxu0 %v285
      %591 = vmatprep.subr.mxu0 0.0
      %592 = vmatpush1.msra.mxu0 %v284
      %593 = vmatprep.subr.mxu0 0.0
      %594 = vmatpush1.msra.mxu0 %v283
      %595 = vmatprep.subr.mxu0 0.0
      %596 = vmatpush2.msra.mxu0 0.0
      %597 = vmatprep.subr.mxu0 0.0
      %598 = vmatpush2.msra.mxu0 0.0
      %599 = vmatprep.subr.mxu0 0.0
      %600 = vmatpush2.msra.mxu0 0.0
      %601 = vmatprep.subr.mxu0 0.0
      %602 = vmatpush2.msra.mxu0 0.0
      %603 = vmatprep.subr.mxu0 0.0
      %604 = vmatpush2.msra.mxu0 0.0
      %605 = vmatprep.subr.mxu0 0.0
      %606 = vmatpush2.msra.mxu0 0.0
      %607 = vmatprep.subr.mxu0 0.0
      %608 = vmatpush2.msra.mxu0 0.0
      %609 = vmatprep.subr.mxu0 0.0
      %610 = vmatpush2.msra.mxu0 0.0
      %611 = vmatprep.subr.mxu0 0.0
      %612 = vmatpush2.msra.mxu0 0.0
      %613 = vmatprep.subr.mxu0 0.0
      %614 = vmatpush2.msra.mxu0 0.0
      %615 = vmatprep.subr.mxu0 0.0
      %616 = vmatpush2.msra.mxu0 0.0
      %617 = vmatprep.subr.mxu0 0.0
      %618 = vmatpush2.msra.mxu0 0.0
      %619 = vmatprep.subr.mxu0 0.0
      %620 = vmatpush2.msra.mxu0 0.0
      %621 = vmatprep.subr.mxu0 0.0
      %622 = vmatpush2.msra.mxu0 0.0
      %623 = vmatprep.subr.mxu0 0.0
      %624 = vmatpush2.msra.mxu0 0.0
      %625 = vmatprep.subr.mxu0 0.0
      %626 = vmatpush2.msra.mxu0 0.0
      %627 = vmatprep.mubr.f32.mxu0 0.0
      %628 = vmatmul.mubr.f32.gmra.mxu0 %v561
      %v629 = vpop.f32.mrf.mxu0
      %v630 = vadd.f32 0.0, %v629
      %v631 = vpop.f32.mrf.mxu0
      %632 = vdwg.mxu0
      %v634 = vsel %vm295, %v557, 0
      %636 = vmatprep.subr.mxu0 0.0
      %637 = vmatpush1.msra.mxu0 0.0
      %638 = vmatprep.subr.mxu0 0.0
      %639 = vmatpush1.msra.mxu0 0.0
      %640 = vmatprep.subr.mxu0 0.0
      %641 = vmatpush1.msra.mxu0 0.0
      %642 = vmatprep.subr.mxu0 0.0
      %643 = vmatpush1.msra.mxu0 0.0
      %644 = vmatprep.subr.mxu0 0.0
      %645 = vmatpush1.msra.mxu0 0.0
      %646 = vmatprep.subr.mxu0 0.0
      %647 = vmatpush1.msra.mxu0 0.0
      %648 = vmatprep.subr.mxu0 0.0
      %649 = vmatpush1.msra.mxu0 0.0
      %650 = vmatprep.subr.mxu0 0.0
      %651 = vmatpush1.msra.mxu0 0.0
      %652 = vmatprep.subr.mxu0 0.0
      %653 = vmatpush1.msra.mxu0 0.0
      %654 = vmatprep.subr.mxu0 0.0
      %655 = vmatpush1.msra.mxu0 0.0
      %656 = vmatprep.subr.mxu0 0.0
      %657 = vmatpush1.msra.mxu0 0.0
      %658 = vmatprep.subr.mxu0 0.0
      %659 = vmatpush1.msra.mxu0 0.0
      %660 = vmatprep.subr.mxu0 0.0
      %661 = vmatpush1.msra.mxu0 %v282
      %662 = vmatprep.subr.mxu0 0.0
      %663 = vmatpush1.msra.mxu0 %v281
      %664 = vmatprep.subr.mxu0 0.0
      %665 = vmatpush1.msra.mxu0 %v280
      %666 = vmatprep.subr.mxu0 0.0
      %667 = vmatpush1.msra.mxu0 %v279
      %668 = vmatprep.subr.mxu0 0.0
      %669 = vmatpush2.msra.mxu0 0.0
      %670 = vmatprep.subr.mxu0 0.0
      %671 = vmatpush2.msra.mxu0 0.0
      %672 = vmatprep.subr.mxu0 0.0
      %673 = vmatpush2.msra.mxu0 0.0
      %674 = vmatprep.subr.mxu0 0.0
      %675 = vmatpush2.msra.mxu0 0.0
      %676 = vmatprep.subr.mxu0 0.0
      %677 = vmatpush2.msra.mxu0 0.0
      %678 = vmatprep.subr.mxu0 0.0
      %679 = vmatpush2.msra.mxu0 0.0
      %680 = vmatprep.subr.mxu0 0.0
      %681 = vmatpush2.msra.mxu0 0.0
      %682 = vmatprep.subr.mxu0 0.0
      %683 = vmatpush2.msra.mxu0 0.0
      %684 = vmatprep.subr.mxu0 0.0
      %685 = vmatpush2.msra.mxu0 0.0
      %686 = vmatprep.subr.mxu0 0.0
      %687 = vmatpush2.msra.mxu0 0.0
      %688 = vmatprep.subr.mxu0 0.0
      %689 = vmatpush2.msra.mxu0 0.0
      %690 = vmatprep.subr.mxu0 0.0
      %691 = vmatpush2.msra.mxu0 0.0
      %692 = vmatprep.subr.mxu0 0.0
      %693 = vmatpush2.msra.mxu0 0.0
      %694 = vmatprep.subr.mxu0 0.0
      %695 = vmatpush2.msra.mxu0 0.0
      %696 = vmatprep.subr.mxu0 0.0
      %697 = vmatpush2.msra.mxu0 0.0
      %698 = vmatprep.subr.mxu0 0.0
      %699 = vmatpush2.msra.mxu0 0.0
      %700 = vmatprep.mubr.f32.mxu0 0.0
      %701 = vmatmul.mubr.f32.gmra.mxu0 %v634
      %v702 = vpop.f32.mrf.mxu0
      %v703 = vadd.f32 %v630, %v702
      %v704 = vpop.f32.mrf.mxu0
      %705 = vdwg.mxu0
      %v706 = vsel %vm295, %v549, 0
      %708 = vmatprep.subr.mxu0 0.0
      %709 = vmatpush1.msra.mxu0 0.0
      %710 = vmatprep.subr.mxu0 0.0
      %711 = vmatpush1.msra.mxu0 0.0
      %712 = vmatprep.subr.mxu0 0.0
      %713 = vmatpush1.msra.mxu0 0.0
      %714 = vmatprep.subr.mxu0 0.0
      %715 = vmatpush1.msra.mxu0 0.0
      %716 = vmatprep.subr.mxu0 0.0
      %717 = vmatpush1.msra.mxu0 0.0
      %718 = vmatprep.subr.mxu0 0.0
      %719 = vmatpush1.msra.mxu0 0.0
      %720 = vmatprep.subr.mxu0 0.0
      %721 = vmatpush1.msra.mxu0 0.0
      %722 = vmatprep.subr.mxu0 0.0
      %723 = vmatpush1.msra.mxu0 0.0
      %724 = vmatprep.subr.mxu0 0.0
      %725 = vmatpush1.msra.mxu0 0.0
      %726 = vmatprep.subr.mxu0 0.0
      %727 = vmatpush1.msra.mxu0 0.0
      %728 = vmatprep.subr.mxu0 0.0
      %729 = vmatpush1.msra.mxu0 0.0
      %730 = vmatprep.subr.mxu0 0.0
      %731 = vmatpush1.msra.mxu0 0.0
      %732 = vmatprep.subr.mxu0 0.0
      %733 = vmatpush1.msra.mxu0 %v290
      %734 = vmatprep.subr.mxu0 0.0
      %735 = vmatpush1.msra.mxu0 %v289
      %736 = vmatprep.subr.mxu0 0.0
      %737 = vmatpush1.msra.mxu0 %v288
      %738 = vmatprep.subr.mxu0 0.0
      %739 = vmatpush1.msra.mxu0 %v287
      %740 = vmatprep.subr.mxu0 0.0
      %741 = vmatpush2.msra.mxu0 0.0
      %742 = vmatprep.subr.mxu0 0.0
      %743 = vmatpush2.msra.mxu0 0.0
      %744 = vmatprep.subr.mxu0 0.0
      %745 = vmatpush2.msra.mxu0 0.0
      %746 = vmatprep.subr.mxu0 0.0
      %747 = vmatpush2.msra.mxu0 0.0
      %748 = vmatprep.subr.mxu0 0.0
      %749 = vmatpush2.msra.mxu0 0.0
      %750 = vmatprep.subr.mxu0 0.0
      %751 = vmatpush2.msra.mxu0 0.0
      %752 = vmatprep.subr.mxu0 0.0
      %753 = vmatpush2.msra.mxu0 0.0
      %754 = vmatprep.subr.mxu0 0.0
      %755 = vmatpush2.msra.mxu0 0.0
      %756 = vmatprep.subr.mxu0 0.0
      %757 = vmatpush2.msra.mxu0 0.0
      %758 = vmatprep.subr.mxu0 0.0
      %759 = vmatpush2.msra.mxu0 0.0
      %760 = vmatprep.subr.mxu0 0.0
      %761 = vmatpush2.msra.mxu0 0.0
      %762 = vmatprep.subr.mxu0 0.0
      %763 = vmatpush2.msra.mxu0 0.0
      %764 = vmatprep.subr.mxu0 0.0
      %765 = vmatpush2.msra.mxu0 0.0
      %766 = vmatprep.subr.mxu0 0.0
      %767 = vmatpush2.msra.mxu0 0.0
      %768 = vmatprep.subr.mxu0 0.0
      %769 = vmatpush2.msra.mxu0 0.0
      %770 = vmatprep.subr.mxu0 0.0
      %771 = vmatpush2.msra.mxu0 0.0
      %772 = vmatprep.mubr.f32.mxu0 0.0
      %773 = vmatmul.mubr.f32.gmra.mxu0 %v706
      %v774 = vpop.f32.mrf.mxu0
      %v775 = vadd.f32 0.0, %v774
      %v776 = vpop.f32.mrf.mxu0
      %777 = vdwg.mxu0
      %v778 = vadd.f32 %v703, %v775
      %v779 = vadd.f32 %v778, %v520
      %v780 = vsub.f32 0.0, %v779
      %v781 = vmul.f32 %v780, 1.442695
      %v782 = vpow.pop %v781
      %v783 = vadd.f32 %v782, 1.0
      %v784 = vrcp.pop %v783
      %v785 = vmul.f32 1.0, %v784
      %v786 = vtanh.pop %v779
      %v787 = vmul.f32 %v785, %v540
      %789 = vrot.lane.b32.xlu0 %v786, 64
      %v790 = vpop.permute.xlu0 %789
      %v792 = vmul.f32 %v785, %v790
      %794 = vrot.lane.b32.xlu0 %v792, 32
      %v795 = vpop.permute.xlu0 %794
      %v797 = vadd.f32 %v787, %v795
      %v798 = vtanh.pop %v797
      %800 = vrot.lane.b32.xlu0 %v798, 64
      %v801 = vpop.permute.xlu0 %800
      %v803 = vmul.f32 %v785, %v801
      %805 = vrot.lane.b32.xlu0 %v803, 32
      %v806 = vpop.permute.xlu0 %805
      %s808 = scalar_lea.vmem %s278, 2
      %809 = vst.msk [vmem:[%s808] sm:$0x3] %vm551, %v806
      %s810 = scalar_lea.vmem %s278, 12
      %811 = vst.msk [vmem:[%s810] sm:$0x3] %vm554, %v806
      %s812 = scalar_lea.vmem %s0, 4
      %v813 = vld [vmem:[%s812] sm:$0x3]
      %s814 = scalar_lea.vmem %s0, 10
      %v815 = vld [vmem:[%s814] sm:$0x3]
      %v817 = vsel %vm295, %v815, 0
      %819 = vmatprep.subr.mxu0 0.0
      %820 = vmatpush1.msra.mxu0 0.0
      %821 = vmatprep.subr.mxu0 0.0
      %822 = vmatpush1.msra.mxu0 0.0
      %823 = vmatprep.subr.mxu0 0.0
      %824 = vmatpush1.msra.mxu0 0.0
      %825 = vmatprep.subr.mxu0 0.0
      %826 = vmatpush1.msra.mxu0 0.0
      %827 = vmatprep.subr.mxu0 0.0
      %828 = vmatpush1.msra.mxu0 0.0
      %829 = vmatprep.subr.mxu0 0.0
      %830 = vmatpush1.msra.mxu0 0.0
      %831 = vmatprep.subr.mxu0 0.0
      %832 = vmatpush1.msra.mxu0 0.0
      %833 = vmatprep.subr.mxu0 0.0
      %834 = vmatpush1.msra.mxu0 0.0
      %835 = vmatprep.subr.mxu0 0.0
      %836 = vmatpush1.msra.mxu0 0.0
      %837 = vmatprep.subr.mxu0 0.0
      %838 = vmatpush1.msra.mxu0 0.0
      %839 = vmatprep.subr.mxu0 0.0
      %840 = vmatpush1.msra.mxu0 0.0
      %841 = vmatprep.subr.mxu0 0.0
      %842 = vmatpush1.msra.mxu0 0.0
      %843 = vmatprep.subr.mxu0 0.0
      %844 = vmatpush1.msra.mxu0 %v286
      %845 = vmatprep.subr.mxu0 0.0
      %846 = vmatpush1.msra.mxu0 %v285
      %847 = vmatprep.subr.mxu0 0.0
      %848 = vmatpush1.msra.mxu0 %v284
      %849 = vmatprep.subr.mxu0 0.0
      %850 = vmatpush1.msra.mxu0 %v283
      %851 = vmatprep.subr.mxu0 0.0
      %852 = vmatpush2.msra.mxu0 0.0
      %853 = vmatprep.subr.mxu0 0.0
      %854 = vmatpush2.msra.mxu0 0.0
      %855 = vmatprep.subr.mxu0 0.0
      %856 = vmatpush2.msra.mxu0 0.0
      %857 = vmatprep.subr.mxu0 0.0
      %858 = vmatpush2.msra.mxu0 0.0
      %859 = vmatprep.subr.mxu0 0.0
      %860 = vmatpush2.msra.mxu0 0.0
      %861 = vmatprep.subr.mxu0 0.0
      %862 = vmatpush2.msra.mxu0 0.0
      %863 = vmatprep.subr.mxu0 0.0
      %864 = vmatpush2.msra.mxu0 0.0
      %865 = vmatprep.subr.mxu0 0.0
      %866 = vmatpush2.msra.mxu0 0.0
      %867 = vmatprep.subr.mxu0 0.0
      %868 = vmatpush2.msra.mxu0 0.0
      %869 = vmatprep.subr.mxu0 0.0
      %870 = vmatpush2.msra.mxu0 0.0
      %871 = vmatprep.subr.mxu0 0.0
      %872 = vmatpush2.msra.mxu0 0.0
      %873 = vmatprep.subr.mxu0 0.0
      %874 = vmatpush2.msra.mxu0 0.0
      %875 = vmatprep.subr.mxu0 0.0
      %876 = vmatpush2.msra.mxu0 0.0
      %877 = vmatprep.subr.mxu0 0.0
      %878 = vmatpush2.msra.mxu0 0.0
      %879 = vmatprep.subr.mxu0 0.0
      %880 = vmatpush2.msra.mxu0 0.0
      %881 = vmatprep.subr.mxu0 0.0
      %882 = vmatpush2.msra.mxu0 0.0
      %883 = vmatprep.mubr.f32.mxu0 0.0
      %884 = vmatmul.mubr.f32.gmra.mxu0 %v817
      %v885 = vpop.f32.mrf.mxu0
      %v886 = vadd.f32 0.0, %v885
      %v887 = vpop.f32.mrf.mxu0
      %888 = vdwg.mxu0
      %v890 = vsel %vm295, %v813, 0
      %892 = vmatprep.subr.mxu0 0.0
      %893 = vmatpush1.msra.mxu0 0.0
      %894 = vmatprep.subr.mxu0 0.0
      %895 = vmatpush1.msra.mxu0 0.0
      %896 = vmatprep.subr.mxu0 0.0
      %897 = vmatpush1.msra.mxu0 0.0
      %898 = vmatprep.subr.mxu0 0.0
      %899 = vmatpush1.msra.mxu0 0.0
      %900 = vmatprep.subr.mxu0 0.0
      %901 = vmatpush1.msra.mxu0 0.0
      %902 = vmatprep.subr.mxu0 0.0
      %903 = vmatpush1.msra.mxu0 0.0
      %904 = vmatprep.subr.mxu0 0.0
      %905 = vmatpush1.msra.mxu0 0.0
      %906 = vmatprep.subr.mxu0 0.0
      %907 = vmatpush1.msra.mxu0 0.0
      %908 = vmatprep.subr.mxu0 0.0
      %909 = vmatpush1.msra.mxu0 0.0
      %910 = vmatprep.subr.mxu0 0.0
      %911 = vmatpush1.msra.mxu0 0.0
      %912 = vmatprep.subr.mxu0 0.0
      %913 = vmatpush1.msra.mxu0 0.0
      %914 = vmatprep.subr.mxu0 0.0
      %915 = vmatpush1.msra.mxu0 0.0
      %916 = vmatprep.subr.mxu0 0.0
      %917 = vmatpush1.msra.mxu0 %v282
      %918 = vmatprep.subr.mxu0 0.0
      %919 = vmatpush1.msra.mxu0 %v281
      %920 = vmatprep.subr.mxu0 0.0
      %921 = vmatpush1.msra.mxu0 %v280
      %922 = vmatprep.subr.mxu0 0.0
      %923 = vmatpush1.msra.mxu0 %v279
      %924 = vmatprep.subr.mxu0 0.0
      %925 = vmatpush2.msra.mxu0 0.0
      %926 = vmatprep.subr.mxu0 0.0
      %927 = vmatpush2.msra.mxu0 0.0
      %928 = vmatprep.subr.mxu0 0.0
      %929 = vmatpush2.msra.mxu0 0.0
      %930 = vmatprep.subr.mxu0 0.0
      %931 = vmatpush2.msra.mxu0 0.0
      %932 = vmatprep.subr.mxu0 0.0
      %933 = vmatpush2.msra.mxu0 0.0
      %934 = vmatprep.subr.mxu0 0.0
      %935 = vmatpush2.msra.mxu0 0.0
      %936 = vmatprep.subr.mxu0 0.0
      %937 = vmatpush2.msra.mxu0 0.0
      %938 = vmatprep.subr.mxu0 0.0
      %939 = vmatpush2.msra.mxu0 0.0
      %940 = vmatprep.subr.mxu0 0.0
      %941 = vmatpush2.msra.mxu0 0.0
      %942 = vmatprep.subr.mxu0 0.0
      %943 = vmatpush2.msra.mxu0 0.0
      %944 = vmatprep.subr.mxu0 0.0
      %945 = vmatpush2.msra.mxu0 0.0
      %946 = vmatprep.subr.mxu0 0.0
      %947 = vmatpush2.msra.mxu0 0.0
      %948 = vmatprep.subr.mxu0 0.0
      %949 = vmatpush2.msra.mxu0 0.0
      %950 = vmatprep.subr.mxu0 0.0
      %951 = vmatpush2.msra.mxu0 0.0
      %952 = vmatprep.subr.mxu0 0.0
      %953 = vmatpush2.msra.mxu0 0.0
      %954 = vmatprep.subr.mxu0 0.0
      %955 = vmatpush2.msra.mxu0 0.0
      %956 = vmatprep.mubr.f32.mxu0 0.0
      %957 = vmatmul.mubr.f32.gmra.mxu0 %v890
      %v958 = vpop.f32.mrf.mxu0
      %v959 = vadd.f32 %v886, %v958
      %v960 = vpop.f32.mrf.mxu0
      %961 = vdwg.mxu0
      %v962 = vsel %vm295, %v806, 0
      %964 = vmatprep.subr.mxu0 0.0
      %965 = vmatpush1.msra.mxu0 0.0
      %966 = vmatprep.subr.mxu0 0.0
      %967 = vmatpush1.msra.mxu0 0.0
      %968 = vmatprep.subr.mxu0 0.0
      %969 = vmatpush1.msra.mxu0 0.0
      %970 = vmatprep.subr.mxu0 0.0
      %971 = vmatpush1.msra.mxu0 0.0
      %972 = vmatprep.subr.mxu0 0.0
      %973 = vmatpush1.msra.mxu0 0.0
      %974 = vmatprep.subr.mxu0 0.0
      %975 = vmatpush1.msra.mxu0 0.0
      %976 = vmatprep.subr.mxu0 0.0
      %977 = vmatpush1.msra.mxu0 0.0
      %978 = vmatprep.subr.mxu0 0.0
      %979 = vmatpush1.msra.mxu0 0.0
      %980 = vmatprep.subr.mxu0 0.0
      %981 = vmatpush1.msra.mxu0 0.0
      %982 = vmatprep.subr.mxu0 0.0
      %983 = vmatpush1.msra.mxu0 0.0
      %984 = vmatprep.subr.mxu0 0.0
      %985 = vmatpush1.msra.mxu0 0.0
      %986 = vmatprep.subr.mxu0 0.0
      %987 = vmatpush1.msra.mxu0 0.0
      %988 = vmatprep.subr.mxu0 0.0
      %989 = vmatpush1.msra.mxu0 %v290
      %990 = vmatprep.subr.mxu0 0.0
      %991 = vmatpush1.msra.mxu0 %v289
      %992 = vmatprep.subr.mxu0 0.0
      %993 = vmatpush1.msra.mxu0 %v288
      %994 = vmatprep.subr.mxu0 0.0
      %995 = vmatpush1.msra.mxu0 %v287
      %996 = vmatprep.subr.mxu0 0.0
      %997 = vmatpush2.msra.mxu0 0.0
      %998 = vmatprep.subr.mxu0 0.0
      %999 = vmatpush2.msra.mxu0 0.0
      %1000 = vmatprep.subr.mxu0 0.0
      %1001 = vmatpush2.msra.mxu0 0.0
      %1002 = vmatprep.subr.mxu0 0.0
      %1003 = vmatpush2.msra.mxu0 0.0
      %1004 = vmatprep.subr.mxu0 0.0
      %1005 = vmatpush2.msra.mxu0 0.0
      %1006 = vmatprep.subr.mxu0 0.0
      %1007 = vmatpush2.msra.mxu0 0.0
      %1008 = vmatprep.subr.mxu0 0.0
      %1009 = vmatpush2.msra.mxu0 0.0
      %1010 = vmatprep.subr.mxu0 0.0
      %1011 = vmatpush2.msra.mxu0 0.0
      %1012 = vmatprep.subr.mxu0 0.0
      %1013 = vmatpush2.msra.mxu0 0.0
      %1014 = vmatprep.subr.mxu0 0.0
      %1015 = vmatpush2.msra.mxu0 0.0
      %1016 = vmatprep.subr.mxu0 0.0
      %1017 = vmatpush2.msra.mxu0 0.0
      %1018 = vmatprep.subr.mxu0 0.0
      %1019 = vmatpush2.msra.mxu0 0.0
      %1020 = vmatprep.subr.mxu0 0.0
      %1021 = vmatpush2.msra.mxu0 0.0
      %1022 = vmatprep.subr.mxu0 0.0
      %1023 = vmatpush2.msra.mxu0 0.0
      %1024 = vmatprep.subr.mxu0 0.0
      %1025 = vmatpush2.msra.mxu0 0.0
      %1026 = vmatprep.subr.mxu0 0.0
      %1027 = vmatpush2.msra.mxu0 0.0
      %1028 = vmatprep.mubr.f32.mxu0 0.0
      %1029 = vmatmul.mubr.f32.gmra.mxu0 %v962
      %v1030 = vpop.f32.mrf.mxu0
      %v1031 = vadd.f32 0.0, %v1030
      %v1032 = vpop.f32.mrf.mxu0
      %1033 = vdwg.mxu0
      %v1034 = vadd.f32 %v959, %v1031
      %v1035 = vadd.f32 %v1034, %v520
      %v1036 = vsub.f32 0.0, %v1035
      %v1037 = vmul.f32 %v1036, 1.442695
      %v1038 = vpow.pop %v1037
      %v1039 = vadd.f32 %v1038, 1.0
      %v1040 = vrcp.pop %v1039
      %v1041 = vmul.f32 1.0, %v1040
      %v1042 = vtanh.pop %v1035
      %v1043 = vmul.f32 %v1041, %v797
      %1045 = vrot.lane.b32.xlu0 %v1042, 64
      %v1046 = vpop.permute.xlu0 %1045
      %v1048 = vmul.f32 %v1041, %v1046
      %1050 = vrot.lane.b32.xlu0 %v1048, 32
      %v1051 = vpop.permute.xlu0 %1050
      %v1053 = vadd.f32 %v1043, %v1051
      %v1054 = vtanh.pop %v1053
      %1056 = vrot.lane.b32.xlu0 %v1054, 64
      %v1057 = vpop.permute.xlu0 %1056
      %v1059 = vmul.f32 %v1041, %v1057
      %1061 = vrot.lane.b32.xlu0 %v1059, 32
      %v1062 = vpop.permute.xlu0 %1061
      %s1064 = scalar_lea.vmem %s278, 4
      %1065 = vst.msk [vmem:[%s1064] sm:$0x3] %vm551, %v1062
      %s1066 = scalar_lea.vmem %s278, 10
      %1067 = vst.msk [vmem:[%s1066] sm:$0x3] %vm554, %v1062
      %s1068 = scalar_lea.vmem %s0, 6
      %v1069 = vld [vmem:[%s1068] sm:$0x3]
      %s1070 = scalar_lea.vmem %s0, 8
      %v1071 = vld [vmem:[%s1070] sm:$0x3]
      %v1073 = vsel %vm295, %v1071, 0
      %1075 = vmatprep.subr.mxu0 0.0
      %1076 = vmatpush1.msra.mxu0 0.0
      %1077 = vmatprep.subr.mxu0 0.0
      %1078 = vmatpush1.msra.mxu0 0.0
      %1079 = vmatprep.subr.mxu0 0.0
      %1080 = vmatpush1.msra.mxu0 0.0
      %1081 = vmatprep.subr.mxu0 0.0
      %1082 = vmatpush1.msra.mxu0 0.0
      %1083 = vmatprep.subr.mxu0 0.0
      %1084 = vmatpush1.msra.mxu0 0.0
      %1085 = vmatprep.subr.mxu0 0.0
      %1086 = vmatpush1.msra.mxu0 0.0
      %1087 = vmatprep.subr.mxu0 0.0
      %1088 = vmatpush1.msra.mxu0 0.0
      %1089 = vmatprep.subr.mxu0 0.0
      %1090 = vmatpush1.msra.mxu0 0.0
      %1091 = vmatprep.subr.mxu0 0.0
      %1092 = vmatpush1.msra.mxu0 0.0
      %1093 = vmatprep.subr.mxu0 0.0
      %1094 = vmatpush1.msra.mxu0 0.0
      %1095 = vmatprep.subr.mxu0 0.0
      %1096 = vmatpush1.msra.mxu0 0.0
      %1097 = vmatprep.subr.mxu0 0.0
      %1098 = vmatpush1.msra.mxu0 0.0
      %1099 = vmatprep.subr.mxu0 0.0
      %1100 = vmatpush1.msra.mxu0 %v286
      %1101 = vmatprep.subr.mxu0 0.0
      %1102 = vmatpush1.msra.mxu0 %v285
      %1103 = vmatprep.subr.mxu0 0.0
      %1104 = vmatpush1.msra.mxu0 %v284
      %1105 = vmatprep.subr.mxu0 0.0
      %1106 = vmatpush1.msra.mxu0 %v283
      %1107 = vmatprep.subr.mxu0 0.0
      %1108 = vmatpush2.msra.mxu0 0.0
      %1109 = vmatprep.subr.mxu0 0.0
      %1110 = vmatpush2.msra.mxu0 0.0
      %1111 = vmatprep.subr.mxu0 0.0
      %1112 = vmatpush2.msra.mxu0 0.0
      %1113 = vmatprep.subr.mxu0 0.0
      %1114 = vmatpush2.msra.mxu0 0.0
      %1115 = vmatprep.subr.mxu0 0.0
      %1116 = vmatpush2.msra.mxu0 0.0
      %1117 = vmatprep.subr.mxu0 0.0
      %1118 = vmatpush2.msra.mxu0 0.0
      %1119 = vmatprep.subr.mxu0 0.0
      %1120 = vmatpush2.msra.mxu0 0.0
      %1121 = vmatprep.subr.mxu0 0.0
      %1122 = vmatpush2.msra.mxu0 0.0
      %1123 = vmatprep.subr.mxu0 0.0
      %1124 = vmatpush2.msra.mxu0 0.0
      %1125 = vmatprep.subr.mxu0 0.0
      %1126 = vmatpush2.msra.mxu0 0.0
      %1127 = vmatprep.subr.mxu0 0.0
      %1128 = vmatpush2.msra.mxu0 0.0
      %1129 = vmatprep.subr.mxu0 0.0
      %1130 = vmatpush2.msra.mxu0 0.0
      %1131 = vmatprep.subr.mxu0 0.0
      %1132 = vmatpush2.msra.mxu0 0.0
      %1133 = vmatprep.subr.mxu0 0.0
      %1134 = vmatpush2.msra.mxu0 0.0
      %1135 = vmatprep.subr.mxu0 0.0
      %1136 = vmatpush2.msra.mxu0 0.0
      %1137 = vmatprep.subr.mxu0 0.0
      %1138 = vmatpush2.msra.mxu0 0.0
      %1139 = vmatprep.mubr.f32.mxu0 0.0
      %1140 = vmatmul.mubr.f32.gmra.mxu0 %v1073
      %v1141 = vpop.f32.mrf.mxu0
      %v1142 = vadd.f32 0.0, %v1141
      %v1143 = vpop.f32.mrf.mxu0
      %1144 = vdwg.mxu0
      %v1146 = vsel %vm295, %v1069, 0
      %1148 = vmatprep.subr.mxu0 0.0
      %1149 = vmatpush1.msra.mxu0 0.0
      %1150 = vmatprep.subr.mxu0 0.0
      %1151 = vmatpush1.msra.mxu0 0.0
      %1152 = vmatprep.subr.mxu0 0.0
      %1153 = vmatpush1.msra.mxu0 0.0
      %1154 = vmatprep.subr.mxu0 0.0
      %1155 = vmatpush1.msra.mxu0 0.0
      %1156 = vmatprep.subr.mxu0 0.0
      %1157 = vmatpush1.msra.mxu0 0.0
      %1158 = vmatprep.subr.mxu0 0.0
      %1159 = vmatpush1.msra.mxu0 0.0
      %1160 = vmatprep.subr.mxu0 0.0
      %1161 = vmatpush1.msra.mxu0 0.0
      %1162 = vmatprep.subr.mxu0 0.0
      %1163 = vmatpush1.msra.mxu0 0.0
      %1164 = vmatprep.subr.mxu0 0.0
      %1165 = vmatpush1.msra.mxu0 0.0
      %1166 = vmatprep.subr.mxu0 0.0
      %1167 = vmatpush1.msra.mxu0 0.0
      %1168 = vmatprep.subr.mxu0 0.0
      %1169 = vmatpush1.msra.mxu0 0.0
      %1170 = vmatprep.subr.mxu0 0.0
      %1171 = vmatpush1.msra.mxu0 0.0
      %1172 = vmatprep.subr.mxu0 0.0
      %1173 = vmatpush1.msra.mxu0 %v282
      %1174 = vmatprep.subr.mxu0 0.0
      %1175 = vmatpush1.msra.mxu0 %v281
      %1176 = vmatprep.subr.mxu0 0.0
      %1177 = vmatpush1.msra.mxu0 %v280
      %1178 = vmatprep.subr.mxu0 0.0
      %1179 = vmatpush1.msra.mxu0 %v279
      %1180 = vmatprep.subr.mxu0 0.0
      %1181 = vmatpush2.msra.mxu0 0.0
      %1182 = vmatprep.subr.mxu0 0.0
      %1183 = vmatpush2.msra.mxu0 0.0
      %1184 = vmatprep.subr.mxu0 0.0
      %1185 = vmatpush2.msra.mxu0 0.0
      %1186 = vmatprep.subr.mxu0 0.0
      %1187 = vmatpush2.msra.mxu0 0.0
      %1188 = vmatprep.subr.mxu0 0.0
      %1189 = vmatpush2.msra.mxu0 0.0
      %1190 = vmatprep.subr.mxu0 0.0
      %1191 = vmatpush2.msra.mxu0 0.0
      %1192 = vmatprep.subr.mxu0 0.0
      %1193 = vmatpush2.msra.mxu0 0.0
      %1194 = vmatprep.subr.mxu0 0.0
      %1195 = vmatpush2.msra.mxu0 0.0
      %1196 = vmatprep.subr.mxu0 0.0
      %1197 = vmatpush2.msra.mxu0 0.0
      %1198 = vmatprep.subr.mxu0 0.0
      %1199 = vmatpush2.msra.mxu0 0.0
      %1200 = vmatprep.subr.mxu0 0.0
      %1201 = vmatpush2.msra.mxu0 0.0
      %1202 = vmatprep.subr.mxu0 0.0
      %1203 = vmatpush2.msra.mxu0 0.0
      %1204 = vmatprep.subr.mxu0 0.0
      %1205 = vmatpush2.msra.mxu0 0.0
      %1206 = vmatprep.subr.mxu0 0.0
      %1207 = vmatpush2.msra.mxu0 0.0
      %1208 = vmatprep.subr.mxu0 0.0
      %1209 = vmatpush2.msra.mxu0 0.0
      %1210 = vmatprep.subr.mxu0 0.0
      %1211 = vmatpush2.msra.mxu0 0.0
      %1212 = vmatprep.mubr.f32.mxu0 0.0
      %1213 = vmatmul.mubr.f32.gmra.mxu0 %v1146
      %v1214 = vpop.f32.mrf.mxu0
      %v1215 = vadd.f32 %v1142, %v1214
      %v1216 = vpop.f32.mrf.mxu0
      %1217 = vdwg.mxu0
      %v1218 = vsel %vm295, %v1062, 0
      %1220 = vmatprep.subr.mxu0 0.0
      %1221 = vmatpush1.msra.mxu0 0.0
      %1222 = vmatprep.subr.mxu0 0.0
      %1223 = vmatpush1.msra.mxu0 0.0
      %1224 = vmatprep.subr.mxu0 0.0
      %1225 = vmatpush1.msra.mxu0 0.0
      %1226 = vmatprep.subr.mxu0 0.0
      %1227 = vmatpush1.msra.mxu0 0.0
      %1228 = vmatprep.subr.mxu0 0.0
      %1229 = vmatpush1.msra.mxu0 0.0
      %1230 = vmatprep.subr.mxu0 0.0
      %1231 = vmatpush1.msra.mxu0 0.0
      %1232 = vmatprep.subr.mxu0 0.0
      %1233 = vmatpush1.msra.mxu0 0.0
      %1234 = vmatprep.subr.mxu0 0.0
      %1235 = vmatpush1.msra.mxu0 0.0
      %1236 = vmatprep.subr.mxu0 0.0
      %1237 = vmatpush1.msra.mxu0 0.0
      %1238 = vmatprep.subr.mxu0 0.0
      %1239 = vmatpush1.msra.mxu0 0.0
      %1240 = vmatprep.subr.mxu0 0.0
      %1241 = vmatpush1.msra.mxu0 0.0
      %1242 = vmatprep.subr.mxu0 0.0
      %1243 = vmatpush1.msra.mxu0 0.0
      %1244 = vmatprep.subr.mxu0 0.0
      %1245 = vmatpush1.msra.mxu0 %v290
      %1246 = vmatprep.subr.mxu0 0.0
      %1247 = vmatpush1.msra.mxu0 %v289
      %1248 = vmatprep.subr.mxu0 0.0
      %1249 = vmatpush1.msra.mxu0 %v288
      %1250 = vmatprep.subr.mxu0 0.0
      %1251 = vmatpush1.msra.mxu0 %v287
      %1252 = vmatprep.subr.mxu0 0.0
      %1253 = vmatpush2.msra.mxu0 0.0
      %1254 = vmatprep.subr.mxu0 0.0
      %1255 = vmatpush2.msra.mxu0 0.0
      %1256 = vmatprep.subr.mxu0 0.0
      %1257 = vmatpush2.msra.mxu0 0.0
      %1258 = vmatprep.subr.mxu0 0.0
      %1259 = vmatpush2.msra.mxu0 0.0
      %1260 = vmatprep.subr.mxu0 0.0
      %1261 = vmatpush2.msra.mxu0 0.0
      %1262 = vmatprep.subr.mxu0 0.0
      %1263 = vmatpush2.msra.mxu0 0.0
      %1264 = vmatprep.subr.mxu0 0.0
      %1265 = vmatpush2.msra.mxu0 0.0
      %1266 = vmatprep.subr.mxu0 0.0
      %1267 = vmatpush2.msra.mxu0 0.0
      %1268 = vmatprep.subr.mxu0 0.0
      %1269 = vmatpush2.msra.mxu0 0.0
      %1270 = vmatprep.subr.mxu0 0.0
      %1271 = vmatpush2.msra.mxu0 0.0
      %1272 = vmatprep.subr.mxu0 0.0
      %1273 = vmatpush2.msra.mxu0 0.0
      %1274 = vmatprep.subr.mxu0 0.0
      %1275 = vmatpush2.msra.mxu0 0.0
      %1276 = vmatprep.subr.mxu0 0.0
      %1277 = vmatpush2.msra.mxu0 0.0
      %1278 = vmatprep.subr.mxu0 0.0
      %1279 = vmatpush2.msra.mxu0 0.0
      %1280 = vmatprep.subr.mxu0 0.0
      %1281 = vmatpush2.msra.mxu0 0.0
      %1282 = vmatprep.subr.mxu0 0.0
      %1283 = vmatpush2.msra.mxu0 0.0
      %1284 = vmatprep.mubr.f32.mxu0 0.0
      %1285 = vmatmul.mubr.f32.gmra.mxu0 %v1218
      %v1286 = vpop.f32.mrf.mxu0
      %v1287 = vadd.f32 0.0, %v1286
      %v1288 = vpop.f32.mrf.mxu0
      %1289 = vdwg.mxu0
      %v1290 = vadd.f32 %v1215, %v1287
      %v1291 = vadd.f32 %v1290, %v520
      %v1292 = vsub.f32 0.0, %v1291
      %v1293 = vmul.f32 %v1292, 1.442695
      %v1294 = vpow.pop %v1293
      %v1295 = vadd.f32 %v1294, 1.0
      %v1296 = vrcp.pop %v1295
      %v1297 = vmul.f32 1.0, %v1296
      %v1298 = vtanh.pop %v1291
      %v1299 = vmul.f32 %v1297, %v1053
      %1301 = vrot.lane.b32.xlu0 %v1298, 64
      %v1302 = vpop.permute.xlu0 %1301
      %v1304 = vmul.f32 %v1297, %v1302
      %1306 = vrot.lane.b32.xlu0 %v1304, 32
      %v1307 = vpop.permute.xlu0 %1306
      %v1309 = vadd.f32 %v1299, %v1307
      %v1310 = vtanh.pop %v1309
      %1312 = vrot.lane.b32.xlu0 %v1310, 64
      %v1313 = vpop.permute.xlu0 %1312
      %v1315 = vmul.f32 %v1297, %v1313
      %1317 = vrot.lane.b32.xlu0 %v1315, 32
      %v1318 = vpop.permute.xlu0 %1317
      %s1320 = scalar_lea.vmem %s278, 6
      %1321 = vst.msk [vmem:[%s1320] sm:$0x3] %vm551, %v1318
      %s1322 = scalar_lea.vmem %s278, 8
      %1323 = vst.msk [vmem:[%s1322] sm:$0x3] %vm554, %v1318
      %v1324 = vld [vmem:[%s1070] sm:$0x3]
      %v1325 = vld [vmem:[%s1068] sm:$0x3]
      %v1327 = vsel %vm295, %v1325, 0
      %1329 = vmatprep.subr.mxu0 0.0
      %1330 = vmatpush1.msra.mxu0 0.0
      %1331 = vmatprep.subr.mxu0 0.0
      %1332 = vmatpush1.msra.mxu0 0.0
      %1333 = vmatprep.subr.mxu0 0.0
      %1334 = vmatpush1.msra.mxu0 0.0
      %1335 = vmatprep.subr.mxu0 0.0
      %1336 = vmatpush1.msra.mxu0 0.0
      %1337 = vmatprep.subr.mxu0 0.0
      %1338 = vmatpush1.msra.mxu0 0.0
      %1339 = vmatprep.subr.mxu0 0.0
      %1340 = vmatpush1.msra.mxu0 0.0
      %1341 = vmatprep.subr.mxu0 0.0
      %1342 = vmatpush1.msra.mxu0 0.0
      %1343 = vmatprep.subr.mxu0 0.0
      %1344 = vmatpush1.msra.mxu0 0.0
      %1345 = vmatprep.subr.mxu0 0.0
      %1346 = vmatpush1.msra.mxu0 0.0
      %1347 = vmatprep.subr.mxu0 0.0
      %1348 = vmatpush1.msra.mxu0 0.0
      %1349 = vmatprep.subr.mxu0 0.0
      %1350 = vmatpush1.msra.mxu0 0.0
      %1351 = vmatprep.subr.mxu0 0.0
      %1352 = vmatpush1.msra.mxu0 0.0
      %1353 = vmatprep.subr.mxu0 0.0
      %1354 = vmatpush1.msra.mxu0 %v286
      %1355 = vmatprep.subr.mxu0 0.0
      %1356 = vmatpush1.msra.mxu0 %v285
      %1357 = vmatprep.subr.mxu0 0.0
      %1358 = vmatpush1.msra.mxu0 %v284
      %1359 = vmatprep.subr.mxu0 0.0
      %1360 = vmatpush1.msra.mxu0 %v283
      %1361 = vmatprep.subr.mxu0 0.0
      %1362 = vmatpush2.msra.mxu0 0.0
      %1363 = vmatprep.subr.mxu0 0.0
      %1364 = vmatpush2.msra.mxu0 0.0
      %1365 = vmatprep.subr.mxu0 0.0
      %1366 = vmatpush2.msra.mxu0 0.0
      %1367 = vmatprep.subr.mxu0 0.0
      %1368 = vmatpush2.msra.mxu0 0.0
      %1369 = vmatprep.subr.mxu0 0.0
      %1370 = vmatpush2.msra.mxu0 0.0
      %1371 = vmatprep.subr.mxu0 0.0
      %1372 = vmatpush2.msra.mxu0 0.0
      %1373 = vmatprep.subr.mxu0 0.0
      %1374 = vmatpush2.msra.mxu0 0.0
      %1375 = vmatprep.subr.mxu0 0.0
      %1376 = vmatpush2.msra.mxu0 0.0
      %1377 = vmatprep.subr.mxu0 0.0
      %1378 = vmatpush2.msra.mxu0 0.0
      %1379 = vmatprep.subr.mxu0 0.0
      %1380 = vmatpush2.msra.mxu0 0.0
      %1381 = vmatprep.subr.mxu0 0.0
      %1382 = vmatpush2.msra.mxu0 0.0
      %1383 = vmatprep.subr.mxu0 0.0
      %1384 = vmatpush2.msra.mxu0 0.0
      %1385 = vmatprep.subr.mxu0 0.0
      %1386 = vmatpush2.msra.mxu0 0.0
      %1387 = vmatprep.subr.mxu0 0.0
      %1388 = vmatpush2.msra.mxu0 0.0
      %1389 = vmatprep.subr.mxu0 0.0
      %1390 = vmatpush2.msra.mxu0 0.0
      %1391 = vmatprep.subr.mxu0 0.0
      %1392 = vmatpush2.msra.mxu0 0.0
      %1393 = vmatprep.mubr.f32.mxu0 0.0
      %1394 = vmatmul.mubr.f32.gmra.mxu0 %v1327
      %v1395 = vpop.f32.mrf.mxu0
      %v1396 = vadd.f32 0.0, %v1395
      %v1397 = vpop.f32.mrf.mxu0
      %1398 = vdwg.mxu0
      %v1400 = vsel %vm295, %v1324, 0
      %1402 = vmatprep.subr.mxu0 0.0
      %1403 = vmatpush1.msra.mxu0 0.0
      %1404 = vmatprep.subr.mxu0 0.0
      %1405 = vmatpush1.msra.mxu0 0.0
      %1406 = vmatprep.subr.mxu0 0.0
      %1407 = vmatpush1.msra.mxu0 0.0
      %1408 = vmatprep.subr.mxu0 0.0
      %1409 = vmatpush1.msra.mxu0 0.0
      %1410 = vmatprep.subr.mxu0 0.0
      %1411 = vmatpush1.msra.mxu0 0.0
      %1412 = vmatprep.subr.mxu0 0.0
      %1413 = vmatpush1.msra.mxu0 0.0
      %1414 = vmatprep.subr.mxu0 0.0
      %1415 = vmatpush1.msra.mxu0 0.0
      %1416 = vmatprep.subr.mxu0 0.0
      %1417 = vmatpush1.msra.mxu0 0.0
      %1418 = vmatprep.subr.mxu0 0.0
      %1419 = vmatpush1.msra.mxu0 0.0
      %1420 = vmatprep.subr.mxu0 0.0
      %1421 = vmatpush1.msra.mxu0 0.0
      %1422 = vmatprep.subr.mxu0 0.0
      %1423 = vmatpush1.msra.mxu0 0.0
      %1424 = vmatprep.subr.mxu0 0.0
      %1425 = vmatpush1.msra.mxu0 0.0
      %1426 = vmatprep.subr.mxu0 0.0
      %1427 = vmatpush1.msra.mxu0 %v282
      %1428 = vmatprep.subr.mxu0 0.0
      %1429 = vmatpush1.msra.mxu0 %v281
      %1430 = vmatprep.subr.mxu0 0.0
      %1431 = vmatpush1.msra.mxu0 %v280
      %1432 = vmatprep.subr.mxu0 0.0
      %1433 = vmatpush1.msra.mxu0 %v279
      %1434 = vmatprep.subr.mxu0 0.0
      %1435 = vmatpush2.msra.mxu0 0.0
      %1436 = vmatprep.subr.mxu0 0.0
      %1437 = vmatpush2.msra.mxu0 0.0
      %1438 = vmatprep.subr.mxu0 0.0
      %1439 = vmatpush2.msra.mxu0 0.0
      %1440 = vmatprep.subr.mxu0 0.0
      %1441 = vmatpush2.msra.mxu0 0.0
      %1442 = vmatprep.subr.mxu0 0.0
      %1443 = vmatpush2.msra.mxu0 0.0
      %1444 = vmatprep.subr.mxu0 0.0
      %1445 = vmatpush2.msra.mxu0 0.0
      %1446 = vmatprep.subr.mxu0 0.0
      %1447 = vmatpush2.msra.mxu0 0.0
      %1448 = vmatprep.subr.mxu0 0.0
      %1449 = vmatpush2.msra.mxu0 0.0
      %1450 = vmatprep.subr.mxu0 0.0
      %1451 = vmatpush2.msra.mxu0 0.0
      %1452 = vmatprep.subr.mxu0 0.0
      %1453 = vmatpush2.msra.mxu0 0.0
      %1454 = vmatprep.subr.mxu0 0.0
      %1455 = vmatpush2.msra.mxu0 0.0
      %1456 = vmatprep.subr.mxu0 0.0
      %1457 = vmatpush2.msra.mxu0 0.0
      %1458 = vmatprep.subr.mxu0 0.0
      %1459 = vmatpush2.msra.mxu0 0.0
      %1460 = vmatprep.subr.mxu0 0.0
      %1461 = vmatpush2.msra.mxu0 0.0
      %1462 = vmatprep.subr.mxu0 0.0
      %1463 = vmatpush2.msra.mxu0 0.0
      %1464 = vmatprep.subr.mxu0 0.0
      %1465 = vmatpush2.msra.mxu0 0.0
      %1466 = vmatprep.mubr.f32.mxu0 0.0
      %1467 = vmatmul.mubr.f32.gmra.mxu0 %v1400
      %v1468 = vpop.f32.mrf.mxu0
      %v1469 = vadd.f32 %v1396, %v1468
      %v1470 = vpop.f32.mrf.mxu0
      %1471 = vdwg.mxu0
      %v1472 = vsel %vm295, %v1318, 0
      %1474 = vmatprep.subr.mxu0 0.0
      %1475 = vmatpush1.msra.mxu0 0.0
      %1476 = vmatprep.subr.mxu0 0.0
      %1477 = vmatpush1.msra.mxu0 0.0
      %1478 = vmatprep.subr.mxu0 0.0
      %1479 = vmatpush1.msra.mxu0 0.0
      %1480 = vmatprep.subr.mxu0 0.0
      %1481 = vmatpush1.msra.mxu0 0.0
      %1482 = vmatprep.subr.mxu0 0.0
      %1483 = vmatpush1.msra.mxu0 0.0
      %1484 = vmatprep.subr.mxu0 0.0
      %1485 = vmatpush1.msra.mxu0 0.0
      %1486 = vmatprep.subr.mxu0 0.0
      %1487 = vmatpush1.msra.mxu0 0.0
      %1488 = vmatprep.subr.mxu0 0.0
      %1489 = vmatpush1.msra.mxu0 0.0
      %1490 = vmatprep.subr.mxu0 0.0
      %1491 = vmatpush1.msra.mxu0 0.0
      %1492 = vmatprep.subr.mxu0 0.0
      %1493 = vmatpush1.msra.mxu0 0.0
      %1494 = vmatprep.subr.mxu0 0.0
      %1495 = vmatpush1.msra.mxu0 0.0
      %1496 = vmatprep.subr.mxu0 0.0
      %1497 = vmatpush1.msra.mxu0 0.0
      %1498 = vmatprep.subr.mxu0 0.0
      %1499 = vmatpush1.msra.mxu0 %v290
      %1500 = vmatprep.subr.mxu0 0.0
      %1501 = vmatpush1.msra.mxu0 %v289
      %1502 = vmatprep.subr.mxu0 0.0
      %1503 = vmatpush1.msra.mxu0 %v288
      %1504 = vmatprep.subr.mxu0 0.0
      %1505 = vmatpush1.msra.mxu0 %v287
      %1506 = vmatprep.subr.mxu0 0.0
      %1507 = vmatpush2.msra.mxu0 0.0
      %1508 = vmatprep.subr.mxu0 0.0
      %1509 = vmatpush2.msra.mxu0 0.0
      %1510 = vmatprep.subr.mxu0 0.0
      %1511 = vmatpush2.msra.mxu0 0.0
      %1512 = vmatprep.subr.mxu0 0.0
      %1513 = vmatpush2.msra.mxu0 0.0
      %1514 = vmatprep.subr.mxu0 0.0
      %1515 = vmatpush2.msra.mxu0 0.0
      %1516 = vmatprep.subr.mxu0 0.0
      %1517 = vmatpush2.msra.mxu0 0.0
      %1518 = vmatprep.subr.mxu0 0.0
      %1519 = vmatpush2.msra.mxu0 0.0
      %1520 = vmatprep.subr.mxu0 0.0
      %1521 = vmatpush2.msra.mxu0 0.0
      %1522 = vmatprep.subr.mxu0 0.0
      %1523 = vmatpush2.msra.mxu0 0.0
      %1524 = vmatprep.subr.mxu0 0.0
      %1525 = vmatpush2.msra.mxu0 0.0
      %1526 = vmatprep.subr.mxu0 0.0
      %1527 = vmatpush2.msra.mxu0 0.0
      %1528 = vmatprep.subr.mxu0 0.0
      %1529 = vmatpush2.msra.mxu0 0.0
      %1530 = vmatprep.subr.mxu0 0.0
      %1531 = vmatpush2.msra.mxu0 0.0
      %1532 = vmatprep.subr.mxu0 0.0
      %1533 = vmatpush2.msra.mxu0 0.0
      %1534 = vmatprep.subr.mxu0 0.0
      %1535 = vmatpush2.msra.mxu0 0.0
      %1536 = vmatprep.subr.mxu0 0.0
      %1537 = vmatpush2.msra.mxu0 0.0
      %1538 = vmatprep.mubr.f32.mxu0 0.0
      %1539 = vmatmul.mubr.f32.gmra.mxu0 %v1472
      %v1540 = vpop.f32.mrf.mxu0
      %v1541 = vadd.f32 0.0, %v1540
      %v1542 = vpop.f32.mrf.mxu0
      %1543 = vdwg.mxu0
      %v1544 = vadd.f32 %v1469, %v1541
      %v1545 = vadd.f32 %v1544, %v520
      %v1546 = vsub.f32 0.0, %v1545
      %v1547 = vmul.f32 %v1546, 1.442695
      %v1548 = vpow.pop %v1547
      %v1549 = vadd.f32 %v1548, 1.0
      %v1550 = vrcp.pop %v1549
      %v1551 = vmul.f32 1.0, %v1550
      %v1552 = vtanh.pop %v1545
      %v1553 = vmul.f32 %v1551, %v1309
      %1555 = vrot.lane.b32.xlu0 %v1552, 64
      %v1556 = vpop.permute.xlu0 %1555
      %v1558 = vmul.f32 %v1551, %v1556
      %1560 = vrot.lane.b32.xlu0 %v1558, 32
      %v1561 = vpop.permute.xlu0 %1560
      %v1563 = vadd.f32 %v1553, %v1561
      %v1564 = vtanh.pop %v1563
      %1566 = vrot.lane.b32.xlu0 %v1564, 64
      %v1567 = vpop.permute.xlu0 %1566
      %v1569 = vmul.f32 %v1551, %v1567
      %1571 = vrot.lane.b32.xlu0 %v1569, 32
      %v1572 = vpop.permute.xlu0 %1571
      %1574 = vst.msk [vmem:[%s1322] sm:$0x3] %vm551, %v1572
      %1575 = vst.msk [vmem:[%s1320] sm:$0x3] %vm554, %v1572
      %v1576 = vld [vmem:[%s814] sm:$0x3]
      %v1577 = vld [vmem:[%s812] sm:$0x3]
      %v1579 = vsel %vm295, %v1577, 0
      %1581 = vmatprep.subr.mxu0 0.0
      %1582 = vmatpush1.msra.mxu0 0.0
      %1583 = vmatprep.subr.mxu0 0.0
      %1584 = vmatpush1.msra.mxu0 0.0
      %1585 = vmatprep.subr.mxu0 0.0
      %1586 = vmatpush1.msra.mxu0 0.0
      %1587 = vmatprep.subr.mxu0 0.0
      %1588 = vmatpush1.msra.mxu0 0.0
      %1589 = vmatprep.subr.mxu0 0.0
      %1590 = vmatpush1.msra.mxu0 0.0
      %1591 = vmatprep.subr.mxu0 0.0
      %1592 = vmatpush1.msra.mxu0 0.0
      %1593 = vmatprep.subr.mxu0 0.0
      %1594 = vmatpush1.msra.mxu0 0.0
      %1595 = vmatprep.subr.mxu0 0.0
      %1596 = vmatpush1.msra.mxu0 0.0
      %1597 = vmatprep.subr.mxu0 0.0
      %1598 = vmatpush1.msra.mxu0 0.0
      %1599 = vmatprep.subr.mxu0 0.0
      %1600 = vmatpush1.msra.mxu0 0.0
      %1601 = vmatprep.subr.mxu0 0.0
      %1602 = vmatpush1.msra.mxu0 0.0
      %1603 = vmatprep.subr.mxu0 0.0
      %1604 = vmatpush1.msra.mxu0 0.0
      %1605 = vmatprep.subr.mxu0 0.0
      %1606 = vmatpush1.msra.mxu0 %v286
      %1607 = vmatprep.subr.mxu0 0.0
      %1608 = vmatpush1.msra.mxu0 %v285
      %1609 = vmatprep.subr.mxu0 0.0
      %1610 = vmatpush1.msra.mxu0 %v284
      %1611 = vmatprep.subr.mxu0 0.0
      %1612 = vmatpush1.msra.mxu0 %v283
      %1613 = vmatprep.subr.mxu0 0.0
      %1614 = vmatpush2.msra.mxu0 0.0
      %1615 = vmatprep.subr.mxu0 0.0
      %1616 = vmatpush2.msra.mxu0 0.0
      %1617 = vmatprep.subr.mxu0 0.0
      %1618 = vmatpush2.msra.mxu0 0.0
      %1619 = vmatprep.subr.mxu0 0.0
      %1620 = vmatpush2.msra.mxu0 0.0
      %1621 = vmatprep.subr.mxu0 0.0
      %1622 = vmatpush2.msra.mxu0 0.0
      %1623 = vmatprep.subr.mxu0 0.0
      %1624 = vmatpush2.msra.mxu0 0.0
      %1625 = vmatprep.subr.mxu0 0.0
      %1626 = vmatpush2.msra.mxu0 0.0
      %1627 = vmatprep.subr.mxu0 0.0
      %1628 = vmatpush2.msra.mxu0 0.0
      %1629 = vmatprep.subr.mxu0 0.0
      %1630 = vmatpush2.msra.mxu0 0.0
      %1631 = vmatprep.subr.mxu0 0.0
      %1632 = vmatpush2.msra.mxu0 0.0
      %1633 = vmatprep.subr.mxu0 0.0
      %1634 = vmatpush2.msra.mxu0 0.0
      %1635 = vmatprep.subr.mxu0 0.0
      %1636 = vmatpush2.msra.mxu0 0.0
      %1637 = vmatprep.subr.mxu0 0.0
      %1638 = vmatpush2.msra.mxu0 0.0
      %1639 = vmatprep.subr.mxu0 0.0
      %1640 = vmatpush2.msra.mxu0 0.0
      %1641 = vmatprep.subr.mxu0 0.0
      %1642 = vmatpush2.msra.mxu0 0.0
      %1643 = vmatprep.subr.mxu0 0.0
      %1644 = vmatpush2.msra.mxu0 0.0
      %1645 = vmatprep.mubr.f32.mxu0 0.0
      %1646 = vmatmul.mubr.f32.gmra.mxu0 %v1579
      %v1647 = vpop.f32.mrf.mxu0
      %v1648 = vadd.f32 0.0, %v1647
      %v1649 = vpop.f32.mrf.mxu0
      %1650 = vdwg.mxu0
      %v1652 = vsel %vm295, %v1576, 0
      %1654 = vmatprep.subr.mxu0 0.0
      %1655 = vmatpush1.msra.mxu0 0.0
      %1656 = vmatprep.subr.mxu0 0.0
      %1657 = vmatpush1.msra.mxu0 0.0
      %1658 = vmatprep.subr.mxu0 0.0
      %1659 = vmatpush1.msra.mxu0 0.0
      %1660 = vmatprep.subr.mxu0 0.0
      %1661 = vmatpush1.msra.mxu0 0.0
      %1662 = vmatprep.subr.mxu0 0.0
      %1663 = vmatpush1.msra.mxu0 0.0
      %1664 = vmatprep.subr.mxu0 0.0
      %1665 = vmatpush1.msra.mxu0 0.0
      %1666 = vmatprep.subr.mxu0 0.0
      %1667 = vmatpush1.msra.mxu0 0.0
      %1668 = vmatprep.subr.mxu0 0.0
      %1669 = vmatpush1.msra.mxu0 0.0
      %1670 = vmatprep.subr.mxu0 0.0
      %1671 = vmatpush1.msra.mxu0 0.0
      %1672 = vmatprep.subr.mxu0 0.0
      %1673 = vmatpush1.msra.mxu0 0.0
      %1674 = vmatprep.subr.mxu0 0.0
      %1675 = vmatpush1.msra.mxu0 0.0
      %1676 = vmatprep.subr.mxu0 0.0
      %1677 = vmatpush1.msra.mxu0 0.0
      %1678 = vmatprep.subr.mxu0 0.0
      %1679 = vmatpush1.msra.mxu0 %v282
      %1680 = vmatprep.subr.mxu0 0.0
      %1681 = vmatpush1.msra.mxu0 %v281
      %1682 = vmatprep.subr.mxu0 0.0
      %1683 = vmatpush1.msra.mxu0 %v280
      %1684 = vmatprep.subr.mxu0 0.0
      %1685 = vmatpush1.msra.mxu0 %v279
      %1686 = vmatprep.subr.mxu0 0.0
      %1687 = vmatpush2.msra.mxu0 0.0
      %1688 = vmatprep.subr.mxu0 0.0
      %1689 = vmatpush2.msra.mxu0 0.0
      %1690 = vmatprep.subr.mxu0 0.0
      %1691 = vmatpush2.msra.mxu0 0.0
      %1692 = vmatprep.subr.mxu0 0.0
      %1693 = vmatpush2.msra.mxu0 0.0
      %1694 = vmatprep.subr.mxu0 0.0
      %1695 = vmatpush2.msra.mxu0 0.0
      %1696 = vmatprep.subr.mxu0 0.0
      %1697 = vmatpush2.msra.mxu0 0.0
      %1698 = vmatprep.subr.mxu0 0.0
      %1699 = vmatpush2.msra.mxu0 0.0
      %1700 = vmatprep.subr.mxu0 0.0
      %1701 = vmatpush2.msra.mxu0 0.0
      %1702 = vmatprep.subr.mxu0 0.0
      %1703 = vmatpush2.msra.mxu0 0.0
      %1704 = vmatprep.subr.mxu0 0.0
      %1705 = vmatpush2.msra.mxu0 0.0
      %1706 = vmatprep.subr.mxu0 0.0
      %1707 = vmatpush2.msra.mxu0 0.0
      %1708 = vmatprep.subr.mxu0 0.0
      %1709 = vmatpush2.msra.mxu0 0.0
      %1710 = vmatprep.subr.mxu0 0.0
      %1711 = vmatpush2.msra.mxu0 0.0
      %1712 = vmatprep.subr.mxu0 0.0
      %1713 = vmatpush2.msra.mxu0 0.0
      %1714 = vmatprep.subr.mxu0 0.0
      %1715 = vmatpush2.msra.mxu0 0.0
      %1716 = vmatprep.subr.mxu0 0.0
      %1717 = vmatpush2.msra.mxu0 0.0
      %1718 = vmatprep.mubr.f32.mxu0 0.0
      %1719 = vmatmul.mubr.f32.gmra.mxu0 %v1652
      %v1720 = vpop.f32.mrf.mxu0
      %v1721 = vadd.f32 %v1648, %v1720
      %v1722 = vpop.f32.mrf.mxu0
      %1723 = vdwg.mxu0
      %v1724 = vsel %vm295, %v1572, 0
      %1726 = vmatprep.subr.mxu0 0.0
      %1727 = vmatpush1.msra.mxu0 0.0
      %1728 = vmatprep.subr.mxu0 0.0
      %1729 = vmatpush1.msra.mxu0 0.0
      %1730 = vmatprep.subr.mxu0 0.0
      %1731 = vmatpush1.msra.mxu0 0.0
      %1732 = vmatprep.subr.mxu0 0.0
      %1733 = vmatpush1.msra.mxu0 0.0
      %1734 = vmatprep.subr.mxu0 0.0
      %1735 = vmatpush1.msra.mxu0 0.0
      %1736 = vmatprep.subr.mxu0 0.0
      %1737 = vmatpush1.msra.mxu0 0.0
      %1738 = vmatprep.subr.mxu0 0.0
      %1739 = vmatpush1.msra.mxu0 0.0
      %1740 = vmatprep.subr.mxu0 0.0
      %1741 = vmatpush1.msra.mxu0 0.0
      %1742 = vmatprep.subr.mxu0 0.0
      %1743 = vmatpush1.msra.mxu0 0.0
      %1744 = vmatprep.subr.mxu0 0.0
      %1745 = vmatpush1.msra.mxu0 0.0
      %1746 = vmatprep.subr.mxu0 0.0
      %1747 = vmatpush1.msra.mxu0 0.0
      %1748 = vmatprep.subr.mxu0 0.0
      %1749 = vmatpush1.msra.mxu0 0.0
      %1750 = vmatprep.subr.mxu0 0.0
      %1751 = vmatpush1.msra.mxu0 %v290
      %1752 = vmatprep.subr.mxu0 0.0
      %1753 = vmatpush1.msra.mxu0 %v289
      %1754 = vmatprep.subr.mxu0 0.0
      %1755 = vmatpush1.msra.mxu0 %v288
      %1756 = vmatprep.subr.mxu0 0.0
      %1757 = vmatpush1.msra.mxu0 %v287
      %1758 = vmatprep.subr.mxu0 0.0
      %1759 = vmatpush2.msra.mxu0 0.0
      %1760 = vmatprep.subr.mxu0 0.0
      %1761 = vmatpush2.msra.mxu0 0.0
      %1762 = vmatprep.subr.mxu0 0.0
      %1763 = vmatpush2.msra.mxu0 0.0
      %1764 = vmatprep.subr.mxu0 0.0
      %1765 = vmatpush2.msra.mxu0 0.0
      %1766 = vmatprep.subr.mxu0 0.0
      %1767 = vmatpush2.msra.mxu0 0.0
      %1768 = vmatprep.subr.mxu0 0.0
      %1769 = vmatpush2.msra.mxu0 0.0
      %1770 = vmatprep.subr.mxu0 0.0
      %1771 = vmatpush2.msra.mxu0 0.0
      %1772 = vmatprep.subr.mxu0 0.0
      %1773 = vmatpush2.msra.mxu0 0.0
      %1774 = vmatprep.subr.mxu0 0.0
      %1775 = vmatpush2.msra.mxu0 0.0
      %1776 = vmatprep.subr.mxu0 0.0
      %1777 = vmatpush2.msra.mxu0 0.0
      %1778 = vmatprep.subr.mxu0 0.0
      %1779 = vmatpush2.msra.mxu0 0.0
      %1780 = vmatprep.subr.mxu0 0.0
      %1781 = vmatpush2.msra.mxu0 0.0
      %1782 = vmatprep.subr.mxu0 0.0
      %1783 = vmatpush2.msra.mxu0 0.0
      %1784 = vmatprep.subr.mxu0 0.0
      %1785 = vmatpush2.msra.mxu0 0.0
      %1786 = vmatprep.subr.mxu0 0.0
      %1787 = vmatpush2.msra.mxu0 0.0
      %1788 = vmatprep.subr.mxu0 0.0
      %1789 = vmatpush2.msra.mxu0 0.0
      %1790 = vmatprep.mubr.f32.mxu0 0.0
      %1791 = vmatmul.mubr.f32.gmra.mxu0 %v1724
      %v1792 = vpop.f32.mrf.mxu0
      %v1793 = vadd.f32 0.0, %v1792
      %v1794 = vpop.f32.mrf.mxu0
      %1795 = vdwg.mxu0
      %v1796 = vadd.f32 %v1721, %v1793
      %v1797 = vadd.f32 %v1796, %v520
      %v1798 = vsub.f32 0.0, %v1797
      %v1799 = vmul.f32 %v1798, 1.442695
      %v1800 = vpow.pop %v1799
      %v1801 = vadd.f32 %v1800, 1.0
      %v1802 = vrcp.pop %v1801
      %v1803 = vmul.f32 1.0, %v1802
      %v1804 = vtanh.pop %v1797
      %v1805 = vmul.f32 %v1803, %v1563
      %1807 = vrot.lane.b32.xlu0 %v1804, 64
      %v1808 = vpop.permute.xlu0 %1807
      %v1810 = vmul.f32 %v1803, %v1808
      %1812 = vrot.lane.b32.xlu0 %v1810, 32
      %v1813 = vpop.permute.xlu0 %1812
      %v1815 = vadd.f32 %v1805, %v1813
      %v1816 = vtanh.pop %v1815
      %1818 = vrot.lane.b32.xlu0 %v1816, 64
      %v1819 = vpop.permute.xlu0 %1818
      %v1821 = vmul.f32 %v1803, %v1819
      %1823 = vrot.lane.b32.xlu0 %v1821, 32
      %v1824 = vpop.permute.xlu0 %1823
      %1826 = vst.msk [vmem:[%s1066] sm:$0x3] %vm551, %v1824
      %1827 = vst.msk [vmem:[%s1064] sm:$0x3] %vm554, %v1824
      %v1828 = vld [vmem:[%s558] sm:$0x3]
      %v1829 = vld [vmem:[%s556] sm:$0x3]
      %v1831 = vsel %vm295, %v1829, 0
      %1833 = vmatprep.subr.mxu0 0.0
      %1834 = vmatpush1.msra.mxu0 0.0
      %1835 = vmatprep.subr.mxu0 0.0
      %1836 = vmatpush1.msra.mxu0 0.0
      %1837 = vmatprep.subr.mxu0 0.0
      %1838 = vmatpush1.msra.mxu0 0.0
      %1839 = vmatprep.subr.mxu0 0.0
      %1840 = vmatpush1.msra.mxu0 0.0
      %1841 = vmatprep.subr.mxu0 0.0
      %1842 = vmatpush1.msra.mxu0 0.0
      %1843 = vmatprep.subr.mxu0 0.0
      %1844 = vmatpush1.msra.mxu0 0.0
      %1845 = vmatprep.subr.mxu0 0.0
      %1846 = vmatpush1.msra.mxu0 0.0
      %1847 = vmatprep.subr.mxu0 0.0
      %1848 = vmatpush1.msra.mxu0 0.0
      %1849 = vmatprep.subr.mxu0 0.0
      %1850 = vmatpush1.msra.mxu0 0.0
      %1851 = vmatprep.subr.mxu0 0.0
      %1852 = vmatpush1.msra.mxu0 0.0
      %1853 = vmatprep.subr.mxu0 0.0
      %1854 = vmatpush1.msra.mxu0 0.0
      %1855 = vmatprep.subr.mxu0 0.0
      %1856 = vmatpush1.msra.mxu0 0.0
      %1857 = vmatprep.subr.mxu0 0.0
      %1858 = vmatpush1.msra.mxu0 %v286
      %1859 = vmatprep.subr.mxu0 0.0
      %1860 = vmatpush1.msra.mxu0 %v285
      %1861 = vmatprep.subr.mxu0 0.0
      %1862 = vmatpush1.msra.mxu0 %v284
      %1863 = vmatprep.subr.mxu0 0.0
      %1864 = vmatpush1.msra.mxu0 %v283
      %1865 = vmatprep.subr.mxu0 0.0
      %1866 = vmatpush2.msra.mxu0 0.0
      %1867 = vmatprep.subr.mxu0 0.0
      %1868 = vmatpush2.msra.mxu0 0.0
      %1869 = vmatprep.subr.mxu0 0.0
      %1870 = vmatpush2.msra.mxu0 0.0
      %1871 = vmatprep.subr.mxu0 0.0
      %1872 = vmatpush2.msra.mxu0 0.0
      %1873 = vmatprep.subr.mxu0 0.0
      %1874 = vmatpush2.msra.mxu0 0.0
      %1875 = vmatprep.subr.mxu0 0.0
      %1876 = vmatpush2.msra.mxu0 0.0
      %1877 = vmatprep.subr.mxu0 0.0
      %1878 = vmatpush2.msra.mxu0 0.0
      %1879 = vmatprep.subr.mxu0 0.0
      %1880 = vmatpush2.msra.mxu0 0.0
      %1881 = vmatprep.subr.mxu0 0.0
      %1882 = vmatpush2.msra.mxu0 0.0
      %1883 = vmatprep.subr.mxu0 0.0
      %1884 = vmatpush2.msra.mxu0 0.0
      %1885 = vmatprep.subr.mxu0 0.0
      %1886 = vmatpush2.msra.mxu0 0.0
      %1887 = vmatprep.subr.mxu0 0.0
      %1888 = vmatpush2.msra.mxu0 0.0
      %1889 = vmatprep.subr.mxu0 0.0
      %1890 = vmatpush2.msra.mxu0 0.0
      %1891 = vmatprep.subr.mxu0 0.0
      %1892 = vmatpush2.msra.mxu0 0.0
      %1893 = vmatprep.subr.mxu0 0.0
      %1894 = vmatpush2.msra.mxu0 0.0
      %1895 = vmatprep.subr.mxu0 0.0
      %1896 = vmatpush2.msra.mxu0 0.0
      %1897 = vmatprep.mubr.f32.mxu0 0.0
      %1898 = vmatmul.mubr.f32.gmra.mxu0 %v1831
      %v1899 = vpop.f32.mrf.mxu0
      %v1900 = vadd.f32 0.0, %v1899
      %v1901 = vpop.f32.mrf.mxu0
      %1902 = vdwg.mxu0
      %v1904 = vsel %vm295, %v1828, 0
      %1906 = vmatprep.subr.mxu0 0.0
      %1907 = vmatpush1.msra.mxu0 0.0
      %1908 = vmatprep.subr.mxu0 0.0
      %1909 = vmatpush1.msra.mxu0 0.0
      %1910 = vmatprep.subr.mxu0 0.0
      %1911 = vmatpush1.msra.mxu0 0.0
      %1912 = vmatprep.subr.mxu0 0.0
      %1913 = vmatpush1.msra.mxu0 0.0
      %1914 = vmatprep.subr.mxu0 0.0
      %1915 = vmatpush1.msra.mxu0 0.0
      %1916 = vmatprep.subr.mxu0 0.0
      %1917 = vmatpush1.msra.mxu0 0.0
      %1918 = vmatprep.subr.mxu0 0.0
      %1919 = vmatpush1.msra.mxu0 0.0
      %1920 = vmatprep.subr.mxu0 0.0
      %1921 = vmatpush1.msra.mxu0 0.0
      %1922 = vmatprep.subr.mxu0 0.0
      %1923 = vmatpush1.msra.mxu0 0.0
      %1924 = vmatprep.subr.mxu0 0.0
      %1925 = vmatpush1.msra.mxu0 0.0
      %1926 = vmatprep.subr.mxu0 0.0
      %1927 = vmatpush1.msra.mxu0 0.0
      %1928 = vmatprep.subr.mxu0 0.0
      %1929 = vmatpush1.msra.mxu0 0.0
      %1930 = vmatprep.subr.mxu0 0.0
      %1931 = vmatpush1.msra.mxu0 %v282
      %1932 = vmatprep.subr.mxu0 0.0
      %1933 = vmatpush1.msra.mxu0 %v281
      %1934 = vmatprep.subr.mxu0 0.0
      %1935 = vmatpush1.msra.mxu0 %v280
      %1936 = vmatprep.subr.mxu0 0.0
      %1937 = vmatpush1.msra.mxu0 %v279
      %1938 = vmatprep.subr.mxu0 0.0
      %1939 = vmatpush2.msra.mxu0 0.0
      %1940 = vmatprep.subr.mxu0 0.0
      %1941 = vmatpush2.msra.mxu0 0.0
      %1942 = vmatprep.subr.mxu0 0.0
      %1943 = vmatpush2.msra.mxu0 0.0
      %1944 = vmatprep.subr.mxu0 0.0
      %1945 = vmatpush2.msra.mxu0 0.0
      %1946 = vmatprep.subr.mxu0 0.0
      %1947 = vmatpush2.msra.mxu0 0.0
      %1948 = vmatprep.subr.mxu0 0.0
      %1949 = vmatpush2.msra.mxu0 0.0
      %1950 = vmatprep.subr.mxu0 0.0
      %1951 = vmatpush2.msra.mxu0 0.0
      %1952 = vmatprep.subr.mxu0 0.0
      %1953 = vmatpush2.msra.mxu0 0.0
      %1954 = vmatprep.subr.mxu0 0.0
      %1955 = vmatpush2.msra.mxu0 0.0
      %1956 = vmatprep.subr.mxu0 0.0
      %1957 = vmatpush2.msra.mxu0 0.0
      %1958 = vmatprep.subr.mxu0 0.0
      %1959 = vmatpush2.msra.mxu0 0.0
      %1960 = vmatprep.subr.mxu0 0.0
      %1961 = vmatpush2.msra.mxu0 0.0
      %1962 = vmatprep.subr.mxu0 0.0
      %1963 = vmatpush2.msra.mxu0 0.0
      %1964 = vmatprep.subr.mxu0 0.0
      %1965 = vmatpush2.msra.mxu0 0.0
      %1966 = vmatprep.subr.mxu0 0.0
      %1967 = vmatpush2.msra.mxu0 0.0
      %1968 = vmatprep.subr.mxu0 0.0
      %1969 = vmatpush2.msra.mxu0 0.0
      %1970 = vmatprep.mubr.f32.mxu0 0.0
      %1971 = vmatmul.mubr.f32.gmra.mxu0 %v1904
      %v1972 = vpop.f32.mrf.mxu0
      %v1973 = vadd.f32 %v1900, %v1972
      %v1974 = vpop.f32.mrf.mxu0
      %1975 = vdwg.mxu0
      %v1976 = vsel %vm295, %v1824, 0
      %1978 = vmatprep.subr.mxu0 0.0
      %1979 = vmatpush1.msra.mxu0 0.0
      %1980 = vmatprep.subr.mxu0 0.0
      %1981 = vmatpush1.msra.mxu0 0.0
      %1982 = vmatprep.subr.mxu0 0.0
      %1983 = vmatpush1.msra.mxu0 0.0
      %1984 = vmatprep.subr.mxu0 0.0
      %1985 = vmatpush1.msra.mxu0 0.0
      %1986 = vmatprep.subr.mxu0 0.0
      %1987 = vmatpush1.msra.mxu0 0.0
      %1988 = vmatprep.subr.mxu0 0.0
      %1989 = vmatpush1.msra.mxu0 0.0
      %1990 = vmatprep.subr.mxu0 0.0
      %1991 = vmatpush1.msra.mxu0 0.0
      %1992 = vmatprep.subr.mxu0 0.0
      %1993 = vmatpush1.msra.mxu0 0.0
      %1994 = vmatprep.subr.mxu0 0.0
      %1995 = vmatpush1.msra.mxu0 0.0
      %1996 = vmatprep.subr.mxu0 0.0
      %1997 = vmatpush1.msra.mxu0 0.0
      %1998 = vmatprep.subr.mxu0 0.0
      %1999 = vmatpush1.msra.mxu0 0.0
      %2000 = vmatprep.subr.mxu0 0.0
      %2001 = vmatpush1.msra.mxu0 0.0
      %2002 = vmatprep.subr.mxu0 0.0
      %2003 = vmatpush1.msra.mxu0 %v290
      %2004 = vmatprep.subr.mxu0 0.0
      %2005 = vmatpush1.msra.mxu0 %v289
      %2006 = vmatprep.subr.mxu0 0.0
      %2007 = vmatpush1.msra.mxu0 %v288
      %2008 = vmatprep.subr.mxu0 0.0
      %2009 = vmatpush1.msra.mxu0 %v287
      %2010 = vmatprep.subr.mxu0 0.0
      %2011 = vmatpush2.msra.mxu0 0.0
      %2012 = vmatprep.subr.mxu0 0.0
      %2013 = vmatpush2.msra.mxu0 0.0
      %2014 = vmatprep.subr.mxu0 0.0
      %2015 = vmatpush2.msra.mxu0 0.0
      %2016 = vmatprep.subr.mxu0 0.0
      %2017 = vmatpush2.msra.mxu0 0.0
      %2018 = vmatprep.subr.mxu0 0.0
      %2019 = vmatpush2.msra.mxu0 0.0
      %2020 = vmatprep.subr.mxu0 0.0
      %2021 = vmatpush2.msra.mxu0 0.0
      %2022 = vmatprep.subr.mxu0 0.0
      %2023 = vmatpush2.msra.mxu0 0.0
      %2024 = vmatprep.subr.mxu0 0.0
      %2025 = vmatpush2.msra.mxu0 0.0
      %2026 = vmatprep.subr.mxu0 0.0
      %2027 = vmatpush2.msra.mxu0 0.0
      %2028 = vmatprep.subr.mxu0 0.0
      %2029 = vmatpush2.msra.mxu0 0.0
      %2030 = vmatprep.subr.mxu0 0.0
      %2031 = vmatpush2.msra.mxu0 0.0
      %2032 = vmatprep.subr.mxu0 0.0
      %2033 = vmatpush2.msra.mxu0 0.0
      %2034 = vmatprep.subr.mxu0 0.0
      %2035 = vmatpush2.msra.mxu0 0.0
      %2036 = vmatprep.subr.mxu0 0.0
      %2037 = vmatpush2.msra.mxu0 0.0
      %2038 = vmatprep.subr.mxu0 0.0
      %2039 = vmatpush2.msra.mxu0 0.0
      %2040 = vmatprep.subr.mxu0 0.0
      %2041 = vmatpush2.msra.mxu0 0.0
      %2042 = vmatprep.mubr.f32.mxu0 0.0
      %2043 = vmatmul.mubr.f32.gmra.mxu0 %v1976
      %v2044 = vpop.f32.mrf.mxu0
      %v2045 = vadd.f32 0.0, %v2044
      %v2046 = vpop.f32.mrf.mxu0
      %2047 = vdwg.mxu0
      %v2048 = vadd.f32 %v1973, %v2045
      %v2049 = vadd.f32 %v2048, %v520
      %v2050 = vsub.f32 0.0, %v2049
      %v2051 = vmul.f32 %v2050, 1.442695
      %v2052 = vpow.pop %v2051
      %v2053 = vadd.f32 %v2052, 1.0
      %v2054 = vrcp.pop %v2053
      %v2055 = vmul.f32 1.0, %v2054
      %v2056 = vtanh.pop %v2049
      %v2057 = vmul.f32 %v2055, %v1815
      %2059 = vrot.lane.b32.xlu0 %v2056, 64
      %v2060 = vpop.permute.xlu0 %2059
      %v2062 = vmul.f32 %v2055, %v2060
      %2064 = vrot.lane.b32.xlu0 %v2062, 32
      %v2065 = vpop.permute.xlu0 %2064
      %v2067 = vadd.f32 %v2057, %v2065
      %v2068 = vtanh.pop %v2067
      %2070 = vrot.lane.b32.xlu0 %v2068, 64
      %v2071 = vpop.permute.xlu0 %2070
      %v2073 = vmul.f32 %v2055, %v2071
      %2075 = vrot.lane.b32.xlu0 %v2073, 32
      %v2076 = vpop.permute.xlu0 %2075
      %2078 = vst.msk [vmem:[%s810] sm:$0x3] %vm551, %v2076
      %2079 = vst.msk [vmem:[%s808] sm:$0x3] %vm554, %v2076
      %v2080 = vld [vmem:[%s293] sm:$0x3]
      %v2081 = vld [vmem:[%s0] sm:$0x3]
      %v2083 = vsel %vm295, %v2081, 0
      %2085 = vmatprep.subr.mxu0 0.0
      %2086 = vmatpush1.msra.mxu0 0.0
      %2087 = vmatprep.subr.mxu0 0.0
      %2088 = vmatpush1.msra.mxu0 0.0
      %2089 = vmatprep.subr.mxu0 0.0
      %2090 = vmatpush1.msra.mxu0 0.0
      %2091 = vmatprep.subr.mxu0 0.0
      %2092 = vmatpush1.msra.mxu0 0.0
      %2093 = vmatprep.subr.mxu0 0.0
      %2094 = vmatpush1.msra.mxu0 0.0
      %2095 = vmatprep.subr.mxu0 0.0
      %2096 = vmatpush1.msra.mxu0 0.0
      %2097 = vmatprep.subr.mxu0 0.0
      %2098 = vmatpush1.msra.mxu0 0.0
      %2099 = vmatprep.subr.mxu0 0.0
      %2100 = vmatpush1.msra.mxu0 0.0
      %2101 = vmatprep.subr.mxu0 0.0
      %2102 = vmatpush1.msra.mxu0 0.0
      %2103 = vmatprep.subr.mxu0 0.0
      %2104 = vmatpush1.msra.mxu0 0.0
      %2105 = vmatprep.subr.mxu0 0.0
      %2106 = vmatpush1.msra.mxu0 0.0
      %2107 = vmatprep.subr.mxu0 0.0
      %2108 = vmatpush1.msra.mxu0 0.0
      %2109 = vmatprep.subr.mxu0 0.0
      %2110 = vmatpush1.msra.mxu0 %v286
      %2111 = vmatprep.subr.mxu0 0.0
      %2112 = vmatpush1.msra.mxu0 %v285
      %2113 = vmatprep.subr.mxu0 0.0
      %2114 = vmatpush1.msra.mxu0 %v284
      %2115 = vmatprep.subr.mxu0 0.0
      %2116 = vmatpush1.msra.mxu0 %v283
      %2117 = vmatprep.subr.mxu0 0.0
      %2118 = vmatpush2.msra.mxu0 0.0
      %2119 = vmatprep.subr.mxu0 0.0
      %2120 = vmatpush2.msra.mxu0 0.0
      %2121 = vmatprep.subr.mxu0 0.0
      %2122 = vmatpush2.msra.mxu0 0.0
      %2123 = vmatprep.subr.mxu0 0.0
      %2124 = vmatpush2.msra.mxu0 0.0
      %2125 = vmatprep.subr.mxu0 0.0
      %2126 = vmatpush2.msra.mxu0 0.0
      %2127 = vmatprep.subr.mxu0 0.0
      %2128 = vmatpush2.msra.mxu0 0.0
      %2129 = vmatprep.subr.mxu0 0.0
      %2130 = vmatpush2.msra.mxu0 0.0
      %2131 = vmatprep.subr.mxu0 0.0
      %2132 = vmatpush2.msra.mxu0 0.0
      %2133 = vmatprep.subr.mxu0 0.0
      %2134 = vmatpush2.msra.mxu0 0.0
      %2135 = vmatprep.subr.mxu0 0.0
      %2136 = vmatpush2.msra.mxu0 0.0
      %2137 = vmatprep.subr.mxu0 0.0
      %2138 = vmatpush2.msra.mxu0 0.0
      %2139 = vmatprep.subr.mxu0 0.0
      %2140 = vmatpush2.msra.mxu0 0.0
      %2141 = vmatprep.subr.mxu0 0.0
      %2142 = vmatpush2.msra.mxu0 0.0
      %2143 = vmatprep.subr.mxu0 0.0
      %2144 = vmatpush2.msra.mxu0 0.0
      %2145 = vmatprep.subr.mxu0 0.0
      %2146 = vmatpush2.msra.mxu0 0.0
      %2147 = vmatprep.subr.mxu0 0.0
      %2148 = vmatpush2.msra.mxu0 0.0
      %2149 = vmatprep.mubr.f32.mxu0 0.0
      %2150 = vmatmul.mubr.f32.gmra.mxu0 %v2083
      %v2151 = vpop.f32.mrf.mxu0
      %v2152 = vadd.f32 0.0, %v2151
      %v2153 = vpop.f32.mrf.mxu0
      %2154 = vdwg.mxu0
      %v2156 = vsel %vm295, %v2080, 0
      %2158 = vmatprep.subr.mxu0 0.0
      %2159 = vmatpush1.msra.mxu0 0.0
      %2160 = vmatprep.subr.mxu0 0.0
      %2161 = vmatpush1.msra.mxu0 0.0
      %2162 = vmatprep.subr.mxu0 0.0
      %2163 = vmatpush1.msra.mxu0 0.0
      %2164 = vmatprep.subr.mxu0 0.0
      %2165 = vmatpush1.msra.mxu0 0.0
      %2166 = vmatprep.subr.mxu0 0.0
      %2167 = vmatpush1.msra.mxu0 0.0
      %2168 = vmatprep.subr.mxu0 0.0
      %2169 = vmatpush1.msra.mxu0 0.0
      %2170 = vmatprep.subr.mxu0 0.0
      %2171 = vmatpush1.msra.mxu0 0.0
      %2172 = vmatprep.subr.mxu0 0.0
      %2173 = vmatpush1.msra.mxu0 0.0
      %2174 = vmatprep.subr.mxu0 0.0
      %2175 = vmatpush1.msra.mxu0 0.0
      %2176 = vmatprep.subr.mxu0 0.0
      %2177 = vmatpush1.msra.mxu0 0.0
      %2178 = vmatprep.subr.mxu0 0.0
      %2179 = vmatpush1.msra.mxu0 0.0
      %2180 = vmatprep.subr.mxu0 0.0
      %2181 = vmatpush1.msra.mxu0 0.0
      %2182 = vmatprep.subr.mxu0 0.0
      %2183 = vmatpush1.msra.mxu0 %v282
      %2184 = vmatprep.subr.mxu0 0.0
      %2185 = vmatpush1.msra.mxu0 %v281
      %2186 = vmatprep.subr.mxu0 0.0
      %2187 = vmatpush1.msra.mxu0 %v280
      %2188 = vmatprep.subr.mxu0 0.0
      %2189 = vmatpush1.msra.mxu0 %v279
      %2190 = vmatprep.subr.mxu0 0.0
      %2191 = vmatpush2.msra.mxu0 0.0
      %2192 = vmatprep.subr.mxu0 0.0
      %2193 = vmatpush2.msra.mxu0 0.0
      %2194 = vmatprep.subr.mxu0 0.0
      %2195 = vmatpush2.msra.mxu0 0.0
      %2196 = vmatprep.subr.mxu0 0.0
      %2197 = vmatpush2.msra.mxu0 0.0
      %2198 = vmatprep.subr.mxu0 0.0
      %2199 = vmatpush2.msra.mxu0 0.0
      %2200 = vmatprep.subr.mxu0 0.0
      %2201 = vmatpush2.msra.mxu0 0.0
      %2202 = vmatprep.subr.mxu0 0.0
      %2203 = vmatpush2.msra.mxu0 0.0
      %2204 = vmatprep.subr.mxu0 0.0
      %2205 = vmatpush2.msra.mxu0 0.0
      %2206 = vmatprep.subr.mxu0 0.0
      %2207 = vmatpush2.msra.mxu0 0.0
      %2208 = vmatprep.subr.mxu0 0.0
      %2209 = vmatpush2.msra.mxu0 0.0
      %2210 = vmatprep.subr.mxu0 0.0
      %2211 = vmatpush2.msra.mxu0 0.0
      %2212 = vmatprep.subr.mxu0 0.0
      %2213 = vmatpush2.msra.mxu0 0.0
      %2214 = vmatprep.subr.mxu0 0.0
      %2215 = vmatpush2.msra.mxu0 0.0
      %2216 = vmatprep.subr.mxu0 0.0
      %2217 = vmatpush2.msra.mxu0 0.0
      %2218 = vmatprep.subr.mxu0 0.0
      %2219 = vmatpush2.msra.mxu0 0.0
      %2220 = vmatprep.subr.mxu0 0.0
      %2221 = vmatpush2.msra.mxu0 0.0
      %2222 = vmatprep.mubr.f32.mxu0 0.0
      %2223 = vmatmul.mubr.f32.gmra.mxu0 %v2156
      %v2224 = vpop.f32.mrf.mxu0
      %v2225 = vadd.f32 %v2152, %v2224
      %v2226 = vpop.f32.mrf.mxu0
      %2227 = vdwg.mxu0
      %v2228 = vsel %vm295, %v2076, 0
      %2230 = vmatprep.subr.mxu0 0.0
      %2231 = vmatpush1.msra.mxu0 0.0
      %2232 = vmatprep.subr.mxu0 0.0
      %2233 = vmatpush1.msra.mxu0 0.0
      %2234 = vmatprep.subr.mxu0 0.0
      %2235 = vmatpush1.msra.mxu0 0.0
      %2236 = vmatprep.subr.mxu0 0.0
      %2237 = vmatpush1.msra.mxu0 0.0
      %2238 = vmatprep.subr.mxu0 0.0
      %2239 = vmatpush1.msra.mxu0 0.0
      %2240 = vmatprep.subr.mxu0 0.0
      %2241 = vmatpush1.msra.mxu0 0.0
      %2242 = vmatprep.subr.mxu0 0.0
      %2243 = vmatpush1.msra.mxu0 0.0
      %2244 = vmatprep.subr.mxu0 0.0
      %2245 = vmatpush1.msra.mxu0 0.0
      %2246 = vmatprep.subr.mxu0 0.0
      %2247 = vmatpush1.msra.mxu0 0.0
      %2248 = vmatprep.subr.mxu0 0.0
      %2249 = vmatpush1.msra.mxu0 0.0
      %2250 = vmatprep.subr.mxu0 0.0
      %2251 = vmatpush1.msra.mxu0 0.0
      %2252 = vmatprep.subr.mxu0 0.0
      %2253 = vmatpush1.msra.mxu0 0.0
      %2254 = vmatprep.subr.mxu0 0.0
      %2255 = vmatpush1.msra.mxu0 %v290
      %2256 = vmatprep.subr.mxu0 0.0
      %2257 = vmatpush1.msra.mxu0 %v289
      %2258 = vmatprep.subr.mxu0 0.0
      %2259 = vmatpush1.msra.mxu0 %v288
      %2260 = vmatprep.subr.mxu0 0.0
      %2261 = vmatpush1.msra.mxu0 %v287
      %2262 = vmatprep.subr.mxu0 0.0
      %2263 = vmatpush2.msra.mxu0 0.0
      %2264 = vmatprep.subr.mxu0 0.0
      %2265 = vmatpush2.msra.mxu0 0.0
      %2266 = vmatprep.subr.mxu0 0.0
      %2267 = vmatpush2.msra.mxu0 0.0
      %2268 = vmatprep.subr.mxu0 0.0
      %2269 = vmatpush2.msra.mxu0 0.0
      %2270 = vmatprep.subr.mxu0 0.0
      %2271 = vmatpush2.msra.mxu0 0.0
      %2272 = vmatprep.subr.mxu0 0.0
      %2273 = vmatpush2.msra.mxu0 0.0
      %2274 = vmatprep.subr.mxu0 0.0
      %2275 = vmatpush2.msra.mxu0 0.0
      %2276 = vmatprep.subr.mxu0 0.0
      %2277 = vmatpush2.msra.mxu0 0.0
      %2278 = vmatprep.subr.mxu0 0.0
      %2279 = vmatpush2.msra.mxu0 0.0
      %2280 = vmatprep.subr.mxu0 0.0
      %2281 = vmatpush2.msra.mxu0 0.0
      %2282 = vmatprep.subr.mxu0 0.0
      %2283 = vmatpush2.msra.mxu0 0.0
      %2284 = vmatprep.subr.mxu0 0.0
      %2285 = vmatpush2.msra.mxu0 0.0
      %2286 = vmatprep.subr.mxu0 0.0
      %2287 = vmatpush2.msra.mxu0 0.0
      %2288 = vmatprep.subr.mxu0 0.0
      %2289 = vmatpush2.msra.mxu0 0.0
      %2290 = vmatprep.subr.mxu0 0.0
      %2291 = vmatpush2.msra.mxu0 0.0
      %2292 = vmatprep.subr.mxu0 0.0
      %2293 = vmatpush2.msra.mxu0 0.0
      %2294 = vmatprep.mubr.f32.mxu0 0.0
      %2295 = vmatmul.mubr.f32.gmra.mxu0 %v2228
      %v2296 = vpop.f32.mrf.mxu0
      %v2297 = vadd.f32 0.0, %v2296
      %v2298 = vpop.f32.mrf.mxu0
      %2299 = vdwg.mxu0
      %v2300 = vadd.f32 %v2225, %v2297
      %v2301 = vadd.f32 %v2300, %v520
      %v2302 = vsub.f32 0.0, %v2301
      %v2303 = vmul.f32 %v2302, 1.442695
      %v2304 = vpow.pop %v2303
      %v2305 = vadd.f32 %v2304, 1.0
      %v2306 = vrcp.pop %v2305
      %v2307 = vmul.f32 1.0, %v2306
      %v2308 = vtanh.pop %v2301
      %v2309 = vmul.f32 %v2307, %v2067
      %2311 = vrot.lane.b32.xlu0 %v2308, 64
      %v2312 = vpop.permute.xlu0 %2311
      %v2314 = vmul.f32 %v2307, %v2312
      %2316 = vrot.lane.b32.xlu0 %v2314, 32
      %v2317 = vpop.permute.xlu0 %2316
      %v2319 = vadd.f32 %v2309, %v2317
      %v2320 = vtanh.pop %v2319
      %2322 = vrot.lane.b32.xlu0 %v2320, 64
      %v2323 = vpop.permute.xlu0 %2322
      %v2325 = vmul.f32 %v2307, %v2323
      %2327 = vrot.lane.b32.xlu0 %v2325, 32
      %v2328 = vpop.permute.xlu0 %2327
      %2330 = vst.msk [vmem:[%s553] sm:$0x3] %vm551, %v2328
      %2331 = vst.msk [vmem:[%s278] sm:$0x3] %vm554, %v2328
      %p2332 = scmp.lt.s32.totalorder %s16, 1
      %s2333 = scalar_select %p2332, %s16, 1
      %s2334 = smul.addr %s2333, 8
      %s2335 = smul.addr %s2334, 2
      %s2336 = scalar_lea.vmem %s5, %s2335
      // Predicated region
      $region41: #{tmodel_forward.4} parent=39 // pred_check
        %p2337 = pneg %p159
      $region42: #{tmodel_forward.4} parent=39 // pred_check_branch
        %2339 = sbr.rel (%p2337) target = $region44
      $region43: #{tmodel_forward.4} parent=39 // pred_region
        _
      $region44: #{tmodel_forward.4} parent=39 // pred_fallthru
        _
    $region40: #{tmodel_forward.4} parent=5 // pred_fallthru
      _
    %p2340 = scmp.le.s32.totalorder 2, %s11
    // Predicated region
    $region45: #{tmodel_forward.4} parent=5 // pred_check
      %p2341 = pneg %p2340
    $region46: #{tmodel_forward.4} parent=5 // pred_check_branch
      %2343 = sbr.rel (%p2341) target = $region48
    $region47: #{tmodel_forward.4} parent=5 // pred_region
      %s2344 = ssub.s32 %s11, 2
      // Predicated region
      $region49: #{tmodel_forward.4} parent=47 // pred_check
        %p2345 = pneg %p165
      $region50: #{tmodel_forward.4} parent=47 // pred_check_branch
        %2347 = sbr.rel (%p2345) target = $region52
      $region51: #{tmodel_forward.4} parent=47 // pred_region
        %p2348 = scmp.lt.s32.totalorder %s17, 1
        %s2349 = scalar_select %p2348, %s17, 1
        %s2350 = smul.addr %s2349, 8
        %s2351 = smul.addr %s2350, 2
        %s2352 = scalar_lea.vmem %s5, %s2351
      $region52: #{tmodel_forward.4} parent=47 // pred_fallthru
        _
    $region48: #{tmodel_forward.4} parent=5 // pred_fallthru
      _
  $region6: #{tmodel_forward.4} parent=0 // loop_footer
    %s15 = sadd.s32 1, %s11
  $region7: #{tmodel_forward.4} parent=0 // loop_footer_branch
    %10 = sbr.rel target = $region3
  $region8: #{tmodel_forward.4} parent=0 // loop_exit
    _

</llo_original>
